<compile_context>
chip_gen: v6e
topology: v6e:2x2x1
jax: 0.10.0
libtpu: 0.0.40
codegen_flags: <defaults>
</compile_context>

<pallas_src>
import jax
import jax.numpy as jnp
from jax import lax
from jax.experimental import pallas as pl
from jax.experimental.pallas import tpu as pltpu

C = 256            # in_channels / out_channels (hard-coded by the module)
N_PROP = 64        # num_proposals (hard-coded by DySepConvAtten / calcualcentroid)
N_HEADS = 8
HEAD_DIM = C // N_HEADS
N_GROUPS = 32
FFN_DIM = 512      # hidden width of the (undefined) Ffn stand-in
LN_EPS = 1e-5
GN_EPS = 1e-5

# rows of the packed (VEC_ROWS, C) f32 per-channel-vector constant
GN_G, GN_B = 0, 1
FNORM_G, FNORM_B = 2, 3
FAN_G, FAN_B = 4, 5
SAN_G, SAN_B = 6, 7
FFNN_G, FFNN_B = 8, 9
B_Q, B_K, B_V, B_O = 10, 11, 12, 13
B_CAT, B_FMASK, FFN_B2 = 14, 15, 16
MLN_G0, MLN_B0, MLN_G1, MLN_B1, MLN_G2, MLN_B2 = 17, 18, 19, 20, 21, 22
EDGE_LO, EDGE_HI = 23, 24
VEC_ROWS = 32      # padded to a sublane multiple


def _mm(a, b):
    """bf16 x bf16 MXU matmul with f32 accumulation."""
    return jnp.dot(a.astype(jnp.bfloat16), b.astype(jnp.bfloat16),
                   preferred_element_type=jnp.float32)


# ----------------------------------------------------------------------------
# single fused kernel: one grid step == one batch element
# ----------------------------------------------------------------------------
def kuh_fused_kernel(
    # batched per-image inputs (bf16)
    x_ref, gm_ref, bias_ref, prop_ref,
    # shared weights
    loc_w_ref, gn_mat_ref, hsel_ref,
    fcomb_w_ref, fcomb_b_ref,
    wqkv_ref, wo_ref,
    ffn_w1_ref, ffn_b1_ref, ffn_w2_ref,
    wcat_ref, wm_ref, wfm_ref, vecs_ref,
    # outputs
    mask_out_ref, feat_out_ref,
):
    f32 = jnp.float32
    bf16 = jnp.bfloat16

    def vrow(i):                                    # (1, C) f32 packed vector row
        return vecs_ref[i:i + 1]

    def layernorm(x, gi, bi, eps=LN_EPS):
        # single-pass: E[x], E[x^2] -> var (clamped >= 0); no (x-mu) temp before reduce
        m = jnp.mean(x, axis=-1, keepdims=True)
        ex2 = jnp.mean(x * x, axis=-1, keepdims=True)
        var = jnp.maximum(ex2 - m * m, 0.0)
        return (x - m) * lax.rsqrt(var + eps) * vrow(gi) + vrow(bi)

    # ---- loc_convs: 1x1 conv (no bias) -> GroupNorm(32, C) -> ReLU ------------
    x = x_ref[0]                                              # (HW, C) bf16
    y = jnp.dot(x, loc_w_ref[...], preferred_element_type=f32)  # (HW, C) f32 accum
    hw = y.shape[0]
    inv_count = 1.0 / float(hw * (C // N_GROUPS))
    s = jnp.sum(y, axis=0, keepdims=True)                     # (1, C) per-channel sums
    ss = jnp.sum(y * y, axis=0, keepdims=True)
    # group-membership matrix turns per-channel sums into per-group stats
    mean = jnp.dot(s.astype(bf16), gn_mat_ref[...],
                   preferred_element_type=f32) * inv_count
    ex2 = jnp.dot(ss.astype(bf16), gn_mat_ref[...],
                  preferred_element_type=f32) * inv_count
    var = jnp.maximum(ex2 - mean * mean, 0.0)                 # clamp cancellation error
    x_loc = (y - mean) * lax.rsqrt(var + GN_EPS) * vrow(GN_G) + vrow(GN_B)
    x_loc = jnp.maximum(x_loc, 0.0)
    x_loc_bf = x_loc.astype(bf16)

    # ---- topk_feats = einsum('bchw,bnhw->bnc'): mask(N,HW) @ x_loc(HW,C) -------
    topk = jnp.dot(gm_ref[0], x_loc_bf, preferred_element_type=f32)   # (N, C) f32
    n = topk.shape[0]

    # ---- f_atten = DySepConvAtten(proposal_feat, topk) + residual + norm -------
    qp = prop_ref[0]                                          # (N, C) bf16 query
    # fused projection: [point(64) | depth(3) | pad] in one lane-dense matmul
    comb = jnp.dot(qp, fcomb_w_ref[...], preferred_element_type=f32) + fcomb_b_ref[...]
    point_w = comb[:, :N_PROP]                                # (N, N)
    w0 = comb[:, N_PROP:N_PROP + 1]
    w1 = comb[:, N_PROP + 1:N_PROP + 2]
    w2 = comb[:, N_PROP + 2:N_PROP + 3]
    # edge masks come from the packed constant (no in-kernel iota / compares)
    v_prev = pltpu.roll(topk, shift=1, axis=1) * vrow(EDGE_LO)
    v_next = pltpu.roll(topk, shift=C - 1, axis=1) * vrow(EDGE_HI)
    depth_out = jnp.maximum(w0 * v_prev + w1 * topk + w2 * v_next, 0.0)
    point_out = _mm(point_w, depth_out)                       # (N, C)
    f_tmp = layernorm(point_out, FNORM_G, FNORM_B)            # DySepConvAtten.norm
    feats = layernorm(topk + f_tmp, FAN_G, FAN_B)             # f_atten_norm

    # ---- s_atten: 8-head attention with geometric bias ------------------------
    # query-side block-diagonal layout: q_bd[h*N+n, :] = q[n, :] masked to head h's
    # 32 channels.  sc is then (8N, N) with heads along rows, so the softmax is an
    # exact per-head row softmax (per-head max, denominator >= 1 -> no NaN path).
    xb = feats.astype(bf16)
    qkv = jnp.dot(xb, wqkv_ref[...], preferred_element_type=f32)      # (N, 3C)
    scale = 1.0 / (HEAD_DIM ** 0.5)
    q = (qkv[:, :C] + vrow(B_Q)) * scale                              # fold qk scale into q
    k = qkv[:, C:2 * C] + vrow(B_K)
    v = qkv[:, 2 * C:] + vrow(B_V)
    q_bd = jnp.concatenate(
        [(q * hsel_ref[h:h + 1]).astype(bf16) for h in range(N_HEADS)],
        axis=0)                                                        # (8N, C) bf16
    sc = lax.dot_general(q_bd, k.astype(bf16), (((1,), (1,)), ((), ())),
                         preferred_element_type=f32)                  # (8N, N)
    sc = sc + bias_ref[0]                                             # log(geo) + key mask
    sc = sc - jnp.max(sc, axis=-1, keepdims=True)                     # per-head row max
    e = jnp.exp(sc)
    den = jnp.sum(e, axis=-1, keepdims=True)                          # >= 1 by construction
    p = (e * pl.reciprocal(den, approx=True)).astype(bf16)            # (8N, N) bf16
    attn_bd = jnp.dot(p, v.astype(bf16), preferred_element_type=f32)  # (8N, C) f32
    # pick head h's 32 output channels from row block h and sum the disjoint blocks
    attn = attn_bd[0:n] * hsel_ref[0:1]
    for h in range(1, N_HEADS):
        attn = attn + attn_bd[h * n:(h + 1) * n] * hsel_ref[h:h + 1]
    y_att = _mm(attn, wo_ref[...]) + vrow(B_O)
    feats = layernorm(feats + y_att, SAN_G, SAN_B)                    # s_atten_norm

    # ---- ffn_pre (Linear-ReLU-Linear + residual) + ffn_norm_pre ---------------
    h1 = jnp.maximum(_mm(feats, ffn_w1_ref[...]) + ffn_b1_ref[...], 0.0)
    y_ffn = _mm(h1, ffn_w2_ref[...]) + vrow(FFN_B2)
    feats = layernorm(feats + y_ffn, FFNN_G, FFNN_B)

    # ---- zero_conv(feats) + one_conv(proposal_feat) fused into one matmul ------
    cat_in = jnp.concatenate([feats.astype(bf16), qp], axis=-1)       # (N, 2C) bf16
    fm = jnp.dot(cat_in, wcat_ref[...], preferred_element_type=f32) + vrow(B_CAT)
    # ---- mask_fcs x3 (Linear no-bias + LayerNorm + ReLU) + fc_mask -------------
    for i in range(3):
        fm = _mm(fm, wm_ref[i])
        fm = layernorm(fm, MLN_G0 + 2 * i, MLN_B0 + 2 * i)
        fm = jnp.maximum(fm, 0.0)
    mask_feat = _mm(fm, wfm_ref[...]) + vrow(B_FMASK)
    feat_out_ref[0] = mask_feat

    # ---- new_mask_preds = einsum('bchw,bnc->bnhw'): mask_feat @ x_loc^T --------
    mask_out_ref[0] = lax.dot_general(
        mask_feat.astype(bf16), x_loc_bf, (((1,), (1,)), ((), ())),
        preferred_element_type=f32)                                    # (N, HW)


# ----------------------------------------------------------------------------
# pallas_call wrapper: grid over batch, whole per-image blocks, weights shared
# ----------------------------------------------------------------------------
def _batched_spec(shape):
    nd = len(shape)
    return pl.BlockSpec((1,) + tuple(shape[1:]),
                        lambda b, _nd=nd: (b,) + (0,) * (_nd - 1))


def _shared_spec(shape):
    nd = len(shape)
    return pl.BlockSpec(tuple(shape), lambda b, _nd=nd: (0,) * _nd)


_WEIGHT_ORDER = (
    'loc_w', 'gn_mat', 'hsel',
    'fcomb_w', 'fcomb_b',
    'wqkv', 'wo',
    'ffn_w1', 'ffn_b1', 'ffn_w2',
    'wcat', 'wm', 'wfm', 'vecs',
)


def fused_head(params, x_flat, gm_flat, bias_flat, proposal_feat):
    b, hw, _ = x_flat.shape
    n = proposal_feat.shape[1]
    batched = [x_flat, gm_flat, bias_flat, proposal_feat]
    weights = [params[k] for k in _WEIGHT_ORDER]
    in_specs = ([_batched_spec(a.shape) for a in batched]
                + [_shared_spec(w.shape) for w in weights])
    out_shape = (jax.ShapeDtypeStruct((b, n, hw), jnp.float32),
                 jax.ShapeDtypeStruct((b, n, C), jnp.float32))
    out_specs = (_batched_spec((b, n, hw)), _batched_spec((b, n, C)))
    return pl.pallas_call(
        kuh_fused_kernel,
        grid=(b,),
        in_specs=in_specs,
        out_specs=out_specs,
        out_shape=out_shape,
        compiler_params=pltpu.CompilerParams(
            dimension_semantics=("parallel",),          # v7x: one image per TC
            vmem_limit_bytes=32 * 1024 * 1024),
    )(*batched, *weights)


# ----------------------------------------------------------------------------
# plain-JAX glue (mirrors the PyTorch helpers)
# ----------------------------------------------------------------------------
def bilinear_resize(x, out_h, out_w):
    """F.interpolate(mode='bilinear', align_corners=False) for (B, N, H, W)."""
    _, _, h, w = x.shape

    def idx(out_len, in_len):
        scale = in_len / out_len
        src = (jnp.arange(out_len, dtype=jnp.float32) + 0.5) * scale - 0.5
        src = jnp.maximum(src, 0.0)
        i0 = jnp.clip(jnp.floor(src).astype(jnp.int32), 0, in_len - 1)
        i1 = jnp.clip(i0 + 1, 0, in_len - 1)
        frac = src - i0.astype(jnp.float32)
        return i0, i1, frac

    h0, h1, fh = idx(out_h, h)
    w0, w1, fw = idx(out_w, w)
    x = (x[:, :, h0, :] * (1.0 - fh)[None, None, :, None]
         + x[:, :, h1, :] * fh[None, None, :, None])
    x = (x[:, :, :, w0] * (1.0 - fw)[None, None, None, :]
         + x[:, :, :, w1] * fw[None, None, None, :])
    return x


def calcual_centroid(gather_mask, aattn_mask):
    """JAX version of calcualcentroid (with the early `break` semantics)."""
    _, _, h, w = gather_mask.shape
    m = jnp.where(gather_mask >= 0.5, 1.0, 0.0)
    attn_sum = jnp.sum(m, axis=(-2, -1)) + 1e-5
    ih = jnp.arange(h, dtype=jnp.float32)
    jw = jnp.arange(w, dtype=jnp.float32)
    h_i = jnp.einsum('bnhw,h->bn', m, ih) / attn_sum
    w_j = jnp.einsum('bnhw,w->bn', m, jw) / attn_sum
    hh = jnp.sum((jnp.sum(m, axis=-1) > 0).astype(jnp.float32), axis=-1)
    ww = jnp.sum((jnp.sum(m, axis=-2) > 0).astype(jnp.float32), axis=-1)
    info = jnp.stack([h_i, w_j, hh, ww], axis=-1)               # (B, N, 4)
    valid = jnp.cumprod((aattn_mask != 0).astype(jnp.float32), axis=1)
    return info * valid[..., None]


def box_relational_embedding(f_g, dim_g=64, wave_len=1000.0):
    b, n, _ = f_g.shape
    cx, cy, w, h = jnp.split(f_g, 4, axis=-1)
    w = w + 1.0
    h = h + 1.0
    delta_x = jnp.log(jnp.maximum(jnp.abs((cx - jnp.reshape(cx, (b, 1, n))) / w), 0.001))
    delta_y = jnp.log(jnp.maximum(jnp.abs((cy - jnp.reshape(cy, (b, 1, n))) / h), 0.001))
    delta_w = jnp.log(w / jnp.reshape(w, (b, 1, n)))
    delta_h = jnp.log(h / jnp.reshape(h, (b, 1, n)))
    pos = jnp.stack([delta_x, delta_y, delta_w, delta_h], axis=-1)   # (B,N,N,4)
    feat_range = jnp.arange(dim_g // 8, dtype=jnp.float32)
    dim_mat = 1.0 / jnp.power(wave_len, feat_range / (dim_g / 8.0))  # (8,)
    mul = (100.0 * pos)[..., None] * dim_mat                         # (B,N,N,4,8)
    mul = mul.reshape(b, n, n, -1)                                   # (B,N,N,32)
    return jnp.concatenate([jnp.sin(mul), jnp.cos(mul)], axis=-1)    # (B,N,N,64)


def box_attention_weights(info, wg_w, wg_b):
    """BoxMultiHeadedAttention.forward: 8 Linear(64,1) heads + ReLU -> (B,8,N,N)."""
    emb = box_relational_embedding(info)
    w = jnp.einsum('bijg,gh->bijh', emb, wg_w) + wg_b
    w = jnp.maximum(w, 0.0)
    return jnp.transpose(w, (0, 3, 1, 2))


# ----------------------------------------------------------------------------
# full forward pass
# ----------------------------------------------------------------------------
@jax.jit
def kernel_update_head_forward(params, x, proposal_feat, mask_preds,
                               attn_mask, attn_mask1, aattn_mask, ori_text_feat):
    # TODO(synk): attn_mask1 / ori_text_feat semantics are undefined in the reference;
    #             only attn_mask is applied (as a key mask on the attention logits).
    del ori_text_feat, attn_mask1
    b, c_in, h, w = x.shape
    n = proposal_feat.shape[1]
    hw = h * w

    # layout: NCHW -> (B, HW, C), bf16 (halves HBM DMA; MXU consumers use bf16 anyway)
    x_flat = jnp.transpose(x, (0, 2, 3, 1)).reshape(b, hw, c_in).astype(jnp.bfloat16)

    # gather mask (sigmoid -> hard threshold at 0.5); 0/1 is exact in bf16
    mh, mw = mask_preds.shape[-2:]
    gm = mask_preds if (mh, mw) == (h, w) else bilinear_resize(mask_preds, h, w)
    gm = (jax.nn.sigmoid(gm) > 0.5).astype(jnp.float32)             # (B, N, H, W)

    # centroid info -> relative geometry attention bias (host glue, f32)
    info = calcual_centroid(gm, aattn_mask)                         # (B, N, 4)
    geo = box_attention_weights(info, params['wg_w'], params['wg_b'])   # (B, 8, N, N)
    attn_bias = jnp.log(jnp.maximum(geo, 1e-6))
    key_mask = (attn_mask != 0).astype(jnp.float32)                 # (B, N)
    attn_bias = attn_bias + jnp.where(key_mask[:, None, None, :] > 0, 0.0, -1e9)
    # kernel layout: bias_flat[b, h*N + n, m] (matches the query-side block-diag sc)
    bias_flat = attn_bias.reshape(b, N_HEADS * n, n).astype(jnp.bfloat16)

    gm_flat = gm.reshape(b, n, hw).astype(jnp.bfloat16)

    # fused per-image chain (loc_convs ... mask prediction) in one pallas_call
    new_mask, mask_feat = fused_head(params, x_flat, gm_flat, bias_flat,
                                     proposal_feat.astype(jnp.bfloat16))

    new_mask = new_mask.reshape(b, n, h, w)
    # mask_transform_stride == 2 -> bilinear upsample x2 (align_corners=False)
    new_mask = bilinear_resize(new_mask, 2 * h, 2 * w)
    return new_mask, mask_feat


# ----------------------------------------------------------------------------
# deterministic synthetic parameters (shapes follow __init__)
# ----------------------------------------------------------------------------
def init_params(key):
    ks = iter(jax.random.split(key, 32))

    def nrm(shape, std=0.02):
        return jax.random.normal(next(ks), shape, jnp.float32) * std

    bf = jnp.bfloat16
    p = {}
    # loc_convs: Conv2d(256,256,1,bias=False) + GroupNorm(32,256)
    p['loc_w'] = nrm((C, C)).astype(bf)
    gid = jnp.arange(C) // (C // N_GROUPS)
    p['gn_mat'] = (gid[:, None] == gid[None, :]).astype(bf)          # 0/1 exact in bf16
    # head-channel selector: hsel[h, c] = 1 iff c belongs to head h (8 KiB constant)
    hid = jnp.arange(C) // HEAD_DIM
    p['hsel'] = (hid[None, :] == jnp.arange(N_HEADS)[:, None]).astype(jnp.float32)
    # DySepConvAtten: weight_linear(256 -> 64 + 3), packed as [point(64) | depth(3) | pad]
    fcomb = jnp.zeros((C, 128), jnp.float32)
    fcomb = fcomb.at[:, :N_PROP].set(nrm((C, N_PROP)))
    fcomb = fcomb.at[:, N_PROP:N_PROP + 3].set(nrm((C, 3)))
    p['fcomb_w'] = fcomb.astype(bf)
    p['fcomb_b'] = jnp.zeros((1, 128), jnp.float32)
    # SelfAttention(256,256,256,8) stand-in: fused QKV + output projection
    p['wqkv'] = jnp.concatenate([nrm((C, C)), nrm((C, C)), nrm((C, C))], axis=1).astype(bf)
    p['wo'] = nrm((C, C)).astype(bf)
    # Ffn stand-in + ffn_norm_pre
    p['ffn_w1'] = nrm((C, FFN_DIM)).astype(bf)
    p['ffn_b1'] = jnp.zeros((1, FFN_DIM), jnp.float32)
    p['ffn_w2'] = nrm((FFN_DIM, C)).astype(bf)
    # zero_conv (zeros) stacked with one_conv (identity) -> single (2C, C) matmul
    wz = jnp.zeros((C, C), jnp.float32)
    wone = jnp.eye(C, dtype=jnp.float32)
    p['wcat'] = jnp.concatenate([wz, wone], axis=0).astype(bf)
    # mask_fcs: 3 x (Linear no-bias + LayerNorm) then fc_mask
    p['wm'] = nrm((3, C, C)).astype(bf)
    p['wfm'] = nrm((C, C)).astype(bf)
    # packed per-channel vectors: LN/GN gamma (=1) & beta (=0), linear biases (=0),
    # DySepConv edge masks
    vecs = jnp.zeros((VEC_ROWS, C), jnp.float32)
    ones = jnp.ones((C,), jnp.float32)
    for gi in (GN_G, FNORM_G, FAN_G, SAN_G, FFNN_G, MLN_G0, MLN_G1, MLN_G2):
        vecs = vecs.at[gi].set(ones)
    vecs = vecs.at[EDGE_LO].set(ones.at[0].set(0.0))
    vecs = vecs.at[EDGE_HI].set(ones.at[C - 1].set(0.0))
    p['vecs'] = vecs
    # BoxMultiHeadedAttention WGs: 8 x Linear(64, 1) (host-side glue)
    p['wg_w'] = nrm((64, 8))
    p['wg_b'] = jnp.zeros((8,), jnp.float32)
    return p


if __name__ == "__main__":
    key = jax.random.PRNGKey(0)
    B, H, W = 2, 16, 16
    k1, k2, k3, kp = jax.random.split(key, 4)

    x = jax.random.normal(k1, (B, C, H, W), jnp.float32)              # NCHW, like PyTorch
    proposal_feat = jax.random.normal(k2, (B, N_PROP, C), jnp.float32)
    mask_preds = jax.random.normal(k3, (B, N_PROP, H, W), jnp.float32)
    attn_mask = jnp.ones((B, N_PROP), jnp.float32)
    attn_mask1 = jnp.ones((B, N_PROP), jnp.float32)
    aattn_mask = jnp.tile((jnp.arange(N_PROP) < 40).astype(jnp.float32)[None, :], (B, 1))
    ori_text_feat = jnp.zeros((B, N_PROP, C), jnp.float32)            # unused by forward

    params = init_params(kp)

    new_mask_preds, mask_feat = kernel_update_head_forward(
        params, x, proposal_feat, mask_preds, attn_mask, attn_mask1, aattn_mask, ori_text_feat)
    jax.block_until_ready((new_mask_preds, mask_feat))

    assert new_mask_preds.shape == (B, N_PROP, 2 * H, 2 * W)
    assert mask_feat.shape == (B, N_PROP, C)
    assert bool(jnp.all(jnp.isfinite(new_mask_preds))) and bool(jnp.all(jnp.isfinite(mask_feat)))
    print("KERNEL_OK")
</pallas_src>

<mosaic_0001>
module attributes {stable_mosaic.version = 11 : i64} {
  func.func @kuh_fused_kernel(%arg0: i32, %arg1: memref<1x256x256xbf16, #tpu.memory_space<vmem>>, %arg2: memref<1x64x256xbf16, #tpu.memory_space<vmem>>, %arg3: memref<1x512x64xbf16, #tpu.memory_space<vmem>>, %arg4: memref<1x64x256xbf16, #tpu.memory_space<vmem>>, %arg5: memref<256x256xbf16, #tpu.memory_space<vmem>>, %arg6: memref<256x256xbf16, #tpu.memory_space<vmem>>, %arg7: memref<8x256xf32, #tpu.memory_space<vmem>>, %arg8: memref<256x128xbf16, #tpu.memory_space<vmem>>, %arg9: memref<1x128xf32, #tpu.memory_space<vmem>>, %arg10: memref<256x768xbf16, #tpu.memory_space<vmem>>, %arg11: memref<256x256xbf16, #tpu.memory_space<vmem>>, %arg12: memref<256x512xbf16, #tpu.memory_space<vmem>>, %arg13: memref<1x512xf32, #tpu.memory_space<vmem>>, %arg14: memref<512x256xbf16, #tpu.memory_space<vmem>>, %arg15: memref<512x256xbf16, #tpu.memory_space<vmem>>, %arg16: memref<3x256x256xbf16, #tpu.memory_space<vmem>>, %arg17: memref<256x256xbf16, #tpu.memory_space<vmem>>, %arg18: memref<32x256xf32, #tpu.memory_space<vmem>>, %arg19: memref<1x64x256xf32, #tpu.memory_space<vmem>>, %arg20: memref<1x64x256xf32, #tpu.memory_space<vmem>>) attributes {dimension_semantics = [#tpu.dimension_semantics<parallel>], iteration_bounds = array<i64: 2>, scalar_prefetch = 0 : i64, scratch_operands = 0 : i64, tpu.core_type = #tpu.core_type<tc>, window_params = [{transform_indices = @transform_0, window_bounds = array<i64: 1, 256, 256>}, {transform_indices = @transform_1, window_bounds = array<i64: 1, 64, 256>}, {transform_indices = @transform_2, window_bounds = array<i64: 1, 512, 64>}, {transform_indices = @transform_3, window_bounds = array<i64: 1, 64, 256>}, {pipeline_mode = #tpu.pipeline_mode<synchronous>, transform_indices = @transform_4, window_bounds = array<i64: 256, 256>}, {pipeline_mode = #tpu.pipeline_mode<synchronous>, transform_indices = @transform_5, window_bounds = array<i64: 256, 256>}, {pipeline_mode = #tpu.pipeline_mode<synchronous>, transform_indices = @transform_6, window_bounds = array<i64: 8, 256>}, {pipeline_mode = #tpu.pipeline_mode<synchronous>, transform_indices = @transform_7, window_bounds = array<i64: 256, 128>}, {pipeline_mode = #tpu.pipeline_mode<synchronous>, transform_indices = @transform_8, window_bounds = array<i64: 1, 128>}, {pipeline_mode = #tpu.pipeline_mode<synchronous>, transform_indices = @transform_9, window_bounds = array<i64: 256, 768>}, {pipeline_mode = #tpu.pipeline_mode<synchronous>, transform_indices = @transform_10, window_bounds = array<i64: 256, 256>}, {pipeline_mode = #tpu.pipeline_mode<synchronous>, transform_indices = @transform_11, window_bounds = array<i64: 256, 512>}, {pipeline_mode = #tpu.pipeline_mode<synchronous>, transform_indices = @transform_12, window_bounds = array<i64: 1, 512>}, {pipeline_mode = #tpu.pipeline_mode<synchronous>, transform_indices = @transform_13, window_bounds = array<i64: 512, 256>}, {pipeline_mode = #tpu.pipeline_mode<synchronous>, transform_indices = @transform_14, window_bounds = array<i64: 512, 256>}, {pipeline_mode = #tpu.pipeline_mode<synchronous>, transform_indices = @transform_15, window_bounds = array<i64: 3, 256, 256>}, {pipeline_mode = #tpu.pipeline_mode<synchronous>, transform_indices = @transform_16, window_bounds = array<i64: 256, 256>}, {pipeline_mode = #tpu.pipeline_mode<synchronous>, transform_indices = @transform_17, window_bounds = array<i64: 32, 256>}, {transform_indices = @transform_18, window_bounds = array<i64: 1, 64, 256>}, {transform_indices = @transform_19, window_bounds = array<i64: 1, 64, 256>}]} {
    %c0 = arith.constant 0 : index
    %c0_0 = arith.constant 0 : index
    %c0_1 = arith.constant 0 : index
    %0 = vector.load %arg1[%c0, %c0_0, %c0_1] : memref<1x256x256xbf16, #tpu.memory_space<vmem>>, vector<1x256x256xbf16>
    %1 = vector.shape_cast %0 : vector<1x256x256xbf16> to vector<256x256xbf16>
    %c0_2 = arith.constant 0 : index
    %c0_3 = arith.constant 0 : index
    %2 = vector.load %arg5[%c0_2, %c0_3] : memref<256x256xbf16, #tpu.memory_space<vmem>>, vector<256x256xbf16>
    %cst = arith.constant dense<0.000000e+00> : vector<256x256xf32>
    %3 = tpu.matmul %1, %2, %cst {dimension_numbers = #tpu.dot_dimension_numbers<[1], [0], [0], [1], [0, 0, 1, 1], [], []>} : vector<256x256xbf16>, vector<256x256xbf16>, vector<256x256xf32> -> vector<256x256xf32>
    %cst_4 = arith.constant dense<0.000000e+00> : vector<256xf32>
    %4 = vector.multi_reduction <add>, %3, %cst_4 [0] : vector<256x256xf32> to vector<256xf32>
    %5 = vector.shape_cast %4 : vector<256xf32> to vector<1x256xf32>
    %6 = arith.mulf %3, %3 : vector<256x256xf32>
    %cst_5 = arith.constant dense<0.000000e+00> : vector<256xf32>
    %7 = vector.multi_reduction <add>, %6, %cst_5 [0] : vector<256x256xf32> to vector<256xf32>
    %8 = vector.shape_cast %7 : vector<256xf32> to vector<1x256xf32>
    %9 = arith.truncf %5 : vector<1x256xf32> to vector<1x256xbf16>
    %c0_6 = arith.constant 0 : index
    %c0_7 = arith.constant 0 : index
    %10 = vector.load %arg6[%c0_6, %c0_7] : memref<256x256xbf16, #tpu.memory_space<vmem>>, vector<256x256xbf16>
    %cst_8 = arith.constant dense<0.000000e+00> : vector<1x256xf32>
    %11 = tpu.matmul %9, %10, %cst_8 {dimension_numbers = #tpu.dot_dimension_numbers<[1], [0], [0], [1], [0, 0, 1, 1], [], []>} : vector<1x256xbf16>, vector<256x256xbf16>, vector<1x256xf32> -> vector<1x256xf32>
    %cst_9 = arith.constant 4.8828125E-4 : f32
    %12 = vector.broadcast %cst_9 : f32 to vector<1x256xf32>
    %13 = arith.mulf %11, %12 : vector<1x256xf32>
    %14 = arith.truncf %8 : vector<1x256xf32> to vector<1x256xbf16>
    %c0_10 = arith.constant 0 : index
    %c0_11 = arith.constant 0 : index
    %15 = vector.load %arg6[%c0_10, %c0_11] : memref<256x256xbf16, #tpu.memory_space<vmem>>, vector<256x256xbf16>
    %cst_12 = arith.constant dense<0.000000e+00> : vector<1x256xf32>
    %16 = tpu.matmul %14, %15, %cst_12 {dimension_numbers = #tpu.dot_dimension_numbers<[1], [0], [0], [1], [0, 0, 1, 1], [], []>} : vector<1x256xbf16>, vector<256x256xbf16>, vector<1x256xf32> -> vector<1x256xf32>
    %cst_13 = arith.constant 4.8828125E-4 : f32
    %17 = vector.broadcast %cst_13 : f32 to vector<1x256xf32>
    %18 = arith.mulf %16, %17 : vector<1x256xf32>
    %19 = arith.mulf %13, %13 : vector<1x256xf32>
    %20 = arith.subf %18, %19 : vector<1x256xf32>
    %cst_14 = arith.constant 0.000000e+00 : f32
    %21 = vector.broadcast %cst_14 : f32 to vector<1x256xf32>
    %22 = arith.maximumf %20, %21 : vector<1x256xf32>
    %23 = vector.broadcast %13 : vector<1x256xf32> to vector<256x256xf32>
    %24 = arith.subf %3, %23 : vector<256x256xf32>
    %cst_15 = arith.constant 9.99999974E-6 : f32
    %25 = vector.broadcast %cst_15 : f32 to vector<1x256xf32>
    %26 = arith.addf %22, %25 : vector<1x256xf32>
    %27 = math.rsqrt %26 : vector<1x256xf32>
    %28 = vector.broadcast %27 : vector<1x256xf32> to vector<256x256xf32>
    %29 = arith.mulf %24, %28 : vector<256x256xf32>
    %c0_16 = arith.constant 0 : index
    %c0_17 = arith.constant 0 : index
    %30 = vector.load %arg18[%c0_16, %c0_17] : memref<32x256xf32, #tpu.memory_space<vmem>>, vector<1x256xf32>
    %31 = vector.broadcast %30 : vector<1x256xf32> to vector<256x256xf32>
    %32 = arith.mulf %29, %31 : vector<256x256xf32>
    %c1 = arith.constant 1 : index
    %c0_18 = arith.constant 0 : index
    %33 = vector.load %arg18[%c1, %c0_18] : memref<32x256xf32, #tpu.memory_space<vmem>>, vector<1x256xf32>
    %34 = vector.broadcast %33 : vector<1x256xf32> to vector<256x256xf32>
    %35 = arith.addf %32, %34 : vector<256x256xf32>
    %cst_19 = arith.constant 0.000000e+00 : f32
    %36 = vector.broadcast %cst_19 : f32 to vector<256x256xf32>
    %37 = arith.maximumf %35, %36 : vector<256x256xf32>
    %38 = arith.truncf %37 : vector<256x256xf32> to vector<256x256xbf16>
    %c0_20 = arith.constant 0 : index
    %c0_21 = arith.constant 0 : index
    %c0_22 = arith.constant 0 : index
    %39 = vector.load %arg2[%c0_20, %c0_21, %c0_22] : memref<1x64x256xbf16, #tpu.memory_space<vmem>>, vector<1x64x256xbf16>
    %40 = vector.shape_cast %39 : vector<1x64x256xbf16> to vector<64x256xbf16>
    %cst_23 = arith.constant dense<0.000000e+00> : vector<64x256xf32>
    %41 = tpu.matmul %40, %38, %cst_23 {dimension_numbers = #tpu.dot_dimension_numbers<[1], [0], [0], [1], [0, 0, 1, 1], [], []>} : vector<64x256xbf16>, vector<256x256xbf16>, vector<64x256xf32> -> vector<64x256xf32>
    %c0_24 = arith.constant 0 : index
    %c0_25 = arith.constant 0 : index
    %c0_26 = arith.constant 0 : index
    %42 = vector.load %arg4[%c0_24, %c0_25, %c0_26] : memref<1x64x256xbf16, #tpu.memory_space<vmem>>, vector<1x64x256xbf16>
    %43 = vector.shape_cast %42 : vector<1x64x256xbf16> to vector<64x256xbf16>
    %c0_27 = arith.constant 0 : index
    %c0_28 = arith.constant 0 : index
    %44 = vector.load %arg8[%c0_27, %c0_28] : memref<256x128xbf16, #tpu.memory_space<vmem>>, vector<256x128xbf16>
    %cst_29 = arith.constant dense<0.000000e+00> : vector<64x128xf32>
    %45 = tpu.matmul %43, %44, %cst_29 {dimension_numbers = #tpu.dot_dimension_numbers<[1], [0], [0], [1], [0, 0, 1, 1], [], []>} : vector<64x256xbf16>, vector<256x128xbf16>, vector<64x128xf32> -> vector<64x128xf32>
    %c0_30 = arith.constant 0 : index
    %c0_31 = arith.constant 0 : index
    %46 = vector.load %arg9[%c0_30, %c0_31] : memref<1x128xf32, #tpu.memory_space<vmem>>, vector<1x128xf32>
    %47 = vector.broadcast %46 : vector<1x128xf32> to vector<64x128xf32>
    %48 = arith.addf %45, %47 : vector<64x128xf32>
    %49 = vector.extract_strided_slice %48 {offsets = [0, 0], sizes = [64, 64], strides = [1, 1]} : vector<64x128xf32> to vector<64x64xf32>
    %50 = vector.extract_strided_slice %48 {offsets = [0, 64], sizes = [64, 1], strides = [1, 1]} : vector<64x128xf32> to vector<64x1xf32>
    %51 = vector.extract_strided_slice %48 {offsets = [0, 65], sizes = [64, 1], strides = [1, 1]} : vector<64x128xf32> to vector<64x1xf32>
    %52 = vector.extract_strided_slice %48 {offsets = [0, 66], sizes = [64, 1], strides = [1, 1]} : vector<64x128xf32> to vector<64x1xf32>
    %c1_i32 = arith.constant 1 : i32
    %53 = tpu.dynamic_rotate %41 by %c1_i32 dim 1 : vector<64x256xf32>, i32 -> vector<64x256xf32>
    %c23 = arith.constant 23 : index
    %c0_32 = arith.constant 0 : index
    %54 = vector.load %arg18[%c23, %c0_32] : memref<32x256xf32, #tpu.memory_space<vmem>>, vector<1x256xf32>
    %55 = vector.broadcast %54 : vector<1x256xf32> to vector<64x256xf32>
    %56 = arith.mulf %53, %55 : vector<64x256xf32>
    %c255_i32 = arith.constant 255 : i32
    %57 = tpu.dynamic_rotate %41 by %c255_i32 dim 1 : vector<64x256xf32>, i32 -> vector<64x256xf32>
    %c24 = arith.constant 24 : index
    %c0_33 = arith.constant 0 : index
    %58 = vector.load %arg18[%c24, %c0_33] : memref<32x256xf32, #tpu.memory_space<vmem>>, vector<1x256xf32>
    %59 = vector.broadcast %58 : vector<1x256xf32> to vector<64x256xf32>
    %60 = arith.mulf %57, %59 : vector<64x256xf32>
    %61 = vector.broadcast %50 : vector<64x1xf32> to vector<64x256xf32>
    %62 = arith.mulf %61, %56 : vector<64x256xf32>
    %63 = vector.broadcast %51 : vector<64x1xf32> to vector<64x256xf32>
    %64 = arith.mulf %63, %41 : vector<64x256xf32>
    %65 = arith.addf %62, %64 : vector<64x256xf32>
    %66 = vector.broadcast %52 : vector<64x1xf32> to vector<64x256xf32>
    %67 = arith.mulf %66, %60 : vector<64x256xf32>
    %68 = arith.addf %65, %67 : vector<64x256xf32>
    %cst_34 = arith.constant 0.000000e+00 : f32
    %69 = vector.broadcast %cst_34 : f32 to vector<64x256xf32>
    %70 = arith.maximumf %68, %69 : vector<64x256xf32>
    %71 = arith.truncf %49 : vector<64x64xf32> to vector<64x64xbf16>
    %72 = arith.truncf %70 : vector<64x256xf32> to vector<64x256xbf16>
    %cst_35 = arith.constant dense<0.000000e+00> : vector<64x256xf32>
    %73 = tpu.matmul %71, %72, %cst_35 {dimension_numbers = #tpu.dot_dimension_numbers<[1], [0], [0], [1], [0, 0, 1, 1], [], []>} : vector<64x64xbf16>, vector<64x256xbf16>, vector<64x256xf32> -> vector<64x256xf32>
    %cst_36 = arith.constant dense<0.000000e+00> : vector<64xf32>
    %74 = vector.multi_reduction <add>, %73, %cst_36 [1] : vector<64x256xf32> to vector<64xf32>
    %75 = vector.shape_cast %74 : vector<64xf32> to vector<64x1xf32>
    %cst_37 = arith.constant 2.560000e+02 : f32
    %76 = vector.broadcast %cst_37 : f32 to vector<64x1xf32>
    %77 = arith.divf %75, %76 : vector<64x1xf32>
    %78 = arith.mulf %73, %73 : vector<64x256xf32>
    %cst_38 = arith.constant dense<0.000000e+00> : vector<64xf32>
    %79 = vector.multi_reduction <add>, %78, %cst_38 [1] : vector<64x256xf32> to vector<64xf32>
    %80 = vector.shape_cast %79 : vector<64xf32> to vector<64x1xf32>
    %cst_39 = arith.constant 2.560000e+02 : f32
    %81 = vector.broadcast %cst_39 : f32 to vector<64x1xf32>
    %82 = arith.divf %80, %81 : vector<64x1xf32>
    %83 = arith.mulf %77, %77 : vector<64x1xf32>
    %84 = arith.subf %82, %83 : vector<64x1xf32>
    %cst_40 = arith.constant 0.000000e+00 : f32
    %85 = vector.broadcast %cst_40 : f32 to vector<64x1xf32>
    %86 = arith.maximumf %84, %85 : vector<64x1xf32>
    %87 = vector.broadcast %77 : vector<64x1xf32> to vector<64x256xf32>
    %88 = arith.subf %73, %87 : vector<64x256xf32>
    %cst_41 = arith.constant 9.99999974E-6 : f32
    %89 = vector.broadcast %cst_41 : f32 to vector<64x1xf32>
    %90 = arith.addf %86, %89 : vector<64x1xf32>
    %91 = math.rsqrt %90 : vector<64x1xf32>
    %92 = vector.broadcast %91 : vector<64x1xf32> to vector<64x256xf32>
    %93 = arith.mulf %88, %92 : vector<64x256xf32>
    %c2 = arith.constant 2 : index
    %c0_42 = arith.constant 0 : index
    %94 = vector.load %arg18[%c2, %c0_42] : memref<32x256xf32, #tpu.memory_space<vmem>>, vector<1x256xf32>
    %95 = vector.broadcast %94 : vector<1x256xf32> to vector<64x256xf32>
    %96 = arith.mulf %93, %95 : vector<64x256xf32>
    %c3 = arith.constant 3 : index
    %c0_43 = arith.constant 0 : index
    %97 = vector.load %arg18[%c3, %c0_43] : memref<32x256xf32, #tpu.memory_space<vmem>>, vector<1x256xf32>
    %98 = vector.broadcast %97 : vector<1x256xf32> to vector<64x256xf32>
    %99 = arith.addf %96, %98 : vector<64x256xf32>
    %100 = arith.addf %41, %99 : vector<64x256xf32>
    %cst_44 = arith.constant dense<0.000000e+00> : vector<64xf32>
    %101 = vector.multi_reduction <add>, %100, %cst_44 [1] : vector<64x256xf32> to vector<64xf32>
    %102 = vector.shape_cast %101 : vector<64xf32> to vector<64x1xf32>
    %cst_45 = arith.constant 2.560000e+02 : f32
    %103 = vector.broadcast %cst_45 : f32 to vector<64x1xf32>
    %104 = arith.divf %102, %103 : vector<64x1xf32>
    %105 = arith.mulf %100, %100 : vector<64x256xf32>
    %cst_46 = arith.constant dense<0.000000e+00> : vector<64xf32>
    %106 = vector.multi_reduction <add>, %105, %cst_46 [1] : vector<64x256xf32> to vector<64xf32>
    %107 = vector.shape_cast %106 : vector<64xf32> to vector<64x1xf32>
    %cst_47 = arith.constant 2.560000e+02 : f32
    %108 = vector.broadcast %cst_47 : f32 to vector<64x1xf32>
    %109 = arith.divf %107, %108 : vector<64x1xf32>
    %110 = arith.mulf %104, %104 : vector<64x1xf32>
    %111 = arith.subf %109, %110 : vector<64x1xf32>
    %cst_48 = arith.constant 0.000000e+00 : f32
    %112 = vector.broadcast %cst_48 : f32 to vector<64x1xf32>
    %113 = arith.maximumf %111, %112 : vector<64x1xf32>
    %114 = vector.broadcast %104 : vector<64x1xf32> to vector<64x256xf32>
    %115 = arith.subf %100, %114 : vector<64x256xf32>
    %cst_49 = arith.constant 9.99999974E-6 : f32
    %116 = vector.broadcast %cst_49 : f32 to vector<64x1xf32>
    %117 = arith.addf %113, %116 : vector<64x1xf32>
    %118 = math.rsqrt %117 : vector<64x1xf32>
    %119 = vector.broadcast %118 : vector<64x1xf32> to vector<64x256xf32>
    %120 = arith.mulf %115, %119 : vector<64x256xf32>
    %c4 = arith.constant 4 : index
    %c0_50 = arith.constant 0 : index
    %121 = vector.load %arg18[%c4, %c0_50] : memref<32x256xf32, #tpu.memory_space<vmem>>, vector<1x256xf32>
    %122 = vector.broadcast %121 : vector<1x256xf32> to vector<64x256xf32>
    %123 = arith.mulf %120, %122 : vector<64x256xf32>
    %c5 = arith.constant 5 : index
    %c0_51 = arith.constant 0 : index
    %124 = vector.load %arg18[%c5, %c0_51] : memref<32x256xf32, #tpu.memory_space<vmem>>, vector<1x256xf32>
    %125 = vector.broadcast %124 : vector<1x256xf32> to vector<64x256xf32>
    %126 = arith.addf %123, %125 : vector<64x256xf32>
    %127 = arith.truncf %126 : vector<64x256xf32> to vector<64x256xbf16>
    %c0_52 = arith.constant 0 : index
    %c0_53 = arith.constant 0 : index
    %128 = vector.load %arg10[%c0_52, %c0_53] : memref<256x768xbf16, #tpu.memory_space<vmem>>, vector<256x768xbf16>
    %cst_54 = arith.constant dense<0.000000e+00> : vector<64x768xf32>
    %129 = tpu.matmul %127, %128, %cst_54 {dimension_numbers = #tpu.dot_dimension_numbers<[1], [0], [0], [1], [0, 0, 1, 1], [], []>} : vector<64x256xbf16>, vector<256x768xbf16>, vector<64x768xf32> -> vector<64x768xf32>
    %130 = vector.extract_strided_slice %129 {offsets = [0, 0], sizes = [64, 256], strides = [1, 1]} : vector<64x768xf32> to vector<64x256xf32>
    %c10 = arith.constant 10 : index
    %c0_55 = arith.constant 0 : index
    %131 = vector.load %arg18[%c10, %c0_55] : memref<32x256xf32, #tpu.memory_space<vmem>>, vector<1x256xf32>
    %132 = vector.broadcast %131 : vector<1x256xf32> to vector<64x256xf32>
    %133 = arith.addf %130, %132 : vector<64x256xf32>
    %cst_56 = arith.constant 0.176776692 : f32
    %134 = vector.broadcast %cst_56 : f32 to vector<64x256xf32>
    %135 = arith.mulf %133, %134 : vector<64x256xf32>
    %136 = vector.extract_strided_slice %129 {offsets = [0, 256], sizes = [64, 256], strides = [1, 1]} : vector<64x768xf32> to vector<64x256xf32>
    %c11 = arith.constant 11 : index
    %c0_57 = arith.constant 0 : index
    %137 = vector.load %arg18[%c11, %c0_57] : memref<32x256xf32, #tpu.memory_space<vmem>>, vector<1x256xf32>
    %138 = vector.broadcast %137 : vector<1x256xf32> to vector<64x256xf32>
    %139 = arith.addf %136, %138 : vector<64x256xf32>
    %140 = vector.extract_strided_slice %129 {offsets = [0, 512], sizes = [64, 256], strides = [1, 1]} : vector<64x768xf32> to vector<64x256xf32>
    %c12 = arith.constant 12 : index
    %c0_58 = arith.constant 0 : index
    %141 = vector.load %arg18[%c12, %c0_58] : memref<32x256xf32, #tpu.memory_space<vmem>>, vector<1x256xf32>
    %142 = vector.broadcast %141 : vector<1x256xf32> to vector<64x256xf32>
    %143 = arith.addf %140, %142 : vector<64x256xf32>
    %c0_59 = arith.constant 0 : index
    %c0_60 = arith.constant 0 : index
    %144 = vector.load %arg7[%c0_59, %c0_60] : memref<8x256xf32, #tpu.memory_space<vmem>>, vector<1x256xf32>
    %145 = vector.broadcast %144 : vector<1x256xf32> to vector<64x256xf32>
    %146 = arith.mulf %135, %145 : vector<64x256xf32>
    %147 = arith.truncf %146 : vector<64x256xf32> to vector<64x256xbf16>
    %c1_61 = arith.constant 1 : index
    %c0_62 = arith.constant 0 : index
    %148 = vector.load %arg7[%c1_61, %c0_62] : memref<8x256xf32, #tpu.memory_space<vmem>>, vector<1x256xf32>
    %149 = vector.broadcast %148 : vector<1x256xf32> to vector<64x256xf32>
    %150 = arith.mulf %135, %149 : vector<64x256xf32>
    %151 = arith.truncf %150 : vector<64x256xf32> to vector<64x256xbf16>
    %c2_63 = arith.constant 2 : index
    %c0_64 = arith.constant 0 : index
    %152 = vector.load %arg7[%c2_63, %c0_64] : memref<8x256xf32, #tpu.memory_space<vmem>>, vector<1x256xf32>
    %153 = vector.broadcast %152 : vector<1x256xf32> to vector<64x256xf32>
    %154 = arith.mulf %135, %153 : vector<64x256xf32>
    %155 = arith.truncf %154 : vector<64x256xf32> to vector<64x256xbf16>
    %c3_65 = arith.constant 3 : index
    %c0_66 = arith.constant 0 : index
    %156 = vector.load %arg7[%c3_65, %c0_66] : memref<8x256xf32, #tpu.memory_space<vmem>>, vector<1x256xf32>
    %157 = vector.broadcast %156 : vector<1x256xf32> to vector<64x256xf32>
    %158 = arith.mulf %135, %157 : vector<64x256xf32>
    %159 = arith.truncf %158 : vector<64x256xf32> to vector<64x256xbf16>
    %c4_67 = arith.constant 4 : index
    %c0_68 = arith.constant 0 : index
    %160 = vector.load %arg7[%c4_67, %c0_68] : memref<8x256xf32, #tpu.memory_space<vmem>>, vector<1x256xf32>
    %161 = vector.broadcast %160 : vector<1x256xf32> to vector<64x256xf32>
    %162 = arith.mulf %135, %161 : vector<64x256xf32>
    %163 = arith.truncf %162 : vector<64x256xf32> to vector<64x256xbf16>
    %c5_69 = arith.constant 5 : index
    %c0_70 = arith.constant 0 : index
    %164 = vector.load %arg7[%c5_69, %c0_70] : memref<8x256xf32, #tpu.memory_space<vmem>>, vector<1x256xf32>
    %165 = vector.broadcast %164 : vector<1x256xf32> to vector<64x256xf32>
    %166 = arith.mulf %135, %165 : vector<64x256xf32>
    %167 = arith.truncf %166 : vector<64x256xf32> to vector<64x256xbf16>
    %c6 = arith.constant 6 : index
    %c0_71 = arith.constant 0 : index
    %168 = vector.load %arg7[%c6, %c0_71] : memref<8x256xf32, #tpu.memory_space<vmem>>, vector<1x256xf32>
    %169 = vector.broadcast %168 : vector<1x256xf32> to vector<64x256xf32>
    %170 = arith.mulf %135, %169 : vector<64x256xf32>
    %171 = arith.truncf %170 : vector<64x256xf32> to vector<64x256xbf16>
    %c7 = arith.constant 7 : index
    %c0_72 = arith.constant 0 : index
    %172 = vector.load %arg7[%c7, %c0_72] : memref<8x256xf32, #tpu.memory_space<vmem>>, vector<1x256xf32>
    %173 = vector.broadcast %172 : vector<1x256xf32> to vector<64x256xf32>
    %174 = arith.mulf %135, %173 : vector<64x256xf32>
    %175 = arith.truncf %174 : vector<64x256xf32> to vector<64x256xbf16>
    %176 = tpu.concatenate %147, %151, %155, %159, %163, %167, %171, %175 in 0 : vector<64x256xbf16>, vector<64x256xbf16>, vector<64x256xbf16>, vector<64x256xbf16>, vector<64x256xbf16>, vector<64x256xbf16>, vector<64x256xbf16>, vector<64x256xbf16> -> vector<512x256xbf16>
    %177 = arith.truncf %139 : vector<64x256xf32> to vector<64x256xbf16>
    %cst_73 = arith.constant dense<0.000000e+00> : vector<512x64xf32>
    %178 = tpu.matmul %176, %177, %cst_73 {dimension_numbers = #tpu.dot_dimension_numbers<[1], [1], [0], [0], [0, 0, 1, 0], [], []>} : vector<512x256xbf16>, vector<64x256xbf16>, vector<512x64xf32> -> vector<512x64xf32>
    %c0_74 = arith.constant 0 : index
    %c0_75 = arith.constant 0 : index
    %c0_76 = arith.constant 0 : index
    %179 = vector.load %arg3[%c0_74, %c0_75, %c0_76] : memref<1x512x64xbf16, #tpu.memory_space<vmem>>, vector<1x512x64xbf16>
    %180 = vector.shape_cast %179 : vector<1x512x64xbf16> to vector<512x64xbf16>
    %181 = arith.extf %180 : vector<512x64xbf16> to vector<512x64xf32>
    %182 = arith.addf %178, %181 : vector<512x64xf32>
    %cst_77 = arith.constant dense<0xFF800000> : vector<512xf32>
    %183 = vector.multi_reduction <maximumf>, %182, %cst_77 [1] : vector<512x64xf32> to vector<512xf32>
    %184 = vector.shape_cast %183 : vector<512xf32> to vector<512x1xf32>
    %185 = vector.broadcast %184 : vector<512x1xf32> to vector<512x64xf32>
    %186 = arith.subf %182, %185 : vector<512x64xf32>
    %187 = math.exp %186 : vector<512x64xf32>
    %cst_78 = arith.constant dense<0.000000e+00> : vector<512xf32>
    %188 = vector.multi_reduction <add>, %187, %cst_78 [1] : vector<512x64xf32> to vector<512xf32>
    %189 = vector.shape_cast %188 : vector<512xf32> to vector<512x1xf32>
    %190 = tpu.reciprocal %189 {approx = true} : vector<512x1xf32> -> vector<512x1xf32>
    %191 = vector.broadcast %190 : vector<512x1xf32> to vector<512x64xf32>
    %192 = arith.mulf %187, %191 : vector<512x64xf32>
    %193 = arith.truncf %192 : vector<512x64xf32> to vector<512x64xbf16>
    %194 = arith.truncf %143 : vector<64x256xf32> to vector<64x256xbf16>
    %cst_79 = arith.constant dense<0.000000e+00> : vector<512x256xf32>
    %195 = tpu.matmul %193, %194, %cst_79 {dimension_numbers = #tpu.dot_dimension_numbers<[1], [0], [0], [1], [0, 0, 1, 1], [], []>} : vector<512x64xbf16>, vector<64x256xbf16>, vector<512x256xf32> -> vector<512x256xf32>
    %196 = vector.extract_strided_slice %195 {offsets = [0, 0], sizes = [64, 256], strides = [1, 1]} : vector<512x256xf32> to vector<64x256xf32>
    %c0_80 = arith.constant 0 : index
    %c0_81 = arith.constant 0 : index
    %197 = vector.load %arg7[%c0_80, %c0_81] : memref<8x256xf32, #tpu.memory_space<vmem>>, vector<1x256xf32>
    %198 = vector.broadcast %197 : vector<1x256xf32> to vector<64x256xf32>
    %199 = arith.mulf %196, %198 : vector<64x256xf32>
    %200 = vector.extract_strided_slice %195 {offsets = [64, 0], sizes = [64, 256], strides = [1, 1]} : vector<512x256xf32> to vector<64x256xf32>
    %c1_82 = arith.constant 1 : index
    %c0_83 = arith.constant 0 : index
    %201 = vector.load %arg7[%c1_82, %c0_83] : memref<8x256xf32, #tpu.memory_space<vmem>>, vector<1x256xf32>
    %202 = vector.broadcast %201 : vector<1x256xf32> to vector<64x256xf32>
    %203 = arith.mulf %200, %202 : vector<64x256xf32>
    %204 = arith.addf %199, %203 : vector<64x256xf32>
    %205 = vector.extract_strided_slice %195 {offsets = [128, 0], sizes = [64, 256], strides = [1, 1]} : vector<512x256xf32> to vector<64x256xf32>
    %c2_84 = arith.constant 2 : index
    %c0_85 = arith.constant 0 : index
    %206 = vector.load %arg7[%c2_84, %c0_85] : memref<8x256xf32, #tpu.memory_space<vmem>>, vector<1x256xf32>
    %207 = vector.broadcast %206 : vector<1x256xf32> to vector<64x256xf32>
    %208 = arith.mulf %205, %207 : vector<64x256xf32>
    %209 = arith.addf %204, %208 : vector<64x256xf32>
    %210 = vector.extract_strided_slice %195 {offsets = [192, 0], sizes = [64, 256], strides = [1, 1]} : vector<512x256xf32> to vector<64x256xf32>
    %c3_86 = arith.constant 3 : index
    %c0_87 = arith.constant 0 : index
    %211 = vector.load %arg7[%c3_86, %c0_87] : memref<8x256xf32, #tpu.memory_space<vmem>>, vector<1x256xf32>
    %212 = vector.broadcast %211 : vector<1x256xf32> to vector<64x256xf32>
    %213 = arith.mulf %210, %212 : vector<64x256xf32>
    %214 = arith.addf %209, %213 : vector<64x256xf32>
    %215 = vector.extract_strided_slice %195 {offsets = [256, 0], sizes = [64, 256], strides = [1, 1]} : vector<512x256xf32> to vector<64x256xf32>
    %c4_88 = arith.constant 4 : index
    %c0_89 = arith.constant 0 : index
    %216 = vector.load %arg7[%c4_88, %c0_89] : memref<8x256xf32, #tpu.memory_space<vmem>>, vector<1x256xf32>
    %217 = vector.broadcast %216 : vector<1x256xf32> to vector<64x256xf32>
    %218 = arith.mulf %215, %217 : vector<64x256xf32>
    %219 = arith.addf %214, %218 : vector<64x256xf32>
    %220 = vector.extract_strided_slice %195 {offsets = [320, 0], sizes = [64, 256], strides = [1, 1]} : vector<512x256xf32> to vector<64x256xf32>
    %c5_90 = arith.constant 5 : index
    %c0_91 = arith.constant 0 : index
    %221 = vector.load %arg7[%c5_90, %c0_91] : memref<8x256xf32, #tpu.memory_space<vmem>>, vector<1x256xf32>
    %222 = vector.broadcast %221 : vector<1x256xf32> to vector<64x256xf32>
    %223 = arith.mulf %220, %222 : vector<64x256xf32>
    %224 = arith.addf %219, %223 : vector<64x256xf32>
    %225 = vector.extract_strided_slice %195 {offsets = [384, 0], sizes = [64, 256], strides = [1, 1]} : vector<512x256xf32> to vector<64x256xf32>
    %c6_92 = arith.constant 6 : index
    %c0_93 = arith.constant 0 : index
    %226 = vector.load %arg7[%c6_92, %c0_93] : memref<8x256xf32, #tpu.memory_space<vmem>>, vector<1x256xf32>
    %227 = vector.broadcast %226 : vector<1x256xf32> to vector<64x256xf32>
    %228 = arith.mulf %225, %227 : vector<64x256xf32>
    %229 = arith.addf %224, %228 : vector<64x256xf32>
    %230 = vector.extract_strided_slice %195 {offsets = [448, 0], sizes = [64, 256], strides = [1, 1]} : vector<512x256xf32> to vector<64x256xf32>
    %c7_94 = arith.constant 7 : index
    %c0_95 = arith.constant 0 : index
    %231 = vector.load %arg7[%c7_94, %c0_95] : memref<8x256xf32, #tpu.memory_space<vmem>>, vector<1x256xf32>
    %232 = vector.broadcast %231 : vector<1x256xf32> to vector<64x256xf32>
    %233 = arith.mulf %230, %232 : vector<64x256xf32>
    %234 = arith.addf %229, %233 : vector<64x256xf32>
    %c0_96 = arith.constant 0 : index
    %c0_97 = arith.constant 0 : index
    %235 = vector.load %arg11[%c0_96, %c0_97] : memref<256x256xbf16, #tpu.memory_space<vmem>>, vector<256x256xbf16>
    %236 = arith.truncf %234 : vector<64x256xf32> to vector<64x256xbf16>
    %cst_98 = arith.constant dense<0.000000e+00> : vector<64x256xf32>
    %237 = tpu.matmul %236, %235, %cst_98 {dimension_numbers = #tpu.dot_dimension_numbers<[1], [0], [0], [1], [0, 0, 1, 1], [], []>} : vector<64x256xbf16>, vector<256x256xbf16>, vector<64x256xf32> -> vector<64x256xf32>
    %c13 = arith.constant 13 : index
    %c0_99 = arith.constant 0 : index
    %238 = vector.load %arg18[%c13, %c0_99] : memref<32x256xf32, #tpu.memory_space<vmem>>, vector<1x256xf32>
    %239 = vector.broadcast %238 : vector<1x256xf32> to vector<64x256xf32>
    %240 = arith.addf %237, %239 : vector<64x256xf32>
    %241 = arith.addf %126, %240 : vector<64x256xf32>
    %cst_100 = arith.constant dense<0.000000e+00> : vector<64xf32>
    %242 = vector.multi_reduction <add>, %241, %cst_100 [1] : vector<64x256xf32> to vector<64xf32>
    %243 = vector.shape_cast %242 : vector<64xf32> to vector<64x1xf32>
    %cst_101 = arith.constant 2.560000e+02 : f32
    %244 = vector.broadcast %cst_101 : f32 to vector<64x1xf32>
    %245 = arith.divf %243, %244 : vector<64x1xf32>
    %246 = arith.mulf %241, %241 : vector<64x256xf32>
    %cst_102 = arith.constant dense<0.000000e+00> : vector<64xf32>
    %247 = vector.multi_reduction <add>, %246, %cst_102 [1] : vector<64x256xf32> to vector<64xf32>
    %248 = vector.shape_cast %247 : vector<64xf32> to vector<64x1xf32>
    %cst_103 = arith.constant 2.560000e+02 : f32
    %249 = vector.broadcast %cst_103 : f32 to vector<64x1xf32>
    %250 = arith.divf %248, %249 : vector<64x1xf32>
    %251 = arith.mulf %245, %245 : vector<64x1xf32>
    %252 = arith.subf %250, %251 : vector<64x1xf32>
    %cst_104 = arith.constant 0.000000e+00 : f32
    %253 = vector.broadcast %cst_104 : f32 to vector<64x1xf32>
    %254 = arith.maximumf %252, %253 : vector<64x1xf32>
    %255 = vector.broadcast %245 : vector<64x1xf32> to vector<64x256xf32>
    %256 = arith.subf %241, %255 : vector<64x256xf32>
    %cst_105 = arith.constant 9.99999974E-6 : f32
    %257 = vector.broadcast %cst_105 : f32 to vector<64x1xf32>
    %258 = arith.addf %254, %257 : vector<64x1xf32>
    %259 = math.rsqrt %258 : vector<64x1xf32>
    %260 = vector.broadcast %259 : vector<64x1xf32> to vector<64x256xf32>
    %261 = arith.mulf %256, %260 : vector<64x256xf32>
    %c6_106 = arith.constant 6 : index
    %c0_107 = arith.constant 0 : index
    %262 = vector.load %arg18[%c6_106, %c0_107] : memref<32x256xf32, #tpu.memory_space<vmem>>, vector<1x256xf32>
    %263 = vector.broadcast %262 : vector<1x256xf32> to vector<64x256xf32>
    %264 = arith.mulf %261, %263 : vector<64x256xf32>
    %c7_108 = arith.constant 7 : index
    %c0_109 = arith.constant 0 : index
    %265 = vector.load %arg18[%c7_108, %c0_109] : memref<32x256xf32, #tpu.memory_space<vmem>>, vector<1x256xf32>
    %266 = vector.broadcast %265 : vector<1x256xf32> to vector<64x256xf32>
    %267 = arith.addf %264, %266 : vector<64x256xf32>
    %c0_110 = arith.constant 0 : index
    %c0_111 = arith.constant 0 : index
    %268 = vector.load %arg12[%c0_110, %c0_111] : memref<256x512xbf16, #tpu.memory_space<vmem>>, vector<256x512xbf16>
    %269 = arith.truncf %267 : vector<64x256xf32> to vector<64x256xbf16>
    %cst_112 = arith.constant dense<0.000000e+00> : vector<64x512xf32>
    %270 = tpu.matmul %269, %268, %cst_112 {dimension_numbers = #tpu.dot_dimension_numbers<[1], [0], [0], [1], [0, 0, 1, 1], [], []>} : vector<64x256xbf16>, vector<256x512xbf16>, vector<64x512xf32> -> vector<64x512xf32>
    %c0_113 = arith.constant 0 : index
    %c0_114 = arith.constant 0 : index
    %271 = vector.load %arg13[%c0_113, %c0_114] : memref<1x512xf32, #tpu.memory_space<vmem>>, vector<1x512xf32>
    %272 = vector.broadcast %271 : vector<1x512xf32> to vector<64x512xf32>
    %273 = arith.addf %270, %272 : vector<64x512xf32>
    %cst_115 = arith.constant 0.000000e+00 : f32
    %274 = vector.broadcast %cst_115 : f32 to vector<64x512xf32>
    %275 = arith.maximumf %273, %274 : vector<64x512xf32>
    %c0_116 = arith.constant 0 : index
    %c0_117 = arith.constant 0 : index
    %276 = vector.load %arg14[%c0_116, %c0_117] : memref<512x256xbf16, #tpu.memory_space<vmem>>, vector<512x256xbf16>
    %277 = arith.truncf %275 : vector<64x512xf32> to vector<64x512xbf16>
    %cst_118 = arith.constant dense<0.000000e+00> : vector<64x256xf32>
    %278 = tpu.matmul %277, %276, %cst_118 {dimension_numbers = #tpu.dot_dimension_numbers<[1], [0], [0], [1], [0, 0, 1, 1], [], []>} : vector<64x512xbf16>, vector<512x256xbf16>, vector<64x256xf32> -> vector<64x256xf32>
    %c16 = arith.constant 16 : index
    %c0_119 = arith.constant 0 : index
    %279 = vector.load %arg18[%c16, %c0_119] : memref<32x256xf32, #tpu.memory_space<vmem>>, vector<1x256xf32>
    %280 = vector.broadcast %279 : vector<1x256xf32> to vector<64x256xf32>
    %281 = arith.addf %278, %280 : vector<64x256xf32>
    %282 = arith.addf %267, %281 : vector<64x256xf32>
    %cst_120 = arith.constant dense<0.000000e+00> : vector<64xf32>
    %283 = vector.multi_reduction <add>, %282, %cst_120 [1] : vector<64x256xf32> to vector<64xf32>
    %284 = vector.shape_cast %283 : vector<64xf32> to vector<64x1xf32>
    %cst_121 = arith.constant 2.560000e+02 : f32
    %285 = vector.broadcast %cst_121 : f32 to vector<64x1xf32>
    %286 = arith.divf %284, %285 : vector<64x1xf32>
    %287 = arith.mulf %282, %282 : vector<64x256xf32>
    %cst_122 = arith.constant dense<0.000000e+00> : vector<64xf32>
    %288 = vector.multi_reduction <add>, %287, %cst_122 [1] : vector<64x256xf32> to vector<64xf32>
    %289 = vector.shape_cast %288 : vector<64xf32> to vector<64x1xf32>
    %cst_123 = arith.constant 2.560000e+02 : f32
    %290 = vector.broadcast %cst_123 : f32 to vector<64x1xf32>
    %291 = arith.divf %289, %290 : vector<64x1xf32>
    %292 = arith.mulf %286, %286 : vector<64x1xf32>
    %293 = arith.subf %291, %292 : vector<64x1xf32>
    %cst_124 = arith.constant 0.000000e+00 : f32
    %294 = vector.broadcast %cst_124 : f32 to vector<64x1xf32>
    %295 = arith.maximumf %293, %294 : vector<64x1xf32>
    %296 = vector.broadcast %286 : vector<64x1xf32> to vector<64x256xf32>
    %297 = arith.subf %282, %296 : vector<64x256xf32>
    %cst_125 = arith.constant 9.99999974E-6 : f32
    %298 = vector.broadcast %cst_125 : f32 to vector<64x1xf32>
    %299 = arith.addf %295, %298 : vector<64x1xf32>
    %300 = math.rsqrt %299 : vector<64x1xf32>
    %301 = vector.broadcast %300 : vector<64x1xf32> to vector<64x256xf32>
    %302 = arith.mulf %297, %301 : vector<64x256xf32>
    %c8 = arith.constant 8 : index
    %c0_126 = arith.constant 0 : index
    %303 = vector.load %arg18[%c8, %c0_126] : memref<32x256xf32, #tpu.memory_space<vmem>>, vector<1x256xf32>
    %304 = vector.broadcast %303 : vector<1x256xf32> to vector<64x256xf32>
    %305 = arith.mulf %302, %304 : vector<64x256xf32>
    %c9 = arith.constant 9 : index
    %c0_127 = arith.constant 0 : index
    %306 = vector.load %arg18[%c9, %c0_127] : memref<32x256xf32, #tpu.memory_space<vmem>>, vector<1x256xf32>
    %307 = vector.broadcast %306 : vector<1x256xf32> to vector<64x256xf32>
    %308 = arith.addf %305, %307 : vector<64x256xf32>
    %309 = arith.truncf %308 : vector<64x256xf32> to vector<64x256xbf16>
    %310 = tpu.concatenate %309, %43 in 1 : vector<64x256xbf16>, vector<64x256xbf16> -> vector<64x512xbf16>
    %c0_128 = arith.constant 0 : index
    %c0_129 = arith.constant 0 : index
    %311 = vector.load %arg15[%c0_128, %c0_129] : memref<512x256xbf16, #tpu.memory_space<vmem>>, vector<512x256xbf16>
    %cst_130 = arith.constant dense<0.000000e+00> : vector<64x256xf32>
    %312 = tpu.matmul %310, %311, %cst_130 {dimension_numbers = #tpu.dot_dimension_numbers<[1], [0], [0], [1], [0, 0, 1, 1], [], []>} : vector<64x512xbf16>, vector<512x256xbf16>, vector<64x256xf32> -> vector<64x256xf32>
    %c14 = arith.constant 14 : index
    %c0_131 = arith.constant 0 : index
    %313 = vector.load %arg18[%c14, %c0_131] : memref<32x256xf32, #tpu.memory_space<vmem>>, vector<1x256xf32>
    %314 = vector.broadcast %313 : vector<1x256xf32> to vector<64x256xf32>
    %315 = arith.addf %312, %314 : vector<64x256xf32>
    %c0_132 = arith.constant 0 : index
    %c0_133 = arith.constant 0 : index
    %c0_134 = arith.constant 0 : index
    %316 = vector.load %arg16[%c0_132, %c0_133, %c0_134] : memref<3x256x256xbf16, #tpu.memory_space<vmem>>, vector<1x256x256xbf16>
    %317 = vector.shape_cast %316 : vector<1x256x256xbf16> to vector<256x256xbf16>
    %318 = arith.truncf %315 : vector<64x256xf32> to vector<64x256xbf16>
    %cst_135 = arith.constant dense<0.000000e+00> : vector<64x256xf32>
    %319 = tpu.matmul %318, %317, %cst_135 {dimension_numbers = #tpu.dot_dimension_numbers<[1], [0], [0], [1], [0, 0, 1, 1], [], []>} : vector<64x256xbf16>, vector<256x256xbf16>, vector<64x256xf32> -> vector<64x256xf32>
    %cst_136 = arith.constant dense<0.000000e+00> : vector<64xf32>
    %320 = vector.multi_reduction <add>, %319, %cst_136 [1] : vector<64x256xf32> to vector<64xf32>
    %321 = vector.shape_cast %320 : vector<64xf32> to vector<64x1xf32>
    %cst_137 = arith.constant 2.560000e+02 : f32
    %322 = vector.broadcast %cst_137 : f32 to vector<64x1xf32>
    %323 = arith.divf %321, %322 : vector<64x1xf32>
    %324 = arith.mulf %319, %319 : vector<64x256xf32>
    %cst_138 = arith.constant dense<0.000000e+00> : vector<64xf32>
    %325 = vector.multi_reduction <add>, %324, %cst_138 [1] : vector<64x256xf32> to vector<64xf32>
    %326 = vector.shape_cast %325 : vector<64xf32> to vector<64x1xf32>
    %cst_139 = arith.constant 2.560000e+02 : f32
    %327 = vector.broadcast %cst_139 : f32 to vector<64x1xf32>
    %328 = arith.divf %326, %327 : vector<64x1xf32>
    %329 = arith.mulf %323, %323 : vector<64x1xf32>
    %330 = arith.subf %328, %329 : vector<64x1xf32>
    %cst_140 = arith.constant 0.000000e+00 : f32
    %331 = vector.broadcast %cst_140 : f32 to vector<64x1xf32>
    %332 = arith.maximumf %330, %331 : vector<64x1xf32>
    %333 = vector.broadcast %323 : vector<64x1xf32> to vector<64x256xf32>
    %334 = arith.subf %319, %333 : vector<64x256xf32>
    %cst_141 = arith.constant 9.99999974E-6 : f32
    %335 = vector.broadcast %cst_141 : f32 to vector<64x1xf32>
    %336 = arith.addf %332, %335 : vector<64x1xf32>
    %337 = math.rsqrt %336 : vector<64x1xf32>
    %338 = vector.broadcast %337 : vector<64x1xf32> to vector<64x256xf32>
    %339 = arith.mulf %334, %338 : vector<64x256xf32>
    %c17 = arith.constant 17 : index
    %c0_142 = arith.constant 0 : index
    %340 = vector.load %arg18[%c17, %c0_142] : memref<32x256xf32, #tpu.memory_space<vmem>>, vector<1x256xf32>
    %341 = vector.broadcast %340 : vector<1x256xf32> to vector<64x256xf32>
    %342 = arith.mulf %339, %341 : vector<64x256xf32>
    %c18 = arith.constant 18 : index
    %c0_143 = arith.constant 0 : index
    %343 = vector.load %arg18[%c18, %c0_143] : memref<32x256xf32, #tpu.memory_space<vmem>>, vector<1x256xf32>
    %344 = vector.broadcast %343 : vector<1x256xf32> to vector<64x256xf32>
    %345 = arith.addf %342, %344 : vector<64x256xf32>
    %cst_144 = arith.constant 0.000000e+00 : f32
    %346 = vector.broadcast %cst_144 : f32 to vector<64x256xf32>
    %347 = arith.maximumf %345, %346 : vector<64x256xf32>
    %c1_145 = arith.constant 1 : index
    %c0_146 = arith.constant 0 : index
    %c0_147 = arith.constant 0 : index
    %348 = vector.load %arg16[%c1_145, %c0_146, %c0_147] : memref<3x256x256xbf16, #tpu.memory_space<vmem>>, vector<1x256x256xbf16>
    %349 = vector.shape_cast %348 : vector<1x256x256xbf16> to vector<256x256xbf16>
    %350 = arith.truncf %347 : vector<64x256xf32> to vector<64x256xbf16>
    %cst_148 = arith.constant dense<0.000000e+00> : vector<64x256xf32>
    %351 = tpu.matmul %350, %349, %cst_148 {dimension_numbers = #tpu.dot_dimension_numbers<[1], [0], [0], [1], [0, 0, 1, 1], [], []>} : vector<64x256xbf16>, vector<256x256xbf16>, vector<64x256xf32> -> vector<64x256xf32>
    %cst_149 = arith.constant dense<0.000000e+00> : vector<64xf32>
    %352 = vector.multi_reduction <add>, %351, %cst_149 [1] : vector<64x256xf32> to vector<64xf32>
    %353 = vector.shape_cast %352 : vector<64xf32> to vector<64x1xf32>
    %cst_150 = arith.constant 2.560000e+02 : f32
    %354 = vector.broadcast %cst_150 : f32 to vector<64x1xf32>
    %355 = arith.divf %353, %354 : vector<64x1xf32>
    %356 = arith.mulf %351, %351 : vector<64x256xf32>
    %cst_151 = arith.constant dense<0.000000e+00> : vector<64xf32>
    %357 = vector.multi_reduction <add>, %356, %cst_151 [1] : vector<64x256xf32> to vector<64xf32>
    %358 = vector.shape_cast %357 : vector<64xf32> to vector<64x1xf32>
    %cst_152 = arith.constant 2.560000e+02 : f32
    %359 = vector.broadcast %cst_152 : f32 to vector<64x1xf32>
    %360 = arith.divf %358, %359 : vector<64x1xf32>
    %361 = arith.mulf %355, %355 : vector<64x1xf32>
    %362 = arith.subf %360, %361 : vector<64x1xf32>
    %cst_153 = arith.constant 0.000000e+00 : f32
    %363 = vector.broadcast %cst_153 : f32 to vector<64x1xf32>
    %364 = arith.maximumf %362, %363 : vector<64x1xf32>
    %365 = vector.broadcast %355 : vector<64x1xf32> to vector<64x256xf32>
    %366 = arith.subf %351, %365 : vector<64x256xf32>
    %cst_154 = arith.constant 9.99999974E-6 : f32
    %367 = vector.broadcast %cst_154 : f32 to vector<64x1xf32>
    %368 = arith.addf %364, %367 : vector<64x1xf32>
    %369 = math.rsqrt %368 : vector<64x1xf32>
    %370 = vector.broadcast %369 : vector<64x1xf32> to vector<64x256xf32>
    %371 = arith.mulf %366, %370 : vector<64x256xf32>
    %c19 = arith.constant 19 : index
    %c0_155 = arith.constant 0 : index
    %372 = vector.load %arg18[%c19, %c0_155] : memref<32x256xf32, #tpu.memory_space<vmem>>, vector<1x256xf32>
    %373 = vector.broadcast %372 : vector<1x256xf32> to vector<64x256xf32>
    %374 = arith.mulf %371, %373 : vector<64x256xf32>
    %c20 = arith.constant 20 : index
    %c0_156 = arith.constant 0 : index
    %375 = vector.load %arg18[%c20, %c0_156] : memref<32x256xf32, #tpu.memory_space<vmem>>, vector<1x256xf32>
    %376 = vector.broadcast %375 : vector<1x256xf32> to vector<64x256xf32>
    %377 = arith.addf %374, %376 : vector<64x256xf32>
    %cst_157 = arith.constant 0.000000e+00 : f32
    %378 = vector.broadcast %cst_157 : f32 to vector<64x256xf32>
    %379 = arith.maximumf %377, %378 : vector<64x256xf32>
    %c2_158 = arith.constant 2 : index
    %c0_159 = arith.constant 0 : index
    %c0_160 = arith.constant 0 : index
    %380 = vector.load %arg16[%c2_158, %c0_159, %c0_160] : memref<3x256x256xbf16, #tpu.memory_space<vmem>>, vector<1x256x256xbf16>
    %381 = vector.shape_cast %380 : vector<1x256x256xbf16> to vector<256x256xbf16>
    %382 = arith.truncf %379 : vector<64x256xf32> to vector<64x256xbf16>
    %cst_161 = arith.constant dense<0.000000e+00> : vector<64x256xf32>
    %383 = tpu.matmul %382, %381, %cst_161 {dimension_numbers = #tpu.dot_dimension_numbers<[1], [0], [0], [1], [0, 0, 1, 1], [], []>} : vector<64x256xbf16>, vector<256x256xbf16>, vector<64x256xf32> -> vector<64x256xf32>
    %cst_162 = arith.constant dense<0.000000e+00> : vector<64xf32>
    %384 = vector.multi_reduction <add>, %383, %cst_162 [1] : vector<64x256xf32> to vector<64xf32>
    %385 = vector.shape_cast %384 : vector<64xf32> to vector<64x1xf32>
    %cst_163 = arith.constant 2.560000e+02 : f32
    %386 = vector.broadcast %cst_163 : f32 to vector<64x1xf32>
    %387 = arith.divf %385, %386 : vector<64x1xf32>
    %388 = arith.mulf %383, %383 : vector<64x256xf32>
    %cst_164 = arith.constant dense<0.000000e+00> : vector<64xf32>
    %389 = vector.multi_reduction <add>, %388, %cst_164 [1] : vector<64x256xf32> to vector<64xf32>
    %390 = vector.shape_cast %389 : vector<64xf32> to vector<64x1xf32>
    %cst_165 = arith.constant 2.560000e+02 : f32
    %391 = vector.broadcast %cst_165 : f32 to vector<64x1xf32>
    %392 = arith.divf %390, %391 : vector<64x1xf32>
    %393 = arith.mulf %387, %387 : vector<64x1xf32>
    %394 = arith.subf %392, %393 : vector<64x1xf32>
    %cst_166 = arith.constant 0.000000e+00 : f32
    %395 = vector.broadcast %cst_166 : f32 to vector<64x1xf32>
    %396 = arith.maximumf %394, %395 : vector<64x1xf32>
    %397 = vector.broadcast %387 : vector<64x1xf32> to vector<64x256xf32>
    %398 = arith.subf %383, %397 : vector<64x256xf32>
    %cst_167 = arith.constant 9.99999974E-6 : f32
    %399 = vector.broadcast %cst_167 : f32 to vector<64x1xf32>
    %400 = arith.addf %396, %399 : vector<64x1xf32>
    %401 = math.rsqrt %400 : vector<64x1xf32>
    %402 = vector.broadcast %401 : vector<64x1xf32> to vector<64x256xf32>
    %403 = arith.mulf %398, %402 : vector<64x256xf32>
    %c21 = arith.constant 21 : index
    %c0_168 = arith.constant 0 : index
    %404 = vector.load %arg18[%c21, %c0_168] : memref<32x256xf32, #tpu.memory_space<vmem>>, vector<1x256xf32>
    %405 = vector.broadcast %404 : vector<1x256xf32> to vector<64x256xf32>
    %406 = arith.mulf %403, %405 : vector<64x256xf32>
    %c22 = arith.constant 22 : index
    %c0_169 = arith.constant 0 : index
    %407 = vector.load %arg18[%c22, %c0_169] : memref<32x256xf32, #tpu.memory_space<vmem>>, vector<1x256xf32>
    %408 = vector.broadcast %407 : vector<1x256xf32> to vector<64x256xf32>
    %409 = arith.addf %406, %408 : vector<64x256xf32>
    %cst_170 = arith.constant 0.000000e+00 : f32
    %410 = vector.broadcast %cst_170 : f32 to vector<64x256xf32>
    %411 = arith.maximumf %409, %410 : vector<64x256xf32>
    %c0_171 = arith.constant 0 : index
    %c0_172 = arith.constant 0 : index
    %412 = vector.load %arg17[%c0_171, %c0_172] : memref<256x256xbf16, #tpu.memory_space<vmem>>, vector<256x256xbf16>
    %413 = arith.truncf %411 : vector<64x256xf32> to vector<64x256xbf16>
    %cst_173 = arith.constant dense<0.000000e+00> : vector<64x256xf32>
    %414 = tpu.matmul %413, %412, %cst_173 {dimension_numbers = #tpu.dot_dimension_numbers<[1], [0], [0], [1], [0, 0, 1, 1], [], []>} : vector<64x256xbf16>, vector<256x256xbf16>, vector<64x256xf32> -> vector<64x256xf32>
    %c15 = arith.constant 15 : index
    %c0_174 = arith.constant 0 : index
    %415 = vector.load %arg18[%c15, %c0_174] : memref<32x256xf32, #tpu.memory_space<vmem>>, vector<1x256xf32>
    %416 = vector.broadcast %415 : vector<1x256xf32> to vector<64x256xf32>
    %417 = arith.addf %414, %416 : vector<64x256xf32>
    %c0_175 = arith.constant 0 : index
    %c0_176 = arith.constant 0 : index
    %c0_177 = arith.constant 0 : index
    %418 = vector.load %arg20[%c0_175, %c0_176, %c0_177] : memref<1x64x256xf32, #tpu.memory_space<vmem>>, vector<1x64x256xf32>
    %419 = vector.shape_cast %418 : vector<1x64x256xf32> to vector<64x256xf32>
    %420 = vector.shape_cast %417 : vector<64x256xf32> to vector<1x64x256xf32>
    tpu.vector_store %arg20[%c0_175, %c0_176, %c0_177], %420 {strides = array<i32>} : memref<1x64x256xf32, #tpu.memory_space<vmem>>, vector<1x64x256xf32>,
    %421 = arith.truncf %417 : vector<64x256xf32> to vector<64x256xbf16>
    %cst_178 = arith.constant dense<0.000000e+00> : vector<64x256xf32>
    %422 = tpu.matmul %421, %38, %cst_178 {dimension_numbers = #tpu.dot_dimension_numbers<[1], [1], [0], [0], [0, 0, 1, 0], [], []>} : vector<64x256xbf16>, vector<256x256xbf16>, vector<64x256xf32> -> vector<64x256xf32>
    %c0_179 = arith.constant 0 : index
    %c0_180 = arith.constant 0 : index
    %c0_181 = arith.constant 0 : index
    %423 = vector.load %arg19[%c0_179, %c0_180, %c0_181] : memref<1x64x256xf32, #tpu.memory_space<vmem>>, vector<1x64x256xf32>
    %424 = vector.shape_cast %423 : vector<1x64x256xf32> to vector<64x256xf32>
    %425 = vector.shape_cast %422 : vector<64x256xf32> to vector<1x64x256xf32>
    tpu.vector_store %arg19[%c0_179, %c0_180, %c0_181], %425 {strides = array<i32>} : memref<1x64x256xf32, #tpu.memory_space<vmem>>, vector<1x64x256xf32>,
    return
  }
  func.func @transform_0(%arg0: i32) -> (i32, i32, i32) {
    %c0_i32 = arith.constant 0 : i32
    %c0_i32_0 = arith.constant 0 : i32
    %c0_i32_1 = arith.constant 0 : i32
    return %arg0, %c0_i32, %c0_i32_0 : i32, i32, i32
  }
  func.func @transform_1(%arg0: i32) -> (i32, i32, i32) {
    %c0_i32 = arith.constant 0 : i32
    %c0_i32_0 = arith.constant 0 : i32
    %c0_i32_1 = arith.constant 0 : i32
    return %arg0, %c0_i32, %c0_i32_0 : i32, i32, i32
  }
  func.func @transform_2(%arg0: i32) -> (i32, i32, i32) {
    %c0_i32 = arith.constant 0 : i32
    %c0_i32_0 = arith.constant 0 : i32
    %c0_i32_1 = arith.constant 0 : i32
    return %arg0, %c0_i32, %c0_i32_0 : i32, i32, i32
  }
  func.func @transform_3(%arg0: i32) -> (i32, i32, i32) {
    %c0_i32 = arith.constant 0 : i32
    %c0_i32_0 = arith.constant 0 : i32
    %c0_i32_1 = arith.constant 0 : i32
    return %arg0, %c0_i32, %c0_i32_0 : i32, i32, i32
  }
  func.func @transform_4(%arg0: i32) -> (i32, i32) {
    %c0_i32 = arith.constant 0 : i32
    %c0_i32_0 = arith.constant 0 : i32
    %c0_i32_1 = arith.constant 0 : i32
    return %c0_i32, %c0_i32_0 : i32, i32
  }
  func.func @transform_5(%arg0: i32) -> (i32, i32) {
    %c0_i32 = arith.constant 0 : i32
    %c0_i32_0 = arith.constant 0 : i32
    %c0_i32_1 = arith.constant 0 : i32
    return %c0_i32, %c0_i32_0 : i32, i32
  }
  func.func @transform_6(%arg0: i32) -> (i32, i32) {
    %c0_i32 = arith.constant 0 : i32
    %c0_i32_0 = arith.constant 0 : i32
    %c0_i32_1 = arith.constant 0 : i32
    return %c0_i32, %c0_i32_0 : i32, i32
  }
  func.func @transform_7(%arg0: i32) -> (i32, i32) {
    %c0_i32 = arith.constant 0 : i32
    %c0_i32_0 = arith.constant 0 : i32
    %c0_i32_1 = arith.constant 0 : i32
    return %c0_i32, %c0_i32_0 : i32, i32
  }
  func.func @transform_8(%arg0: i32) -> (i32, i32) {
    %c0_i32 = arith.constant 0 : i32
    %c0_i32_0 = arith.constant 0 : i32
    %c0_i32_1 = arith.constant 0 : i32
    return %c0_i32, %c0_i32_0 : i32, i32
  }
  func.func @transform_9(%arg0: i32) -> (i32, i32) {
    %c0_i32 = arith.constant 0 : i32
    %c0_i32_0 = arith.constant 0 : i32
    %c0_i32_1 = arith.constant 0 : i32
    return %c0_i32, %c0_i32_0 : i32, i32
  }
  func.func @transform_10(%arg0: i32) -> (i32, i32) {
    %c0_i32 = arith.constant 0 : i32
    %c0_i32_0 = arith.constant 0 : i32
    %c0_i32_1 = arith.constant 0 : i32
    return %c0_i32, %c0_i32_0 : i32, i32
  }
  func.func @transform_11(%arg0: i32) -> (i32, i32) {
    %c0_i32 = arith.constant 0 : i32
    %c0_i32_0 = arith.constant 0 : i32
    %c0_i32_1 = arith.constant 0 : i32
    return %c0_i32, %c0_i32_0 : i32, i32
  }
  func.func @transform_12(%arg0: i32) -> (i32, i32) {
    %c0_i32 = arith.constant 0 : i32
    %c0_i32_0 = arith.constant 0 : i32
    %c0_i32_1 = arith.constant 0 : i32
    return %c0_i32, %c0_i32_0 : i32, i32
  }
  func.func @transform_13(%arg0: i32) -> (i32, i32) {
    %c0_i32 = arith.constant 0 : i32
    %c0_i32_0 = arith.constant 0 : i32
    %c0_i32_1 = arith.constant 0 : i32
    return %c0_i32, %c0_i32_0 : i32, i32
  }
  func.func @transform_14(%arg0: i32) -> (i32, i32) {
    %c0_i32 = arith.constant 0 : i32
    %c0_i32_0 = arith.constant 0 : i32
    %c0_i32_1 = arith.constant 0 : i32
    return %c0_i32, %c0_i32_0 : i32, i32
  }
  func.func @transform_15(%arg0: i32) -> (i32, i32, i32) {
    %c0_i32 = arith.constant 0 : i32
    %c0_i32_0 = arith.constant 0 : i32
    %c0_i32_1 = arith.constant 0 : i32
    %c0_i32_2 = arith.constant 0 : i32
    return %c0_i32, %c0_i32_0, %c0_i32_1 : i32, i32, i32
  }
  func.func @transform_16(%arg0: i32) -> (i32, i32) {
    %c0_i32 = arith.constant 0 : i32
    %c0_i32_0 = arith.constant 0 : i32
    %c0_i32_1 = arith.constant 0 : i32
    return %c0_i32, %c0_i32_0 : i32, i32
  }
  func.func @transform_17(%arg0: i32) -> (i32, i32) {
    %c0_i32 = arith.constant 0 : i32
    %c0_i32_0 = arith.constant 0 : i32
    %c0_i32_1 = arith.constant 0 : i32
    return %c0_i32, %c0_i32_0 : i32, i32
  }
  func.func @transform_18(%arg0: i32) -> (i32, i32, i32) {
    %c0_i32 = arith.constant 0 : i32
    %c0_i32_0 = arith.constant 0 : i32
    %c0_i32_1 = arith.constant 0 : i32
    return %arg0, %c0_i32, %c0_i32_0 : i32, i32, i32
  }
  func.func @transform_19(%arg0: i32) -> (i32, i32, i32) {
    %c0_i32 = arith.constant 0 : i32
    %c0_i32_0 = arith.constant 0 : i32
    %c0_i32_1 = arith.constant 0 : i32
    return %arg0, %c0_i32, %c0_i32_0 : i32, i32, i32
  }
}

</mosaic_0001>

<llo_original>
// kernel: kernel_update_head_forward.1
$region0: #{kernel_update_head_forward.1}
  #allocation0 [shape = 'u32[]', space=smem, size = 0x4, offset = 0x4, fixed_abs, tag = 'smem constant byte address 0x4 - core index']
  #allocation1 [shape = 'u32[144,128]{1,0:T(1,128)}', space=vmem, size = 0x12000, scoped, tag = 'internal scratch']
  %s0 = inlined_call_operand.vmem [shape: bf16[2,256,256], index: 0, kind: input, shape index: {}]
  %s1 = inlined_call_operand.vmem [shape: bf16[2,64,256], index: 1, kind: input, shape index: {}]
  %s2 = inlined_call_operand.vmem [shape: bf16[2,512,64], index: 2, kind: input, shape index: {}]
  %s3 = inlined_call_operand.vmem [shape: bf16[2,64,256], index: 3, kind: input, shape index: {}]
  %s4 = inlined_call_operand.vmem [shape: bf16[256,256], index: 4, kind: input, shape index: {}]
  %s5 = inlined_call_operand.vmem [shape: bf16[256,256], index: 5, kind: input, shape index: {}]
  %s6 = inlined_call_operand.vmem [shape: f32[8,256], index: 6, kind: input, shape index: {}]
  %s7 = inlined_call_operand.vmem [shape: bf16[256,128], index: 7, kind: input, shape index: {}]
  %s8 = inlined_call_operand.vmem [shape: f32[1,128], index: 8, kind: input, shape index: {}]
  %s9 = inlined_call_operand.vmem [shape: bf16[256,768], index: 9, kind: input, shape index: {}]
  %s10 = inlined_call_operand.vmem [shape: bf16[256,256], index: 10, kind: input, shape index: {}]
  %s11 = inlined_call_operand.vmem [shape: bf16[256,512], index: 11, kind: input, shape index: {}]
  %s12 = inlined_call_operand.vmem [shape: f32[1,512], index: 12, kind: input, shape index: {}]
  %s13 = inlined_call_operand.vmem [shape: bf16[512,256], index: 13, kind: input, shape index: {}]
  %s14 = inlined_call_operand.vmem [shape: bf16[512,256], index: 14, kind: input, shape index: {}]
  %s15 = inlined_call_operand.vmem [shape: bf16[3,256,256], index: 15, kind: input, shape index: {}]
  %s16 = inlined_call_operand.vmem [shape: bf16[256,256], index: 16, kind: input, shape index: {}]
  %s17 = inlined_call_operand.vmem [shape: f32[32,256], index: 17, kind: input, shape index: {}]
  %s18 = inlined_call_operand.vmem [shape: f32[2,64,256], index: 18, kind: output, shape index: {0}]
  %s19 = inlined_call_operand.hbm [shape: f32[2,64,256], index: 19, kind: output, shape index: {1}]
  %20 = xla_tuple %s18, %s19
  %s21 = sld [smem:[#allocation0]]
  $region113: #{kernel_update_head_forward.1} parent=0
    _
  %s23 = ssub.s32 1, %s21
  %s24 = scalar_select 0, %s23, %s21
  $region1: #{kernel_update_head_forward.1} parent=0
    #allocation2 [shape = 'u8[131072]{0}', space=vmem, size = 0x20000, scoped, tag = 'output window, operand 1']
    #allocation3 [shape = 's32[2]{0}', space=sflag, size = 0x8, scoped, tag = 'scoped memory for kernel_update_head_forward.1']
    %25 = vsyncpa [#allocation3], 0
    %s26 = scalar_lea.sflag [#allocation3], 1
    %27 = vsyncpa %s26, 0
    loop: start=0, step=1, limit=4
    $region2: #{kernel_update_head_forward.1} parent=1 // loop_pre_header
      _
    $region3: #{kernel_update_head_forward.1} parent=1 // loop_header
      %s29 = sphi 0, %s33
      %p30 = scmp.ge.s32.totalorder %s29, 4
      %s39 = sphi 0, %s41
      %s42 = sphi 0, %s39
      %s43 = sphi 0, %s42
      %s59 = sphi 0, %s43
      %s65 = sphi 0, %s67
      %s68 = sphi 0, %s65
      %s69 = sphi 0, %s68
      %s85 = sphi 0, %s69
      %s91 = sphi 0, %s93
      %s94 = sphi 0, %s91
      %s95 = sphi 0, %s94
      %s111 = sphi 0, %s95
      %s117 = sphi 0, %s119
      %s120 = sphi 0, %s117
      %s121 = sphi 0, %s120
      %s137 = sphi 0, %s121
      %s141 = sphi 0, %s141
      %s143 = sphi 0, %s141
      %s144 = sphi 0, %s143
      %s158 = sphi 0, %s144
      %s162 = sphi 0, %s162
      %s164 = sphi 0, %s162
      %s165 = sphi 0, %s164
      %s179 = sphi 0, %s165
      %s183 = sphi 0, %s183
      %s185 = sphi 0, %s183
      %s186 = sphi 0, %s185
      %s200 = sphi 0, %s186
      %s204 = sphi 0, %s204
      %s206 = sphi 0, %s204
      %s207 = sphi 0, %s206
      %s221 = sphi 0, %s207
      %s225 = sphi 0, %s225
      %s227 = sphi 0, %s225
      %s228 = sphi 0, %s227
      %s242 = sphi 0, %s228
      %s246 = sphi 0, %s246
      %s248 = sphi 0, %s246
      %s249 = sphi 0, %s248
      %s263 = sphi 0, %s249
      %s267 = sphi 0, %s267
      %s269 = sphi 0, %s267
      %s270 = sphi 0, %s269
      %s284 = sphi 0, %s270
      %s288 = sphi 0, %s288
      %s290 = sphi 0, %s288
      %s291 = sphi 0, %s290
      %s305 = sphi 0, %s291
      %s309 = sphi 0, %s309
      %s311 = sphi 0, %s309
      %s312 = sphi 0, %s311
      %s326 = sphi 0, %s312
      %s330 = sphi 0, %s330
      %s332 = sphi 0, %s330
      %s333 = sphi 0, %s332
      %s347 = sphi 0, %s333
      %s351 = sphi 0, %s351
      %s353 = sphi 0, %s351
      %s354 = sphi 0, %s353
      %s368 = sphi 0, %s354
      %s372 = sphi 0, %s372
      %s374 = sphi 0, %s372
      %s375 = sphi 0, %s374
      %s389 = sphi 0, %s375
      %s393 = sphi 0, %s393
      %s395 = sphi 0, %s393
      %s396 = sphi 0, %s395
      %s410 = sphi 0, %s396
      %s414 = sphi 0, %s414
      %s416 = sphi 0, %s414
      %s417 = sphi 0, %s416
      %s431 = sphi 0, %s417
      %s437 = sphi 0, %s439
      %s440 = sphi 0, %s437
      %s441 = sphi 0, %s440
      %s457 = sphi 0, %s441
      %s463 = sphi 0, %s465
      %s466 = sphi 0, %s463
      %s467 = sphi 0, %s466
      %s483 = sphi 0, %s467
    $region4: #{kernel_update_head_forward.1} parent=1 // loop_header_branch
      %32 = sbr.rel (%p30) target = $region8
    $region5: #{kernel_update_head_forward.1} parent=1 // loop_body
      %s34 = ssub.s32 %s29, 1
      %s35 = ssub.s32 %s29, 2
      %s36 = sadd.s32 %s29, 1
      %s37 = ssub.s32 %s29, %s36
      %p38 = scmp.eq.s32.totalorder %s37, 0
      %s40 = sadd.s32 %s39, 1
      %s41 = scalar_select %p38, %s39, %s40
      %p44 = pneg %p38
      %p45 = scmp.eq.s32.totalorder %s29, 1
      %p46 = por %p44, %p45
      %p47 = scmp.ne.s32.totalorder %s39, %s42
      %p48 = scmp.eq.s32.totalorder %s29, 0
      %p49 = por %p47, %p48
      %p50 = scmp.ne.s32.totalorder %s39, %s42
      %p51 = scmp.eq.s32.totalorder %s34, 1
      %p52 = por %p50, %p51
      %p53 = scmp.ne.s32.totalorder %s42, %s43
      %p54 = scmp.eq.s32.totalorder %s34, 0
      %p55 = por %p53, %p54
      %p56 = scmp.ne.s32.totalorder %s42, %s43
      %p57 = scmp.eq.s32.totalorder %s35, 1
      %p58 = por %p56, %p57
      %p60 = scmp.ne.s32.totalorder %s43, %s59
      %p61 = scmp.eq.s32.totalorder %s35, 0
      %p62 = por %p60, %p61
      %s63 = ssub.s32 %s29, %s36
      %p64 = scmp.eq.s32.totalorder %s63, 0
      %s66 = sadd.s32 %s65, 1
      %s67 = scalar_select %p64, %s65, %s66
      %p70 = pneg %p64
      %p71 = scmp.eq.s32.totalorder %s29, 1
      %p72 = por %p70, %p71
      %p73 = scmp.ne.s32.totalorder %s65, %s68
      %p74 = scmp.eq.s32.totalorder %s29, 0
      %p75 = por %p73, %p74
      %p76 = scmp.ne.s32.totalorder %s65, %s68
      %p77 = scmp.eq.s32.totalorder %s34, 1
      %p78 = por %p76, %p77
      %p79 = scmp.ne.s32.totalorder %s68, %s69
      %p80 = scmp.eq.s32.totalorder %s34, 0
      %p81 = por %p79, %p80
      %p82 = scmp.ne.s32.totalorder %s68, %s69
      %p83 = scmp.eq.s32.totalorder %s35, 1
      %p84 = por %p82, %p83
      %p86 = scmp.ne.s32.totalorder %s69, %s85
      %p87 = scmp.eq.s32.totalorder %s35, 0
      %p88 = por %p86, %p87
      %s89 = ssub.s32 %s29, %s36
      %p90 = scmp.eq.s32.totalorder %s89, 0
      %s92 = sadd.s32 %s91, 1
      %s93 = scalar_select %p90, %s91, %s92
      %p96 = pneg %p90
      %p97 = scmp.eq.s32.totalorder %s29, 1
      %p98 = por %p96, %p97
      %p99 = scmp.ne.s32.totalorder %s91, %s94
      %p100 = scmp.eq.s32.totalorder %s29, 0
      %p101 = por %p99, %p100
      %p102 = scmp.ne.s32.totalorder %s91, %s94
      %p103 = scmp.eq.s32.totalorder %s34, 1
      %p104 = por %p102, %p103
      %p105 = scmp.ne.s32.totalorder %s94, %s95
      %p106 = scmp.eq.s32.totalorder %s34, 0
      %p107 = por %p105, %p106
      %p108 = scmp.ne.s32.totalorder %s94, %s95
      %p109 = scmp.eq.s32.totalorder %s35, 1
      %p110 = por %p108, %p109
      %p112 = scmp.ne.s32.totalorder %s95, %s111
      %p113 = scmp.eq.s32.totalorder %s35, 0
      %p114 = por %p112, %p113
      %s115 = ssub.s32 %s29, %s36
      %p116 = scmp.eq.s32.totalorder %s115, 0
      %s118 = sadd.s32 %s117, 1
      %s119 = scalar_select %p116, %s117, %s118
      %p122 = pneg %p116
      %p123 = scmp.eq.s32.totalorder %s29, 1
      %p124 = por %p122, %p123
      %p125 = scmp.ne.s32.totalorder %s117, %s120
      %p126 = scmp.eq.s32.totalorder %s29, 0
      %p127 = por %p125, %p126
      %p128 = scmp.ne.s32.totalorder %s117, %s120
      %p129 = scmp.eq.s32.totalorder %s34, 1
      %p130 = por %p128, %p129
      %p131 = scmp.ne.s32.totalorder %s120, %s121
      %p132 = scmp.eq.s32.totalorder %s34, 0
      %p133 = por %p131, %p132
      %p134 = scmp.ne.s32.totalorder %s120, %s121
      %p135 = scmp.eq.s32.totalorder %s35, 1
      %p136 = por %p134, %p135
      %p138 = scmp.ne.s32.totalorder %s121, %s137
      %p139 = scmp.eq.s32.totalorder %s35, 0
      %p140 = por %p138, %p139
      %s142 = sadd.s32 %s141, 1
      %p145 = scmp.eq.s32.totalorder %s29, 1
      %p146 = scmp.ne.s32.totalorder %s141, %s143
      %p147 = scmp.eq.s32.totalorder %s29, 0
      %p148 = por %p146, %p147
      %p149 = scmp.ne.s32.totalorder %s141, %s143
      %p150 = scmp.eq.s32.totalorder %s34, 1
      %p151 = por %p149, %p150
      %p152 = scmp.ne.s32.totalorder %s143, %s144
      %p153 = scmp.eq.s32.totalorder %s34, 0
      %p154 = por %p152, %p153
      %p155 = scmp.ne.s32.totalorder %s143, %s144
      %p156 = scmp.eq.s32.totalorder %s35, 1
      %p157 = por %p155, %p156
      %p159 = scmp.ne.s32.totalorder %s144, %s158
      %p160 = scmp.eq.s32.totalorder %s35, 0
      %p161 = por %p159, %p160
      %s163 = sadd.s32 %s162, 1
      %p166 = scmp.eq.s32.totalorder %s29, 1
      %p167 = scmp.ne.s32.totalorder %s162, %s164
      %p168 = scmp.eq.s32.totalorder %s29, 0
      %p169 = por %p167, %p168
      %p170 = scmp.ne.s32.totalorder %s162, %s164
      %p171 = scmp.eq.s32.totalorder %s34, 1
      %p172 = por %p170, %p171
      %p173 = scmp.ne.s32.totalorder %s164, %s165
      %p174 = scmp.eq.s32.totalorder %s34, 0
      %p175 = por %p173, %p174
      %p176 = scmp.ne.s32.totalorder %s164, %s165
      %p177 = scmp.eq.s32.totalorder %s35, 1
      %p178 = por %p176, %p177
      %p180 = scmp.ne.s32.totalorder %s165, %s179
      %p181 = scmp.eq.s32.totalorder %s35, 0
      %p182 = por %p180, %p181
      %s184 = sadd.s32 %s183, 1
      %p187 = scmp.eq.s32.totalorder %s29, 1
      %p188 = scmp.ne.s32.totalorder %s183, %s185
      %p189 = scmp.eq.s32.totalorder %s29, 0
      %p190 = por %p188, %p189
      %p191 = scmp.ne.s32.totalorder %s183, %s185
      %p192 = scmp.eq.s32.totalorder %s34, 1
      %p193 = por %p191, %p192
      %p194 = scmp.ne.s32.totalorder %s185, %s186
      %p195 = scmp.eq.s32.totalorder %s34, 0
      %p196 = por %p194, %p195
      %p197 = scmp.ne.s32.totalorder %s185, %s186
      %p198 = scmp.eq.s32.totalorder %s35, 1
      %p199 = por %p197, %p198
      %p201 = scmp.ne.s32.totalorder %s186, %s200
      %p202 = scmp.eq.s32.totalorder %s35, 0
      %p203 = por %p201, %p202
      %s205 = sadd.s32 %s204, 1
      %p208 = scmp.eq.s32.totalorder %s29, 1
      %p209 = scmp.ne.s32.totalorder %s204, %s206
      %p210 = scmp.eq.s32.totalorder %s29, 0
      %p211 = por %p209, %p210
      %p212 = scmp.ne.s32.totalorder %s204, %s206
      %p213 = scmp.eq.s32.totalorder %s34, 1
      %p214 = por %p212, %p213
      %p215 = scmp.ne.s32.totalorder %s206, %s207
      %p216 = scmp.eq.s32.totalorder %s34, 0
      %p217 = por %p215, %p216
      %p218 = scmp.ne.s32.totalorder %s206, %s207
      %p219 = scmp.eq.s32.totalorder %s35, 1
      %p220 = por %p218, %p219
      %p222 = scmp.ne.s32.totalorder %s207, %s221
      %p223 = scmp.eq.s32.totalorder %s35, 0
      %p224 = por %p222, %p223
      %s226 = sadd.s32 %s225, 1
      %p229 = scmp.eq.s32.totalorder %s29, 1
      %p230 = scmp.ne.s32.totalorder %s225, %s227
      %p231 = scmp.eq.s32.totalorder %s29, 0
      %p232 = por %p230, %p231
      %p233 = scmp.ne.s32.totalorder %s225, %s227
      %p234 = scmp.eq.s32.totalorder %s34, 1
      %p235 = por %p233, %p234
      %p236 = scmp.ne.s32.totalorder %s227, %s228
      %p237 = scmp.eq.s32.totalorder %s34, 0
      %p238 = por %p236, %p237
      %p239 = scmp.ne.s32.totalorder %s227, %s228
      %p240 = scmp.eq.s32.totalorder %s35, 1
      %p241 = por %p239, %p240
      %p243 = scmp.ne.s32.totalorder %s228, %s242
      %p244 = scmp.eq.s32.totalorder %s35, 0
      %p245 = por %p243, %p244
      %s247 = sadd.s32 %s246, 1
      %p250 = scmp.eq.s32.totalorder %s29, 1
      %p251 = scmp.ne.s32.totalorder %s246, %s248
      %p252 = scmp.eq.s32.totalorder %s29, 0
      %p253 = por %p251, %p252
      %p254 = scmp.ne.s32.totalorder %s246, %s248
      %p255 = scmp.eq.s32.totalorder %s34, 1
      %p256 = por %p254, %p255
      %p257 = scmp.ne.s32.totalorder %s248, %s249
      %p258 = scmp.eq.s32.totalorder %s34, 0
      %p259 = por %p257, %p258
      %p260 = scmp.ne.s32.totalorder %s248, %s249
      %p261 = scmp.eq.s32.totalorder %s35, 1
      %p262 = por %p260, %p261
      %p264 = scmp.ne.s32.totalorder %s249, %s263
      %p265 = scmp.eq.s32.totalorder %s35, 0
      %p266 = por %p264, %p265
      %s268 = sadd.s32 %s267, 1
      %p271 = scmp.eq.s32.totalorder %s29, 1
      %p272 = scmp.ne.s32.totalorder %s267, %s269
      %p273 = scmp.eq.s32.totalorder %s29, 0
      %p274 = por %p272, %p273
      %p275 = scmp.ne.s32.totalorder %s267, %s269
      %p276 = scmp.eq.s32.totalorder %s34, 1
      %p277 = por %p275, %p276
      %p278 = scmp.ne.s32.totalorder %s269, %s270
      %p279 = scmp.eq.s32.totalorder %s34, 0
      %p280 = por %p278, %p279
      %p281 = scmp.ne.s32.totalorder %s269, %s270
      %p282 = scmp.eq.s32.totalorder %s35, 1
      %p283 = por %p281, %p282
      %p285 = scmp.ne.s32.totalorder %s270, %s284
      %p286 = scmp.eq.s32.totalorder %s35, 0
      %p287 = por %p285, %p286
      %s289 = sadd.s32 %s288, 1
      %p292 = scmp.eq.s32.totalorder %s29, 1
      %p293 = scmp.ne.s32.totalorder %s288, %s290
      %p294 = scmp.eq.s32.totalorder %s29, 0
      %p295 = por %p293, %p294
      %p296 = scmp.ne.s32.totalorder %s288, %s290
      %p297 = scmp.eq.s32.totalorder %s34, 1
      %p298 = por %p296, %p297
      %p299 = scmp.ne.s32.totalorder %s290, %s291
      %p300 = scmp.eq.s32.totalorder %s34, 0
      %p301 = por %p299, %p300
      %p302 = scmp.ne.s32.totalorder %s290, %s291
      %p303 = scmp.eq.s32.totalorder %s35, 1
      %p304 = por %p302, %p303
      %p306 = scmp.ne.s32.totalorder %s291, %s305
      %p307 = scmp.eq.s32.totalorder %s35, 0
      %p308 = por %p306, %p307
      %s310 = sadd.s32 %s309, 1
      %p313 = scmp.eq.s32.totalorder %s29, 1
      %p314 = scmp.ne.s32.totalorder %s309, %s311
      %p315 = scmp.eq.s32.totalorder %s29, 0
      %p316 = por %p314, %p315
      %p317 = scmp.ne.s32.totalorder %s309, %s311
      %p318 = scmp.eq.s32.totalorder %s34, 1
      %p319 = por %p317, %p318
      %p320 = scmp.ne.s32.totalorder %s311, %s312
      %p321 = scmp.eq.s32.totalorder %s34, 0
      %p322 = por %p320, %p321
      %p323 = scmp.ne.s32.totalorder %s311, %s312
      %p324 = scmp.eq.s32.totalorder %s35, 1
      %p325 = por %p323, %p324
      %p327 = scmp.ne.s32.totalorder %s312, %s326
      %p328 = scmp.eq.s32.totalorder %s35, 0
      %p329 = por %p327, %p328
      %s331 = sadd.s32 %s330, 1
      %p334 = scmp.eq.s32.totalorder %s29, 1
      %p335 = scmp.ne.s32.totalorder %s330, %s332
      %p336 = scmp.eq.s32.totalorder %s29, 0
      %p337 = por %p335, %p336
      %p338 = scmp.ne.s32.totalorder %s330, %s332
      %p339 = scmp.eq.s32.totalorder %s34, 1
      %p340 = por %p338, %p339
      %p341 = scmp.ne.s32.totalorder %s332, %s333
      %p342 = scmp.eq.s32.totalorder %s34, 0
      %p343 = por %p341, %p342
      %p344 = scmp.ne.s32.totalorder %s332, %s333
      %p345 = scmp.eq.s32.totalorder %s35, 1
      %p346 = por %p344, %p345
      %p348 = scmp.ne.s32.totalorder %s333, %s347
      %p349 = scmp.eq.s32.totalorder %s35, 0
      %p350 = por %p348, %p349
      %s352 = sadd.s32 %s351, 1
      %p355 = scmp.eq.s32.totalorder %s29, 1
      %p356 = scmp.ne.s32.totalorder %s351, %s353
      %p357 = scmp.eq.s32.totalorder %s29, 0
      %p358 = por %p356, %p357
      %p359 = scmp.ne.s32.totalorder %s351, %s353
      %p360 = scmp.eq.s32.totalorder %s34, 1
      %p361 = por %p359, %p360
      %p362 = scmp.ne.s32.totalorder %s353, %s354
      %p363 = scmp.eq.s32.totalorder %s34, 0
      %p364 = por %p362, %p363
      %p365 = scmp.ne.s32.totalorder %s353, %s354
      %p366 = scmp.eq.s32.totalorder %s35, 1
      %p367 = por %p365, %p366
      %p369 = scmp.ne.s32.totalorder %s354, %s368
      %p370 = scmp.eq.s32.totalorder %s35, 0
      %p371 = por %p369, %p370
      %s373 = sadd.s32 %s372, 1
      %p376 = scmp.eq.s32.totalorder %s29, 1
      %p377 = scmp.ne.s32.totalorder %s372, %s374
      %p378 = scmp.eq.s32.totalorder %s29, 0
      %p379 = por %p377, %p378
      %p380 = scmp.ne.s32.totalorder %s372, %s374
      %p381 = scmp.eq.s32.totalorder %s34, 1
      %p382 = por %p380, %p381
      %p383 = scmp.ne.s32.totalorder %s374, %s375
      %p384 = scmp.eq.s32.totalorder %s34, 0
      %p385 = por %p383, %p384
      %p386 = scmp.ne.s32.totalorder %s374, %s375
      %p387 = scmp.eq.s32.totalorder %s35, 1
      %p388 = por %p386, %p387
      %p390 = scmp.ne.s32.totalorder %s375, %s389
      %p391 = scmp.eq.s32.totalorder %s35, 0
      %p392 = por %p390, %p391
      %s394 = sadd.s32 %s393, 1
      %p397 = scmp.eq.s32.totalorder %s29, 1
      %p398 = scmp.ne.s32.totalorder %s393, %s395
      %p399 = scmp.eq.s32.totalorder %s29, 0
      %p400 = por %p398, %p399
      %p401 = scmp.ne.s32.totalorder %s393, %s395
      %p402 = scmp.eq.s32.totalorder %s34, 1
      %p403 = por %p401, %p402
      %p404 = scmp.ne.s32.totalorder %s395, %s396
      %p405 = scmp.eq.s32.totalorder %s34, 0
      %p406 = por %p404, %p405
      %p407 = scmp.ne.s32.totalorder %s395, %s396
      %p408 = scmp.eq.s32.totalorder %s35, 1
      %p409 = por %p407, %p408
      %p411 = scmp.ne.s32.totalorder %s396, %s410
      %p412 = scmp.eq.s32.totalorder %s35, 0
      %p413 = por %p411, %p412
      %s415 = sadd.s32 %s414, 1
      %p418 = scmp.eq.s32.totalorder %s29, 1
      %p419 = scmp.ne.s32.totalorder %s414, %s416
      %p420 = scmp.eq.s32.totalorder %s29, 0
      %p421 = por %p419, %p420
      %p422 = scmp.ne.s32.totalorder %s414, %s416
      %p423 = scmp.eq.s32.totalorder %s34, 1
      %p424 = por %p422, %p423
      %p425 = scmp.ne.s32.totalorder %s416, %s417
      %p426 = scmp.eq.s32.totalorder %s34, 0
      %p427 = por %p425, %p426
      %p428 = scmp.ne.s32.totalorder %s416, %s417
      %p429 = scmp.eq.s32.totalorder %s35, 1
      %p430 = por %p428, %p429
      %p432 = scmp.ne.s32.totalorder %s417, %s431
      %p433 = scmp.eq.s32.totalorder %s35, 0
      %p434 = por %p432, %p433
      %s435 = ssub.s32 %s29, %s36
      %p436 = scmp.eq.s32.totalorder %s435, 0
      %s438 = sadd.s32 %s437, 1
      %s439 = scalar_select %p436, %s437, %s438
      %p442 = pneg %p436
      %p443 = scmp.eq.s32.totalorder %s29, 1
      %p444 = por %p442, %p443
      %p445 = scmp.ne.s32.totalorder %s437, %s440
      %p446 = scmp.eq.s32.totalorder %s29, 0
      %p447 = por %p445, %p446
      %p448 = scmp.ne.s32.totalorder %s437, %s440
      %p449 = scmp.eq.s32.totalorder %s34, 1
      %p450 = por %p448, %p449
      %p451 = scmp.ne.s32.totalorder %s440, %s441
      %p452 = scmp.eq.s32.totalorder %s34, 0
      %p453 = por %p451, %p452
      %p454 = scmp.ne.s32.totalorder %s440, %s441
      %p455 = scmp.eq.s32.totalorder %s35, 1
      %p456 = por %p454, %p455
      %p458 = scmp.ne.s32.totalorder %s441, %s457
      %p459 = scmp.eq.s32.totalorder %s35, 0
      %p460 = por %p458, %p459
      %s461 = ssub.s32 %s29, %s36
      %p462 = scmp.eq.s32.totalorder %s461, 0
      %s464 = sadd.s32 %s463, 1
      %s465 = scalar_select %p462, %s463, %s464
      %p468 = pneg %p462
      %p469 = scmp.eq.s32.totalorder %s29, 1
      %p470 = por %p468, %p469
      %p471 = scmp.ne.s32.totalorder %s463, %s466
      %p472 = scmp.eq.s32.totalorder %s29, 0
      %p473 = por %p471, %p472
      %p474 = scmp.ne.s32.totalorder %s463, %s466
      %p475 = scmp.eq.s32.totalorder %s34, 1
      %p476 = por %p474, %p475
      %p477 = scmp.ne.s32.totalorder %s466, %s467
      %p478 = scmp.eq.s32.totalorder %s34, 0
      %p479 = por %p477, %p478
      %p480 = scmp.ne.s32.totalorder %s466, %s467
      %p481 = scmp.eq.s32.totalorder %s35, 1
      %p482 = por %p480, %p481
      %p484 = scmp.ne.s32.totalorder %s467, %s483
      %p485 = scmp.eq.s32.totalorder %s35, 0
      %p486 = por %p484, %p485
      %p487 = scmp.le.s32.totalorder 1, %s29
      %p488 = scmp.lt.s32.totalorder %s29, 3
      %p489 = pnand %p487, %p488
      %p490 = pneg %p489
      // Predicated region
      $region9: #{kernel_update_head_forward.1} parent=5 // pred_check
        _
      $region10: #{kernel_update_head_forward.1} parent=5 // pred_check_branch
        %492 = sbr.rel (%p489) target = $region12
      $region11: #{kernel_update_head_forward.1} parent=5 // pred_region
        %s493 = ssub.s32 %s29, 1
        // Predicated region
        $region13: #{kernel_update_head_forward.1} parent=11 // pred_check
          %p494 = pneg %p154
        $region14: #{kernel_update_head_forward.1} parent=11 // pred_check_branch
          %496 = sbr.rel (%p494) target = $region16
        $region15: #{kernel_update_head_forward.1} parent=11 // pred_region
          _
        $region16: #{kernel_update_head_forward.1} parent=11 // pred_fallthru
          _
        // Predicated region
        $region17: #{kernel_update_head_forward.1} parent=11 // pred_check
          %p497 = pneg %p175
        $region18: #{kernel_update_head_forward.1} parent=11 // pred_check_branch
          %499 = sbr.rel (%p497) target = $region20
        $region19: #{kernel_update_head_forward.1} parent=11 // pred_region
          _
        $region20: #{kernel_update_head_forward.1} parent=11 // pred_fallthru
          _
        // Predicated region
        $region21: #{kernel_update_head_forward.1} parent=11 // pred_check
          %p500 = pneg %p196
        $region22: #{kernel_update_head_forward.1} parent=11 // pred_check_branch
          %502 = sbr.rel (%p500) target = $region24
        $region23: #{kernel_update_head_forward.1} parent=11 // pred_region
          _
        $region24: #{kernel_update_head_forward.1} parent=11 // pred_fallthru
          _
        // Predicated region
        $region25: #{kernel_update_head_forward.1} parent=11 // pred_check
          %p503 = pneg %p217
        $region26: #{kernel_update_head_forward.1} parent=11 // pred_check_branch
          %505 = sbr.rel (%p503) target = $region28
        $region27: #{kernel_update_head_forward.1} parent=11 // pred_region
          _
        $region28: #{kernel_update_head_forward.1} parent=11 // pred_fallthru
          _
        // Predicated region
        $region29: #{kernel_update_head_forward.1} parent=11 // pred_check
          %p506 = pneg %p238
        $region30: #{kernel_update_head_forward.1} parent=11 // pred_check_branch
          %508 = sbr.rel (%p506) target = $region32
        $region31: #{kernel_update_head_forward.1} parent=11 // pred_region
          _
        $region32: #{kernel_update_head_forward.1} parent=11 // pred_fallthru
          _
        // Predicated region
        $region33: #{kernel_update_head_forward.1} parent=11 // pred_check
          %p509 = pneg %p259
        $region34: #{kernel_update_head_forward.1} parent=11 // pred_check_branch
          %511 = sbr.rel (%p509) target = $region36
        $region35: #{kernel_update_head_forward.1} parent=11 // pred_region
          _
        $region36: #{kernel_update_head_forward.1} parent=11 // pred_fallthru
          _
        // Predicated region
        $region37: #{kernel_update_head_forward.1} parent=11 // pred_check
          %p512 = pneg %p280
        $region38: #{kernel_update_head_forward.1} parent=11 // pred_check_branch
          %514 = sbr.rel (%p512) target = $region40
        $region39: #{kernel_update_head_forward.1} parent=11 // pred_region
          _
        $region40: #{kernel_update_head_forward.1} parent=11 // pred_fallthru
          _
        // Predicated region
        $region41: #{kernel_update_head_forward.1} parent=11 // pred_check
          %p515 = pneg %p301
        $region42: #{kernel_update_head_forward.1} parent=11 // pred_check_branch
          %517 = sbr.rel (%p515) target = $region44
        $region43: #{kernel_update_head_forward.1} parent=11 // pred_region
          _
        $region44: #{kernel_update_head_forward.1} parent=11 // pred_fallthru
          _
        // Predicated region
        $region45: #{kernel_update_head_forward.1} parent=11 // pred_check
          %p518 = pneg %p322
        $region46: #{kernel_update_head_forward.1} parent=11 // pred_check_branch
          %520 = sbr.rel (%p518) target = $region48
        $region47: #{kernel_update_head_forward.1} parent=11 // pred_region
          _
        $region48: #{kernel_update_head_forward.1} parent=11 // pred_fallthru
          _
        // Predicated region
        $region49: #{kernel_update_head_forward.1} parent=11 // pred_check
          %p521 = pneg %p343
        $region50: #{kernel_update_head_forward.1} parent=11 // pred_check_branch
          %523 = sbr.rel (%p521) target = $region52
        $region51: #{kernel_update_head_forward.1} parent=11 // pred_region
          _
        $region52: #{kernel_update_head_forward.1} parent=11 // pred_fallthru
          _
        // Predicated region
        $region53: #{kernel_update_head_forward.1} parent=11 // pred_check
          %p524 = pneg %p364
        $region54: #{kernel_update_head_forward.1} parent=11 // pred_check_branch
          %526 = sbr.rel (%p524) target = $region56
        $region55: #{kernel_update_head_forward.1} parent=11 // pred_region
          _
        $region56: #{kernel_update_head_forward.1} parent=11 // pred_fallthru
          _
        // Predicated region
        $region57: #{kernel_update_head_forward.1} parent=11 // pred_check
          %p527 = pneg %p385
        $region58: #{kernel_update_head_forward.1} parent=11 // pred_check_branch
          %529 = sbr.rel (%p527) target = $region60
        $region59: #{kernel_update_head_forward.1} parent=11 // pred_region
          _
        $region60: #{kernel_update_head_forward.1} parent=11 // pred_fallthru
          _
        // Predicated region
        $region61: #{kernel_update_head_forward.1} parent=11 // pred_check
          %p530 = pneg %p406
        $region62: #{kernel_update_head_forward.1} parent=11 // pred_check_branch
          %532 = sbr.rel (%p530) target = $region64
        $region63: #{kernel_update_head_forward.1} parent=11 // pred_region
          _
        $region64: #{kernel_update_head_forward.1} parent=11 // pred_fallthru
          _
        // Predicated region
        $region65: #{kernel_update_head_forward.1} parent=11 // pred_check
          %p533 = pneg %p427
        $region66: #{kernel_update_head_forward.1} parent=11 // pred_check_branch
          %535 = sbr.rel (%p533) target = $region68
        $region67: #{kernel_update_head_forward.1} parent=11 // pred_region
          _
        $region68: #{kernel_update_head_forward.1} parent=11 // pred_fallthru
          _
      $region12: #{kernel_update_head_forward.1} parent=5 // pred_fallthru
        _
      %p536 = scmp.lt.s32.totalorder %s29, 2
      // Predicated region
      $region69: #{kernel_update_head_forward.1} parent=5 // pred_check
        %p537 = pneg %p536
      $region70: #{kernel_update_head_forward.1} parent=5 // pred_check_branch
        %539 = sbr.rel (%p537) target = $region72
      $region71: #{kernel_update_head_forward.1} parent=5 // pred_region
        // Predicated region
        $region73: #{kernel_update_head_forward.1} parent=71 // pred_check
          %p540 = pneg %p49
        $region74: #{kernel_update_head_forward.1} parent=71 // pred_check_branch
          %542 = sbr.rel (%p540) target = $region76
        $region75: #{kernel_update_head_forward.1} parent=71 // pred_region
          %p543 = scmp.lt.s32.totalorder %s29, 1
          %s544 = scalar_select %p543, %s29, 1
          %s545 = smul.addr %s544, 64
          %s546 = smul.addr %s545, 4
          %s547 = scalar_lea.vmem %s0, %s546
        $region76: #{kernel_update_head_forward.1} parent=71 // pred_fallthru
          _
        // Predicated region
        $region77: #{kernel_update_head_forward.1} parent=71 // pred_check
          %p548 = pneg %p75
        $region78: #{kernel_update_head_forward.1} parent=71 // pred_check_branch
          %550 = sbr.rel (%p548) target = $region80
        $region79: #{kernel_update_head_forward.1} parent=71 // pred_region
          %p551 = scmp.lt.s32.totalorder %s29, 1
          %s552 = scalar_select %p551, %s29, 1
          %s553 = smul.addr %s552, 16
          %s554 = smul.addr %s553, 4
          %s555 = scalar_lea.vmem %s1, %s554
        $region80: #{kernel_update_head_forward.1} parent=71 // pred_fallthru
          _
        // Predicated region
        $region81: #{kernel_update_head_forward.1} parent=71 // pred_check
          %p556 = pneg %p101
        $region82: #{kernel_update_head_forward.1} parent=71 // pred_check_branch
          %558 = sbr.rel (%p556) target = $region84
        $region83: #{kernel_update_head_forward.1} parent=71 // pred_region
          %p559 = scmp.lt.s32.totalorder %s29, 1
          %s560 = scalar_select %p559, %s29, 1
          %s561 = smul.addr %s560, 64
          %s562 = smul.addr %s561, 4
          %s563 = scalar_lea.vmem %s2, %s562
        $region84: #{kernel_update_head_forward.1} parent=71 // pred_fallthru
          _
        // Predicated region
        $region85: #{kernel_update_head_forward.1} parent=71 // pred_check
          %p564 = pneg %p127
        $region86: #{kernel_update_head_forward.1} parent=71 // pred_check_branch
          %566 = sbr.rel (%p564) target = $region88
        $region87: #{kernel_update_head_forward.1} parent=71 // pred_region
          %p567 = scmp.lt.s32.totalorder %s29, 1
          %s568 = scalar_select %p567, %s29, 1
          %s569 = smul.addr %s568, 16
          %s570 = smul.addr %s569, 4
          %s571 = scalar_lea.vmem %s3, %s570
        $region88: #{kernel_update_head_forward.1} parent=71 // pred_fallthru
          _
      $region72: #{kernel_update_head_forward.1} parent=5 // pred_fallthru
        _
      %p572 = scmp.le.s32.totalorder 1, %s29
      %p573 = scmp.lt.s32.totalorder %s29, 3
      %p574 = pnand %p572, %p573
      %p575 = pneg %p574
      // Predicated region
      $region89: #{kernel_update_head_forward.1} parent=5 // pred_check
        _
      $region90: #{kernel_update_head_forward.1} parent=5 // pred_check_branch
        %577 = sbr.rel (%p574) target = $region92
      $region91: #{kernel_update_head_forward.1} parent=5 // pred_region
        %s578 = ssub.s32 %s29, 1
        %p579 = scmp.lt.s32.totalorder %s34, 1
        %s580 = scalar_select %p579, %s34, 1
        %s581 = smul.addr %s580, 64
        %s582 = smul.addr %s581, 4
        %s583 = scalar_lea.vmem %s0, %s582
        %p584 = pneg %p55
        %p585 = pneg %p52
        %p586 = scmp.lt.s32.totalorder %s34, 1
        %s587 = scalar_select %p586, %s34, 1
        %s588 = smul.addr %s587, 16
        %s589 = smul.addr %s588, 4
        %s590 = scalar_lea.vmem %s1, %s589
        %p591 = pneg %p81
        %p592 = pneg %p78
        %p593 = scmp.lt.s32.totalorder %s34, 1
        %s594 = scalar_select %p593, %s34, 1
        %s595 = smul.addr %s594, 64
        %s596 = smul.addr %s595, 4
        %s597 = scalar_lea.vmem %s2, %s596
        %p598 = pneg %p107
        %p599 = pneg %p104
        %p600 = scmp.lt.s32.totalorder %s34, 1
        %s601 = scalar_select %p600, %s34, 1
        %s602 = smul.addr %s601, 16
        %s603 = smul.addr %s602, 4
        %s604 = scalar_lea.vmem %s3, %s603
        %p605 = pneg %p133
        %p606 = pneg %p130
        %p607 = pneg %p154
        %p608 = pneg %p151
        %p609 = pneg %p175
        %p610 = pneg %p172
        %p611 = pneg %p196
        %p612 = pneg %p193
        %p613 = pneg %p217
        %p614 = pneg %p214
        %p615 = pneg %p238
        %p616 = pneg %p235
        %p617 = pneg %p259
        %p618 = pneg %p256
        %p619 = pneg %p280
        %p620 = pneg %p277
        %p621 = pneg %p301
        %p622 = pneg %p298
        %p623 = pneg %p322
        %p624 = pneg %p319
        %p625 = pneg %p343
        %p626 = pneg %p340
        %p627 = pneg %p364
        %p628 = pneg %p361
        %p629 = pneg %p385
        %p630 = pneg %p382
        %p631 = pneg %p406
        %p632 = pneg %p403
        %p633 = pneg %p427
        %p634 = pneg %p424
        %p635 = pneg %p453
        %p636 = pneg %p450
        %p637 = scmp.lt.s32.totalorder %s34, 1
        %s638 = scalar_select %p637, %s34, 1
        %s639 = smul.addr %s638, 16
        %s640 = smul.addr %s639, 8
        %s641 = scalar_lea.vmem %s18, %s640
        %p642 = pneg %p479
        %p643 = pneg %p476
        %s644 = sand.u32 %s466, 1
        %s645 = scalar_lea.sflag [#allocation3], %s644
        %s646 = sand.u32 %s466, 1
        %s647 = smul.addr %s646, 128
        %s648 = scalar_lea.vmem [#allocation2], %s647
        %p649 = scmp.lt.s32.totalorder %s34, 1
        %s650 = scalar_select %p649, %s34, 1
        %s651 = smul.addr %s650, 64
        %s652 = smul.addr %s651, 4
        %s653 = scalar_lea.vmem %s0, %s652
        %p654 = scmp.lt.s32.totalorder %s34, 1
        %s655 = scalar_select %p654, %s34, 1
        %s656 = smul.addr %s655, 16
        %s657 = smul.addr %s656, 4
        %s658 = scalar_lea.vmem %s1, %s657
        %p659 = scmp.lt.s32.totalorder %s34, 1
        %s660 = scalar_select %p659, %s34, 1
        %s661 = smul.addr %s660, 64
        %s662 = smul.addr %s661, 4
        %s663 = scalar_lea.vmem %s2, %s662
        %p664 = scmp.lt.s32.totalorder %s34, 1
        %s665 = scalar_select %p664, %s34, 1
        %s666 = smul.addr %s665, 16
        %s667 = smul.addr %s666, 4
        %s668 = scalar_lea.vmem %s3, %s667
        %p669 = scmp.lt.s32.totalorder %s34, 1
        %s670 = scalar_select %p669, %s34, 1
        %s671 = smul.addr %s670, 16
        %s672 = smul.addr %s671, 8
        %s673 = scalar_lea.vmem %s18, %s672
        %v675 = vld [vmem:[%s653] sm:$0xff]
        %v676 = vld [vmem:[%s653 + $0x8] sm:$0xff]
        %v677 = vld [vmem:[%s653 + $0x10] sm:$0xff]
        %v678 = vld [vmem:[%s653 + $0x18] sm:$0xff]
        %v679 = vld [vmem:[%s653 + $0x20] sm:$0xff]
        %v680 = vld [vmem:[%s653 + $0x28] sm:$0xff]
        %v681 = vld [vmem:[%s653 + $0x30] sm:$0xff]
        %v682 = vld [vmem:[%s653 + $0x38] sm:$0xff]
        %v683 = vld [vmem:[%s653 + $0x40] sm:$0xff]
        %v684 = vld [vmem:[%s653 + $0x48] sm:$0xff]
        %v685 = vld [vmem:[%s653 + $0x50] sm:$0xff]
        %v686 = vld [vmem:[%s653 + $0x58] sm:$0xff]
        %v687 = vld [vmem:[%s653 + $0x60] sm:$0xff]
        %v688 = vld [vmem:[%s653 + $0x68] sm:$0xff]
        %v689 = vld [vmem:[%s653 + $0x70] sm:$0xff]
        %v690 = vld [vmem:[%s653 + $0x78] sm:$0xff]
        %v691 = vld [vmem:[%s653 + $0x80] sm:$0xff]
        %v692 = vld [vmem:[%s653 + $0x88] sm:$0xff]
        %v693 = vld [vmem:[%s653 + $0x90] sm:$0xff]
        %v694 = vld [vmem:[%s653 + $0x98] sm:$0xff]
        %v695 = vld [vmem:[%s653 + $0xa0] sm:$0xff]
        %v696 = vld [vmem:[%s653 + $0xa8] sm:$0xff]
        %v697 = vld [vmem:[%s653 + $0xb0] sm:$0xff]
        %v698 = vld [vmem:[%s653 + $0xb8] sm:$0xff]
        %v699 = vld [vmem:[%s653 + $0xc0] sm:$0xff]
        %v700 = vld [vmem:[%s653 + $0xc8] sm:$0xff]
        %v701 = vld [vmem:[%s653 + $0xd0] sm:$0xff]
        %v702 = vld [vmem:[%s653 + $0xd8] sm:$0xff]
        %v703 = vld [vmem:[%s653 + $0xe0] sm:$0xff]
        %v704 = vld [vmem:[%s653 + $0xe8] sm:$0xff]
        %v705 = vld [vmem:[%s653 + $0xf0] sm:$0xff]
        %v706 = vld [vmem:[%s653 + $0xf8] sm:$0xff]
        %v707 = vld [vmem:[%s4] sm:$0xff]
        %v708 = vld [vmem:[%s4 + $0x8] sm:$0xff]
        %v709 = vld [vmem:[%s4 + $0x10] sm:$0xff]
        %v710 = vld [vmem:[%s4 + $0x18] sm:$0xff]
        %v711 = vld [vmem:[%s4 + $0x20] sm:$0xff]
        %v712 = vld [vmem:[%s4 + $0x28] sm:$0xff]
        %v713 = vld [vmem:[%s4 + $0x30] sm:$0xff]
        %v714 = vld [vmem:[%s4 + $0x38] sm:$0xff]
        %v715 = vld [vmem:[%s4 + $0x40] sm:$0xff]
        %v716 = vld [vmem:[%s4 + $0x48] sm:$0xff]
        %v717 = vld [vmem:[%s4 + $0x50] sm:$0xff]
        %v718 = vld [vmem:[%s4 + $0x58] sm:$0xff]
        %v719 = vld [vmem:[%s4 + $0x60] sm:$0xff]
        %v720 = vld [vmem:[%s4 + $0x68] sm:$0xff]
        %v721 = vld [vmem:[%s4 + $0x70] sm:$0xff]
        %v722 = vld [vmem:[%s4 + $0x78] sm:$0xff]
        %v723 = vld [vmem:[%s4 + $0x80] sm:$0xff]
        %v724 = vld [vmem:[%s4 + $0x88] sm:$0xff]
        %v725 = vld [vmem:[%s4 + $0x90] sm:$0xff]
        %v726 = vld [vmem:[%s4 + $0x98] sm:$0xff]
        %v727 = vld [vmem:[%s4 + $0xa0] sm:$0xff]
        %v728 = vld [vmem:[%s4 + $0xa8] sm:$0xff]
        %v729 = vld [vmem:[%s4 + $0xb0] sm:$0xff]
        %v730 = vld [vmem:[%s4 + $0xb8] sm:$0xff]
        %v731 = vld [vmem:[%s4 + $0xc0] sm:$0xff]
        %v732 = vld [vmem:[%s4 + $0xc8] sm:$0xff]
        %v733 = vld [vmem:[%s4 + $0xd0] sm:$0xff]
        %v734 = vld [vmem:[%s4 + $0xd8] sm:$0xff]
        %v735 = vld [vmem:[%s4 + $0xe0] sm:$0xff]
        %v736 = vld [vmem:[%s4 + $0xe8] sm:$0xff]
        %v737 = vld [vmem:[%s4 + $0xf0] sm:$0xff]
        %v738 = vld [vmem:[%s4 + $0xf8] sm:$0xff]
        %v771 = vunpack.c.l.b16 %v675
        %v772 = vunpack.c.h.b16 %v675
        %v773 = vunpack.c.l.b16 %v676
        %v774 = vunpack.c.h.b16 %v676
        %v775 = vunpack.c.l.b16 %v677
        %v776 = vunpack.c.h.b16 %v677
        %v777 = vunpack.c.l.b16 %v678
        %v778 = vunpack.c.h.b16 %v678
        %v779 = vunpack.c.l.b16 %v679
        %v780 = vunpack.c.h.b16 %v679
        %v781 = vunpack.c.l.b16 %v680
        %v782 = vunpack.c.h.b16 %v680
        %v783 = vunpack.c.l.b16 %v681
        %v784 = vunpack.c.h.b16 %v681
        %v785 = vunpack.c.l.b16 %v682
        %v786 = vunpack.c.h.b16 %v682
        %v787 = vunpack.c.l.b16 %v683
        %v788 = vunpack.c.h.b16 %v683
        %v789 = vunpack.c.l.b16 %v684
        %v790 = vunpack.c.h.b16 %v684
        %v791 = vunpack.c.l.b16 %v685
        %v792 = vunpack.c.h.b16 %v685
        %v793 = vunpack.c.l.b16 %v686
        %v794 = vunpack.c.h.b16 %v686
        %v795 = vunpack.c.l.b16 %v687
        %v796 = vunpack.c.h.b16 %v687
        %v797 = vunpack.c.l.b16 %v688
        %v798 = vunpack.c.h.b16 %v688
        %v799 = vunpack.c.l.b16 %v689
        %v800 = vunpack.c.h.b16 %v689
        %v801 = vunpack.c.l.b16 %v690
        %v802 = vunpack.c.h.b16 %v690
        %v803 = vunpack.c.l.b16 %v691
        %v804 = vunpack.c.h.b16 %v691
        %v805 = vunpack.c.l.b16 %v692
        %v806 = vunpack.c.h.b16 %v692
        %v807 = vunpack.c.l.b16 %v693
        %v808 = vunpack.c.h.b16 %v693
        %v809 = vunpack.c.l.b16 %v694
        %v810 = vunpack.c.h.b16 %v694
        %v811 = vunpack.c.l.b16 %v695
        %v812 = vunpack.c.h.b16 %v695
        %v813 = vunpack.c.l.b16 %v696
        %v814 = vunpack.c.h.b16 %v696
        %v815 = vunpack.c.l.b16 %v697
        %v816 = vunpack.c.h.b16 %v697
        %v817 = vunpack.c.l.b16 %v698
        %v818 = vunpack.c.h.b16 %v698
        %v819 = vunpack.c.l.b16 %v699
        %v820 = vunpack.c.h.b16 %v699
        %v821 = vunpack.c.l.b16 %v700
        %v822 = vunpack.c.h.b16 %v700
        %v823 = vunpack.c.l.b16 %v701
        %v824 = vunpack.c.h.b16 %v701
        %v825 = vunpack.c.l.b16 %v702
        %v826 = vunpack.c.h.b16 %v702
        %v827 = vunpack.c.l.b16 %v703
        %v828 = vunpack.c.h.b16 %v703
        %v829 = vunpack.c.l.b16 %v704
        %v830 = vunpack.c.h.b16 %v704
        %v831 = vunpack.c.l.b16 %v705
        %v832 = vunpack.c.h.b16 %v705
        %v833 = vunpack.c.l.b16 %v706
        %v834 = vunpack.c.h.b16 %v706
        %v835 = vpack.c.b16 %v773, %v771
        %v836 = vpack.c.b16 %v774, %v772
        %v837 = vpack.c.b16 %v777, %v775
        %v838 = vpack.c.b16 %v778, %v776
        %v839 = vpack.c.b16 %v781, %v779
        %v840 = vpack.c.b16 %v782, %v780
        %v841 = vpack.c.b16 %v785, %v783
        %v842 = vpack.c.b16 %v786, %v784
        %v843 = vpack.c.b16 %v789, %v787
        %v844 = vpack.c.b16 %v790, %v788
        %v845 = vpack.c.b16 %v793, %v791
        %v846 = vpack.c.b16 %v794, %v792
        %v847 = vpack.c.b16 %v797, %v795
        %v848 = vpack.c.b16 %v798, %v796
        %v849 = vpack.c.b16 %v801, %v799
        %v850 = vpack.c.b16 %v802, %v800
        %v851 = vpack.c.b16 %v805, %v803
        %v852 = vpack.c.b16 %v806, %v804
        %v853 = vpack.c.b16 %v809, %v807
        %v854 = vpack.c.b16 %v810, %v808
        %v855 = vpack.c.b16 %v813, %v811
        %v856 = vpack.c.b16 %v814, %v812
        %v857 = vpack.c.b16 %v817, %v815
        %v858 = vpack.c.b16 %v818, %v816
        %v859 = vpack.c.b16 %v821, %v819
        %v860 = vpack.c.b16 %v822, %v820
        %v861 = vpack.c.b16 %v825, %v823
        %v862 = vpack.c.b16 %v826, %v824
        %v863 = vpack.c.b16 %v829, %v827
        %v864 = vpack.c.b16 %v830, %v828
        %v865 = vpack.c.b16 %v833, %v831
        %v866 = vpack.c.b16 %v834, %v832
        %v931 = vunpack.c.l.b16 %v707
        %v932 = vunpack.c.h.b16 %v707
        %v933 = vunpack.c.l.b16 %v708
        %v934 = vunpack.c.h.b16 %v708
        %v935 = vunpack.c.l.b16 %v709
        %v936 = vunpack.c.h.b16 %v709
        %v937 = vunpack.c.l.b16 %v710
        %v938 = vunpack.c.h.b16 %v710
        %v939 = vunpack.c.l.b16 %v711
        %v940 = vunpack.c.h.b16 %v711
        %v941 = vunpack.c.l.b16 %v712
        %v942 = vunpack.c.h.b16 %v712
        %v943 = vunpack.c.l.b16 %v713
        %v944 = vunpack.c.h.b16 %v713
        %v945 = vunpack.c.l.b16 %v714
        %v946 = vunpack.c.h.b16 %v714
        %v947 = vunpack.c.l.b16 %v715
        %v948 = vunpack.c.h.b16 %v715
        %v949 = vunpack.c.l.b16 %v716
        %v950 = vunpack.c.h.b16 %v716
        %v951 = vunpack.c.l.b16 %v717
        %v952 = vunpack.c.h.b16 %v717
        %v953 = vunpack.c.l.b16 %v718
        %v954 = vunpack.c.h.b16 %v718
        %v955 = vunpack.c.l.b16 %v719
        %v956 = vunpack.c.h.b16 %v719
        %v957 = vunpack.c.l.b16 %v720
        %v958 = vunpack.c.h.b16 %v720
        %v959 = vunpack.c.l.b16 %v721
        %v960 = vunpack.c.h.b16 %v721
        %v961 = vunpack.c.l.b16 %v722
        %v962 = vunpack.c.h.b16 %v722
        %v963 = vunpack.c.l.b16 %v723
        %v964 = vunpack.c.h.b16 %v723
        %v965 = vunpack.c.l.b16 %v724
        %v966 = vunpack.c.h.b16 %v724
        %v967 = vunpack.c.l.b16 %v725
        %v968 = vunpack.c.h.b16 %v725
        %v969 = vunpack.c.l.b16 %v726
        %v970 = vunpack.c.h.b16 %v726
        %v971 = vunpack.c.l.b16 %v727
        %v972 = vunpack.c.h.b16 %v727
        %v973 = vunpack.c.l.b16 %v728
        %v974 = vunpack.c.h.b16 %v728
        %v975 = vunpack.c.l.b16 %v729
        %v976 = vunpack.c.h.b16 %v729
        %v977 = vunpack.c.l.b16 %v730
        %v978 = vunpack.c.h.b16 %v730
        %v979 = vunpack.c.l.b16 %v731
        %v980 = vunpack.c.h.b16 %v731
        %v981 = vunpack.c.l.b16 %v732
        %v982 = vunpack.c.h.b16 %v732
        %v983 = vunpack.c.l.b16 %v733
        %v984 = vunpack.c.h.b16 %v733
        %v985 = vunpack.c.l.b16 %v734
        %v986 = vunpack.c.h.b16 %v734
        %v987 = vunpack.c.l.b16 %v735
        %v988 = vunpack.c.h.b16 %v735
        %v989 = vunpack.c.l.b16 %v736
        %v990 = vunpack.c.h.b16 %v736
        %v991 = vunpack.c.l.b16 %v737
        %v992 = vunpack.c.h.b16 %v737
        %v993 = vunpack.c.l.b16 %v738
        %v994 = vunpack.c.h.b16 %v738
        %v995 = vpack.c.b16 %v933, %v931
        %v996 = vpack.c.b16 %v934, %v932
        %v997 = vpack.c.b16 %v937, %v935
        %v998 = vpack.c.b16 %v938, %v936
        %v999 = vpack.c.b16 %v941, %v939
        %v1000 = vpack.c.b16 %v942, %v940
        %v1001 = vpack.c.b16 %v945, %v943
        %v1002 = vpack.c.b16 %v946, %v944
        %v1003 = vpack.c.b16 %v949, %v947
        %v1004 = vpack.c.b16 %v950, %v948
        %v1005 = vpack.c.b16 %v953, %v951
        %v1006 = vpack.c.b16 %v954, %v952
        %v1007 = vpack.c.b16 %v957, %v955
        %v1008 = vpack.c.b16 %v958, %v956
        %v1009 = vpack.c.b16 %v961, %v959
        %v1010 = vpack.c.b16 %v962, %v960
        %v1011 = vpack.c.b16 %v965, %v963
        %v1012 = vpack.c.b16 %v966, %v964
        %v1013 = vpack.c.b16 %v969, %v967
        %v1014 = vpack.c.b16 %v970, %v968
        %v1015 = vpack.c.b16 %v973, %v971
        %v1016 = vpack.c.b16 %v974, %v972
        %v1017 = vpack.c.b16 %v977, %v975
        %v1018 = vpack.c.b16 %v978, %v976
        %v1019 = vpack.c.b16 %v981, %v979
        %v1020 = vpack.c.b16 %v982, %v980
        %v1021 = vpack.c.b16 %v985, %v983
        %v1022 = vpack.c.b16 %v986, %v984
        %v1023 = vpack.c.b16 %v989, %v987
        %v1024 = vpack.c.b16 %v990, %v988
        %v1025 = vpack.c.b16 %v993, %v991
        %v1026 = vpack.c.b16 %v994, %v992
        %1059 = vmatprep.subr.bf16.mxu0 %v1010
        %1060 = vmatpush1.bf16.msra.mxu0 %v1009
        %1061 = vmatprep.subr.bf16.mxu0 %v1008
        %1062 = vmatpush1.bf16.msra.mxu0 %v1007
        %1063 = vmatprep.subr.bf16.mxu0 %v1006
        %1064 = vmatpush1.bf16.msra.mxu0 %v1005
        %1065 = vmatprep.subr.bf16.mxu0 %v1004
        %1066 = vmatpush1.bf16.msra.mxu0 %v1003
        %1067 = vmatprep.subr.bf16.mxu0 %v1002
        %1068 = vmatpush1.bf16.msra.mxu0 %v1001
        %1069 = vmatprep.subr.bf16.mxu0 %v1000
        %1070 = vmatpush1.bf16.msra.mxu0 %v999
        %1071 = vmatprep.subr.bf16.mxu0 %v998
        %1072 = vmatpush1.bf16.msra.mxu0 %v997
        %1073 = vmatprep.subr.bf16.mxu0 %v996
        %1074 = vmatpush1.bf16.msra.mxu0 %v995
        %1075 = vmatprep.subr.bf16.mxu0 %v1026
        %1076 = vmatpush2.bf16.msra.mxu0 %v1025
        %1077 = vmatprep.subr.bf16.mxu0 %v1024
        %1078 = vmatpush2.bf16.msra.mxu0 %v1023
        %1079 = vmatprep.subr.bf16.mxu0 %v1022
        %1080 = vmatpush2.bf16.msra.mxu0 %v1021
        %1081 = vmatprep.subr.bf16.mxu0 %v1020
        %1082 = vmatpush2.bf16.msra.mxu0 %v1019
        %1083 = vmatprep.subr.bf16.mxu0 %v1018
        %1084 = vmatpush2.bf16.msra.mxu0 %v1017
        %1085 = vmatprep.subr.bf16.mxu0 %v1016
        %1086 = vmatpush2.bf16.msra.mxu0 %v1015
        %1087 = vmatprep.subr.bf16.mxu0 %v1014
        %1088 = vmatpush2.bf16.msra.mxu0 %v1013
        %1089 = vmatprep.subr.bf16.mxu0 %v1012
        %1090 = vmatpush2.bf16.msra.mxu0 %v1011
        %1091 = vmatprep.mubr.bf16.mxu0 %v836
        %1092 = vmatmul.mubr.bf16.gmra.mxu0 %v835
        %v1093 = vpop.f32.mrf.mxu0
        %v1094 = vadd.f32 0.0, %v1093
        %v1095 = vpop.f32.mrf.mxu0
        %v1096 = vadd.f32 0.0, %v1095
        %v1097 = vpop.f32.mrf.mxu0
        %v1098 = vadd.f32 0.0, %v1097
        %v1099 = vpop.f32.mrf.mxu0
        %v1100 = vadd.f32 0.0, %v1099
        %1101 = vmatprep.mubr.bf16.mxu0 %v838
        %1102 = vmatmul.mubr.bf16.gmra.mxu0 %v837
        %v1103 = vpop.f32.mrf.mxu0
        %v1104 = vadd.f32 0.0, %v1103
        %v1105 = vpop.f32.mrf.mxu0
        %v1106 = vadd.f32 0.0, %v1105
        %v1107 = vpop.f32.mrf.mxu0
        %v1108 = vadd.f32 0.0, %v1107
        %v1109 = vpop.f32.mrf.mxu0
        %v1110 = vadd.f32 0.0, %v1109
        %1111 = vmatprep.mubr.bf16.mxu0 %v840
        %1112 = vmatmul.mubr.bf16.gmra.mxu0 %v839
        %v1113 = vpop.f32.mrf.mxu0
        %v1114 = vadd.f32 0.0, %v1113
        %v1115 = vpop.f32.mrf.mxu0
        %v1116 = vadd.f32 0.0, %v1115
        %v1117 = vpop.f32.mrf.mxu0
        %v1118 = vadd.f32 0.0, %v1117
        %v1119 = vpop.f32.mrf.mxu0
        %v1120 = vadd.f32 0.0, %v1119
        %1121 = vmatprep.mubr.bf16.mxu0 %v842
        %1122 = vmatmul.mubr.bf16.gmra.mxu0 %v841
        %v1123 = vpop.f32.mrf.mxu0
        %v1124 = vadd.f32 0.0, %v1123
        %v1125 = vpop.f32.mrf.mxu0
        %v1126 = vadd.f32 0.0, %v1125
        %v1127 = vpop.f32.mrf.mxu0
        %v1128 = vadd.f32 0.0, %v1127
        %v1129 = vpop.f32.mrf.mxu0
        %v1130 = vadd.f32 0.0, %v1129
        %1131 = vmatprep.mubr.bf16.mxu0 %v844
        %1132 = vmatmul.mubr.bf16.gmra.mxu0 %v843
        %v1133 = vpop.f32.mrf.mxu0
        %v1134 = vadd.f32 0.0, %v1133
        %v1135 = vpop.f32.mrf.mxu0
        %v1136 = vadd.f32 0.0, %v1135
        %v1137 = vpop.f32.mrf.mxu0
        %v1138 = vadd.f32 0.0, %v1137
        %v1139 = vpop.f32.mrf.mxu0
        %v1140 = vadd.f32 0.0, %v1139
        %1141 = vmatprep.mubr.bf16.mxu0 %v846
        %1142 = vmatmul.mubr.bf16.gmra.mxu0 %v845
        %v1143 = vpop.f32.mrf.mxu0
        %v1144 = vadd.f32 0.0, %v1143
        %v1145 = vpop.f32.mrf.mxu0
        %v1146 = vadd.f32 0.0, %v1145
        %v1147 = vpop.f32.mrf.mxu0
        %v1148 = vadd.f32 0.0, %v1147
        %v1149 = vpop.f32.mrf.mxu0
        %v1150 = vadd.f32 0.0, %v1149
        %1151 = vmatprep.mubr.bf16.mxu0 %v848
        %1152 = vmatmul.mubr.bf16.gmra.mxu0 %v847
        %v1153 = vpop.f32.mrf.mxu0
        %v1154 = vadd.f32 0.0, %v1153
        %v1155 = vpop.f32.mrf.mxu0
        %v1156 = vadd.f32 0.0, %v1155
        %v1157 = vpop.f32.mrf.mxu0
        %v1158 = vadd.f32 0.0, %v1157
        %v1159 = vpop.f32.mrf.mxu0
        %v1160 = vadd.f32 0.0, %v1159
        %1161 = vmatprep.mubr.bf16.mxu0 %v850
        %1162 = vmatmul.mubr.bf16.gmra.mxu0 %v849
        %v1163 = vpop.f32.mrf.mxu0
        %v1164 = vadd.f32 0.0, %v1163
        %v1165 = vpop.f32.mrf.mxu0
        %v1166 = vadd.f32 0.0, %v1165
        %v1167 = vpop.f32.mrf.mxu0
        %v1168 = vadd.f32 0.0, %v1167
        %v1169 = vpop.f32.mrf.mxu0
        %v1170 = vadd.f32 0.0, %v1169
        %1171 = vmatprep.mubr.bf16.mxu0 %v852
        %1172 = vmatmul.mubr.bf16.gmra.mxu0 %v851
        %v1173 = vpop.f32.mrf.mxu0
        %v1174 = vadd.f32 0.0, %v1173
        %v1175 = vpop.f32.mrf.mxu0
        %v1176 = vadd.f32 0.0, %v1175
        %v1177 = vpop.f32.mrf.mxu0
        %v1178 = vadd.f32 0.0, %v1177
        %v1179 = vpop.f32.mrf.mxu0
        %v1180 = vadd.f32 0.0, %v1179
        %1181 = vmatprep.mubr.bf16.mxu0 %v854
        %1182 = vmatmul.mubr.bf16.gmra.mxu0 %v853
        %v1183 = vpop.f32.mrf.mxu0
        %v1184 = vadd.f32 0.0, %v1183
        %v1185 = vpop.f32.mrf.mxu0
        %v1186 = vadd.f32 0.0, %v1185
        %v1187 = vpop.f32.mrf.mxu0
        %v1188 = vadd.f32 0.0, %v1187
        %v1189 = vpop.f32.mrf.mxu0
        %v1190 = vadd.f32 0.0, %v1189
        %1191 = vmatprep.mubr.bf16.mxu0 %v856
        %1192 = vmatmul.mubr.bf16.gmra.mxu0 %v855
        %v1193 = vpop.f32.mrf.mxu0
        %v1194 = vadd.f32 0.0, %v1193
        %v1195 = vpop.f32.mrf.mxu0
        %v1196 = vadd.f32 0.0, %v1195
        %v1197 = vpop.f32.mrf.mxu0
        %v1198 = vadd.f32 0.0, %v1197
        %v1199 = vpop.f32.mrf.mxu0
        %v1200 = vadd.f32 0.0, %v1199
        %1201 = vmatprep.mubr.bf16.mxu0 %v858
        %1202 = vmatmul.mubr.bf16.gmra.mxu0 %v857
        %v1203 = vpop.f32.mrf.mxu0
        %v1204 = vadd.f32 0.0, %v1203
        %v1205 = vpop.f32.mrf.mxu0
        %v1206 = vadd.f32 0.0, %v1205
        %v1207 = vpop.f32.mrf.mxu0
        %v1208 = vadd.f32 0.0, %v1207
        %v1209 = vpop.f32.mrf.mxu0
        %v1210 = vadd.f32 0.0, %v1209
        %1211 = vmatprep.mubr.bf16.mxu0 %v860
        %1212 = vmatmul.mubr.bf16.gmra.mxu0 %v859
        %v1213 = vpop.f32.mrf.mxu0
        %v1214 = vadd.f32 0.0, %v1213
        %v1215 = vpop.f32.mrf.mxu0
        %v1216 = vadd.f32 0.0, %v1215
        %v1217 = vpop.f32.mrf.mxu0
        %v1218 = vadd.f32 0.0, %v1217
        %v1219 = vpop.f32.mrf.mxu0
        %v1220 = vadd.f32 0.0, %v1219
        %1221 = vmatprep.mubr.bf16.mxu0 %v862
        %1222 = vmatmul.mubr.bf16.gmra.mxu0 %v861
        %v1223 = vpop.f32.mrf.mxu0
        %v1224 = vadd.f32 0.0, %v1223
        %v1225 = vpop.f32.mrf.mxu0
        %v1226 = vadd.f32 0.0, %v1225
        %v1227 = vpop.f32.mrf.mxu0
        %v1228 = vadd.f32 0.0, %v1227
        %v1229 = vpop.f32.mrf.mxu0
        %v1230 = vadd.f32 0.0, %v1229
        %1231 = vmatprep.mubr.bf16.mxu0 %v864
        %1232 = vmatmul.mubr.bf16.gmra.mxu0 %v863
        %v1233 = vpop.f32.mrf.mxu0
        %v1234 = vadd.f32 0.0, %v1233
        %v1235 = vpop.f32.mrf.mxu0
        %v1236 = vadd.f32 0.0, %v1235
        %v1237 = vpop.f32.mrf.mxu0
        %v1238 = vadd.f32 0.0, %v1237
        %v1239 = vpop.f32.mrf.mxu0
        %v1240 = vadd.f32 0.0, %v1239
        %1241 = vmatprep.mubr.bf16.mxu0 %v866
        %1242 = vmatmul.mubr.bf16.gmra.mxu0 %v865
        %v1243 = vpop.f32.mrf.mxu0
        %v1244 = vadd.f32 0.0, %v1243
        %v1245 = vpop.f32.mrf.mxu0
        %v1246 = vadd.f32 0.0, %v1245
        %v1247 = vpop.f32.mrf.mxu0
        %v1248 = vadd.f32 0.0, %v1247
        %v1249 = vpop.f32.mrf.mxu0
        %v1250 = vadd.f32 0.0, %v1249
        %1251 = vdwg.mxu0
        %v1252 = vadd.f32 %v1094, %v1098
        %v1253 = vadd.f32 %v1252, %v1104
        %v1254 = vadd.f32 %v1253, %v1108
        %v1255 = vadd.f32 %v1254, %v1114
        %v1256 = vadd.f32 %v1255, %v1118
        %v1257 = vadd.f32 %v1256, %v1124
        %v1258 = vadd.f32 %v1257, %v1128
        %v1259 = vadd.f32 %v1258, %v1134
        %v1260 = vadd.f32 %v1259, %v1138
        %v1261 = vadd.f32 %v1260, %v1144
        %v1262 = vadd.f32 %v1261, %v1148
        %v1263 = vadd.f32 %v1262, %v1154
        %v1264 = vadd.f32 %v1263, %v1158
        %v1265 = vadd.f32 %v1264, %v1164
        %v1266 = vadd.f32 %v1265, %v1168
        %v1267 = vadd.f32 %v1266, %v1174
        %v1268 = vadd.f32 %v1267, %v1178
        %v1269 = vadd.f32 %v1268, %v1184
        %v1270 = vadd.f32 %v1269, %v1188
        %v1271 = vadd.f32 %v1270, %v1194
        %v1272 = vadd.f32 %v1271, %v1198
        %v1273 = vadd.f32 %v1272, %v1204
        %v1274 = vadd.f32 %v1273, %v1208
        %v1275 = vadd.f32 %v1274, %v1214
        %v1276 = vadd.f32 %v1275, %v1218
        %v1277 = vadd.f32 %v1276, %v1224
        %v1278 = vadd.f32 %v1277, %v1228
        %v1279 = vadd.f32 %v1278, %v1234
        %v1280 = vadd.f32 %v1279, %v1238
        %v1281 = vadd.f32 %v1280, %v1244
        %v1282 = vadd.f32 %v1281, %v1248
        %v1283 = vrot.slane %v1282, 4
        %v1284 = vadd.f32 %v1282, %v1283
        %v1285 = vrot.slane %v1284, 2
        %v1286 = vadd.f32 %v1284, %v1285
        %v1287 = vrot.slane %v1286, 1
        %v1288 = vadd.f32 %v1286, %v1287
        %v1289 = vadd.f32 %v1096, %v1100
        %v1290 = vadd.f32 %v1289, %v1106
        %v1291 = vadd.f32 %v1290, %v1110
        %v1292 = vadd.f32 %v1291, %v1116
        %v1293 = vadd.f32 %v1292, %v1120
        %v1294 = vadd.f32 %v1293, %v1126
        %v1295 = vadd.f32 %v1294, %v1130
        %v1296 = vadd.f32 %v1295, %v1136
        %v1297 = vadd.f32 %v1296, %v1140
        %v1298 = vadd.f32 %v1297, %v1146
        %v1299 = vadd.f32 %v1298, %v1150
        %v1300 = vadd.f32 %v1299, %v1156
        %v1301 = vadd.f32 %v1300, %v1160
        %v1302 = vadd.f32 %v1301, %v1166
        %v1303 = vadd.f32 %v1302, %v1170
        %v1304 = vadd.f32 %v1303, %v1176
        %v1305 = vadd.f32 %v1304, %v1180
        %v1306 = vadd.f32 %v1305, %v1186
        %v1307 = vadd.f32 %v1306, %v1190
        %v1308 = vadd.f32 %v1307, %v1196
        %v1309 = vadd.f32 %v1308, %v1200
        %v1310 = vadd.f32 %v1309, %v1206
        %v1311 = vadd.f32 %v1310, %v1210
        %v1312 = vadd.f32 %v1311, %v1216
        %v1313 = vadd.f32 %v1312, %v1220
        %v1314 = vadd.f32 %v1313, %v1226
        %v1315 = vadd.f32 %v1314, %v1230
        %v1316 = vadd.f32 %v1315, %v1236
        %v1317 = vadd.f32 %v1316, %v1240
        %v1318 = vadd.f32 %v1317, %v1246
        %v1319 = vadd.f32 %v1318, %v1250
        %v1320 = vrot.slane %v1319, 4
        %v1321 = vadd.f32 %v1319, %v1320
        %v1322 = vrot.slane %v1321, 2
        %v1323 = vadd.f32 %v1321, %v1322
        %v1324 = vrot.slane %v1323, 1
        %v1325 = vadd.f32 %v1323, %v1324
        %v1326 = vmul.f32 %v1094, %v1094
        %v1327 = vmul.f32 %v1096, %v1096
        %v1328 = vmul.f32 %v1098, %v1098
        %v1329 = vmul.f32 %v1100, %v1100
        %v1330 = vmul.f32 %v1104, %v1104
        %v1331 = vmul.f32 %v1106, %v1106
        %v1332 = vmul.f32 %v1108, %v1108
        %v1333 = vmul.f32 %v1110, %v1110
        %v1334 = vmul.f32 %v1114, %v1114
        %v1335 = vmul.f32 %v1116, %v1116
        %v1336 = vmul.f32 %v1118, %v1118
        %v1337 = vmul.f32 %v1120, %v1120
        %v1338 = vmul.f32 %v1124, %v1124
        %v1339 = vmul.f32 %v1126, %v1126
        %v1340 = vmul.f32 %v1128, %v1128
        %v1341 = vmul.f32 %v1130, %v1130
        %v1342 = vmul.f32 %v1134, %v1134
        %v1343 = vmul.f32 %v1136, %v1136
        %v1344 = vmul.f32 %v1138, %v1138
        %v1345 = vmul.f32 %v1140, %v1140
        %v1346 = vmul.f32 %v1144, %v1144
        %v1347 = vmul.f32 %v1146, %v1146
        %v1348 = vmul.f32 %v1148, %v1148
        %v1349 = vmul.f32 %v1150, %v1150
        %v1350 = vmul.f32 %v1154, %v1154
        %v1351 = vmul.f32 %v1156, %v1156
        %v1352 = vmul.f32 %v1158, %v1158
        %v1353 = vmul.f32 %v1160, %v1160
        %v1354 = vmul.f32 %v1164, %v1164
        %v1355 = vmul.f32 %v1166, %v1166
        %v1356 = vmul.f32 %v1168, %v1168
        %v1357 = vmul.f32 %v1170, %v1170
        %v1358 = vmul.f32 %v1174, %v1174
        %v1359 = vmul.f32 %v1176, %v1176
        %v1360 = vmul.f32 %v1178, %v1178
        %v1361 = vmul.f32 %v1180, %v1180
        %v1362 = vmul.f32 %v1184, %v1184
        %v1363 = vmul.f32 %v1186, %v1186
        %v1364 = vmul.f32 %v1188, %v1188
        %v1365 = vmul.f32 %v1190, %v1190
        %v1366 = vmul.f32 %v1194, %v1194
        %v1367 = vmul.f32 %v1196, %v1196
        %v1368 = vmul.f32 %v1198, %v1198
        %v1369 = vmul.f32 %v1200, %v1200
        %v1370 = vmul.f32 %v1204, %v1204
        %v1371 = vmul.f32 %v1206, %v1206
        %v1372 = vmul.f32 %v1208, %v1208
        %v1373 = vmul.f32 %v1210, %v1210
        %v1374 = vmul.f32 %v1214, %v1214
        %v1375 = vmul.f32 %v1216, %v1216
        %v1376 = vmul.f32 %v1218, %v1218
        %v1377 = vmul.f32 %v1220, %v1220
        %v1378 = vmul.f32 %v1224, %v1224
        %v1379 = vmul.f32 %v1226, %v1226
        %v1380 = vmul.f32 %v1228, %v1228
        %v1381 = vmul.f32 %v1230, %v1230
        %v1382 = vmul.f32 %v1234, %v1234
        %v1383 = vmul.f32 %v1236, %v1236
        %v1384 = vmul.f32 %v1238, %v1238
        %v1385 = vmul.f32 %v1240, %v1240
        %v1386 = vmul.f32 %v1244, %v1244
        %v1387 = vmul.f32 %v1246, %v1246
        %v1388 = vmul.f32 %v1248, %v1248
        %v1389 = vmul.f32 %v1250, %v1250
        %v1390 = vadd.f32 %v1326, %v1328
        %v1391 = vadd.f32 %v1390, %v1330
        %v1392 = vadd.f32 %v1391, %v1332
        %v1393 = vadd.f32 %v1392, %v1334
        %v1394 = vadd.f32 %v1393, %v1336
        %v1395 = vadd.f32 %v1394, %v1338
        %v1396 = vadd.f32 %v1395, %v1340
        %v1397 = vadd.f32 %v1396, %v1342
        %v1398 = vadd.f32 %v1397, %v1344
        %v1399 = vadd.f32 %v1398, %v1346
        %v1400 = vadd.f32 %v1399, %v1348
        %v1401 = vadd.f32 %v1400, %v1350
        %v1402 = vadd.f32 %v1401, %v1352
        %v1403 = vadd.f32 %v1402, %v1354
        %v1404 = vadd.f32 %v1403, %v1356
        %v1405 = vadd.f32 %v1404, %v1358
        %v1406 = vadd.f32 %v1405, %v1360
        %v1407 = vadd.f32 %v1406, %v1362
        %v1408 = vadd.f32 %v1407, %v1364
        %v1409 = vadd.f32 %v1408, %v1366
        %v1410 = vadd.f32 %v1409, %v1368
        %v1411 = vadd.f32 %v1410, %v1370
        %v1412 = vadd.f32 %v1411, %v1372
        %v1413 = vadd.f32 %v1412, %v1374
        %v1414 = vadd.f32 %v1413, %v1376
        %v1415 = vadd.f32 %v1414, %v1378
        %v1416 = vadd.f32 %v1415, %v1380
        %v1417 = vadd.f32 %v1416, %v1382
        %v1418 = vadd.f32 %v1417, %v1384
        %v1419 = vadd.f32 %v1418, %v1386
        %v1420 = vadd.f32 %v1419, %v1388
        %v1421 = vrot.slane %v1420, 4
        %v1422 = vadd.f32 %v1420, %v1421
        %v1423 = vrot.slane %v1422, 2
        %v1424 = vadd.f32 %v1422, %v1423
        %v1425 = vrot.slane %v1424, 1
        %v1426 = vadd.f32 %v1424, %v1425
        %v1427 = vadd.f32 %v1327, %v1329
        %v1428 = vadd.f32 %v1427, %v1331
        %v1429 = vadd.f32 %v1428, %v1333
        %v1430 = vadd.f32 %v1429, %v1335
        %v1431 = vadd.f32 %v1430, %v1337
        %v1432 = vadd.f32 %v1431, %v1339
        %v1433 = vadd.f32 %v1432, %v1341
        %v1434 = vadd.f32 %v1433, %v1343
        %v1435 = vadd.f32 %v1434, %v1345
        %v1436 = vadd.f32 %v1435, %v1347
        %v1437 = vadd.f32 %v1436, %v1349
        %v1438 = vadd.f32 %v1437, %v1351
        %v1439 = vadd.f32 %v1438, %v1353
        %v1440 = vadd.f32 %v1439, %v1355
        %v1441 = vadd.f32 %v1440, %v1357
        %v1442 = vadd.f32 %v1441, %v1359
        %v1443 = vadd.f32 %v1442, %v1361
        %v1444 = vadd.f32 %v1443, %v1363
        %v1445 = vadd.f32 %v1444, %v1365
        %v1446 = vadd.f32 %v1445, %v1367
        %v1447 = vadd.f32 %v1446, %v1369
        %v1448 = vadd.f32 %v1447, %v1371
        %v1449 = vadd.f32 %v1448, %v1373
        %v1450 = vadd.f32 %v1449, %v1375
        %v1451 = vadd.f32 %v1450, %v1377
        %v1452 = vadd.f32 %v1451, %v1379
        %v1453 = vadd.f32 %v1452, %v1381
        %v1454 = vadd.f32 %v1453, %v1383
        %v1455 = vadd.f32 %v1454, %v1385
        %v1456 = vadd.f32 %v1455, %v1387
        %v1457 = vadd.f32 %v1456, %v1389
        %v1458 = vrot.slane %v1457, 4
        %v1459 = vadd.f32 %v1457, %v1458
        %v1460 = vrot.slane %v1459, 2
        %v1461 = vadd.f32 %v1459, %v1460
        %v1462 = vrot.slane %v1461, 1
        %v1463 = vadd.f32 %v1461, %v1462
        %v1464 = vpack.c.bf16 %v1288, %v1288
        %v1465 = vpack.c.bf16 %v1325, %v1325
        %v1466 = vld [vmem:[%s5] sm:$0xff]
        %v1467 = vld [vmem:[%s5 + $0x8] sm:$0xff]
        %v1468 = vld [vmem:[%s5 + $0x10] sm:$0xff]
        %v1469 = vld [vmem:[%s5 + $0x18] sm:$0xff]
        %v1470 = vld [vmem:[%s5 + $0x20] sm:$0xff]
        %v1471 = vld [vmem:[%s5 + $0x28] sm:$0xff]
        %v1472 = vld [vmem:[%s5 + $0x30] sm:$0xff]
        %v1473 = vld [vmem:[%s5 + $0x38] sm:$0xff]
        %v1474 = vld [vmem:[%s5 + $0x40] sm:$0xff]
        %v1475 = vld [vmem:[%s5 + $0x48] sm:$0xff]
        %v1476 = vld [vmem:[%s5 + $0x50] sm:$0xff]
        %v1477 = vld [vmem:[%s5 + $0x58] sm:$0xff]
        %v1478 = vld [vmem:[%s5 + $0x60] sm:$0xff]
        %v1479 = vld [vmem:[%s5 + $0x68] sm:$0xff]
        %v1480 = vld [vmem:[%s5 + $0x70] sm:$0xff]
        %v1481 = vld [vmem:[%s5 + $0x78] sm:$0xff]
        %v1482 = vld [vmem:[%s5 + $0x80] sm:$0xff]
        %v1483 = vld [vmem:[%s5 + $0x88] sm:$0xff]
        %v1484 = vld [vmem:[%s5 + $0x90] sm:$0xff]
        %v1485 = vld [vmem:[%s5 + $0x98] sm:$0xff]
        %v1486 = vld [vmem:[%s5 + $0xa0] sm:$0xff]
        %v1487 = vld [vmem:[%s5 + $0xa8] sm:$0xff]
        %v1488 = vld [vmem:[%s5 + $0xb0] sm:$0xff]
        %v1489 = vld [vmem:[%s5 + $0xb8] sm:$0xff]
        %v1490 = vld [vmem:[%s5 + $0xc0] sm:$0xff]
        %v1491 = vld [vmem:[%s5 + $0xc8] sm:$0xff]
        %v1492 = vld [vmem:[%s5 + $0xd0] sm:$0xff]
        %v1493 = vld [vmem:[%s5 + $0xd8] sm:$0xff]
        %v1494 = vld [vmem:[%s5 + $0xe0] sm:$0xff]
        %v1495 = vld [vmem:[%s5 + $0xe8] sm:$0xff]
        %v1496 = vld [vmem:[%s5 + $0xf0] sm:$0xff]
        %v1497 = vld [vmem:[%s5 + $0xf8] sm:$0xff]
        %v1530 = vunpack.c.l.b16 %v1466
        %v1531 = vunpack.c.h.b16 %v1466
        %v1532 = vunpack.c.l.b16 %v1467
        %v1533 = vunpack.c.h.b16 %v1467
        %v1534 = vunpack.c.l.b16 %v1468
        %v1535 = vunpack.c.h.b16 %v1468
        %v1536 = vunpack.c.l.b16 %v1469
        %v1537 = vunpack.c.h.b16 %v1469
        %v1538 = vunpack.c.l.b16 %v1470
        %v1539 = vunpack.c.h.b16 %v1470
        %v1540 = vunpack.c.l.b16 %v1471
        %v1541 = vunpack.c.h.b16 %v1471
        %v1542 = vunpack.c.l.b16 %v1472
        %v1543 = vunpack.c.h.b16 %v1472
        %v1544 = vunpack.c.l.b16 %v1473
        %v1545 = vunpack.c.h.b16 %v1473
        %v1546 = vunpack.c.l.b16 %v1474
        %v1547 = vunpack.c.h.b16 %v1474
        %v1548 = vunpack.c.l.b16 %v1475
        %v1549 = vunpack.c.h.b16 %v1475
        %v1550 = vunpack.c.l.b16 %v1476
        %v1551 = vunpack.c.h.b16 %v1476
        %v1552 = vunpack.c.l.b16 %v1477
        %v1553 = vunpack.c.h.b16 %v1477
        %v1554 = vunpack.c.l.b16 %v1478
        %v1555 = vunpack.c.h.b16 %v1478
        %v1556 = vunpack.c.l.b16 %v1479
        %v1557 = vunpack.c.h.b16 %v1479
        %v1558 = vunpack.c.l.b16 %v1480
        %v1559 = vunpack.c.h.b16 %v1480
        %v1560 = vunpack.c.l.b16 %v1481
        %v1561 = vunpack.c.h.b16 %v1481
        %v1562 = vunpack.c.l.b16 %v1482
        %v1563 = vunpack.c.h.b16 %v1482
        %v1564 = vunpack.c.l.b16 %v1483
        %v1565 = vunpack.c.h.b16 %v1483
        %v1566 = vunpack.c.l.b16 %v1484
        %v1567 = vunpack.c.h.b16 %v1484
        %v1568 = vunpack.c.l.b16 %v1485
        %v1569 = vunpack.c.h.b16 %v1485
        %v1570 = vunpack.c.l.b16 %v1486
        %v1571 = vunpack.c.h.b16 %v1486
        %v1572 = vunpack.c.l.b16 %v1487
        %v1573 = vunpack.c.h.b16 %v1487
        %v1574 = vunpack.c.l.b16 %v1488
        %v1575 = vunpack.c.h.b16 %v1488
        %v1576 = vunpack.c.l.b16 %v1489
        %v1577 = vunpack.c.h.b16 %v1489
        %v1578 = vunpack.c.l.b16 %v1490
        %v1579 = vunpack.c.h.b16 %v1490
        %v1580 = vunpack.c.l.b16 %v1491
        %v1581 = vunpack.c.h.b16 %v1491
        %v1582 = vunpack.c.l.b16 %v1492
        %v1583 = vunpack.c.h.b16 %v1492
        %v1584 = vunpack.c.l.b16 %v1493
        %v1585 = vunpack.c.h.b16 %v1493
        %v1586 = vunpack.c.l.b16 %v1494
        %v1587 = vunpack.c.h.b16 %v1494
        %v1588 = vunpack.c.l.b16 %v1495
        %v1589 = vunpack.c.h.b16 %v1495
        %v1590 = vunpack.c.l.b16 %v1496
        %v1591 = vunpack.c.h.b16 %v1496
        %v1592 = vunpack.c.l.b16 %v1497
        %v1593 = vunpack.c.h.b16 %v1497
        %v1594 = vpack.c.b16 %v1532, %v1530
        %v1595 = vpack.c.b16 %v1533, %v1531
        %v1596 = vpack.c.b16 %v1536, %v1534
        %v1597 = vpack.c.b16 %v1537, %v1535
        %v1598 = vpack.c.b16 %v1540, %v1538
        %v1599 = vpack.c.b16 %v1541, %v1539
        %v1600 = vpack.c.b16 %v1544, %v1542
        %v1601 = vpack.c.b16 %v1545, %v1543
        %v1602 = vpack.c.b16 %v1548, %v1546
        %v1603 = vpack.c.b16 %v1549, %v1547
        %v1604 = vpack.c.b16 %v1552, %v1550
        %v1605 = vpack.c.b16 %v1553, %v1551
        %v1606 = vpack.c.b16 %v1556, %v1554
        %v1607 = vpack.c.b16 %v1557, %v1555
        %v1608 = vpack.c.b16 %v1560, %v1558
        %v1609 = vpack.c.b16 %v1561, %v1559
        %v1610 = vpack.c.b16 %v1564, %v1562
        %v1611 = vpack.c.b16 %v1565, %v1563
        %v1612 = vpack.c.b16 %v1568, %v1566
        %v1613 = vpack.c.b16 %v1569, %v1567
        %v1614 = vpack.c.b16 %v1572, %v1570
        %v1615 = vpack.c.b16 %v1573, %v1571
        %v1616 = vpack.c.b16 %v1576, %v1574
        %v1617 = vpack.c.b16 %v1577, %v1575
        %v1618 = vpack.c.b16 %v1580, %v1578
        %v1619 = vpack.c.b16 %v1581, %v1579
        %v1620 = vpack.c.b16 %v1584, %v1582
        %v1621 = vpack.c.b16 %v1585, %v1583
        %v1622 = vpack.c.b16 %v1588, %v1586
        %v1623 = vpack.c.b16 %v1589, %v1587
        %v1624 = vpack.c.b16 %v1592, %v1590
        %v1625 = vpack.c.b16 %v1593, %v1591
        %1658 = vmatprep.subr.bf16.mxu0 %v1609
        %1659 = vmatpush1.bf16.msra.mxu0 %v1608
        %1660 = vmatprep.subr.bf16.mxu0 %v1607
        %1661 = vmatpush1.bf16.msra.mxu0 %v1606
        %1662 = vmatprep.subr.bf16.mxu0 %v1605
        %1663 = vmatpush1.bf16.msra.mxu0 %v1604
        %1664 = vmatprep.subr.bf16.mxu0 %v1603
        %1665 = vmatpush1.bf16.msra.mxu0 %v1602
        %1666 = vmatprep.subr.bf16.mxu0 %v1601
        %1667 = vmatpush1.bf16.msra.mxu0 %v1600
        %1668 = vmatprep.subr.bf16.mxu0 %v1599
        %1669 = vmatpush1.bf16.msra.mxu0 %v1598
        %1670 = vmatprep.subr.bf16.mxu0 %v1597
        %1671 = vmatpush1.bf16.msra.mxu0 %v1596
        %1672 = vmatprep.subr.bf16.mxu0 %v1595
        %1673 = vmatpush1.bf16.msra.mxu0 %v1594
        %1674 = vmatprep.subr.bf16.mxu0 %v1625
        %1675 = vmatpush2.bf16.msra.mxu0 %v1624
        %1676 = vmatprep.subr.bf16.mxu0 %v1623
        %1677 = vmatpush2.bf16.msra.mxu0 %v1622
        %1678 = vmatprep.subr.bf16.mxu0 %v1621
        %1679 = vmatpush2.bf16.msra.mxu0 %v1620
        %1680 = vmatprep.subr.bf16.mxu0 %v1619
        %1681 = vmatpush2.bf16.msra.mxu0 %v1618
        %1682 = vmatprep.subr.bf16.mxu0 %v1617
        %1683 = vmatpush2.bf16.msra.mxu0 %v1616
        %1684 = vmatprep.subr.bf16.mxu0 %v1615
        %1685 = vmatpush2.bf16.msra.mxu0 %v1614
        %1686 = vmatprep.subr.bf16.mxu0 %v1613
        %1687 = vmatpush2.bf16.msra.mxu0 %v1612
        %1688 = vmatprep.subr.bf16.mxu0 %v1611
        %1689 = vmatpush2.bf16.msra.mxu0 %v1610
        %1690 = vmatprep.mubr.bf16.mxu0 %v1465
        %1691 = vmatmul.mubr.bf16.gmra.mxu0 %v1464
        %v1692 = vpop.f32.mrf.mxu0
        %v1693 = vadd.f32 0.0, %v1692
        %v1694 = vpop.f32.mrf.mxu0
        %v1695 = vadd.f32 0.0, %v1694
        %v1696 = vpop.f32.mrf.mxu0
        %v1697 = vpop.f32.mrf.mxu0
        %1698 = vdwg.mxu0
        %v1699 = vmul.f32 %v1693, 0.00048828125
        %v1700 = vmul.f32 %v1695, 0.00048828125
        %v1701 = vpack.c.bf16 %v1426, %v1426
        %v1702 = vpack.c.bf16 %v1463, %v1463
        %1703 = vmatprep.subr.bf16.mxu0 %v1609
        %1704 = vmatpush1.bf16.msra.mxu0 %v1608
        %1705 = vmatprep.subr.bf16.mxu0 %v1607
        %1706 = vmatpush1.bf16.msra.mxu0 %v1606
        %1707 = vmatprep.subr.bf16.mxu0 %v1605
        %1708 = vmatpush1.bf16.msra.mxu0 %v1604
        %1709 = vmatprep.subr.bf16.mxu0 %v1603
        %1710 = vmatpush1.bf16.msra.mxu0 %v1602
        %1711 = vmatprep.subr.bf16.mxu0 %v1601
        %1712 = vmatpush1.bf16.msra.mxu0 %v1600
        %1713 = vmatprep.subr.bf16.mxu0 %v1599
        %1714 = vmatpush1.bf16.msra.mxu0 %v1598
        %1715 = vmatprep.subr.bf16.mxu0 %v1597
        %1716 = vmatpush1.bf16.msra.mxu0 %v1596
        %1717 = vmatprep.subr.bf16.mxu0 %v1595
        %1718 = vmatpush1.bf16.msra.mxu0 %v1594
        %1719 = vmatprep.subr.bf16.mxu0 %v1625
        %1720 = vmatpush2.bf16.msra.mxu0 %v1624
        %1721 = vmatprep.subr.bf16.mxu0 %v1623
        %1722 = vmatpush2.bf16.msra.mxu0 %v1622
        %1723 = vmatprep.subr.bf16.mxu0 %v1621
        %1724 = vmatpush2.bf16.msra.mxu0 %v1620
        %1725 = vmatprep.subr.bf16.mxu0 %v1619
        %1726 = vmatpush2.bf16.msra.mxu0 %v1618
        %1727 = vmatprep.subr.bf16.mxu0 %v1617
        %1728 = vmatpush2.bf16.msra.mxu0 %v1616
        %1729 = vmatprep.subr.bf16.mxu0 %v1615
        %1730 = vmatpush2.bf16.msra.mxu0 %v1614
        %1731 = vmatprep.subr.bf16.mxu0 %v1613
        %1732 = vmatpush2.bf16.msra.mxu0 %v1612
        %1733 = vmatprep.subr.bf16.mxu0 %v1611
        %1734 = vmatpush2.bf16.msra.mxu0 %v1610
        %1735 = vmatprep.mubr.bf16.mxu0 %v1702
        %1736 = vmatmul.mubr.bf16.gmra.mxu0 %v1701
        %v1737 = vpop.f32.mrf.mxu0
        %v1738 = vadd.f32 0.0, %v1737
        %v1739 = vpop.f32.mrf.mxu0
        %v1740 = vadd.f32 0.0, %v1739
        %v1741 = vpop.f32.mrf.mxu0
        %v1742 = vpop.f32.mrf.mxu0
        %1743 = vdwg.mxu0
        %v1744 = vmul.f32 %v1738, 0.00048828125
        %v1745 = vmul.f32 %v1740, 0.00048828125
        %v1746 = vmul.f32 %v1699, %v1699
        %v1747 = vmul.f32 %v1700, %v1700
        %v1748 = vsub.f32 %v1744, %v1746
        %v1749 = vsub.f32 %v1745, %v1747
        %v1750 = vmax.f32 %v1748, 0.0
        %v1751 = vmax.f32 %v1749, 0.0
        %v1752 = vlaneseq
        %v1753 = vshrl.u32 %v1752, 7
        %v1754 = vsub.s32 0, %v1753
        %v1755 = vrot.slane %v1699, %v1754
        %v1756 = vlaneseq
        %v1757 = vshrl.u32 %v1756, 7
        %v1758 = vsub.s32 0, %v1757
        %v1759 = vrot.slane %v1700, %v1758
        %v1760 = vsub.f32 %v1094, %v1755
        %v1761 = vsub.f32 %v1096, %v1759
        %v1762 = vsub.f32 %v1098, %v1755
        %v1763 = vsub.f32 %v1100, %v1759
        %v1764 = vsub.f32 %v1104, %v1755
        %v1765 = vsub.f32 %v1106, %v1759
        %v1766 = vsub.f32 %v1108, %v1755
        %v1767 = vsub.f32 %v1110, %v1759
        %v1768 = vsub.f32 %v1114, %v1755
        %v1769 = vsub.f32 %v1116, %v1759
        %v1770 = vsub.f32 %v1118, %v1755
        %v1771 = vsub.f32 %v1120, %v1759
        %v1772 = vsub.f32 %v1124, %v1755
        %v1773 = vsub.f32 %v1126, %v1759
        %v1774 = vsub.f32 %v1128, %v1755
        %v1775 = vsub.f32 %v1130, %v1759
        %v1776 = vsub.f32 %v1134, %v1755
        %v1777 = vsub.f32 %v1136, %v1759
        %v1778 = vsub.f32 %v1138, %v1755
        %v1779 = vsub.f32 %v1140, %v1759
        %v1780 = vsub.f32 %v1144, %v1755
        %v1781 = vsub.f32 %v1146, %v1759
        %v1782 = vsub.f32 %v1148, %v1755
        %v1783 = vsub.f32 %v1150, %v1759
        %v1784 = vsub.f32 %v1154, %v1755
        %v1785 = vsub.f32 %v1156, %v1759
        %v1786 = vsub.f32 %v1158, %v1755
        %v1787 = vsub.f32 %v1160, %v1759
        %v1788 = vsub.f32 %v1164, %v1755
        %v1789 = vsub.f32 %v1166, %v1759
        %v1790 = vsub.f32 %v1168, %v1755
        %v1791 = vsub.f32 %v1170, %v1759
        %v1792 = vsub.f32 %v1174, %v1755
        %v1793 = vsub.f32 %v1176, %v1759
        %v1794 = vsub.f32 %v1178, %v1755
        %v1795 = vsub.f32 %v1180, %v1759
        %v1796 = vsub.f32 %v1184, %v1755
        %v1797 = vsub.f32 %v1186, %v1759
        %v1798 = vsub.f32 %v1188, %v1755
        %v1799 = vsub.f32 %v1190, %v1759
        %v1800 = vsub.f32 %v1194, %v1755
        %v1801 = vsub.f32 %v1196, %v1759
        %v1802 = vsub.f32 %v1198, %v1755
        %v1803 = vsub.f32 %v1200, %v1759
        %v1804 = vsub.f32 %v1204, %v1755
        %v1805 = vsub.f32 %v1206, %v1759
        %v1806 = vsub.f32 %v1208, %v1755
        %v1807 = vsub.f32 %v1210, %v1759
        %v1808 = vsub.f32 %v1214, %v1755
        %v1809 = vsub.f32 %v1216, %v1759
        %v1810 = vsub.f32 %v1218, %v1755
        %v1811 = vsub.f32 %v1220, %v1759
        %v1812 = vsub.f32 %v1224, %v1755
        %v1813 = vsub.f32 %v1226, %v1759
        %v1814 = vsub.f32 %v1228, %v1755
        %v1815 = vsub.f32 %v1230, %v1759
        %v1816 = vsub.f32 %v1234, %v1755
        %v1817 = vsub.f32 %v1236, %v1759
        %v1818 = vsub.f32 %v1238, %v1755
        %v1819 = vsub.f32 %v1240, %v1759
        %v1820 = vsub.f32 %v1244, %v1755
        %v1821 = vsub.f32 %v1246, %v1759
        %v1822 = vsub.f32 %v1248, %v1755
        %v1823 = vsub.f32 %v1250, %v1759
        %v1824 = vadd.f32 %v1750, 1e-05
        %v1825 = vadd.f32 %v1751, 1e-05
        %v1826 = vrsqrt.pop %v1824
        %v1827 = vrsqrt.pop %v1825
        %v1828 = vlaneseq
        %v1829 = vshrl.u32 %v1828, 7
        %v1830 = vsub.s32 0, %v1829
        %v1831 = vrot.slane %v1826, %v1830
        %v1832 = vlaneseq
        %v1833 = vshrl.u32 %v1832, 7
        %v1834 = vsub.s32 0, %v1833
        %v1835 = vrot.slane %v1827, %v1834
        %v1836 = vmul.f32 %v1760, %v1831
        %v1837 = vmul.f32 %v1761, %v1835
        %v1838 = vmul.f32 %v1762, %v1831
        %v1839 = vmul.f32 %v1763, %v1835
        %v1840 = vmul.f32 %v1764, %v1831
        %v1841 = vmul.f32 %v1765, %v1835
        %v1842 = vmul.f32 %v1766, %v1831
        %v1843 = vmul.f32 %v1767, %v1835
        %v1844 = vmul.f32 %v1768, %v1831
        %v1845 = vmul.f32 %v1769, %v1835
        %v1846 = vmul.f32 %v1770, %v1831
        %v1847 = vmul.f32 %v1771, %v1835
        %v1848 = vmul.f32 %v1772, %v1831
        %v1849 = vmul.f32 %v1773, %v1835
        %v1850 = vmul.f32 %v1774, %v1831
        %v1851 = vmul.f32 %v1775, %v1835
        %v1852 = vmul.f32 %v1776, %v1831
        %v1853 = vmul.f32 %v1777, %v1835
        %v1854 = vmul.f32 %v1778, %v1831
        %v1855 = vmul.f32 %v1779, %v1835
        %v1856 = vmul.f32 %v1780, %v1831
        %v1857 = vmul.f32 %v1781, %v1835
        %v1858 = vmul.f32 %v1782, %v1831
        %v1859 = vmul.f32 %v1783, %v1835
        %v1860 = vmul.f32 %v1784, %v1831
        %v1861 = vmul.f32 %v1785, %v1835
        %v1862 = vmul.f32 %v1786, %v1831
        %v1863 = vmul.f32 %v1787, %v1835
        %v1864 = vmul.f32 %v1788, %v1831
        %v1865 = vmul.f32 %v1789, %v1835
        %v1866 = vmul.f32 %v1790, %v1831
        %v1867 = vmul.f32 %v1791, %v1835
        %v1868 = vmul.f32 %v1792, %v1831
        %v1869 = vmul.f32 %v1793, %v1835
        %v1870 = vmul.f32 %v1794, %v1831
        %v1871 = vmul.f32 %v1795, %v1835
        %v1872 = vmul.f32 %v1796, %v1831
        %v1873 = vmul.f32 %v1797, %v1835
        %v1874 = vmul.f32 %v1798, %v1831
        %v1875 = vmul.f32 %v1799, %v1835
        %v1876 = vmul.f32 %v1800, %v1831
        %v1877 = vmul.f32 %v1801, %v1835
        %v1878 = vmul.f32 %v1802, %v1831
        %v1879 = vmul.f32 %v1803, %v1835
        %v1880 = vmul.f32 %v1804, %v1831
        %v1881 = vmul.f32 %v1805, %v1835
        %v1882 = vmul.f32 %v1806, %v1831
        %v1883 = vmul.f32 %v1807, %v1835
        %v1884 = vmul.f32 %v1808, %v1831
        %v1885 = vmul.f32 %v1809, %v1835
        %v1886 = vmul.f32 %v1810, %v1831
        %v1887 = vmul.f32 %v1811, %v1835
        %v1888 = vmul.f32 %v1812, %v1831
        %v1889 = vmul.f32 %v1813, %v1835
        %v1890 = vmul.f32 %v1814, %v1831
        %v1891 = vmul.f32 %v1815, %v1835
        %v1892 = vmul.f32 %v1816, %v1831
        %v1893 = vmul.f32 %v1817, %v1835
        %v1894 = vmul.f32 %v1818, %v1831
        %v1895 = vmul.f32 %v1819, %v1835
        %v1896 = vmul.f32 %v1820, %v1831
        %v1897 = vmul.f32 %v1821, %v1835
        %v1898 = vmul.f32 %v1822, %v1831
        %v1899 = vmul.f32 %v1823, %v1835
        %v1900 = vld [vmem:[%s17] ss:$8 sm:$0x3]
        %v1902 = vlaneseq
        %v1903 = vshrl.u32 %v1902, 7
        %v1904 = vsub.s32 0, %v1903
        %v1905 = vrot.slane %v1900, %v1904
        %v1906 = vlaneseq
        %v1907 = vshrl.u32 %v1906, 7
        %v1908 = vsub.s32 1, %v1907
        %v1909 = vrot.slane %v1900, %v1908
        %v1912 = vmul.f32 %v1836, %v1905
        %v1913 = vmul.f32 %v1837, %v1909
        %v1914 = vmul.f32 %v1838, %v1905
        %v1915 = vmul.f32 %v1839, %v1909
        %v1916 = vmul.f32 %v1840, %v1905
        %v1917 = vmul.f32 %v1841, %v1909
        %v1918 = vmul.f32 %v1842, %v1905
        %v1919 = vmul.f32 %v1843, %v1909
        %v1920 = vmul.f32 %v1844, %v1905
        %v1921 = vmul.f32 %v1845, %v1909
        %v1922 = vmul.f32 %v1846, %v1905
        %v1923 = vmul.f32 %v1847, %v1909
        %v1924 = vmul.f32 %v1848, %v1905
        %v1925 = vmul.f32 %v1849, %v1909
        %v1926 = vmul.f32 %v1850, %v1905
        %v1927 = vmul.f32 %v1851, %v1909
        %v1928 = vmul.f32 %v1852, %v1905
        %v1929 = vmul.f32 %v1853, %v1909
        %v1930 = vmul.f32 %v1854, %v1905
        %v1931 = vmul.f32 %v1855, %v1909
        %v1932 = vmul.f32 %v1856, %v1905
        %v1933 = vmul.f32 %v1857, %v1909
        %v1934 = vmul.f32 %v1858, %v1905
        %v1935 = vmul.f32 %v1859, %v1909
        %v1936 = vmul.f32 %v1860, %v1905
        %v1937 = vmul.f32 %v1861, %v1909
        %v1938 = vmul.f32 %v1862, %v1905
        %v1939 = vmul.f32 %v1863, %v1909
        %v1940 = vmul.f32 %v1864, %v1905
        %v1941 = vmul.f32 %v1865, %v1909
        %v1942 = vmul.f32 %v1866, %v1905
        %v1943 = vmul.f32 %v1867, %v1909
        %v1944 = vmul.f32 %v1868, %v1905
        %v1945 = vmul.f32 %v1869, %v1909
        %v1946 = vmul.f32 %v1870, %v1905
        %v1947 = vmul.f32 %v1871, %v1909
        %v1948 = vmul.f32 %v1872, %v1905
        %v1949 = vmul.f32 %v1873, %v1909
        %v1950 = vmul.f32 %v1874, %v1905
        %v1951 = vmul.f32 %v1875, %v1909
        %v1952 = vmul.f32 %v1876, %v1905
        %v1953 = vmul.f32 %v1877, %v1909
        %v1954 = vmul.f32 %v1878, %v1905
        %v1955 = vmul.f32 %v1879, %v1909
        %v1956 = vmul.f32 %v1880, %v1905
        %v1957 = vmul.f32 %v1881, %v1909
        %v1958 = vmul.f32 %v1882, %v1905
        %v1959 = vmul.f32 %v1883, %v1909
        %v1960 = vmul.f32 %v1884, %v1905
        %v1961 = vmul.f32 %v1885, %v1909
        %v1962 = vmul.f32 %v1886, %v1905
        %v1963 = vmul.f32 %v1887, %v1909
        %v1964 = vmul.f32 %v1888, %v1905
        %v1965 = vmul.f32 %v1889, %v1909
        %v1966 = vmul.f32 %v1890, %v1905
        %v1967 = vmul.f32 %v1891, %v1909
        %v1968 = vmul.f32 %v1892, %v1905
        %v1969 = vmul.f32 %v1893, %v1909
        %v1970 = vmul.f32 %v1894, %v1905
        %v1971 = vmul.f32 %v1895, %v1909
        %v1972 = vmul.f32 %v1896, %v1905
        %v1973 = vmul.f32 %v1897, %v1909
        %v1974 = vmul.f32 %v1898, %v1905
        %v1975 = vmul.f32 %v1899, %v1909
        %s1976 = scalar_lea.vmem %s17, 1
        %v1977 = vld [vmem:[%s1976] ss:$8 sm:$0x3]
        %v1979 = vlaneseq
        %v1980 = vshrl.u32 %v1979, 7
        %v1981 = vsub.s32 0, %v1980
        %v1982 = vrot.slane %v1977, %v1981
        %v1983 = vlaneseq
        %v1984 = vshrl.u32 %v1983, 7
        %v1985 = vsub.s32 1, %v1984
        %v1986 = vrot.slane %v1977, %v1985
        %v1989 = vadd.f32 %v1912, %v1982
        %v1990 = vadd.f32 %v1913, %v1986
        %v1991 = vadd.f32 %v1914, %v1982
        %v1992 = vadd.f32 %v1915, %v1986
        %v1993 = vadd.f32 %v1916, %v1982
        %v1994 = vadd.f32 %v1917, %v1986
        %v1995 = vadd.f32 %v1918, %v1982
        %v1996 = vadd.f32 %v1919, %v1986
        %v1997 = vadd.f32 %v1920, %v1982
        %v1998 = vadd.f32 %v1921, %v1986
        %v1999 = vadd.f32 %v1922, %v1982
        %v2000 = vadd.f32 %v1923, %v1986
        %v2001 = vadd.f32 %v1924, %v1982
        %v2002 = vadd.f32 %v1925, %v1986
        %v2003 = vadd.f32 %v1926, %v1982
        %v2004 = vadd.f32 %v1927, %v1986
        %v2005 = vadd.f32 %v1928, %v1982
        %v2006 = vadd.f32 %v1929, %v1986
        %v2007 = vadd.f32 %v1930, %v1982
        %v2008 = vadd.f32 %v1931, %v1986
        %v2009 = vadd.f32 %v1932, %v1982
        %v2010 = vadd.f32 %v1933, %v1986
        %v2011 = vadd.f32 %v1934, %v1982
        %v2012 = vadd.f32 %v1935, %v1986
        %v2013 = vadd.f32 %v1936, %v1982
        %v2014 = vadd.f32 %v1937, %v1986
        %v2015 = vadd.f32 %v1938, %v1982
        %v2016 = vadd.f32 %v1939, %v1986
        %v2017 = vadd.f32 %v1940, %v1982
        %v2018 = vadd.f32 %v1941, %v1986
        %v2019 = vadd.f32 %v1942, %v1982
        %v2020 = vadd.f32 %v1943, %v1986
        %v2021 = vadd.f32 %v1944, %v1982
        %v2022 = vadd.f32 %v1945, %v1986
        %v2023 = vadd.f32 %v1946, %v1982
        %v2024 = vadd.f32 %v1947, %v1986
        %v2025 = vadd.f32 %v1948, %v1982
        %v2026 = vadd.f32 %v1949, %v1986
        %v2027 = vadd.f32 %v1950, %v1982
        %v2028 = vadd.f32 %v1951, %v1986
        %v2029 = vadd.f32 %v1952, %v1982
        %v2030 = vadd.f32 %v1953, %v1986
        %v2031 = vadd.f32 %v1954, %v1982
        %v2032 = vadd.f32 %v1955, %v1986
        %v2033 = vadd.f32 %v1956, %v1982
        %v2034 = vadd.f32 %v1957, %v1986
        %v2035 = vadd.f32 %v1958, %v1982
        %v2036 = vadd.f32 %v1959, %v1986
        %v2037 = vadd.f32 %v1960, %v1982
        %v2038 = vadd.f32 %v1961, %v1986
        %v2039 = vadd.f32 %v1962, %v1982
        %v2040 = vadd.f32 %v1963, %v1986
        %v2041 = vadd.f32 %v1964, %v1982
        %v2042 = vadd.f32 %v1965, %v1986
        %v2043 = vadd.f32 %v1966, %v1982
        %v2044 = vadd.f32 %v1967, %v1986
        %v2045 = vadd.f32 %v1968, %v1982
        %v2046 = vadd.f32 %v1969, %v1986
        %v2047 = vadd.f32 %v1970, %v1982
        %v2048 = vadd.f32 %v1971, %v1986
        %v2049 = vadd.f32 %v1972, %v1982
        %v2050 = vadd.f32 %v1973, %v1986
        %v2051 = vadd.f32 %v1974, %v1982
        %v2052 = vadd.f32 %v1975, %v1986
        %v2053 = vmax.f32 %v1989, 0.0
        %v2054 = vmax.f32 %v1990, 0.0
        %v2055 = vmax.f32 %v1991, 0.0
        %v2056 = vmax.f32 %v1992, 0.0
        %v2057 = vmax.f32 %v1993, 0.0
        %v2058 = vmax.f32 %v1994, 0.0
        %v2059 = vmax.f32 %v1995, 0.0
        %v2060 = vmax.f32 %v1996, 0.0
        %v2061 = vmax.f32 %v1997, 0.0
        %v2062 = vmax.f32 %v1998, 0.0
        %v2063 = vmax.f32 %v1999, 0.0
        %v2064 = vmax.f32 %v2000, 0.0
        %v2065 = vmax.f32 %v2001, 0.0
        %v2066 = vmax.f32 %v2002, 0.0
        %v2067 = vmax.f32 %v2003, 0.0
        %v2068 = vmax.f32 %v2004, 0.0
        %v2069 = vmax.f32 %v2005, 0.0
        %v2070 = vmax.f32 %v2006, 0.0
        %v2071 = vmax.f32 %v2007, 0.0
        %v2072 = vmax.f32 %v2008, 0.0
        %v2073 = vmax.f32 %v2009, 0.0
        %v2074 = vmax.f32 %v2010, 0.0
        %v2075 = vmax.f32 %v2011, 0.0
        %v2076 = vmax.f32 %v2012, 0.0
        %v2077 = vmax.f32 %v2013, 0.0
        %v2078 = vmax.f32 %v2014, 0.0
        %v2079 = vmax.f32 %v2015, 0.0
        %v2080 = vmax.f32 %v2016, 0.0
        %v2081 = vmax.f32 %v2017, 0.0
        %v2082 = vmax.f32 %v2018, 0.0
        %v2083 = vmax.f32 %v2019, 0.0
        %v2084 = vmax.f32 %v2020, 0.0
        %v2085 = vmax.f32 %v2021, 0.0
        %v2086 = vmax.f32 %v2022, 0.0
        %v2087 = vmax.f32 %v2023, 0.0
        %v2088 = vmax.f32 %v2024, 0.0
        %v2089 = vmax.f32 %v2025, 0.0
        %v2090 = vmax.f32 %v2026, 0.0
        %v2091 = vmax.f32 %v2027, 0.0
        %v2092 = vmax.f32 %v2028, 0.0
        %v2093 = vmax.f32 %v2029, 0.0
        %v2094 = vmax.f32 %v2030, 0.0
        %v2095 = vmax.f32 %v2031, 0.0
        %v2096 = vmax.f32 %v2032, 0.0
        %v2097 = vmax.f32 %v2033, 0.0
        %v2098 = vmax.f32 %v2034, 0.0
        %v2099 = vmax.f32 %v2035, 0.0
        %v2100 = vmax.f32 %v2036, 0.0
        %v2101 = vmax.f32 %v2037, 0.0
        %v2102 = vmax.f32 %v2038, 0.0
        %v2103 = vmax.f32 %v2039, 0.0
        %v2104 = vmax.f32 %v2040, 0.0
        %v2105 = vmax.f32 %v2041, 0.0
        %v2106 = vmax.f32 %v2042, 0.0
        %v2107 = vmax.f32 %v2043, 0.0
        %v2108 = vmax.f32 %v2044, 0.0
        %v2109 = vmax.f32 %v2045, 0.0
        %v2110 = vmax.f32 %v2046, 0.0
        %v2111 = vmax.f32 %v2047, 0.0
        %v2112 = vmax.f32 %v2048, 0.0
        %v2113 = vmax.f32 %v2049, 0.0
        %v2114 = vmax.f32 %v2050, 0.0
        %v2115 = vmax.f32 %v2051, 0.0
        %v2116 = vmax.f32 %v2052, 0.0
        %v2117 = vpack.c.bf16 %v2055, %v2053
        %v2118 = vpack.c.bf16 %v2056, %v2054
        %v2119 = vpack.c.bf16 %v2059, %v2057
        %v2120 = vpack.c.bf16 %v2060, %v2058
        %v2121 = vpack.c.bf16 %v2063, %v2061
        %v2122 = vpack.c.bf16 %v2064, %v2062
        %v2123 = vpack.c.bf16 %v2067, %v2065
        %v2124 = vpack.c.bf16 %v2068, %v2066
        %v2125 = vpack.c.bf16 %v2071, %v2069
        %v2126 = vpack.c.bf16 %v2072, %v2070
        %v2127 = vpack.c.bf16 %v2075, %v2073
        %v2128 = vpack.c.bf16 %v2076, %v2074
        %v2129 = vpack.c.bf16 %v2079, %v2077
        %v2130 = vpack.c.bf16 %v2080, %v2078
        %v2131 = vpack.c.bf16 %v2083, %v2081
        %v2132 = vpack.c.bf16 %v2084, %v2082
        %v2133 = vpack.c.bf16 %v2087, %v2085
        %v2134 = vpack.c.bf16 %v2088, %v2086
        %v2135 = vpack.c.bf16 %v2091, %v2089
        %v2136 = vpack.c.bf16 %v2092, %v2090
        %v2137 = vpack.c.bf16 %v2095, %v2093
        %v2138 = vpack.c.bf16 %v2096, %v2094
        %v2139 = vpack.c.bf16 %v2099, %v2097
        %v2140 = vpack.c.bf16 %v2100, %v2098
        %v2141 = vpack.c.bf16 %v2103, %v2101
        %v2142 = vpack.c.bf16 %v2104, %v2102
        %v2143 = vpack.c.bf16 %v2107, %v2105
        %v2144 = vpack.c.bf16 %v2108, %v2106
        %v2145 = vpack.c.bf16 %v2111, %v2109
        %v2146 = vpack.c.bf16 %v2112, %v2110
        %v2147 = vpack.c.bf16 %v2115, %v2113
        %v2148 = vpack.c.bf16 %v2116, %v2114
        %v2149 = vld [vmem:[%s658] sm:$0xff]
        %v2150 = vld [vmem:[%s658 + $0x8] sm:$0xff]
        %v2151 = vld [vmem:[%s658 + $0x10] sm:$0xff]
        %v2152 = vld [vmem:[%s658 + $0x18] sm:$0xff]
        %v2153 = vld [vmem:[%s658 + $0x20] sm:$0xff]
        %v2154 = vld [vmem:[%s658 + $0x28] sm:$0xff]
        %v2155 = vld [vmem:[%s658 + $0x30] sm:$0xff]
        %v2156 = vld [vmem:[%s658 + $0x38] sm:$0xff]
        %v2165 = vunpack.c.l.b16 %v2149
        %v2166 = vunpack.c.h.b16 %v2149
        %v2167 = vunpack.c.l.b16 %v2150
        %v2168 = vunpack.c.h.b16 %v2150
        %v2169 = vunpack.c.l.b16 %v2151
        %v2170 = vunpack.c.h.b16 %v2151
        %v2171 = vunpack.c.l.b16 %v2152
        %v2172 = vunpack.c.h.b16 %v2152
        %v2173 = vunpack.c.l.b16 %v2153
        %v2174 = vunpack.c.h.b16 %v2153
        %v2175 = vunpack.c.l.b16 %v2154
        %v2176 = vunpack.c.h.b16 %v2154
        %v2177 = vunpack.c.l.b16 %v2155
        %v2178 = vunpack.c.h.b16 %v2155
        %v2179 = vunpack.c.l.b16 %v2156
        %v2180 = vunpack.c.h.b16 %v2156
        %v2181 = vpack.c.b16 %v2167, %v2165
        %v2182 = vpack.c.b16 %v2168, %v2166
        %v2183 = vpack.c.b16 %v2171, %v2169
        %v2184 = vpack.c.b16 %v2172, %v2170
        %v2185 = vpack.c.b16 %v2175, %v2173
        %v2186 = vpack.c.b16 %v2176, %v2174
        %v2187 = vpack.c.b16 %v2179, %v2177
        %v2188 = vpack.c.b16 %v2180, %v2178
        %2197 = vmatprep.subr.bf16.mxu0 %v2132
        %2198 = vmatpush1.bf16.msra.mxu0 %v2131
        %2199 = vmatprep.subr.bf16.mxu0 %v2130
        %2200 = vmatpush1.bf16.msra.mxu0 %v2129
        %2201 = vmatprep.subr.bf16.mxu0 %v2128
        %2202 = vmatpush1.bf16.msra.mxu0 %v2127
        %2203 = vmatprep.subr.bf16.mxu0 %v2126
        %2204 = vmatpush1.bf16.msra.mxu0 %v2125
        %2205 = vmatprep.subr.bf16.mxu0 %v2124
        %2206 = vmatpush1.bf16.msra.mxu0 %v2123
        %2207 = vmatprep.subr.bf16.mxu0 %v2122
        %2208 = vmatpush1.bf16.msra.mxu0 %v2121
        %2209 = vmatprep.subr.bf16.mxu0 %v2120
        %2210 = vmatpush1.bf16.msra.mxu0 %v2119
        %2211 = vmatprep.subr.bf16.mxu0 %v2118
        %2212 = vmatpush1.bf16.msra.mxu0 %v2117
        %2213 = vmatprep.subr.bf16.mxu0 %v2148
        %2214 = vmatpush2.bf16.msra.mxu0 %v2147
        %2215 = vmatprep.subr.bf16.mxu0 %v2146
        %2216 = vmatpush2.bf16.msra.mxu0 %v2145
        %2217 = vmatprep.subr.bf16.mxu0 %v2144
        %2218 = vmatpush2.bf16.msra.mxu0 %v2143
        %2219 = vmatprep.subr.bf16.mxu0 %v2142
        %2220 = vmatpush2.bf16.msra.mxu0 %v2141
        %2221 = vmatprep.subr.bf16.mxu0 %v2140
        %2222 = vmatpush2.bf16.msra.mxu0 %v2139
        %2223 = vmatprep.subr.bf16.mxu0 %v2138
        %2224 = vmatpush2.bf16.msra.mxu0 %v2137
        %2225 = vmatprep.subr.bf16.mxu0 %v2136
        %2226 = vmatpush2.bf16.msra.mxu0 %v2135
        %2227 = vmatprep.subr.bf16.mxu0 %v2134
        %2228 = vmatpush2.bf16.msra.mxu0 %v2133
        %2229 = vmatprep.mubr.bf16.mxu0 %v2182
        %2230 = vmatmul.mubr.bf16.gmra.mxu0 %v2181
        %v2231 = vpop.f32.mrf.mxu0
        %v2232 = vadd.f32 0.0, %v2231
        %v2233 = vpop.f32.mrf.mxu0
        %v2234 = vadd.f32 0.0, %v2233
        %v2235 = vpop.f32.mrf.mxu0
        %v2236 = vadd.f32 0.0, %v2235
        %v2237 = vpop.f32.mrf.mxu0
        %v2238 = vadd.f32 0.0, %v2237
        %2239 = vmatprep.mubr.bf16.mxu0 %v2184
        %2240 = vmatmul.mubr.bf16.gmra.mxu0 %v2183
        %v2241 = vpop.f32.mrf.mxu0
        %v2242 = vadd.f32 0.0, %v2241
        %v2243 = vpop.f32.mrf.mxu0
        %v2244 = vadd.f32 0.0, %v2243
        %v2245 = vpop.f32.mrf.mxu0
        %v2246 = vadd.f32 0.0, %v2245
        %v2247 = vpop.f32.mrf.mxu0
        %v2248 = vadd.f32 0.0, %v2247
        %2249 = vmatprep.mubr.bf16.mxu0 %v2186
        %2250 = vmatmul.mubr.bf16.gmra.mxu0 %v2185
        %v2251 = vpop.f32.mrf.mxu0
        %v2252 = vadd.f32 0.0, %v2251
        %v2253 = vpop.f32.mrf.mxu0
        %v2254 = vadd.f32 0.0, %v2253
        %v2255 = vpop.f32.mrf.mxu0
        %v2256 = vadd.f32 0.0, %v2255
        %v2257 = vpop.f32.mrf.mxu0
        %v2258 = vadd.f32 0.0, %v2257
        %2259 = vmatprep.mubr.bf16.mxu0 %v2188
        %2260 = vmatmul.mubr.bf16.gmra.mxu0 %v2187
        %v2261 = vpop.f32.mrf.mxu0
        %v2262 = vadd.f32 0.0, %v2261
        %v2263 = vpop.f32.mrf.mxu0
        %v2264 = vadd.f32 0.0, %v2263
        %v2265 = vpop.f32.mrf.mxu0
        %v2266 = vadd.f32 0.0, %v2265
        %v2267 = vpop.f32.mrf.mxu0
        %v2268 = vadd.f32 0.0, %v2267
        %2269 = vdwg.mxu0
        %v2270 = vld [vmem:[%s668] sm:$0xff]
        %v2271 = vld [vmem:[%s668 + $0x8] sm:$0xff]
        %v2272 = vld [vmem:[%s668 + $0x10] sm:$0xff]
        %v2273 = vld [vmem:[%s668 + $0x18] sm:$0xff]
        %v2274 = vld [vmem:[%s668 + $0x20] sm:$0xff]
        %v2275 = vld [vmem:[%s668 + $0x28] sm:$0xff]
        %v2276 = vld [vmem:[%s668 + $0x30] sm:$0xff]
        %v2277 = vld [vmem:[%s668 + $0x38] sm:$0xff]
        %v2278 = vld [vmem:[%s7] sm:$0xf]
        %v2279 = vld [vmem:[%s7 + $0x4] sm:$0xf]
        %v2280 = vld [vmem:[%s7 + $0x8] sm:$0xf]
        %v2281 = vld [vmem:[%s7 + $0xc] sm:$0xf]
        %v2282 = vld [vmem:[%s7 + $0x10] sm:$0xf]
        %v2283 = vld [vmem:[%s7 + $0x14] sm:$0xf]
        %v2284 = vld [vmem:[%s7 + $0x18] sm:$0xf]
        %v2285 = vld [vmem:[%s7 + $0x1c] sm:$0xf]
        %v2286 = vld [vmem:[%s7 + $0x20] sm:$0xf]
        %v2287 = vld [vmem:[%s7 + $0x24] sm:$0xf]
        %v2288 = vld [vmem:[%s7 + $0x28] sm:$0xf]
        %v2289 = vld [vmem:[%s7 + $0x2c] sm:$0xf]
        %v2290 = vld [vmem:[%s7 + $0x30] sm:$0xf]
        %v2291 = vld [vmem:[%s7 + $0x34] sm:$0xf]
        %v2292 = vld [vmem:[%s7 + $0x38] sm:$0xf]
        %v2293 = vld [vmem:[%s7 + $0x3c] sm:$0xf]
        %v2294 = vld [vmem:[%s7 + $0x40] sm:$0xf]
        %v2295 = vld [vmem:[%s7 + $0x44] sm:$0xf]
        %v2296 = vld [vmem:[%s7 + $0x48] sm:$0xf]
        %v2297 = vld [vmem:[%s7 + $0x4c] sm:$0xf]
        %v2298 = vld [vmem:[%s7 + $0x50] sm:$0xf]
        %v2299 = vld [vmem:[%s7 + $0x54] sm:$0xf]
        %v2300 = vld [vmem:[%s7 + $0x58] sm:$0xf]
        %v2301 = vld [vmem:[%s7 + $0x5c] sm:$0xf]
        %v2302 = vld [vmem:[%s7 + $0x60] sm:$0xf]
        %v2303 = vld [vmem:[%s7 + $0x64] sm:$0xf]
        %v2304 = vld [vmem:[%s7 + $0x68] sm:$0xf]
        %v2305 = vld [vmem:[%s7 + $0x6c] sm:$0xf]
        %v2306 = vld [vmem:[%s7 + $0x70] sm:$0xf]
        %v2307 = vld [vmem:[%s7 + $0x74] sm:$0xf]
        %v2308 = vld [vmem:[%s7 + $0x78] sm:$0xf]
        %v2309 = vld [vmem:[%s7 + $0x7c] sm:$0xf]
        %v2310 = vld [vmem:[%s8] sm:$0x1]
        %v2312 = vlaneseq
        %v2313 = vshrl.u32 %v2312, 7
        %v2314 = vsub.s32 0, %v2313
        %v2315 = vrot.slane %v2310, %v2314
        %v2325 = vunpack.c.l.b16 %v2270
        %v2326 = vunpack.c.h.b16 %v2270
        %v2327 = vunpack.c.l.b16 %v2271
        %v2328 = vunpack.c.h.b16 %v2271
        %v2329 = vunpack.c.l.b16 %v2272
        %v2330 = vunpack.c.h.b16 %v2272
        %v2331 = vunpack.c.l.b16 %v2273
        %v2332 = vunpack.c.h.b16 %v2273
        %v2333 = vunpack.c.l.b16 %v2274
        %v2334 = vunpack.c.h.b16 %v2274
        %v2335 = vunpack.c.l.b16 %v2275
        %v2336 = vunpack.c.h.b16 %v2275
        %v2337 = vunpack.c.l.b16 %v2276
        %v2338 = vunpack.c.h.b16 %v2276
        %v2339 = vunpack.c.l.b16 %v2277
        %v2340 = vunpack.c.h.b16 %v2277
        %v2341 = vpack.c.b16 %v2327, %v2325
        %v2342 = vpack.c.b16 %v2328, %v2326
        %v2343 = vpack.c.b16 %v2331, %v2329
        %v2344 = vpack.c.b16 %v2332, %v2330
        %v2345 = vpack.c.b16 %v2335, %v2333
        %v2346 = vpack.c.b16 %v2336, %v2334
        %v2347 = vpack.c.b16 %v2339, %v2337
        %v2348 = vpack.c.b16 %v2340, %v2338
        %v2389 = vunpack.c.l.b16 %v2278
        %v2390 = vunpack.c.l.b16 %v2279
        %v2391 = vunpack.c.l.b16 %v2280
        %v2392 = vunpack.c.l.b16 %v2281
        %v2393 = vunpack.c.l.b16 %v2282
        %v2394 = vunpack.c.l.b16 %v2283
        %v2395 = vunpack.c.l.b16 %v2284
        %v2396 = vunpack.c.l.b16 %v2285
        %v2397 = vunpack.c.l.b16 %v2286
        %v2398 = vunpack.c.l.b16 %v2287
        %v2399 = vunpack.c.l.b16 %v2288
        %v2400 = vunpack.c.l.b16 %v2289
        %v2401 = vunpack.c.l.b16 %v2290
        %v2402 = vunpack.c.l.b16 %v2291
        %v2403 = vunpack.c.l.b16 %v2292
        %v2404 = vunpack.c.l.b16 %v2293
        %v2405 = vunpack.c.l.b16 %v2294
        %v2406 = vunpack.c.l.b16 %v2295
        %v2407 = vunpack.c.l.b16 %v2296
        %v2408 = vunpack.c.l.b16 %v2297
        %v2409 = vunpack.c.l.b16 %v2298
        %v2410 = vunpack.c.l.b16 %v2299
        %v2411 = vunpack.c.l.b16 %v2300
        %v2412 = vunpack.c.l.b16 %v2301
        %v2413 = vunpack.c.l.b16 %v2302
        %v2414 = vunpack.c.l.b16 %v2303
        %v2415 = vunpack.c.l.b16 %v2304
        %v2416 = vunpack.c.l.b16 %v2305
        %v2417 = vunpack.c.l.b16 %v2306
        %v2418 = vunpack.c.l.b16 %v2307
        %v2419 = vunpack.c.l.b16 %v2308
        %v2420 = vunpack.c.l.b16 %v2309
        %v2421 = vpack.c.b16 %v2390, %v2389
        %v2422 = vpack.c.b16 %v2392, %v2391
        %v2423 = vpack.c.b16 %v2394, %v2393
        %v2424 = vpack.c.b16 %v2396, %v2395
        %v2425 = vpack.c.b16 %v2398, %v2397
        %v2426 = vpack.c.b16 %v2400, %v2399
        %v2427 = vpack.c.b16 %v2402, %v2401
        %v2428 = vpack.c.b16 %v2404, %v2403
        %v2429 = vpack.c.b16 %v2406, %v2405
        %v2430 = vpack.c.b16 %v2408, %v2407
        %v2431 = vpack.c.b16 %v2410, %v2409
        %v2432 = vpack.c.b16 %v2412, %v2411
        %v2433 = vpack.c.b16 %v2414, %v2413
        %v2434 = vpack.c.b16 %v2416, %v2415
        %v2435 = vpack.c.b16 %v2418, %v2417
        %v2436 = vpack.c.b16 %v2420, %v2419
        %2453 = vmatprep.subr.bf16.mxu0 0
        %2454 = vmatpush1.bf16.msra.mxu0 %v2428
        %2455 = vmatprep.subr.bf16.mxu0 0
        %2456 = vmatpush1.bf16.msra.mxu0 %v2427
        %2457 = vmatprep.subr.bf16.mxu0 0
        %2458 = vmatpush1.bf16.msra.mxu0 %v2426
        %2459 = vmatprep.subr.bf16.mxu0 0
        %2460 = vmatpush1.bf16.msra.mxu0 %v2425
        %2461 = vmatprep.subr.bf16.mxu0 0
        %2462 = vmatpush1.bf16.msra.mxu0 %v2424
        %2463 = vmatprep.subr.bf16.mxu0 0
        %2464 = vmatpush1.bf16.msra.mxu0 %v2423
        %2465 = vmatprep.subr.bf16.mxu0 0
        %2466 = vmatpush1.bf16.msra.mxu0 %v2422
        %2467 = vmatprep.subr.bf16.mxu0 0
        %2468 = vmatpush1.bf16.msra.mxu0 %v2421
        %2469 = vmatprep.subr.bf16.mxu0 0
        %2470 = vmatpush2.bf16.msra.mxu0 %v2436
        %2471 = vmatprep.subr.bf16.mxu0 0
        %2472 = vmatpush2.bf16.msra.mxu0 %v2435
        %2473 = vmatprep.subr.bf16.mxu0 0
        %2474 = vmatpush2.bf16.msra.mxu0 %v2434
        %2475 = vmatprep.subr.bf16.mxu0 0
        %2476 = vmatpush2.bf16.msra.mxu0 %v2433
        %2477 = vmatprep.subr.bf16.mxu0 0
        %2478 = vmatpush2.bf16.msra.mxu0 %v2432
        %2479 = vmatprep.subr.bf16.mxu0 0
        %2480 = vmatpush2.bf16.msra.mxu0 %v2431
        %2481 = vmatprep.subr.bf16.mxu0 0
        %2482 = vmatpush2.bf16.msra.mxu0 %v2430
        %2483 = vmatprep.subr.bf16.mxu0 0
        %2484 = vmatpush2.bf16.msra.mxu0 %v2429
        %2485 = vmatprep.mubr.bf16.mxu0 %v2342
        %2486 = vmatmul.mubr.bf16.gmra.mxu0 %v2341
        %v2487 = vpop.f32.mrf.mxu0
        %v2488 = vadd.f32 %v2315, %v2487
        %v2489 = vpop.f32.mrf.mxu0
        %v2490 = vpop.f32.mrf.mxu0
        %v2491 = vadd.f32 %v2315, %v2490
        %v2492 = vpop.f32.mrf.mxu0
        %2493 = vmatprep.mubr.bf16.mxu0 %v2344
        %2494 = vmatmul.mubr.bf16.gmra.mxu0 %v2343
        %v2495 = vpop.f32.mrf.mxu0
        %v2496 = vadd.f32 %v2315, %v2495
        %v2497 = vpop.f32.mrf.mxu0
        %v2498 = vpop.f32.mrf.mxu0
        %v2499 = vadd.f32 %v2315, %v2498
        %v2500 = vpop.f32.mrf.mxu0
        %2501 = vmatprep.mubr.bf16.mxu0 %v2346
        %2502 = vmatmul.mubr.bf16.gmra.mxu0 %v2345
        %v2503 = vpop.f32.mrf.mxu0
        %v2504 = vadd.f32 %v2315, %v2503
        %v2505 = vpop.f32.mrf.mxu0
        %v2506 = vpop.f32.mrf.mxu0
        %v2507 = vadd.f32 %v2315, %v2506
        %v2508 = vpop.f32.mrf.mxu0
        %2509 = vmatprep.mubr.bf16.mxu0 %v2348
        %2510 = vmatmul.mubr.bf16.gmra.mxu0 %v2347
        %v2511 = vpop.f32.mrf.mxu0
        %v2512 = vadd.f32 %v2315, %v2511
        %v2513 = vpop.f32.mrf.mxu0
        %v2514 = vpop.f32.mrf.mxu0
        %v2515 = vadd.f32 %v2315, %v2514
        %v2516 = vpop.f32.mrf.mxu0
        %2517 = vdwg.mxu0
        %2518 = vrot.lane.b32.xlu0 %v2232, 1
        %v2519 = vpop.permute.xlu0 %2518
        %2520 = vrot.lane.b32.xlu0 %v2236, 1
        %v2521 = vpop.permute.xlu0 %2520
        %2522 = vrot.lane.b32.xlu0 %v2242, 1
        %v2523 = vpop.permute.xlu0 %2522
        %2524 = vrot.lane.b32.xlu0 %v2246, 1
        %v2525 = vpop.permute.xlu0 %2524
        %2526 = vrot.lane.b32.xlu0 %v2252, 1
        %v2527 = vpop.permute.xlu0 %2526
        %2528 = vrot.lane.b32.xlu0 %v2256, 1
        %v2529 = vpop.permute.xlu0 %2528
        %2530 = vrot.lane.b32.xlu0 %v2262, 1
        %v2531 = vpop.permute.xlu0 %2530
        %2532 = vrot.lane.b32.xlu0 %v2266, 1
        %v2533 = vpop.permute.xlu0 %2532
        %2534 = vrot.lane.b32.xlu0 %v2234, 1
        %v2535 = vpop.permute.xlu0 %2534
        %2536 = vrot.lane.b32.xlu0 %v2238, 1
        %v2537 = vpop.permute.xlu0 %2536
        %2538 = vrot.lane.b32.xlu0 %v2244, 1
        %v2539 = vpop.permute.xlu0 %2538
        %2540 = vrot.lane.b32.xlu0 %v2248, 1
        %v2541 = vpop.permute.xlu0 %2540
        %2542 = vrot.lane.b32.xlu0 %v2254, 1
        %v2543 = vpop.permute.xlu0 %2542
        %2544 = vrot.lane.b32.xlu0 %v2258, 1
        %v2545 = vpop.permute.xlu0 %2544
        %2546 = vrot.lane.b32.xlu0 %v2264, 1
        %v2547 = vpop.permute.xlu0 %2546
        %2548 = vrot.lane.b32.xlu0 %v2268, 1
        %v2549 = vpop.permute.xlu0 %2548
        %v2550 = vlaneseq
        %v2551 = vand.u32 %v2550, 127
        %vm2552 = vcmp.lt.s32.totalorder %v2551, 1
        %v2553 = vsel %vm2552, %v2519, %v2535
        %v2554 = vsel %vm2552, %v2521, %v2537
        %v2555 = vsel %vm2552, %v2523, %v2539
        %v2556 = vsel %vm2552, %v2525, %v2541
        %v2557 = vsel %vm2552, %v2527, %v2543
        %v2558 = vsel %vm2552, %v2529, %v2545
        %v2559 = vsel %vm2552, %v2531, %v2547
        %v2560 = vsel %vm2552, %v2533, %v2549
        %v2561 = vsel %vm2552, %v2535, %v2519
        %v2562 = vsel %vm2552, %v2537, %v2521
        %v2563 = vsel %vm2552, %v2539, %v2523
        %v2564 = vsel %vm2552, %v2541, %v2525
        %v2565 = vsel %vm2552, %v2543, %v2527
        %v2566 = vsel %vm2552, %v2545, %v2529
        %v2567 = vsel %vm2552, %v2547, %v2531
        %v2568 = vsel %vm2552, %v2549, %v2533
        %s2569 = scalar_lea.vmem %s17, 39
        %v2570 = vld [vmem:[%s2569] ss:$8 sm:$0x3]
        %v2572 = vlaneseq
        %v2573 = vshrl.u32 %v2572, 7
        %v2574 = vsub.s32 0, %v2573
        %v2575 = vrot.slane %v2570, %v2574
        %v2576 = vlaneseq
        %v2577 = vshrl.u32 %v2576, 7
        %v2578 = vsub.s32 1, %v2577
        %v2579 = vrot.slane %v2570, %v2578
        %v2582 = vmul.f32 %v2561, %v2575
        %v2583 = vmul.f32 %v2553, %v2579
        %v2584 = vmul.f32 %v2562, %v2575
        %v2585 = vmul.f32 %v2554, %v2579
        %v2586 = vmul.f32 %v2563, %v2575
        %v2587 = vmul.f32 %v2555, %v2579
        %v2588 = vmul.f32 %v2564, %v2575
        %v2589 = vmul.f32 %v2556, %v2579
        %v2590 = vmul.f32 %v2565, %v2575
        %v2591 = vmul.f32 %v2557, %v2579
        %v2592 = vmul.f32 %v2566, %v2575
        %v2593 = vmul.f32 %v2558, %v2579
        %v2594 = vmul.f32 %v2567, %v2575
        %v2595 = vmul.f32 %v2559, %v2579
        %v2596 = vmul.f32 %v2568, %v2575
        %v2597 = vmul.f32 %v2560, %v2579
        %2598 = vrot.lane.b32.xlu0 %v2232, 127
        %v2599 = vpop.permute.xlu0 %2598
        %2600 = vrot.lane.b32.xlu0 %v2236, 127
        %v2601 = vpop.permute.xlu0 %2600
        %2602 = vrot.lane.b32.xlu0 %v2242, 127
        %v2603 = vpop.permute.xlu0 %2602
        %2604 = vrot.lane.b32.xlu0 %v2246, 127
        %v2605 = vpop.permute.xlu0 %2604
        %2606 = vrot.lane.b32.xlu0 %v2252, 127
        %v2607 = vpop.permute.xlu0 %2606
        %2608 = vrot.lane.b32.xlu0 %v2256, 127
        %v2609 = vpop.permute.xlu0 %2608
        %2610 = vrot.lane.b32.xlu0 %v2262, 127
        %v2611 = vpop.permute.xlu0 %2610
        %2612 = vrot.lane.b32.xlu0 %v2266, 127
        %v2613 = vpop.permute.xlu0 %2612
        %2614 = vrot.lane.b32.xlu0 %v2234, 127
        %v2615 = vpop.permute.xlu0 %2614
        %2616 = vrot.lane.b32.xlu0 %v2238, 127
        %v2617 = vpop.permute.xlu0 %2616
        %2618 = vrot.lane.b32.xlu0 %v2244, 127
        %v2619 = vpop.permute.xlu0 %2618
        %2620 = vrot.lane.b32.xlu0 %v2248, 127
        %v2621 = vpop.permute.xlu0 %2620
        %2622 = vrot.lane.b32.xlu0 %v2254, 127
        %v2623 = vpop.permute.xlu0 %2622
        %2624 = vrot.lane.b32.xlu0 %v2258, 127
        %v2625 = vpop.permute.xlu0 %2624
        %2626 = vrot.lane.b32.xlu0 %v2264, 127
        %v2627 = vpop.permute.xlu0 %2626
        %2628 = vrot.lane.b32.xlu0 %v2268, 127
        %v2629 = vpop.permute.xlu0 %2628
        %vm2630 = vcmp.lt.s32.totalorder %v2551, 127
        %v2631 = vsel %vm2630, %v2599, %v2615
        %v2632 = vsel %vm2630, %v2601, %v2617
        %v2633 = vsel %vm2630, %v2603, %v2619
        %v2634 = vsel %vm2630, %v2605, %v2621
        %v2635 = vsel %vm2630, %v2607, %v2623
        %v2636 = vsel %vm2630, %v2609, %v2625
        %v2637 = vsel %vm2630, %v2611, %v2627
        %v2638 = vsel %vm2630, %v2613, %v2629
        %v2639 = vsel %vm2630, %v2615, %v2599
        %v2640 = vsel %vm2630, %v2617, %v2601
        %v2641 = vsel %vm2630, %v2619, %v2603
        %v2642 = vsel %vm2630, %v2621, %v2605
        %v2643 = vsel %vm2630, %v2623, %v2607
        %v2644 = vsel %vm2630, %v2625, %v2609
        %v2645 = vsel %vm2630, %v2627, %v2611
        %v2646 = vsel %vm2630, %v2629, %v2613
        %s2647 = scalar_lea.vmem %s17, 48
        %v2648 = vld [vmem:[%s2647] ss:$8 sm:$0x3]
        %v2650 = vlaneseq
        %v2651 = vshrl.u32 %v2650, 7
        %v2652 = vsub.s32 0, %v2651
        %v2653 = vrot.slane %v2648, %v2652
        %v2654 = vlaneseq
        %v2655 = vshrl.u32 %v2654, 7
        %v2656 = vsub.s32 1, %v2655
        %v2657 = vrot.slane %v2648, %v2656
        %v2660 = vmul.f32 %v2631, %v2653
        %v2661 = vmul.f32 %v2639, %v2657
        %v2662 = vmul.f32 %v2632, %v2653
        %v2663 = vmul.f32 %v2640, %v2657
        %v2664 = vmul.f32 %v2633, %v2653
        %v2665 = vmul.f32 %v2641, %v2657
        %v2666 = vmul.f32 %v2634, %v2653
        %v2667 = vmul.f32 %v2642, %v2657
        %v2668 = vmul.f32 %v2635, %v2653
        %v2669 = vmul.f32 %v2643, %v2657
        %v2670 = vmul.f32 %v2636, %v2653
        %v2671 = vmul.f32 %v2644, %v2657
        %v2672 = vmul.f32 %v2637, %v2653
        %v2673 = vmul.f32 %v2645, %v2657
        %v2674 = vmul.f32 %v2638, %v2653
        %v2675 = vmul.f32 %v2646, %v2657
        %2677 = vset.pattern.permute.xlu0 64
        %2678 = vperm.xlu0 %2677, %v2488
        %v2679 = vpop.permute.xlu0 %2678
        %2682 = vset.pattern.permute.xlu0 64
        %2683 = vperm.xlu0 %2682, %v2491
        %v2684 = vpop.permute.xlu0 %2683
        %2687 = vset.pattern.permute.xlu0 64
        %2688 = vperm.xlu0 %2687, %v2496
        %v2689 = vpop.permute.xlu0 %2688
        %2692 = vset.pattern.permute.xlu0 64
        %2693 = vperm.xlu0 %2692, %v2499
        %v2694 = vpop.permute.xlu0 %2693
        %2697 = vset.pattern.permute.xlu0 64
        %2698 = vperm.xlu0 %2697, %v2504
        %v2699 = vpop.permute.xlu0 %2698
        %2702 = vset.pattern.permute.xlu0 64
        %2703 = vperm.xlu0 %2702, %v2507
        %v2704 = vpop.permute.xlu0 %2703
        %2707 = vset.pattern.permute.xlu0 64
        %2708 = vperm.xlu0 %2707, %v2512
        %v2709 = vpop.permute.xlu0 %2708
        %2712 = vset.pattern.permute.xlu0 64
        %2713 = vperm.xlu0 %2712, %v2515
        %v2714 = vpop.permute.xlu0 %2713
        %v2716 = vmul.f32 %v2679, %v2582
        %v2717 = vmul.f32 %v2679, %v2583
        %v2718 = vmul.f32 %v2684, %v2584
        %v2719 = vmul.f32 %v2684, %v2585
        %v2720 = vmul.f32 %v2689, %v2586
        %v2721 = vmul.f32 %v2689, %v2587
        %v2722 = vmul.f32 %v2694, %v2588
        %v2723 = vmul.f32 %v2694, %v2589
        %v2724 = vmul.f32 %v2699, %v2590
        %v2725 = vmul.f32 %v2699, %v2591
        %v2726 = vmul.f32 %v2704, %v2592
        %v2727 = vmul.f32 %v2704, %v2593
        %v2728 = vmul.f32 %v2709, %v2594
        %v2729 = vmul.f32 %v2709, %v2595
        %v2730 = vmul.f32 %v2714, %v2596
        %v2731 = vmul.f32 %v2714, %v2597
        %2732 = vset.pattern.permute.xlu0 65
        %2733 = vperm.xlu0 %2732, %v2488
        %v2734 = vpop.permute.xlu0 %2733
        %2736 = vset.pattern.permute.xlu0 65
        %2737 = vperm.xlu0 %2736, %v2491
        %v2738 = vpop.permute.xlu0 %2737
        %2740 = vset.pattern.permute.xlu0 65
        %2741 = vperm.xlu0 %2740, %v2496
        %v2742 = vpop.permute.xlu0 %2741
        %2744 = vset.pattern.permute.xlu0 65
        %2745 = vperm.xlu0 %2744, %v2499
        %v2746 = vpop.permute.xlu0 %2745
        %2748 = vset.pattern.permute.xlu0 65
        %2749 = vperm.xlu0 %2748, %v2504
        %v2750 = vpop.permute.xlu0 %2749
        %2752 = vset.pattern.permute.xlu0 65
        %2753 = vperm.xlu0 %2752, %v2507
        %v2754 = vpop.permute.xlu0 %2753
        %2756 = vset.pattern.permute.xlu0 65
        %2757 = vperm.xlu0 %2756, %v2512
        %v2758 = vpop.permute.xlu0 %2757
        %2760 = vset.pattern.permute.xlu0 65
        %2761 = vperm.xlu0 %2760, %v2515
        %v2762 = vpop.permute.xlu0 %2761
        %v2764 = vmul.f32 %v2734, %v2232
        %v2765 = vmul.f32 %v2734, %v2234
        %v2766 = vmul.f32 %v2738, %v2236
        %v2767 = vmul.f32 %v2738, %v2238
        %v2768 = vmul.f32 %v2742, %v2242
        %v2769 = vmul.f32 %v2742, %v2244
        %v2770 = vmul.f32 %v2746, %v2246
        %v2771 = vmul.f32 %v2746, %v2248
        %v2772 = vmul.f32 %v2750, %v2252
        %v2773 = vmul.f32 %v2750, %v2254
        %v2774 = vmul.f32 %v2754, %v2256
        %v2775 = vmul.f32 %v2754, %v2258
        %v2776 = vmul.f32 %v2758, %v2262
        %v2777 = vmul.f32 %v2758, %v2264
        %v2778 = vmul.f32 %v2762, %v2266
        %v2779 = vmul.f32 %v2762, %v2268
        %v2780 = vadd.f32 %v2716, %v2764
        %v2781 = vadd.f32 %v2717, %v2765
        %v2782 = vadd.f32 %v2718, %v2766
        %v2783 = vadd.f32 %v2719, %v2767
        %v2784 = vadd.f32 %v2720, %v2768
        %v2785 = vadd.f32 %v2721, %v2769
        %v2786 = vadd.f32 %v2722, %v2770
        %v2787 = vadd.f32 %v2723, %v2771
        %v2788 = vadd.f32 %v2724, %v2772
        %v2789 = vadd.f32 %v2725, %v2773
        %v2790 = vadd.f32 %v2726, %v2774
        %v2791 = vadd.f32 %v2727, %v2775
        %v2792 = vadd.f32 %v2728, %v2776
        %v2793 = vadd.f32 %v2729, %v2777
        %v2794 = vadd.f32 %v2730, %v2778
        %v2795 = vadd.f32 %v2731, %v2779
        %2796 = vset.pattern.permute.xlu0 66
        %2797 = vperm.xlu0 %2796, %v2488
        %v2798 = vpop.permute.xlu0 %2797
        %2800 = vset.pattern.permute.xlu0 66
        %2801 = vperm.xlu0 %2800, %v2491
        %v2802 = vpop.permute.xlu0 %2801
        %2804 = vset.pattern.permute.xlu0 66
        %2805 = vperm.xlu0 %2804, %v2496
        %v2806 = vpop.permute.xlu0 %2805
        %2808 = vset.pattern.permute.xlu0 66
        %2809 = vperm.xlu0 %2808, %v2499
        %v2810 = vpop.permute.xlu0 %2809
        %2812 = vset.pattern.permute.xlu0 66
        %2813 = vperm.xlu0 %2812, %v2504
        %v2814 = vpop.permute.xlu0 %2813
        %2816 = vset.pattern.permute.xlu0 66
        %2817 = vperm.xlu0 %2816, %v2507
        %v2818 = vpop.permute.xlu0 %2817
        %2820 = vset.pattern.permute.xlu0 66
        %2821 = vperm.xlu0 %2820, %v2512
        %v2822 = vpop.permute.xlu0 %2821
        %2824 = vset.pattern.permute.xlu0 66
        %2825 = vperm.xlu0 %2824, %v2515
        %v2826 = vpop.permute.xlu0 %2825
        %v2828 = vmul.f32 %v2798, %v2660
        %v2829 = vmul.f32 %v2798, %v2661
        %v2830 = vmul.f32 %v2802, %v2662
        %v2831 = vmul.f32 %v2802, %v2663
        %v2832 = vmul.f32 %v2806, %v2664
        %v2833 = vmul.f32 %v2806, %v2665
        %v2834 = vmul.f32 %v2810, %v2666
        %v2835 = vmul.f32 %v2810, %v2667
        %v2836 = vmul.f32 %v2814, %v2668
        %v2837 = vmul.f32 %v2814, %v2669
        %v2838 = vmul.f32 %v2818, %v2670
        %v2839 = vmul.f32 %v2818, %v2671
        %v2840 = vmul.f32 %v2822, %v2672
        %v2841 = vmul.f32 %v2822, %v2673
        %v2842 = vmul.f32 %v2826, %v2674
        %v2843 = vmul.f32 %v2826, %v2675
        %v2844 = vadd.f32 %v2780, %v2828
        %v2845 = vadd.f32 %v2781, %v2829
        %v2846 = vadd.f32 %v2782, %v2830
        %v2847 = vadd.f32 %v2783, %v2831
        %v2848 = vadd.f32 %v2784, %v2832
        %v2849 = vadd.f32 %v2785, %v2833
        %v2850 = vadd.f32 %v2786, %v2834
        %v2851 = vadd.f32 %v2787, %v2835
        %v2852 = vadd.f32 %v2788, %v2836
        %v2853 = vadd.f32 %v2789, %v2837
        %v2854 = vadd.f32 %v2790, %v2838
        %v2855 = vadd.f32 %v2791, %v2839
        %v2856 = vadd.f32 %v2792, %v2840
        %v2857 = vadd.f32 %v2793, %v2841
        %v2858 = vadd.f32 %v2794, %v2842
        %v2859 = vadd.f32 %v2795, %v2843
        %v2860 = vmax.f32 %v2844, 0.0
        %v2861 = vmax.f32 %v2845, 0.0
        %v2862 = vmax.f32 %v2846, 0.0
        %v2863 = vmax.f32 %v2847, 0.0
        %v2864 = vmax.f32 %v2848, 0.0
        %v2865 = vmax.f32 %v2849, 0.0
        %v2866 = vmax.f32 %v2850, 0.0
        %v2867 = vmax.f32 %v2851, 0.0
        %v2868 = vmax.f32 %v2852, 0.0
        %v2869 = vmax.f32 %v2853, 0.0
        %v2870 = vmax.f32 %v2854, 0.0
        %v2871 = vmax.f32 %v2855, 0.0
        %v2872 = vmax.f32 %v2856, 0.0
        %v2873 = vmax.f32 %v2857, 0.0
        %v2874 = vmax.f32 %v2858, 0.0
        %v2875 = vmax.f32 %v2859, 0.0
        %v2876 = vpack.c.bf16 %v2491, %v2488
        %v2877 = vpack.c.bf16 %v2499, %v2496
        %v2878 = vpack.c.bf16 %v2507, %v2504
        %v2879 = vpack.c.bf16 %v2515, %v2512
        %v2880 = vpack.c.bf16 %v2862, %v2860
        %v2881 = vpack.c.bf16 %v2863, %v2861
        %v2882 = vpack.c.bf16 %v2866, %v2864
        %v2883 = vpack.c.bf16 %v2867, %v2865
        %v2884 = vpack.c.bf16 %v2870, %v2868
        %v2885 = vpack.c.bf16 %v2871, %v2869
        %v2886 = vpack.c.bf16 %v2874, %v2872
        %v2887 = vpack.c.bf16 %v2875, %v2873
        %vm2888 = vcmask 523264
        %v2890 = vsel %vm2888, %v2876, 0
        %v2893 = vsel %vm2888, %v2877, 0
        %v2896 = vsel %vm2888, %v2878, 0
        %v2899 = vsel %vm2888, %v2879, 0
        %2901 = vmatprep.subr.bf16.mxu0 0
        %2902 = vmatpush1.bf16.msra.mxu0 0
        %2903 = vmatprep.subr.bf16.mxu0 0
        %2904 = vmatpush1.bf16.msra.mxu0 0
        %2905 = vmatprep.subr.bf16.mxu0 0
        %2906 = vmatpush1.bf16.msra.mxu0 0
        %2907 = vmatprep.subr.bf16.mxu0 0
        %2908 = vmatpush1.bf16.msra.mxu0 0
        %2909 = vmatprep.subr.bf16.mxu0 %v2887
        %2910 = vmatpush1.bf16.msra.mxu0 %v2886
        %2911 = vmatprep.subr.bf16.mxu0 %v2885
        %2912 = vmatpush1.bf16.msra.mxu0 %v2884
        %2913 = vmatprep.subr.bf16.mxu0 %v2883
        %2914 = vmatpush1.bf16.msra.mxu0 %v2882
        %2915 = vmatprep.subr.bf16.mxu0 %v2881
        %2916 = vmatpush1.bf16.msra.mxu0 %v2880
        %2917 = vmatprep.subr.bf16.mxu0 0
        %2918 = vmatpush2.bf16.msra.mxu0 0
        %2919 = vmatprep.subr.bf16.mxu0 0
        %2920 = vmatpush2.bf16.msra.mxu0 0
        %2921 = vmatprep.subr.bf16.mxu0 0
        %2922 = vmatpush2.bf16.msra.mxu0 0
        %2923 = vmatprep.subr.bf16.mxu0 0
        %2924 = vmatpush2.bf16.msra.mxu0 0
        %2925 = vmatprep.subr.bf16.mxu0 0
        %2926 = vmatpush2.bf16.msra.mxu0 0
        %2927 = vmatprep.subr.bf16.mxu0 0
        %2928 = vmatpush2.bf16.msra.mxu0 0
        %2929 = vmatprep.subr.bf16.mxu0 0
        %2930 = vmatpush2.bf16.msra.mxu0 0
        %2931 = vmatprep.subr.bf16.mxu0 0
        %2932 = vmatpush2.bf16.msra.mxu0 0
        %2933 = vmatprep.mubr.bf16.mxu0 0
        %2934 = vmatmul.mubr.bf16.gmra.mxu0 %v2890
        %v2935 = vpop.f32.mrf.mxu0
        %v2936 = vadd.f32 0.0, %v2935
        %v2937 = vpop.f32.mrf.mxu0
        %v2938 = vadd.f32 0.0, %v2937
        %v2939 = vpop.f32.mrf.mxu0
        %v2940 = vadd.f32 0.0, %v2939
        %v2941 = vpop.f32.mrf.mxu0
        %v2942 = vadd.f32 0.0, %v2941
        %2943 = vmatprep.mubr.bf16.mxu0 0
        %2944 = vmatmul.mubr.bf16.gmra.mxu0 %v2893
        %v2945 = vpop.f32.mrf.mxu0
        %v2946 = vadd.f32 0.0, %v2945
        %v2947 = vpop.f32.mrf.mxu0
        %v2948 = vadd.f32 0.0, %v2947
        %v2949 = vpop.f32.mrf.mxu0
        %v2950 = vadd.f32 0.0, %v2949
        %v2951 = vpop.f32.mrf.mxu0
        %v2952 = vadd.f32 0.0, %v2951
        %2953 = vmatprep.mubr.bf16.mxu0 0
        %2954 = vmatmul.mubr.bf16.gmra.mxu0 %v2896
        %v2955 = vpop.f32.mrf.mxu0
        %v2956 = vadd.f32 0.0, %v2955
        %v2957 = vpop.f32.mrf.mxu0
        %v2958 = vadd.f32 0.0, %v2957
        %v2959 = vpop.f32.mrf.mxu0
        %v2960 = vadd.f32 0.0, %v2959
        %v2961 = vpop.f32.mrf.mxu0
        %v2962 = vadd.f32 0.0, %v2961
        %2963 = vmatprep.mubr.bf16.mxu0 0
        %2964 = vmatmul.mubr.bf16.gmra.mxu0 %v2899
        %v2965 = vpop.f32.mrf.mxu0
        %v2966 = vadd.f32 0.0, %v2965
        %v2967 = vpop.f32.mrf.mxu0
        %v2968 = vadd.f32 0.0, %v2967
        %v2969 = vpop.f32.mrf.mxu0
        %v2970 = vadd.f32 0.0, %v2969
        %v2971 = vpop.f32.mrf.mxu0
        %v2972 = vadd.f32 0.0, %v2971
        %2973 = vdwg.mxu0
        %v2974 = vadd.f32 %v2936, %v2938
        %2975 = vadd.xlane.f32.xlu0 %v2974
        %v2976 = vpop.xlane.xlu0 %2975
        %v2977 = vadd.f32 %v2940, %v2942
        %2978 = vadd.xlane.f32.xlu0 %v2977
        %v2979 = vpop.xlane.xlu0 %2978
        %v2980 = vadd.f32 %v2946, %v2948
        %2981 = vadd.xlane.f32.xlu0 %v2980
        %v2982 = vpop.xlane.xlu0 %2981
        %v2983 = vadd.f32 %v2950, %v2952
        %2984 = vadd.xlane.f32.xlu0 %v2983
        %v2985 = vpop.xlane.xlu0 %2984
        %v2986 = vadd.f32 %v2956, %v2958
        %2987 = vadd.xlane.f32.xlu0 %v2986
        %v2988 = vpop.xlane.xlu0 %2987
        %v2989 = vadd.f32 %v2960, %v2962
        %2990 = vadd.xlane.f32.xlu0 %v2989
        %v2991 = vpop.xlane.xlu0 %2990
        %v2992 = vadd.f32 %v2966, %v2968
        %2993 = vadd.xlane.f32.xlu0 %v2992
        %v2994 = vpop.xlane.xlu0 %2993
        %v2995 = vadd.f32 %v2970, %v2972
        %2996 = vadd.xlane.f32.xlu0 %v2995
        %v2997 = vpop.xlane.xlu0 %2996
        %v2998 = vrcp.pop 256.0
        %v2999 = vmul.f32 %v2976, %v2998
        %v3000 = vmul.f32 %v2979, %v2998
        %v3001 = vmul.f32 %v2982, %v2998
        %v3002 = vmul.f32 %v2985, %v2998
        %v3003 = vmul.f32 %v2988, %v2998
        %v3004 = vmul.f32 %v2991, %v2998
        %v3005 = vmul.f32 %v2994, %v2998
        %v3006 = vmul.f32 %v2997, %v2998
        %v3007 = vmul.f32 %v2936, %v2936
        %v3008 = vmul.f32 %v2938, %v2938
        %v3009 = vmul.f32 %v2940, %v2940
        %v3010 = vmul.f32 %v2942, %v2942
        %v3011 = vmul.f32 %v2946, %v2946
        %v3012 = vmul.f32 %v2948, %v2948
        %v3013 = vmul.f32 %v2950, %v2950
        %v3014 = vmul.f32 %v2952, %v2952
        %v3015 = vmul.f32 %v2956, %v2956
        %v3016 = vmul.f32 %v2958, %v2958
        %v3017 = vmul.f32 %v2960, %v2960
        %v3018 = vmul.f32 %v2962, %v2962
        %v3019 = vmul.f32 %v2966, %v2966
        %v3020 = vmul.f32 %v2968, %v2968
        %v3021 = vmul.f32 %v2970, %v2970
        %v3022 = vmul.f32 %v2972, %v2972
        %v3023 = vadd.f32 %v3007, %v3008
        %3024 = vadd.xlane.f32.xlu0 %v3023
        %v3025 = vpop.xlane.xlu0 %3024
        %v3026 = vadd.f32 %v3009, %v3010
        %3027 = vadd.xlane.f32.xlu0 %v3026
        %v3028 = vpop.xlane.xlu0 %3027
        %v3029 = vadd.f32 %v3011, %v3012
        %3030 = vadd.xlane.f32.xlu0 %v3029
        %v3031 = vpop.xlane.xlu0 %3030
        %v3032 = vadd.f32 %v3013, %v3014
        %3033 = vadd.xlane.f32.xlu0 %v3032
        %v3034 = vpop.xlane.xlu0 %3033
        %v3035 = vadd.f32 %v3015, %v3016
        %3036 = vadd.xlane.f32.xlu0 %v3035
        %v3037 = vpop.xlane.xlu0 %3036
        %v3038 = vadd.f32 %v3017, %v3018
        %3039 = vadd.xlane.f32.xlu0 %v3038
        %v3040 = vpop.xlane.xlu0 %3039
        %v3041 = vadd.f32 %v3019, %v3020
        %3042 = vadd.xlane.f32.xlu0 %v3041
        %v3043 = vpop.xlane.xlu0 %3042
        %v3044 = vadd.f32 %v3021, %v3022
        %3045 = vadd.xlane.f32.xlu0 %v3044
        %v3046 = vpop.xlane.xlu0 %3045
        %v3047 = vmul.f32 %v3025, %v2998
        %v3048 = vmul.f32 %v3028, %v2998
        %v3049 = vmul.f32 %v3031, %v2998
        %v3050 = vmul.f32 %v3034, %v2998
        %v3051 = vmul.f32 %v3037, %v2998
        %v3052 = vmul.f32 %v3040, %v2998
        %v3053 = vmul.f32 %v3043, %v2998
        %v3054 = vmul.f32 %v3046, %v2998
        %v3055 = vmul.f32 %v2999, %v2999
        %v3056 = vmul.f32 %v3000, %v3000
        %v3057 = vmul.f32 %v3001, %v3001
        %v3058 = vmul.f32 %v3002, %v3002
        %v3059 = vmul.f32 %v3003, %v3003
        %v3060 = vmul.f32 %v3004, %v3004
        %v3061 = vmul.f32 %v3005, %v3005
        %v3062 = vmul.f32 %v3006, %v3006
        %v3063 = vsub.f32 %v3047, %v3055
        %v3064 = vsub.f32 %v3048, %v3056
        %v3065 = vsub.f32 %v3049, %v3057
        %v3066 = vsub.f32 %v3050, %v3058
        %v3067 = vsub.f32 %v3051, %v3059
        %v3068 = vsub.f32 %v3052, %v3060
        %v3069 = vsub.f32 %v3053, %v3061
        %v3070 = vsub.f32 %v3054, %v3062
        %v3071 = vmax.f32 %v3063, 0.0
        %v3072 = vmax.f32 %v3064, 0.0
        %v3073 = vmax.f32 %v3065, 0.0
        %v3074 = vmax.f32 %v3066, 0.0
        %v3075 = vmax.f32 %v3067, 0.0
        %v3076 = vmax.f32 %v3068, 0.0
        %v3077 = vmax.f32 %v3069, 0.0
        %v3078 = vmax.f32 %v3070, 0.0
        %v3079 = vsub.f32 %v2936, %v2999
        %v3080 = vsub.f32 %v2938, %v2999
        %v3081 = vsub.f32 %v2940, %v3000
        %v3082 = vsub.f32 %v2942, %v3000
        %v3083 = vsub.f32 %v2946, %v3001
        %v3084 = vsub.f32 %v2948, %v3001
        %v3085 = vsub.f32 %v2950, %v3002
        %v3086 = vsub.f32 %v2952, %v3002
        %v3087 = vsub.f32 %v2956, %v3003
        %v3088 = vsub.f32 %v2958, %v3003
        %v3089 = vsub.f32 %v2960, %v3004
        %v3090 = vsub.f32 %v2962, %v3004
        %v3091 = vsub.f32 %v2966, %v3005
        %v3092 = vsub.f32 %v2968, %v3005
        %v3093 = vsub.f32 %v2970, %v3006
        %v3094 = vsub.f32 %v2972, %v3006
        %v3095 = vadd.f32 %v3071, 1e-05
        %v3096 = vadd.f32 %v3072, 1e-05
        %v3097 = vadd.f32 %v3073, 1e-05
        %v3098 = vadd.f32 %v3074, 1e-05
        %v3099 = vadd.f32 %v3075, 1e-05
        %v3100 = vadd.f32 %v3076, 1e-05
        %v3101 = vadd.f32 %v3077, 1e-05
        %v3102 = vadd.f32 %v3078, 1e-05
        %v3103 = vrsqrt.pop %v3095
        %v3104 = vrsqrt.pop %v3096
        %v3105 = vrsqrt.pop %v3097
        %v3106 = vrsqrt.pop %v3098
        %v3107 = vrsqrt.pop %v3099
        %v3108 = vrsqrt.pop %v3100
        %v3109 = vrsqrt.pop %v3101
        %v3110 = vrsqrt.pop %v3102
        %v3111 = vmul.f32 %v3079, %v3103
        %v3112 = vmul.f32 %v3080, %v3103
        %v3113 = vmul.f32 %v3081, %v3104
        %v3114 = vmul.f32 %v3082, %v3104
        %v3115 = vmul.f32 %v3083, %v3105
        %v3116 = vmul.f32 %v3084, %v3105
        %v3117 = vmul.f32 %v3085, %v3106
        %v3118 = vmul.f32 %v3086, %v3106
        %v3119 = vmul.f32 %v3087, %v3107
        %v3120 = vmul.f32 %v3088, %v3107
        %v3121 = vmul.f32 %v3089, %v3108
        %v3122 = vmul.f32 %v3090, %v3108
        %v3123 = vmul.f32 %v3091, %v3109
        %v3124 = vmul.f32 %v3092, %v3109
        %v3125 = vmul.f32 %v3093, %v3110
        %v3126 = vmul.f32 %v3094, %v3110
        %s3127 = scalar_lea.vmem %s17, 2
        %v3128 = vld [vmem:[%s3127] ss:$8 sm:$0x3]
        %v3130 = vlaneseq
        %v3131 = vshrl.u32 %v3130, 7
        %v3132 = vsub.s32 0, %v3131
        %v3133 = vrot.slane %v3128, %v3132
        %v3134 = vlaneseq
        %v3135 = vshrl.u32 %v3134, 7
        %v3136 = vsub.s32 1, %v3135
        %v3137 = vrot.slane %v3128, %v3136
        %v3140 = vmul.f32 %v3111, %v3133
        %v3141 = vmul.f32 %v3112, %v3137
        %v3142 = vmul.f32 %v3113, %v3133
        %v3143 = vmul.f32 %v3114, %v3137
        %v3144 = vmul.f32 %v3115, %v3133
        %v3145 = vmul.f32 %v3116, %v3137
        %v3146 = vmul.f32 %v3117, %v3133
        %v3147 = vmul.f32 %v3118, %v3137
        %v3148 = vmul.f32 %v3119, %v3133
        %v3149 = vmul.f32 %v3120, %v3137
        %v3150 = vmul.f32 %v3121, %v3133
        %v3151 = vmul.f32 %v3122, %v3137
        %v3152 = vmul.f32 %v3123, %v3133
        %v3153 = vmul.f32 %v3124, %v3137
        %v3154 = vmul.f32 %v3125, %v3133
        %v3155 = vmul.f32 %v3126, %v3137
        %s3156 = scalar_lea.vmem %s17, 3
        %v3157 = vld [vmem:[%s3156] ss:$8 sm:$0x3]
        %v3159 = vlaneseq
        %v3160 = vshrl.u32 %v3159, 7
        %v3161 = vsub.s32 0, %v3160
        %v3162 = vrot.slane %v3157, %v3161
        %v3163 = vlaneseq
        %v3164 = vshrl.u32 %v3163, 7
        %v3165 = vsub.s32 1, %v3164
        %v3166 = vrot.slane %v3157, %v3165
        %v3169 = vadd.f32 %v3140, %v3162
        %v3170 = vadd.f32 %v3141, %v3166
        %v3171 = vadd.f32 %v3142, %v3162
        %v3172 = vadd.f32 %v3143, %v3166
        %v3173 = vadd.f32 %v3144, %v3162
        %v3174 = vadd.f32 %v3145, %v3166
        %v3175 = vadd.f32 %v3146, %v3162
        %v3176 = vadd.f32 %v3147, %v3166
        %v3177 = vadd.f32 %v3148, %v3162
        %v3178 = vadd.f32 %v3149, %v3166
        %v3179 = vadd.f32 %v3150, %v3162
        %v3180 = vadd.f32 %v3151, %v3166
        %v3181 = vadd.f32 %v3152, %v3162
        %v3182 = vadd.f32 %v3153, %v3166
        %v3183 = vadd.f32 %v3154, %v3162
        %v3184 = vadd.f32 %v3155, %v3166
        %v3185 = vadd.f32 %v2232, %v3169
        %v3186 = vadd.f32 %v2234, %v3170
        %v3187 = vadd.f32 %v2236, %v3171
        %v3188 = vadd.f32 %v2238, %v3172
        %v3189 = vadd.f32 %v2242, %v3173
        %v3190 = vadd.f32 %v2244, %v3174
        %v3191 = vadd.f32 %v2246, %v3175
        %v3192 = vadd.f32 %v2248, %v3176
        %v3193 = vadd.f32 %v2252, %v3177
        %v3194 = vadd.f32 %v2254, %v3178
        %v3195 = vadd.f32 %v2256, %v3179
        %v3196 = vadd.f32 %v2258, %v3180
        %v3197 = vadd.f32 %v2262, %v3181
        %v3198 = vadd.f32 %v2264, %v3182
        %v3199 = vadd.f32 %v2266, %v3183
        %v3200 = vadd.f32 %v2268, %v3184
        %v3201 = vadd.f32 %v3185, %v3186
        %3202 = vadd.xlane.f32.xlu0 %v3201
        %v3203 = vpop.xlane.xlu0 %3202
        %v3204 = vadd.f32 %v3187, %v3188
        %3205 = vadd.xlane.f32.xlu0 %v3204
        %v3206 = vpop.xlane.xlu0 %3205
        %v3207 = vadd.f32 %v3189, %v3190
        %3208 = vadd.xlane.f32.xlu0 %v3207
        %v3209 = vpop.xlane.xlu0 %3208
        %v3210 = vadd.f32 %v3191, %v3192
        %3211 = vadd.xlane.f32.xlu0 %v3210
        %v3212 = vpop.xlane.xlu0 %3211
        %v3213 = vadd.f32 %v3193, %v3194
        %3214 = vadd.xlane.f32.xlu0 %v3213
        %v3215 = vpop.xlane.xlu0 %3214
        %v3216 = vadd.f32 %v3195, %v3196
        %3217 = vadd.xlane.f32.xlu0 %v3216
        %v3218 = vpop.xlane.xlu0 %3217
        %v3219 = vadd.f32 %v3197, %v3198
        %3220 = vadd.xlane.f32.xlu0 %v3219
        %v3221 = vpop.xlane.xlu0 %3220
        %v3222 = vadd.f32 %v3199, %v3200
        %3223 = vadd.xlane.f32.xlu0 %v3222
        %v3224 = vpop.xlane.xlu0 %3223
        %v3225 = vmul.f32 %v3203, %v2998
        %v3226 = vmul.f32 %v3206, %v2998
        %v3227 = vmul.f32 %v3209, %v2998
        %v3228 = vmul.f32 %v3212, %v2998
        %v3229 = vmul.f32 %v3215, %v2998
        %v3230 = vmul.f32 %v3218, %v2998
        %v3231 = vmul.f32 %v3221, %v2998
        %v3232 = vmul.f32 %v3224, %v2998
        %v3233 = vmul.f32 %v3185, %v3185
        %v3234 = vmul.f32 %v3186, %v3186
        %v3235 = vmul.f32 %v3187, %v3187
        %v3236 = vmul.f32 %v3188, %v3188
        %v3237 = vmul.f32 %v3189, %v3189
        %v3238 = vmul.f32 %v3190, %v3190
        %v3239 = vmul.f32 %v3191, %v3191
        %v3240 = vmul.f32 %v3192, %v3192
        %v3241 = vmul.f32 %v3193, %v3193
        %v3242 = vmul.f32 %v3194, %v3194
        %v3243 = vmul.f32 %v3195, %v3195
        %v3244 = vmul.f32 %v3196, %v3196
        %v3245 = vmul.f32 %v3197, %v3197
        %v3246 = vmul.f32 %v3198, %v3198
        %v3247 = vmul.f32 %v3199, %v3199
        %v3248 = vmul.f32 %v3200, %v3200
        %v3249 = vadd.f32 %v3233, %v3234
        %3250 = vadd.xlane.f32.xlu0 %v3249
        %v3251 = vpop.xlane.xlu0 %3250
        %v3252 = vadd.f32 %v3235, %v3236
        %3253 = vadd.xlane.f32.xlu0 %v3252
        %v3254 = vpop.xlane.xlu0 %3253
        %v3255 = vadd.f32 %v3237, %v3238
        %3256 = vadd.xlane.f32.xlu0 %v3255
        %v3257 = vpop.xlane.xlu0 %3256
        %v3258 = vadd.f32 %v3239, %v3240
        %3259 = vadd.xlane.f32.xlu0 %v3258
        %v3260 = vpop.xlane.xlu0 %3259
        %v3261 = vadd.f32 %v3241, %v3242
        %3262 = vadd.xlane.f32.xlu0 %v3261
        %v3263 = vpop.xlane.xlu0 %3262
        %v3264 = vadd.f32 %v3243, %v3244
        %3265 = vadd.xlane.f32.xlu0 %v3264
        %v3266 = vpop.xlane.xlu0 %3265
        %v3267 = vadd.f32 %v3245, %v3246
        %3268 = vadd.xlane.f32.xlu0 %v3267
        %v3269 = vpop.xlane.xlu0 %3268
        %v3270 = vadd.f32 %v3247, %v3248
        %3271 = vadd.xlane.f32.xlu0 %v3270
        %v3272 = vpop.xlane.xlu0 %3271
        %v3273 = vmul.f32 %v3251, %v2998
        %v3274 = vmul.f32 %v3254, %v2998
        %v3275 = vmul.f32 %v3257, %v2998
        %v3276 = vmul.f32 %v3260, %v2998
        %v3277 = vmul.f32 %v3263, %v2998
        %v3278 = vmul.f32 %v3266, %v2998
        %v3279 = vmul.f32 %v3269, %v2998
        %v3280 = vmul.f32 %v3272, %v2998
        %v3281 = vmul.f32 %v3225, %v3225
        %v3282 = vmul.f32 %v3226, %v3226
        %v3283 = vmul.f32 %v3227, %v3227
        %v3284 = vmul.f32 %v3228, %v3228
        %v3285 = vmul.f32 %v3229, %v3229
        %v3286 = vmul.f32 %v3230, %v3230
        %v3287 = vmul.f32 %v3231, %v3231
        %v3288 = vmul.f32 %v3232, %v3232
        %v3289 = vsub.f32 %v3273, %v3281
        %v3290 = vsub.f32 %v3274, %v3282
        %v3291 = vsub.f32 %v3275, %v3283
        %v3292 = vsub.f32 %v3276, %v3284
        %v3293 = vsub.f32 %v3277, %v3285
        %v3294 = vsub.f32 %v3278, %v3286
        %v3295 = vsub.f32 %v3279, %v3287
        %v3296 = vsub.f32 %v3280, %v3288
        %v3297 = vmax.f32 %v3289, 0.0
        %v3298 = vmax.f32 %v3290, 0.0
        %v3299 = vmax.f32 %v3291, 0.0
        %v3300 = vmax.f32 %v3292, 0.0
        %v3301 = vmax.f32 %v3293, 0.0
        %v3302 = vmax.f32 %v3294, 0.0
        %v3303 = vmax.f32 %v3295, 0.0
        %v3304 = vmax.f32 %v3296, 0.0
        %v3305 = vsub.f32 %v3185, %v3225
        %v3306 = vsub.f32 %v3186, %v3225
        %v3307 = vsub.f32 %v3187, %v3226
        %v3308 = vsub.f32 %v3188, %v3226
        %v3309 = vsub.f32 %v3189, %v3227
        %v3310 = vsub.f32 %v3190, %v3227
        %v3311 = vsub.f32 %v3191, %v3228
        %v3312 = vsub.f32 %v3192, %v3228
        %v3313 = vsub.f32 %v3193, %v3229
        %v3314 = vsub.f32 %v3194, %v3229
        %v3315 = vsub.f32 %v3195, %v3230
        %v3316 = vsub.f32 %v3196, %v3230
        %v3317 = vsub.f32 %v3197, %v3231
        %v3318 = vsub.f32 %v3198, %v3231
        %v3319 = vsub.f32 %v3199, %v3232
        %v3320 = vsub.f32 %v3200, %v3232
        %v3321 = vadd.f32 %v3297, 1e-05
        %v3322 = vadd.f32 %v3298, 1e-05
        %v3323 = vadd.f32 %v3299, 1e-05
        %v3324 = vadd.f32 %v3300, 1e-05
        %v3325 = vadd.f32 %v3301, 1e-05
        %v3326 = vadd.f32 %v3302, 1e-05
        %v3327 = vadd.f32 %v3303, 1e-05
        %v3328 = vadd.f32 %v3304, 1e-05
        %v3329 = vrsqrt.pop %v3321
        %v3330 = vrsqrt.pop %v3322
        %v3331 = vrsqrt.pop %v3323
        %v3332 = vrsqrt.pop %v3324
        %v3333 = vrsqrt.pop %v3325
        %v3334 = vrsqrt.pop %v3326
        %v3335 = vrsqrt.pop %v3327
        %v3336 = vrsqrt.pop %v3328
        %v3337 = vmul.f32 %v3305, %v3329
        %v3338 = vmul.f32 %v3306, %v3329
        %v3339 = vmul.f32 %v3307, %v3330
        %v3340 = vmul.f32 %v3308, %v3330
        %v3341 = vmul.f32 %v3309, %v3331
        %v3342 = vmul.f32 %v3310, %v3331
        %v3343 = vmul.f32 %v3311, %v3332
        %v3344 = vmul.f32 %v3312, %v3332
        %v3345 = vmul.f32 %v3313, %v3333
        %v3346 = vmul.f32 %v3314, %v3333
        %v3347 = vmul.f32 %v3315, %v3334
        %v3348 = vmul.f32 %v3316, %v3334
        %v3349 = vmul.f32 %v3317, %v3335
        %v3350 = vmul.f32 %v3318, %v3335
        %v3351 = vmul.f32 %v3319, %v3336
        %v3352 = vmul.f32 %v3320, %v3336
        %s3353 = scalar_lea.vmem %s17, 4
        %v3354 = vld [vmem:[%s3353] ss:$8 sm:$0x3]
        %v3356 = vlaneseq
        %v3357 = vshrl.u32 %v3356, 7
        %v3358 = vsub.s32 0, %v3357
        %v3359 = vrot.slane %v3354, %v3358
        %v3360 = vlaneseq
        %v3361 = vshrl.u32 %v3360, 7
        %v3362 = vsub.s32 1, %v3361
        %v3363 = vrot.slane %v3354, %v3362
        %v3366 = vmul.f32 %v3337, %v3359
        %v3367 = vmul.f32 %v3338, %v3363
        %v3368 = vmul.f32 %v3339, %v3359
        %v3369 = vmul.f32 %v3340, %v3363
        %v3370 = vmul.f32 %v3341, %v3359
        %v3371 = vmul.f32 %v3342, %v3363
        %v3372 = vmul.f32 %v3343, %v3359
        %v3373 = vmul.f32 %v3344, %v3363
        %v3374 = vmul.f32 %v3345, %v3359
        %v3375 = vmul.f32 %v3346, %v3363
        %v3376 = vmul.f32 %v3347, %v3359
        %v3377 = vmul.f32 %v3348, %v3363
        %v3378 = vmul.f32 %v3349, %v3359
        %v3379 = vmul.f32 %v3350, %v3363
        %v3380 = vmul.f32 %v3351, %v3359
        %v3381 = vmul.f32 %v3352, %v3363
        %s3382 = scalar_lea.vmem %s17, 5
        %v3383 = vld [vmem:[%s3382] ss:$8 sm:$0x3]
        %v3385 = vlaneseq
        %v3386 = vshrl.u32 %v3385, 7
        %v3387 = vsub.s32 0, %v3386
        %v3388 = vrot.slane %v3383, %v3387
        %v3389 = vlaneseq
        %v3390 = vshrl.u32 %v3389, 7
        %v3391 = vsub.s32 1, %v3390
        %v3392 = vrot.slane %v3383, %v3391
        %v3395 = vadd.f32 %v3366, %v3388
        %v3396 = vadd.f32 %v3367, %v3392
        %v3397 = vadd.f32 %v3368, %v3388
        %v3398 = vadd.f32 %v3369, %v3392
        %v3399 = vadd.f32 %v3370, %v3388
        %v3400 = vadd.f32 %v3371, %v3392
        %v3401 = vadd.f32 %v3372, %v3388
        %v3402 = vadd.f32 %v3373, %v3392
        %v3403 = vadd.f32 %v3374, %v3388
        %v3404 = vadd.f32 %v3375, %v3392
        %v3405 = vadd.f32 %v3376, %v3388
        %v3406 = vadd.f32 %v3377, %v3392
        %v3407 = vadd.f32 %v3378, %v3388
        %v3408 = vadd.f32 %v3379, %v3392
        %v3409 = vadd.f32 %v3380, %v3388
        %v3410 = vadd.f32 %v3381, %v3392
        %v3411 = vpack.c.bf16 %v3397, %v3395
        %v3412 = vpack.c.bf16 %v3398, %v3396
        %v3413 = vpack.c.bf16 %v3401, %v3399
        %v3414 = vpack.c.bf16 %v3402, %v3400
        %v3415 = vpack.c.bf16 %v3405, %v3403
        %v3416 = vpack.c.bf16 %v3406, %v3404
        %v3417 = vpack.c.bf16 %v3409, %v3407
        %v3418 = vpack.c.bf16 %v3410, %v3408
        %v3419 = vld [vmem:[%s9] sm:$0xff]
        %v3420 = vld [vmem:[%s9 + $0x8] sm:$0xff]
        %v3421 = vld [vmem:[%s9 + $0x10] sm:$0xff]
        %v3422 = vld [vmem:[%s9 + $0x18] sm:$0xff]
        %v3423 = vld [vmem:[%s9 + $0x20] sm:$0xff]
        %v3424 = vld [vmem:[%s9 + $0x28] sm:$0xff]
        %v3425 = vld [vmem:[%s9 + $0x30] sm:$0xff]
        %v3426 = vld [vmem:[%s9 + $0x38] sm:$0xff]
        %v3427 = vld [vmem:[%s9 + $0x40] sm:$0xff]
        %v3428 = vld [vmem:[%s9 + $0x48] sm:$0xff]
        %v3429 = vld [vmem:[%s9 + $0x50] sm:$0xff]
        %v3430 = vld [vmem:[%s9 + $0x58] sm:$0xff]
        %v3431 = vld [vmem:[%s9 + $0x60] sm:$0xff]
        %v3432 = vld [vmem:[%s9 + $0x68] sm:$0xff]
        %v3433 = vld [vmem:[%s9 + $0x70] sm:$0xff]
        %v3434 = vld [vmem:[%s9 + $0x78] sm:$0xff]
        %v3435 = vld [vmem:[%s9 + $0x80] sm:$0xff]
        %v3436 = vld [vmem:[%s9 + $0x88] sm:$0xff]
        %v3437 = vld [vmem:[%s9 + $0x90] sm:$0xff]
        %v3438 = vld [vmem:[%s9 + $0x98] sm:$0xff]
        %v3439 = vld [vmem:[%s9 + $0xa0] sm:$0xff]
        %v3440 = vld [vmem:[%s9 + $0xa8] sm:$0xff]
        %v3441 = vld [vmem:[%s9 + $0xb0] sm:$0xff]
        %v3442 = vld [vmem:[%s9 + $0xb8] sm:$0xff]
        %v3443 = vld [vmem:[%s9 + $0xc0] sm:$0xff]
        %v3444 = vld [vmem:[%s9 + $0xc8] sm:$0xff]
        %v3445 = vld [vmem:[%s9 + $0xd0] sm:$0xff]
        %v3446 = vld [vmem:[%s9 + $0xd8] sm:$0xff]
        %v3447 = vld [vmem:[%s9 + $0xe0] sm:$0xff]
        %v3448 = vld [vmem:[%s9 + $0xe8] sm:$0xff]
        %v3449 = vld [vmem:[%s9 + $0xf0] sm:$0xff]
        %v3450 = vld [vmem:[%s9 + $0xf8] sm:$0xff]
        %v3451 = vld [vmem:[%s9 + $0x100] sm:$0xff]
        %v3452 = vld [vmem:[%s9 + $0x108] sm:$0xff]
        %v3453 = vld [vmem:[%s9 + $0x110] sm:$0xff]
        %v3454 = vld [vmem:[%s9 + $0x118] sm:$0xff]
        %v3455 = vld [vmem:[%s9 + $0x120] sm:$0xff]
        %v3456 = vld [vmem:[%s9 + $0x128] sm:$0xff]
        %v3457 = vld [vmem:[%s9 + $0x130] sm:$0xff]
        %v3458 = vld [vmem:[%s9 + $0x138] sm:$0xff]
        %v3459 = vld [vmem:[%s9 + $0x140] sm:$0xff]
        %v3460 = vld [vmem:[%s9 + $0x148] sm:$0xff]
        %v3461 = vld [vmem:[%s9 + $0x150] sm:$0xff]
        %v3462 = vld [vmem:[%s9 + $0x158] sm:$0xff]
        %v3463 = vld [vmem:[%s9 + $0x160] sm:$0xff]
        %v3464 = vld [vmem:[%s9 + $0x168] sm:$0xff]
        %v3465 = vld [vmem:[%s9 + $0x170] sm:$0xff]
        %v3466 = vld [vmem:[%s9 + $0x178] sm:$0xff]
        %v3467 = vld [vmem:[%s9 + $0x180] sm:$0xff]
        %v3468 = vld [vmem:[%s9 + $0x188] sm:$0xff]
        %v3469 = vld [vmem:[%s9 + $0x190] sm:$0xff]
        %v3470 = vld [vmem:[%s9 + $0x198] sm:$0xff]
        %v3471 = vld [vmem:[%s9 + $0x1a0] sm:$0xff]
        %v3472 = vld [vmem:[%s9 + $0x1a8] sm:$0xff]
        %v3473 = vld [vmem:[%s9 + $0x1b0] sm:$0xff]
        %v3474 = vld [vmem:[%s9 + $0x1b8] sm:$0xff]
        %v3475 = vld [vmem:[%s9 + $0x1c0] sm:$0xff]
        %v3476 = vld [vmem:[%s9 + $0x1c8] sm:$0xff]
        %v3477 = vld [vmem:[%s9 + $0x1d0] sm:$0xff]
        %v3478 = vld [vmem:[%s9 + $0x1d8] sm:$0xff]
        %v3479 = vld [vmem:[%s9 + $0x1e0] sm:$0xff]
        %v3480 = vld [vmem:[%s9 + $0x1e8] sm:$0xff]
        %v3481 = vld [vmem:[%s9 + $0x1f0] sm:$0xff]
        %v3482 = vld [vmem:[%s9 + $0x1f8] sm:$0xff]
        %v3483 = vld [vmem:[%s9 + $0x200] sm:$0xff]
        %v3484 = vld [vmem:[%s9 + $0x208] sm:$0xff]
        %v3485 = vld [vmem:[%s9 + $0x210] sm:$0xff]
        %v3486 = vld [vmem:[%s9 + $0x218] sm:$0xff]
        %v3487 = vld [vmem:[%s9 + $0x220] sm:$0xff]
        %v3488 = vld [vmem:[%s9 + $0x228] sm:$0xff]
        %v3489 = vld [vmem:[%s9 + $0x230] sm:$0xff]
        %v3490 = vld [vmem:[%s9 + $0x238] sm:$0xff]
        %v3491 = vld [vmem:[%s9 + $0x240] sm:$0xff]
        %v3492 = vld [vmem:[%s9 + $0x248] sm:$0xff]
        %v3493 = vld [vmem:[%s9 + $0x250] sm:$0xff]
        %v3494 = vld [vmem:[%s9 + $0x258] sm:$0xff]
        %v3495 = vld [vmem:[%s9 + $0x260] sm:$0xff]
        %v3496 = vld [vmem:[%s9 + $0x268] sm:$0xff]
        %v3497 = vld [vmem:[%s9 + $0x270] sm:$0xff]
        %v3498 = vld [vmem:[%s9 + $0x278] sm:$0xff]
        %v3499 = vld [vmem:[%s9 + $0x280] sm:$0xff]
        %v3500 = vld [vmem:[%s9 + $0x288] sm:$0xff]
        %v3501 = vld [vmem:[%s9 + $0x290] sm:$0xff]
        %v3502 = vld [vmem:[%s9 + $0x298] sm:$0xff]
        %v3503 = vld [vmem:[%s9 + $0x2a0] sm:$0xff]
        %v3504 = vld [vmem:[%s9 + $0x2a8] sm:$0xff]
        %v3505 = vld [vmem:[%s9 + $0x2b0] sm:$0xff]
        %v3506 = vld [vmem:[%s9 + $0x2b8] sm:$0xff]
        %v3507 = vld [vmem:[%s9 + $0x2c0] sm:$0xff]
        %v3508 = vld [vmem:[%s9 + $0x2c8] sm:$0xff]
        %v3509 = vld [vmem:[%s9 + $0x2d0] sm:$0xff]
        %v3510 = vld [vmem:[%s9 + $0x2d8] sm:$0xff]
        %v3511 = vld [vmem:[%s9 + $0x2e0] sm:$0xff]
        %v3512 = vld [vmem:[%s9 + $0x2e8] sm:$0xff]
        %v3513 = vld [vmem:[%s9 + $0x2f0] sm:$0xff]
        %v3514 = vld [vmem:[%s9 + $0x2f8] sm:$0xff]
        %v3611 = vunpack.c.l.b16 %v3419
        %v3612 = vunpack.c.h.b16 %v3419
        %v3613 = vunpack.c.l.b16 %v3420
        %v3614 = vunpack.c.h.b16 %v3420
        %v3615 = vunpack.c.l.b16 %v3421
        %v3616 = vunpack.c.h.b16 %v3421
        %v3617 = vunpack.c.l.b16 %v3422
        %v3618 = vunpack.c.h.b16 %v3422
        %v3619 = vunpack.c.l.b16 %v3423
        %v3620 = vunpack.c.h.b16 %v3423
        %v3621 = vunpack.c.l.b16 %v3424
        %v3622 = vunpack.c.h.b16 %v3424
        %v3623 = vunpack.c.l.b16 %v3425
        %v3624 = vunpack.c.h.b16 %v3425
        %v3625 = vunpack.c.l.b16 %v3426
        %v3626 = vunpack.c.h.b16 %v3426
        %v3627 = vunpack.c.l.b16 %v3427
        %v3628 = vunpack.c.h.b16 %v3427
        %v3629 = vunpack.c.l.b16 %v3428
        %v3630 = vunpack.c.h.b16 %v3428
        %v3631 = vunpack.c.l.b16 %v3429
        %v3632 = vunpack.c.h.b16 %v3429
        %v3633 = vunpack.c.l.b16 %v3430
        %v3634 = vunpack.c.h.b16 %v3430
        %v3635 = vunpack.c.l.b16 %v3431
        %v3636 = vunpack.c.h.b16 %v3431
        %v3637 = vunpack.c.l.b16 %v3432
        %v3638 = vunpack.c.h.b16 %v3432
        %v3639 = vunpack.c.l.b16 %v3433
        %v3640 = vunpack.c.h.b16 %v3433
        %v3641 = vunpack.c.l.b16 %v3434
        %v3642 = vunpack.c.h.b16 %v3434
        %v3643 = vunpack.c.l.b16 %v3435
        %v3644 = vunpack.c.h.b16 %v3435
        %v3645 = vunpack.c.l.b16 %v3436
        %v3646 = vunpack.c.h.b16 %v3436
        %v3647 = vunpack.c.l.b16 %v3437
        %v3648 = vunpack.c.h.b16 %v3437
        %v3649 = vunpack.c.l.b16 %v3438
        %v3650 = vunpack.c.h.b16 %v3438
        %v3651 = vunpack.c.l.b16 %v3439
        %v3652 = vunpack.c.h.b16 %v3439
        %v3653 = vunpack.c.l.b16 %v3440
        %v3654 = vunpack.c.h.b16 %v3440
        %v3655 = vunpack.c.l.b16 %v3441
        %v3656 = vunpack.c.h.b16 %v3441
        %v3657 = vunpack.c.l.b16 %v3442
        %v3658 = vunpack.c.h.b16 %v3442
        %v3659 = vunpack.c.l.b16 %v3443
        %v3660 = vunpack.c.h.b16 %v3443
        %v3661 = vunpack.c.l.b16 %v3444
        %v3662 = vunpack.c.h.b16 %v3444
        %v3663 = vunpack.c.l.b16 %v3445
        %v3664 = vunpack.c.h.b16 %v3445
        %v3665 = vunpack.c.l.b16 %v3446
        %v3666 = vunpack.c.h.b16 %v3446
        %v3667 = vunpack.c.l.b16 %v3447
        %v3668 = vunpack.c.h.b16 %v3447
        %v3669 = vunpack.c.l.b16 %v3448
        %v3670 = vunpack.c.h.b16 %v3448
        %v3671 = vunpack.c.l.b16 %v3449
        %v3672 = vunpack.c.h.b16 %v3449
        %v3673 = vunpack.c.l.b16 %v3450
        %v3674 = vunpack.c.h.b16 %v3450
        %v3675 = vunpack.c.l.b16 %v3451
        %v3676 = vunpack.c.h.b16 %v3451
        %v3677 = vunpack.c.l.b16 %v3452
        %v3678 = vunpack.c.h.b16 %v3452
        %v3679 = vunpack.c.l.b16 %v3453
        %v3680 = vunpack.c.h.b16 %v3453
        %v3681 = vunpack.c.l.b16 %v3454
        %v3682 = vunpack.c.h.b16 %v3454
        %v3683 = vunpack.c.l.b16 %v3455
        %v3684 = vunpack.c.h.b16 %v3455
        %v3685 = vunpack.c.l.b16 %v3456
        %v3686 = vunpack.c.h.b16 %v3456
        %v3687 = vunpack.c.l.b16 %v3457
        %v3688 = vunpack.c.h.b16 %v3457
        %v3689 = vunpack.c.l.b16 %v3458
        %v3690 = vunpack.c.h.b16 %v3458
        %v3691 = vunpack.c.l.b16 %v3459
        %v3692 = vunpack.c.h.b16 %v3459
        %v3693 = vunpack.c.l.b16 %v3460
        %v3694 = vunpack.c.h.b16 %v3460
        %v3695 = vunpack.c.l.b16 %v3461
        %v3696 = vunpack.c.h.b16 %v3461
        %v3697 = vunpack.c.l.b16 %v3462
        %v3698 = vunpack.c.h.b16 %v3462
        %v3699 = vunpack.c.l.b16 %v3463
        %v3700 = vunpack.c.h.b16 %v3463
        %v3701 = vunpack.c.l.b16 %v3464
        %v3702 = vunpack.c.h.b16 %v3464
        %v3703 = vunpack.c.l.b16 %v3465
        %v3704 = vunpack.c.h.b16 %v3465
        %v3705 = vunpack.c.l.b16 %v3466
        %v3706 = vunpack.c.h.b16 %v3466
        %v3707 = vunpack.c.l.b16 %v3467
        %v3708 = vunpack.c.h.b16 %v3467
        %v3709 = vunpack.c.l.b16 %v3468
        %v3710 = vunpack.c.h.b16 %v3468
        %v3711 = vunpack.c.l.b16 %v3469
        %v3712 = vunpack.c.h.b16 %v3469
        %v3713 = vunpack.c.l.b16 %v3470
        %v3714 = vunpack.c.h.b16 %v3470
        %v3715 = vunpack.c.l.b16 %v3471
        %v3716 = vunpack.c.h.b16 %v3471
        %v3717 = vunpack.c.l.b16 %v3472
        %v3718 = vunpack.c.h.b16 %v3472
        %v3719 = vunpack.c.l.b16 %v3473
        %v3720 = vunpack.c.h.b16 %v3473
        %v3721 = vunpack.c.l.b16 %v3474
        %v3722 = vunpack.c.h.b16 %v3474
        %v3723 = vunpack.c.l.b16 %v3475
        %v3724 = vunpack.c.h.b16 %v3475
        %v3725 = vunpack.c.l.b16 %v3476
        %v3726 = vunpack.c.h.b16 %v3476
        %v3727 = vunpack.c.l.b16 %v3477
        %v3728 = vunpack.c.h.b16 %v3477
        %v3729 = vunpack.c.l.b16 %v3478
        %v3730 = vunpack.c.h.b16 %v3478
        %v3731 = vunpack.c.l.b16 %v3479
        %v3732 = vunpack.c.h.b16 %v3479
        %v3733 = vunpack.c.l.b16 %v3480
        %v3734 = vunpack.c.h.b16 %v3480
        %v3735 = vunpack.c.l.b16 %v3481
        %v3736 = vunpack.c.h.b16 %v3481
        %v3737 = vunpack.c.l.b16 %v3482
        %v3738 = vunpack.c.h.b16 %v3482
        %v3739 = vunpack.c.l.b16 %v3483
        %v3740 = vunpack.c.h.b16 %v3483
        %v3741 = vunpack.c.l.b16 %v3484
        %v3742 = vunpack.c.h.b16 %v3484
        %v3743 = vunpack.c.l.b16 %v3485
        %v3744 = vunpack.c.h.b16 %v3485
        %v3745 = vunpack.c.l.b16 %v3486
        %v3746 = vunpack.c.h.b16 %v3486
        %v3747 = vunpack.c.l.b16 %v3487
        %v3748 = vunpack.c.h.b16 %v3487
        %v3749 = vunpack.c.l.b16 %v3488
        %v3750 = vunpack.c.h.b16 %v3488
        %v3751 = vunpack.c.l.b16 %v3489
        %v3752 = vunpack.c.h.b16 %v3489
        %v3753 = vunpack.c.l.b16 %v3490
        %v3754 = vunpack.c.h.b16 %v3490
        %v3755 = vunpack.c.l.b16 %v3491
        %v3756 = vunpack.c.h.b16 %v3491
        %v3757 = vunpack.c.l.b16 %v3492
        %v3758 = vunpack.c.h.b16 %v3492
        %v3759 = vunpack.c.l.b16 %v3493
        %v3760 = vunpack.c.h.b16 %v3493
        %v3761 = vunpack.c.l.b16 %v3494
        %v3762 = vunpack.c.h.b16 %v3494
        %v3763 = vunpack.c.l.b16 %v3495
        %v3764 = vunpack.c.h.b16 %v3495
        %v3765 = vunpack.c.l.b16 %v3496
        %v3766 = vunpack.c.h.b16 %v3496
        %v3767 = vunpack.c.l.b16 %v3497
        %v3768 = vunpack.c.h.b16 %v3497
        %v3769 = vunpack.c.l.b16 %v3498
        %v3770 = vunpack.c.h.b16 %v3498
        %v3771 = vunpack.c.l.b16 %v3499
        %v3772 = vunpack.c.h.b16 %v3499
        %v3773 = vunpack.c.l.b16 %v3500
        %v3774 = vunpack.c.h.b16 %v3500
        %v3775 = vunpack.c.l.b16 %v3501
        %v3776 = vunpack.c.h.b16 %v3501
        %v3777 = vunpack.c.l.b16 %v3502
        %v3778 = vunpack.c.h.b16 %v3502
        %v3779 = vunpack.c.l.b16 %v3503
        %v3780 = vunpack.c.h.b16 %v3503
        %v3781 = vunpack.c.l.b16 %v3504
        %v3782 = vunpack.c.h.b16 %v3504
        %v3783 = vunpack.c.l.b16 %v3505
        %v3784 = vunpack.c.h.b16 %v3505
        %v3785 = vunpack.c.l.b16 %v3506
        %v3786 = vunpack.c.h.b16 %v3506
        %v3787 = vunpack.c.l.b16 %v3507
        %v3788 = vunpack.c.h.b16 %v3507
        %v3789 = vunpack.c.l.b16 %v3508
        %v3790 = vunpack.c.h.b16 %v3508
        %v3791 = vunpack.c.l.b16 %v3509
        %v3792 = vunpack.c.h.b16 %v3509
        %v3793 = vunpack.c.l.b16 %v3510
        %v3794 = vunpack.c.h.b16 %v3510
        %v3795 = vunpack.c.l.b16 %v3511
        %v3796 = vunpack.c.h.b16 %v3511
        %v3797 = vunpack.c.l.b16 %v3512
        %v3798 = vunpack.c.h.b16 %v3512
        %v3799 = vunpack.c.l.b16 %v3513
        %v3800 = vunpack.c.h.b16 %v3513
        %v3801 = vunpack.c.l.b16 %v3514
        %v3802 = vunpack.c.h.b16 %v3514
        %v3803 = vpack.c.b16 %v3617, %v3611
        %v3804 = vpack.c.b16 %v3618, %v3612
        %v3805 = vpack.c.b16 %v3619, %v3613
        %v3806 = vpack.c.b16 %v3620, %v3614
        %v3807 = vpack.c.b16 %v3621, %v3615
        %v3808 = vpack.c.b16 %v3622, %v3616
        %v3809 = vpack.c.b16 %v3629, %v3623
        %v3810 = vpack.c.b16 %v3630, %v3624
        %v3811 = vpack.c.b16 %v3631, %v3625
        %v3812 = vpack.c.b16 %v3632, %v3626
        %v3813 = vpack.c.b16 %v3633, %v3627
        %v3814 = vpack.c.b16 %v3634, %v3628
        %v3815 = vpack.c.b16 %v3641, %v3635
        %v3816 = vpack.c.b16 %v3642, %v3636
        %v3817 = vpack.c.b16 %v3643, %v3637
        %v3818 = vpack.c.b16 %v3644, %v3638
        %v3819 = vpack.c.b16 %v3645, %v3639
        %v3820 = vpack.c.b16 %v3646, %v3640
        %v3821 = vpack.c.b16 %v3653, %v3647
        %v3822 = vpack.c.b16 %v3654, %v3648
        %v3823 = vpack.c.b16 %v3655, %v3649
        %v3824 = vpack.c.b16 %v3656, %v3650
        %v3825 = vpack.c.b16 %v3657, %v3651
        %v3826 = vpack.c.b16 %v3658, %v3652
        %v3827 = vpack.c.b16 %v3665, %v3659
        %v3828 = vpack.c.b16 %v3666, %v3660
        %v3829 = vpack.c.b16 %v3667, %v3661
        %v3830 = vpack.c.b16 %v3668, %v3662
        %v3831 = vpack.c.b16 %v3669, %v3663
        %v3832 = vpack.c.b16 %v3670, %v3664
        %v3833 = vpack.c.b16 %v3677, %v3671
        %v3834 = vpack.c.b16 %v3678, %v3672
        %v3835 = vpack.c.b16 %v3679, %v3673
        %v3836 = vpack.c.b16 %v3680, %v3674
        %v3837 = vpack.c.b16 %v3681, %v3675
        %v3838 = vpack.c.b16 %v3682, %v3676
        %v3839 = vpack.c.b16 %v3689, %v3683
        %v3840 = vpack.c.b16 %v3690, %v3684
        %v3841 = vpack.c.b16 %v3691, %v3685
        %v3842 = vpack.c.b16 %v3692, %v3686
        %v3843 = vpack.c.b16 %v3693, %v3687
        %v3844 = vpack.c.b16 %v3694, %v3688
        %v3845 = vpack.c.b16 %v3701, %v3695
        %v3846 = vpack.c.b16 %v3702, %v3696
        %v3847 = vpack.c.b16 %v3703, %v3697
        %v3848 = vpack.c.b16 %v3704, %v3698
        %v3849 = vpack.c.b16 %v3705, %v3699
        %v3850 = vpack.c.b16 %v3706, %v3700
        %v3851 = vpack.c.b16 %v3713, %v3707
        %v3852 = vpack.c.b16 %v3714, %v3708
        %v3853 = vpack.c.b16 %v3715, %v3709
        %v3854 = vpack.c.b16 %v3716, %v3710
        %v3855 = vpack.c.b16 %v3717, %v3711
        %v3856 = vpack.c.b16 %v3718, %v3712
        %v3857 = vpack.c.b16 %v3725, %v3719
        %v3858 = vpack.c.b16 %v3726, %v3720
        %v3859 = vpack.c.b16 %v3727, %v3721
        %v3860 = vpack.c.b16 %v3728, %v3722
        %v3861 = vpack.c.b16 %v3729, %v3723
        %v3862 = vpack.c.b16 %v3730, %v3724
        %v3863 = vpack.c.b16 %v3737, %v3731
        %v3864 = vpack.c.b16 %v3738, %v3732
        %v3865 = vpack.c.b16 %v3739, %v3733
        %v3866 = vpack.c.b16 %v3740, %v3734
        %v3867 = vpack.c.b16 %v3741, %v3735
        %v3868 = vpack.c.b16 %v3742, %v3736
        %v3869 = vpack.c.b16 %v3749, %v3743
        %v3870 = vpack.c.b16 %v3750, %v3744
        %v3871 = vpack.c.b16 %v3751, %v3745
        %v3872 = vpack.c.b16 %v3752, %v3746
        %v3873 = vpack.c.b16 %v3753, %v3747
        %v3874 = vpack.c.b16 %v3754, %v3748
        %v3875 = vpack.c.b16 %v3761, %v3755
        %v3876 = vpack.c.b16 %v3762, %v3756
        %v3877 = vpack.c.b16 %v3763, %v3757
        %v3878 = vpack.c.b16 %v3764, %v3758
        %v3879 = vpack.c.b16 %v3765, %v3759
        %v3880 = vpack.c.b16 %v3766, %v3760
        %v3881 = vpack.c.b16 %v3773, %v3767
        %v3882 = vpack.c.b16 %v3774, %v3768
        %v3883 = vpack.c.b16 %v3775, %v3769
        %v3884 = vpack.c.b16 %v3776, %v3770
        %v3885 = vpack.c.b16 %v3777, %v3771
        %v3886 = vpack.c.b16 %v3778, %v3772
        %v3887 = vpack.c.b16 %v3785, %v3779
        %v3888 = vpack.c.b16 %v3786, %v3780
        %v3889 = vpack.c.b16 %v3787, %v3781
        %v3890 = vpack.c.b16 %v3788, %v3782
        %v3891 = vpack.c.b16 %v3789, %v3783
        %v3892 = vpack.c.b16 %v3790, %v3784
        %v3893 = vpack.c.b16 %v3797, %v3791
        %v3894 = vpack.c.b16 %v3798, %v3792
        %v3895 = vpack.c.b16 %v3799, %v3793
        %v3896 = vpack.c.b16 %v3800, %v3794
        %v3897 = vpack.c.b16 %v3801, %v3795
        %v3898 = vpack.c.b16 %v3802, %v3796
        %3995 = vmatprep.subr.bf16.mxu0 %v3846
        %3996 = vmatpush1.bf16.msra.mxu0 %v3845
        %3997 = vmatprep.subr.bf16.mxu0 %v3840
        %3998 = vmatpush1.bf16.msra.mxu0 %v3839
        %3999 = vmatprep.subr.bf16.mxu0 %v3834
        %4000 = vmatpush1.bf16.msra.mxu0 %v3833
        %4001 = vmatprep.subr.bf16.mxu0 %v3828
        %4002 = vmatpush1.bf16.msra.mxu0 %v3827
        %4003 = vmatprep.subr.bf16.mxu0 %v3822
        %4004 = vmatpush1.bf16.msra.mxu0 %v3821
        %4005 = vmatprep.subr.bf16.mxu0 %v3816
        %4006 = vmatpush1.bf16.msra.mxu0 %v3815
        %4007 = vmatprep.subr.bf16.mxu0 %v3810
        %4008 = vmatpush1.bf16.msra.mxu0 %v3809
        %4009 = vmatprep.subr.bf16.mxu0 %v3804
        %4010 = vmatpush1.bf16.msra.mxu0 %v3803
        %4011 = vmatprep.subr.bf16.mxu0 %v3894
        %4012 = vmatpush2.bf16.msra.mxu0 %v3893
        %4013 = vmatprep.subr.bf16.mxu0 %v3888
        %4014 = vmatpush2.bf16.msra.mxu0 %v3887
        %4015 = vmatprep.subr.bf16.mxu0 %v3882
        %4016 = vmatpush2.bf16.msra.mxu0 %v3881
        %4017 = vmatprep.subr.bf16.mxu0 %v3876
        %4018 = vmatpush2.bf16.msra.mxu0 %v3875
        %4019 = vmatprep.subr.bf16.mxu0 %v3870
        %4020 = vmatpush2.bf16.msra.mxu0 %v3869
        %4021 = vmatprep.subr.bf16.mxu0 %v3864
        %4022 = vmatpush2.bf16.msra.mxu0 %v3863
        %4023 = vmatprep.subr.bf16.mxu0 %v3858
        %4024 = vmatpush2.bf16.msra.mxu0 %v3857
        %4025 = vmatprep.subr.bf16.mxu0 %v3852
        %4026 = vmatpush2.bf16.msra.mxu0 %v3851
        %4027 = vmatprep.mubr.bf16.mxu0 %v3412
        %4028 = vmatmul.mubr.bf16.gmra.mxu0 %v3411
        %v4029 = vpop.f32.mrf.mxu0
        %v4030 = vadd.f32 0.0, %v4029
        %v4031 = vpop.f32.mrf.mxu0
        %v4032 = vadd.f32 0.0, %v4031
        %v4033 = vpop.f32.mrf.mxu0
        %v4034 = vadd.f32 0.0, %v4033
        %v4035 = vpop.f32.mrf.mxu0
        %v4036 = vadd.f32 0.0, %v4035
        %4037 = vmatprep.mubr.bf16.mxu0 %v3414
        %4038 = vmatmul.mubr.bf16.gmra.mxu0 %v3413
        %v4039 = vpop.f32.mrf.mxu0
        %v4040 = vadd.f32 0.0, %v4039
        %v4041 = vpop.f32.mrf.mxu0
        %v4042 = vadd.f32 0.0, %v4041
        %v4043 = vpop.f32.mrf.mxu0
        %v4044 = vadd.f32 0.0, %v4043
        %v4045 = vpop.f32.mrf.mxu0
        %v4046 = vadd.f32 0.0, %v4045
        %4047 = vmatprep.mubr.bf16.mxu0 %v3416
        %4048 = vmatmul.mubr.bf16.gmra.mxu0 %v3415
        %v4049 = vpop.f32.mrf.mxu0
        %v4050 = vadd.f32 0.0, %v4049
        %v4051 = vpop.f32.mrf.mxu0
        %v4052 = vadd.f32 0.0, %v4051
        %v4053 = vpop.f32.mrf.mxu0
        %v4054 = vadd.f32 0.0, %v4053
        %v4055 = vpop.f32.mrf.mxu0
        %v4056 = vadd.f32 0.0, %v4055
        %4057 = vmatprep.mubr.bf16.mxu0 %v3418
        %4058 = vmatmul.mubr.bf16.gmra.mxu0 %v3417
        %v4059 = vpop.f32.mrf.mxu0
        %v4060 = vadd.f32 0.0, %v4059
        %v4061 = vpop.f32.mrf.mxu0
        %v4062 = vadd.f32 0.0, %v4061
        %v4063 = vpop.f32.mrf.mxu0
        %v4064 = vadd.f32 0.0, %v4063
        %v4065 = vpop.f32.mrf.mxu0
        %v4066 = vadd.f32 0.0, %v4065
        %4067 = vdwg.mxu0
        %4068 = vmatprep.subr.bf16.mxu0 %v3848
        %4069 = vmatpush1.bf16.msra.mxu0 %v3847
        %4070 = vmatprep.subr.bf16.mxu0 %v3842
        %4071 = vmatpush1.bf16.msra.mxu0 %v3841
        %4072 = vmatprep.subr.bf16.mxu0 %v3836
        %4073 = vmatpush1.bf16.msra.mxu0 %v3835
        %4074 = vmatprep.subr.bf16.mxu0 %v3830
        %4075 = vmatpush1.bf16.msra.mxu0 %v3829
        %4076 = vmatprep.subr.bf16.mxu0 %v3824
        %4077 = vmatpush1.bf16.msra.mxu0 %v3823
        %4078 = vmatprep.subr.bf16.mxu0 %v3818
        %4079 = vmatpush1.bf16.msra.mxu0 %v3817
        %4080 = vmatprep.subr.bf16.mxu0 %v3812
        %4081 = vmatpush1.bf16.msra.mxu0 %v3811
        %4082 = vmatprep.subr.bf16.mxu0 %v3806
        %4083 = vmatpush1.bf16.msra.mxu0 %v3805
        %4084 = vmatprep.subr.bf16.mxu0 %v3896
        %4085 = vmatpush2.bf16.msra.mxu0 %v3895
        %4086 = vmatprep.subr.bf16.mxu0 %v3890
        %4087 = vmatpush2.bf16.msra.mxu0 %v3889
        %4088 = vmatprep.subr.bf16.mxu0 %v3884
        %4089 = vmatpush2.bf16.msra.mxu0 %v3883
        %4090 = vmatprep.subr.bf16.mxu0 %v3878
        %4091 = vmatpush2.bf16.msra.mxu0 %v3877
        %4092 = vmatprep.subr.bf16.mxu0 %v3872
        %4093 = vmatpush2.bf16.msra.mxu0 %v3871
        %4094 = vmatprep.subr.bf16.mxu0 %v3866
        %4095 = vmatpush2.bf16.msra.mxu0 %v3865
        %4096 = vmatprep.subr.bf16.mxu0 %v3860
        %4097 = vmatpush2.bf16.msra.mxu0 %v3859
        %4098 = vmatprep.subr.bf16.mxu0 %v3854
        %4099 = vmatpush2.bf16.msra.mxu0 %v3853
        %4100 = vmatprep.mubr.bf16.mxu0 %v3412
        %4101 = vmatmul.mubr.bf16.gmra.mxu0 %v3411
        %v4102 = vpop.f32.mrf.mxu0
        %v4103 = vadd.f32 0.0, %v4102
        %v4104 = vpop.f32.mrf.mxu0
        %v4105 = vadd.f32 0.0, %v4104
        %v4106 = vpop.f32.mrf.mxu0
        %v4107 = vadd.f32 0.0, %v4106
        %v4108 = vpop.f32.mrf.mxu0
        %v4109 = vadd.f32 0.0, %v4108
        %4110 = vmatprep.mubr.bf16.mxu0 %v3414
        %4111 = vmatmul.mubr.bf16.gmra.mxu0 %v3413
        %v4112 = vpop.f32.mrf.mxu0
        %v4113 = vadd.f32 0.0, %v4112
        %v4114 = vpop.f32.mrf.mxu0
        %v4115 = vadd.f32 0.0, %v4114
        %v4116 = vpop.f32.mrf.mxu0
        %v4117 = vadd.f32 0.0, %v4116
        %v4118 = vpop.f32.mrf.mxu0
        %v4119 = vadd.f32 0.0, %v4118
        %4120 = vmatprep.mubr.bf16.mxu0 %v3416
        %4121 = vmatmul.mubr.bf16.gmra.mxu0 %v3415
        %v4122 = vpop.f32.mrf.mxu0
        %v4123 = vadd.f32 0.0, %v4122
        %v4124 = vpop.f32.mrf.mxu0
        %v4125 = vadd.f32 0.0, %v4124
        %v4126 = vpop.f32.mrf.mxu0
        %v4127 = vadd.f32 0.0, %v4126
        %v4128 = vpop.f32.mrf.mxu0
        %v4129 = vadd.f32 0.0, %v4128
        %4130 = vmatprep.mubr.bf16.mxu0 %v3418
        %4131 = vmatmul.mubr.bf16.gmra.mxu0 %v3417
        %v4132 = vpop.f32.mrf.mxu0
        %v4133 = vadd.f32 0.0, %v4132
        %v4134 = vpop.f32.mrf.mxu0
        %v4135 = vadd.f32 0.0, %v4134
        %v4136 = vpop.f32.mrf.mxu0
        %v4137 = vadd.f32 0.0, %v4136
        %v4138 = vpop.f32.mrf.mxu0
        %v4139 = vadd.f32 0.0, %v4138
        %4140 = vdwg.mxu0
        %4141 = vmatprep.subr.bf16.mxu0 %v3850
        %4142 = vmatpush1.bf16.msra.mxu0 %v3849
        %4143 = vmatprep.subr.bf16.mxu0 %v3844
        %4144 = vmatpush1.bf16.msra.mxu0 %v3843
        %4145 = vmatprep.subr.bf16.mxu0 %v3838
        %4146 = vmatpush1.bf16.msra.mxu0 %v3837
        %4147 = vmatprep.subr.bf16.mxu0 %v3832
        %4148 = vmatpush1.bf16.msra.mxu0 %v3831
        %4149 = vmatprep.subr.bf16.mxu0 %v3826
        %4150 = vmatpush1.bf16.msra.mxu0 %v3825
        %4151 = vmatprep.subr.bf16.mxu0 %v3820
        %4152 = vmatpush1.bf16.msra.mxu0 %v3819
        %4153 = vmatprep.subr.bf16.mxu0 %v3814
        %4154 = vmatpush1.bf16.msra.mxu0 %v3813
        %4155 = vmatprep.subr.bf16.mxu0 %v3808
        %4156 = vmatpush1.bf16.msra.mxu0 %v3807
        %4157 = vmatprep.subr.bf16.mxu0 %v3898
        %4158 = vmatpush2.bf16.msra.mxu0 %v3897
        %4159 = vmatprep.subr.bf16.mxu0 %v3892
        %4160 = vmatpush2.bf16.msra.mxu0 %v3891
        %4161 = vmatprep.subr.bf16.mxu0 %v3886
        %4162 = vmatpush2.bf16.msra.mxu0 %v3885
        %4163 = vmatprep.subr.bf16.mxu0 %v3880
        %4164 = vmatpush2.bf16.msra.mxu0 %v3879
        %4165 = vmatprep.subr.bf16.mxu0 %v3874
        %4166 = vmatpush2.bf16.msra.mxu0 %v3873
        %4167 = vmatprep.subr.bf16.mxu0 %v3868
        %4168 = vmatpush2.bf16.msra.mxu0 %v3867
        %4169 = vmatprep.subr.bf16.mxu0 %v3862
        %4170 = vmatpush2.bf16.msra.mxu0 %v3861
        %4171 = vmatprep.subr.bf16.mxu0 %v3856
        %4172 = vmatpush2.bf16.msra.mxu0 %v3855
        %4173 = vmatprep.mubr.bf16.mxu0 %v3412
        %4174 = vmatmul.mubr.bf16.gmra.mxu0 %v3411
        %v4175 = vpop.f32.mrf.mxu0
        %v4176 = vadd.f32 0.0, %v4175
        %v4177 = vpop.f32.mrf.mxu0
        %v4178 = vadd.f32 0.0, %v4177
        %v4179 = vpop.f32.mrf.mxu0
        %v4180 = vadd.f32 0.0, %v4179
        %v4181 = vpop.f32.mrf.mxu0
        %v4182 = vadd.f32 0.0, %v4181
        %4183 = vmatprep.mubr.bf16.mxu0 %v3414
        %4184 = vmatmul.mubr.bf16.gmra.mxu0 %v3413
        %v4185 = vpop.f32.mrf.mxu0
        %v4186 = vadd.f32 0.0, %v4185
        %v4187 = vpop.f32.mrf.mxu0
        %v4188 = vadd.f32 0.0, %v4187
        %v4189 = vpop.f32.mrf.mxu0
        %v4190 = vadd.f32 0.0, %v4189
        %v4191 = vpop.f32.mrf.mxu0
        %v4192 = vadd.f32 0.0, %v4191
        %4193 = vmatprep.mubr.bf16.mxu0 %v3416
        %4194 = vmatmul.mubr.bf16.gmra.mxu0 %v3415
        %v4195 = vpop.f32.mrf.mxu0
        %v4196 = vadd.f32 0.0, %v4195
        %v4197 = vpop.f32.mrf.mxu0
        %v4198 = vadd.f32 0.0, %v4197
        %v4199 = vpop.f32.mrf.mxu0
        %v4200 = vadd.f32 0.0, %v4199
        %v4201 = vpop.f32.mrf.mxu0
        %v4202 = vadd.f32 0.0, %v4201
        %4203 = vmatprep.mubr.bf16.mxu0 %v3418
        %4204 = vmatmul.mubr.bf16.gmra.mxu0 %v3417
        %v4205 = vpop.f32.mrf.mxu0
        %v4206 = vadd.f32 0.0, %v4205
        %v4207 = vpop.f32.mrf.mxu0
        %v4208 = vadd.f32 0.0, %v4207
        %v4209 = vpop.f32.mrf.mxu0
        %v4210 = vadd.f32 0.0, %v4209
        %v4211 = vpop.f32.mrf.mxu0
        %v4212 = vadd.f32 0.0, %v4211
        %4213 = vdwg.mxu0
        %s4214 = scalar_lea.vmem %s17, 18
        %v4215 = vld [vmem:[%s4214] ss:$8 sm:$0x3]
        %v4217 = vlaneseq
        %v4218 = vshrl.u32 %v4217, 7
        %v4219 = vsub.s32 0, %v4218
        %v4220 = vrot.slane %v4215, %v4219
        %v4221 = vlaneseq
        %v4222 = vshrl.u32 %v4221, 7
        %v4223 = vsub.s32 1, %v4222
        %v4224 = vrot.slane %v4215, %v4223
        %v4227 = vadd.f32 %v4030, %v4220
        %v4228 = vadd.f32 %v4032, %v4224
        %v4229 = vadd.f32 %v4034, %v4220
        %v4230 = vadd.f32 %v4036, %v4224
        %v4231 = vadd.f32 %v4040, %v4220
        %v4232 = vadd.f32 %v4042, %v4224
        %v4233 = vadd.f32 %v4044, %v4220
        %v4234 = vadd.f32 %v4046, %v4224
        %v4235 = vadd.f32 %v4050, %v4220
        %v4236 = vadd.f32 %v4052, %v4224
        %v4237 = vadd.f32 %v4054, %v4220
        %v4238 = vadd.f32 %v4056, %v4224
        %v4239 = vadd.f32 %v4060, %v4220
        %v4240 = vadd.f32 %v4062, %v4224
        %v4241 = vadd.f32 %v4064, %v4220
        %v4242 = vadd.f32 %v4066, %v4224
        %v4243 = vmul.f32 %v4227, 0.17677669
        %v4244 = vmul.f32 %v4228, 0.17677669
        %v4245 = vmul.f32 %v4229, 0.17677669
        %v4246 = vmul.f32 %v4230, 0.17677669
        %v4247 = vmul.f32 %v4231, 0.17677669
        %v4248 = vmul.f32 %v4232, 0.17677669
        %v4249 = vmul.f32 %v4233, 0.17677669
        %v4250 = vmul.f32 %v4234, 0.17677669
        %v4251 = vmul.f32 %v4235, 0.17677669
        %v4252 = vmul.f32 %v4236, 0.17677669
        %v4253 = vmul.f32 %v4237, 0.17677669
        %v4254 = vmul.f32 %v4238, 0.17677669
        %v4255 = vmul.f32 %v4239, 0.17677669
        %v4256 = vmul.f32 %v4240, 0.17677669
        %v4257 = vmul.f32 %v4241, 0.17677669
        %v4258 = vmul.f32 %v4242, 0.17677669
        %s4259 = scalar_lea.vmem %s17, 19
        %v4260 = vld [vmem:[%s4259] ss:$8 sm:$0x3]
        %v4262 = vlaneseq
        %v4263 = vshrl.u32 %v4262, 7
        %v4264 = vsub.s32 0, %v4263
        %v4265 = vrot.slane %v4260, %v4264
        %v4266 = vlaneseq
        %v4267 = vshrl.u32 %v4266, 7
        %v4268 = vsub.s32 1, %v4267
        %v4269 = vrot.slane %v4260, %v4268
        %v4272 = vadd.f32 %v4103, %v4265
        %v4273 = vadd.f32 %v4105, %v4269
        %v4274 = vadd.f32 %v4107, %v4265
        %v4275 = vadd.f32 %v4109, %v4269
        %v4276 = vadd.f32 %v4113, %v4265
        %v4277 = vadd.f32 %v4115, %v4269
        %v4278 = vadd.f32 %v4117, %v4265
        %v4279 = vadd.f32 %v4119, %v4269
        %v4280 = vadd.f32 %v4123, %v4265
        %v4281 = vadd.f32 %v4125, %v4269
        %v4282 = vadd.f32 %v4127, %v4265
        %v4283 = vadd.f32 %v4129, %v4269
        %v4284 = vadd.f32 %v4133, %v4265
        %v4285 = vadd.f32 %v4135, %v4269
        %v4286 = vadd.f32 %v4137, %v4265
        %v4287 = vadd.f32 %v4139, %v4269
        %s4288 = scalar_lea.vmem %s17, 20
        %v4289 = vld [vmem:[%s4288] ss:$8 sm:$0x3]
        %v4291 = vlaneseq
        %v4292 = vshrl.u32 %v4291, 7
        %v4293 = vsub.s32 0, %v4292
        %v4294 = vrot.slane %v4289, %v4293
        %v4295 = vlaneseq
        %v4296 = vshrl.u32 %v4295, 7
        %v4297 = vsub.s32 1, %v4296
        %v4298 = vrot.slane %v4289, %v4297
        %v4301 = vadd.f32 %v4176, %v4294
        %v4302 = vadd.f32 %v4178, %v4298
        %v4303 = vadd.f32 %v4180, %v4294
        %v4304 = vadd.f32 %v4182, %v4298
        %v4305 = vadd.f32 %v4186, %v4294
        %v4306 = vadd.f32 %v4188, %v4298
        %v4307 = vadd.f32 %v4190, %v4294
        %v4308 = vadd.f32 %v4192, %v4298
        %v4309 = vadd.f32 %v4196, %v4294
        %v4310 = vadd.f32 %v4198, %v4298
        %v4311 = vadd.f32 %v4200, %v4294
        %v4312 = vadd.f32 %v4202, %v4298
        %v4313 = vadd.f32 %v4206, %v4294
        %v4314 = vadd.f32 %v4208, %v4298
        %v4315 = vadd.f32 %v4210, %v4294
        %v4316 = vadd.f32 %v4212, %v4298
        %v4317 = vld [vmem:[%s6] ss:$8 sm:$0x3]
        %v4319 = vlaneseq
        %v4320 = vshrl.u32 %v4319, 7
        %v4321 = vsub.s32 0, %v4320
        %v4322 = vrot.slane %v4317, %v4321
        %v4323 = vlaneseq
        %v4324 = vshrl.u32 %v4323, 7
        %v4325 = vsub.s32 1, %v4324
        %v4326 = vrot.slane %v4317, %v4325
        %v4329 = vmul.f32 %v4243, %v4322
        %v4330 = vmul.f32 %v4244, %v4326
        %v4331 = vmul.f32 %v4245, %v4322
        %v4332 = vmul.f32 %v4246, %v4326
        %v4333 = vmul.f32 %v4247, %v4322
        %v4334 = vmul.f32 %v4248, %v4326
        %v4335 = vmul.f32 %v4249, %v4322
        %v4336 = vmul.f32 %v4250, %v4326
        %v4337 = vmul.f32 %v4251, %v4322
        %v4338 = vmul.f32 %v4252, %v4326
        %v4339 = vmul.f32 %v4253, %v4322
        %v4340 = vmul.f32 %v4254, %v4326
        %v4341 = vmul.f32 %v4255, %v4322
        %v4342 = vmul.f32 %v4256, %v4326
        %v4343 = vmul.f32 %v4257, %v4322
        %v4344 = vmul.f32 %v4258, %v4326
        %v4345 = vpack.c.bf16 %v4331, %v4329
        %v4346 = vpack.c.bf16 %v4332, %v4330
        %v4347 = vpack.c.bf16 %v4335, %v4333
        %v4348 = vpack.c.bf16 %v4336, %v4334
        %v4349 = vpack.c.bf16 %v4339, %v4337
        %v4350 = vpack.c.bf16 %v4340, %v4338
        %v4351 = vpack.c.bf16 %v4343, %v4341
        %v4352 = vpack.c.bf16 %v4344, %v4342
        %s4353 = scalar_lea.vmem %s6, 1
        %v4354 = vld [vmem:[%s4353] ss:$8 sm:$0x3]
        %v4356 = vlaneseq
        %v4357 = vshrl.u32 %v4356, 7
        %v4358 = vsub.s32 0, %v4357
        %v4359 = vrot.slane %v4354, %v4358
        %v4360 = vlaneseq
        %v4361 = vshrl.u32 %v4360, 7
        %v4362 = vsub.s32 1, %v4361
        %v4363 = vrot.slane %v4354, %v4362
        %v4366 = vmul.f32 %v4243, %v4359
        %v4367 = vmul.f32 %v4244, %v4363
        %v4368 = vmul.f32 %v4245, %v4359
        %v4369 = vmul.f32 %v4246, %v4363
        %v4370 = vmul.f32 %v4247, %v4359
        %v4371 = vmul.f32 %v4248, %v4363
        %v4372 = vmul.f32 %v4249, %v4359
        %v4373 = vmul.f32 %v4250, %v4363
        %v4374 = vmul.f32 %v4251, %v4359
        %v4375 = vmul.f32 %v4252, %v4363
        %v4376 = vmul.f32 %v4253, %v4359
        %v4377 = vmul.f32 %v4254, %v4363
        %v4378 = vmul.f32 %v4255, %v4359
        %v4379 = vmul.f32 %v4256, %v4363
        %v4380 = vmul.f32 %v4257, %v4359
        %v4381 = vmul.f32 %v4258, %v4363
        %v4382 = vpack.c.bf16 %v4368, %v4366
        %v4383 = vpack.c.bf16 %v4369, %v4367
        %v4384 = vpack.c.bf16 %v4372, %v4370
        %v4385 = vpack.c.bf16 %v4373, %v4371
        %v4386 = vpack.c.bf16 %v4376, %v4374
        %v4387 = vpack.c.bf16 %v4377, %v4375
        %v4388 = vpack.c.bf16 %v4380, %v4378
        %v4389 = vpack.c.bf16 %v4381, %v4379
        %s4390 = scalar_lea.vmem %s6, 2
        %v4391 = vld [vmem:[%s4390] ss:$8 sm:$0x3]
        %v4393 = vlaneseq
        %v4394 = vshrl.u32 %v4393, 7
        %v4395 = vsub.s32 0, %v4394
        %v4396 = vrot.slane %v4391, %v4395
        %v4397 = vlaneseq
        %v4398 = vshrl.u32 %v4397, 7
        %v4399 = vsub.s32 1, %v4398
        %v4400 = vrot.slane %v4391, %v4399
        %v4403 = vmul.f32 %v4243, %v4396
        %v4404 = vmul.f32 %v4244, %v4400
        %v4405 = vmul.f32 %v4245, %v4396
        %v4406 = vmul.f32 %v4246, %v4400
        %v4407 = vmul.f32 %v4247, %v4396
        %v4408 = vmul.f32 %v4248, %v4400
        %v4409 = vmul.f32 %v4249, %v4396
        %v4410 = vmul.f32 %v4250, %v4400
        %v4411 = vmul.f32 %v4251, %v4396
        %v4412 = vmul.f32 %v4252, %v4400
        %v4413 = vmul.f32 %v4253, %v4396
        %v4414 = vmul.f32 %v4254, %v4400
        %v4415 = vmul.f32 %v4255, %v4396
        %v4416 = vmul.f32 %v4256, %v4400
        %v4417 = vmul.f32 %v4257, %v4396
        %v4418 = vmul.f32 %v4258, %v4400
        %v4419 = vpack.c.bf16 %v4405, %v4403
        %v4420 = vpack.c.bf16 %v4406, %v4404
        %v4421 = vpack.c.bf16 %v4409, %v4407
        %v4422 = vpack.c.bf16 %v4410, %v4408
        %v4423 = vpack.c.bf16 %v4413, %v4411
        %v4424 = vpack.c.bf16 %v4414, %v4412
        %v4425 = vpack.c.bf16 %v4417, %v4415
        %v4426 = vpack.c.bf16 %v4418, %v4416
        %s4427 = scalar_lea.vmem %s6, 3
        %v4428 = vld [vmem:[%s4427] ss:$8 sm:$0x3]
        %v4430 = vlaneseq
        %v4431 = vshrl.u32 %v4430, 7
        %v4432 = vsub.s32 0, %v4431
        %v4433 = vrot.slane %v4428, %v4432
        %v4434 = vlaneseq
        %v4435 = vshrl.u32 %v4434, 7
        %v4436 = vsub.s32 1, %v4435
        %v4437 = vrot.slane %v4428, %v4436
        %v4440 = vmul.f32 %v4243, %v4433
        %v4441 = vmul.f32 %v4244, %v4437
        %v4442 = vmul.f32 %v4245, %v4433
        %v4443 = vmul.f32 %v4246, %v4437
        %v4444 = vmul.f32 %v4247, %v4433
        %v4445 = vmul.f32 %v4248, %v4437
        %v4446 = vmul.f32 %v4249, %v4433
        %v4447 = vmul.f32 %v4250, %v4437
        %v4448 = vmul.f32 %v4251, %v4433
        %v4449 = vmul.f32 %v4252, %v4437
        %v4450 = vmul.f32 %v4253, %v4433
        %v4451 = vmul.f32 %v4254, %v4437
        %v4452 = vmul.f32 %v4255, %v4433
        %v4453 = vmul.f32 %v4256, %v4437
        %v4454 = vmul.f32 %v4257, %v4433
        %v4455 = vmul.f32 %v4258, %v4437
        %v4456 = vpack.c.bf16 %v4442, %v4440
        %v4457 = vpack.c.bf16 %v4443, %v4441
        %v4458 = vpack.c.bf16 %v4446, %v4444
        %v4459 = vpack.c.bf16 %v4447, %v4445
        %v4460 = vpack.c.bf16 %v4450, %v4448
        %v4461 = vpack.c.bf16 %v4451, %v4449
        %v4462 = vpack.c.bf16 %v4454, %v4452
        %v4463 = vpack.c.bf16 %v4455, %v4453
        %s4464 = scalar_lea.vmem %s6, 4
        %v4465 = vld [vmem:[%s4464] ss:$8 sm:$0x3]
        %v4467 = vlaneseq
        %v4468 = vshrl.u32 %v4467, 7
        %v4469 = vsub.s32 0, %v4468
        %v4470 = vrot.slane %v4465, %v4469
        %v4471 = vlaneseq
        %v4472 = vshrl.u32 %v4471, 7
        %v4473 = vsub.s32 1, %v4472
        %v4474 = vrot.slane %v4465, %v4473
        %v4477 = vmul.f32 %v4243, %v4470
        %v4478 = vmul.f32 %v4244, %v4474
        %v4479 = vmul.f32 %v4245, %v4470
        %v4480 = vmul.f32 %v4246, %v4474
        %v4481 = vmul.f32 %v4247, %v4470
        %v4482 = vmul.f32 %v4248, %v4474
        %v4483 = vmul.f32 %v4249, %v4470
        %v4484 = vmul.f32 %v4250, %v4474
        %v4485 = vmul.f32 %v4251, %v4470
        %v4486 = vmul.f32 %v4252, %v4474
        %v4487 = vmul.f32 %v4253, %v4470
        %v4488 = vmul.f32 %v4254, %v4474
        %v4489 = vmul.f32 %v4255, %v4470
        %v4490 = vmul.f32 %v4256, %v4474
        %v4491 = vmul.f32 %v4257, %v4470
        %v4492 = vmul.f32 %v4258, %v4474
        %v4493 = vpack.c.bf16 %v4479, %v4477
        %v4494 = vpack.c.bf16 %v4480, %v4478
        %v4495 = vpack.c.bf16 %v4483, %v4481
        %v4496 = vpack.c.bf16 %v4484, %v4482
        %v4497 = vpack.c.bf16 %v4487, %v4485
        %v4498 = vpack.c.bf16 %v4488, %v4486
        %v4499 = vpack.c.bf16 %v4491, %v4489
        %v4500 = vpack.c.bf16 %v4492, %v4490
        %s4501 = scalar_lea.vmem %s6, 5
        %v4502 = vld [vmem:[%s4501] ss:$8 sm:$0x3]
        %v4504 = vlaneseq
        %v4505 = vshrl.u32 %v4504, 7
        %v4506 = vsub.s32 0, %v4505
        %v4507 = vrot.slane %v4502, %v4506
        %v4508 = vlaneseq
        %v4509 = vshrl.u32 %v4508, 7
        %v4510 = vsub.s32 1, %v4509
        %v4511 = vrot.slane %v4502, %v4510
        %v4514 = vmul.f32 %v4243, %v4507
        %v4515 = vmul.f32 %v4244, %v4511
        %v4516 = vmul.f32 %v4245, %v4507
        %v4517 = vmul.f32 %v4246, %v4511
        %v4518 = vmul.f32 %v4247, %v4507
        %v4519 = vmul.f32 %v4248, %v4511
        %v4520 = vmul.f32 %v4249, %v4507
        %v4521 = vmul.f32 %v4250, %v4511
        %v4522 = vmul.f32 %v4251, %v4507
        %v4523 = vmul.f32 %v4252, %v4511
        %v4524 = vmul.f32 %v4253, %v4507
        %v4525 = vmul.f32 %v4254, %v4511
        %v4526 = vmul.f32 %v4255, %v4507
        %v4527 = vmul.f32 %v4256, %v4511
        %v4528 = vmul.f32 %v4257, %v4507
        %v4529 = vmul.f32 %v4258, %v4511
        %v4530 = vpack.c.bf16 %v4516, %v4514
        %v4531 = vpack.c.bf16 %v4517, %v4515
        %v4532 = vpack.c.bf16 %v4520, %v4518
        %v4533 = vpack.c.bf16 %v4521, %v4519
        %v4534 = vpack.c.bf16 %v4524, %v4522
        %v4535 = vpack.c.bf16 %v4525, %v4523
        %v4536 = vpack.c.bf16 %v4528, %v4526
        %v4537 = vpack.c.bf16 %v4529, %v4527
        %s4538 = scalar_lea.vmem %s6, 6
        %v4539 = vld [vmem:[%s4538] ss:$8 sm:$0x3]
        %v4541 = vlaneseq
        %v4542 = vshrl.u32 %v4541, 7
        %v4543 = vsub.s32 0, %v4542
        %v4544 = vrot.slane %v4539, %v4543
        %v4545 = vlaneseq
        %v4546 = vshrl.u32 %v4545, 7
        %v4547 = vsub.s32 1, %v4546
        %v4548 = vrot.slane %v4539, %v4547
        %v4551 = vmul.f32 %v4243, %v4544
        %v4552 = vmul.f32 %v4244, %v4548
        %v4553 = vmul.f32 %v4245, %v4544
        %v4554 = vmul.f32 %v4246, %v4548
        %v4555 = vmul.f32 %v4247, %v4544
        %v4556 = vmul.f32 %v4248, %v4548
        %v4557 = vmul.f32 %v4249, %v4544
        %v4558 = vmul.f32 %v4250, %v4548
        %v4559 = vmul.f32 %v4251, %v4544
        %v4560 = vmul.f32 %v4252, %v4548
        %v4561 = vmul.f32 %v4253, %v4544
        %v4562 = vmul.f32 %v4254, %v4548
        %v4563 = vmul.f32 %v4255, %v4544
        %v4564 = vmul.f32 %v4256, %v4548
        %v4565 = vmul.f32 %v4257, %v4544
        %v4566 = vmul.f32 %v4258, %v4548
        %v4567 = vpack.c.bf16 %v4553, %v4551
        %v4568 = vpack.c.bf16 %v4554, %v4552
        %v4569 = vpack.c.bf16 %v4557, %v4555
        %v4570 = vpack.c.bf16 %v4558, %v4556
        %v4571 = vpack.c.bf16 %v4561, %v4559
        %v4572 = vpack.c.bf16 %v4562, %v4560
        %v4573 = vpack.c.bf16 %v4565, %v4563
        %v4574 = vpack.c.bf16 %v4566, %v4564
        %s4575 = scalar_lea.vmem %s6, 7
        %v4576 = vld [vmem:[%s4575] ss:$8 sm:$0x3]
        %v4578 = vlaneseq
        %v4579 = vshrl.u32 %v4578, 7
        %v4580 = vsub.s32 0, %v4579
        %v4581 = vrot.slane %v4576, %v4580
        %v4582 = vlaneseq
        %v4583 = vshrl.u32 %v4582, 7
        %v4584 = vsub.s32 1, %v4583
        %v4585 = vrot.slane %v4576, %v4584
        %v4588 = vmul.f32 %v4243, %v4581
        %v4589 = vmul.f32 %v4244, %v4585
        %v4590 = vmul.f32 %v4245, %v4581
        %v4591 = vmul.f32 %v4246, %v4585
        %v4592 = vmul.f32 %v4247, %v4581
        %v4593 = vmul.f32 %v4248, %v4585
        %v4594 = vmul.f32 %v4249, %v4581
        %v4595 = vmul.f32 %v4250, %v4585
        %v4596 = vmul.f32 %v4251, %v4581
        %v4597 = vmul.f32 %v4252, %v4585
        %v4598 = vmul.f32 %v4253, %v4581
        %v4599 = vmul.f32 %v4254, %v4585
        %v4600 = vmul.f32 %v4255, %v4581
        %v4601 = vmul.f32 %v4256, %v4585
        %v4602 = vmul.f32 %v4257, %v4581
        %v4603 = vmul.f32 %v4258, %v4585
        %v4604 = vpack.c.bf16 %v4590, %v4588
        %v4605 = vpack.c.bf16 %v4591, %v4589
        %v4606 = vpack.c.bf16 %v4594, %v4592
        %v4607 = vpack.c.bf16 %v4595, %v4593
        %v4608 = vpack.c.bf16 %v4598, %v4596
        %v4609 = vpack.c.bf16 %v4599, %v4597
        %v4610 = vpack.c.bf16 %v4602, %v4600
        %v4611 = vpack.c.bf16 %v4603, %v4601
        %v4612 = vpack.c.bf16 %v4274, %v4272
        %v4613 = vpack.c.bf16 %v4275, %v4273
        %v4614 = vpack.c.bf16 %v4278, %v4276
        %v4615 = vpack.c.bf16 %v4279, %v4277
        %v4616 = vpack.c.bf16 %v4282, %v4280
        %v4617 = vpack.c.bf16 %v4283, %v4281
        %v4618 = vpack.c.bf16 %v4286, %v4284
        %v4619 = vpack.c.bf16 %v4287, %v4285
        %v4620 = vld [vmem:[%s663] sm:$0xf]
        %v4621 = vld [vmem:[%s663 + $0x4] sm:$0xf]
        %v4622 = vld [vmem:[%s663 + $0x8] sm:$0xf]
        %v4623 = vld [vmem:[%s663 + $0xc] sm:$0xf]
        %v4624 = vld [vmem:[%s663 + $0x10] sm:$0xf]
        %v4625 = vld [vmem:[%s663 + $0x14] sm:$0xf]
        %v4626 = vld [vmem:[%s663 + $0x18] sm:$0xf]
        %v4627 = vld [vmem:[%s663 + $0x1c] sm:$0xf]
        %v4628 = vld [vmem:[%s663 + $0x20] sm:$0xf]
        %v4629 = vld [vmem:[%s663 + $0x24] sm:$0xf]
        %v4630 = vld [vmem:[%s663 + $0x28] sm:$0xf]
        %v4631 = vld [vmem:[%s663 + $0x2c] sm:$0xf]
        %v4632 = vld [vmem:[%s663 + $0x30] sm:$0xf]
        %v4633 = vld [vmem:[%s663 + $0x34] sm:$0xf]
        %v4634 = vld [vmem:[%s663 + $0x38] sm:$0xf]
        %v4635 = vld [vmem:[%s663 + $0x3c] sm:$0xf]
        %v4636 = vld [vmem:[%s663 + $0x40] sm:$0xf]
        %v4637 = vld [vmem:[%s663 + $0x44] sm:$0xf]
        %v4638 = vld [vmem:[%s663 + $0x48] sm:$0xf]
        %v4639 = vld [vmem:[%s663 + $0x4c] sm:$0xf]
        %v4640 = vld [vmem:[%s663 + $0x50] sm:$0xf]
        %v4641 = vld [vmem:[%s663 + $0x54] sm:$0xf]
        %v4642 = vld [vmem:[%s663 + $0x58] sm:$0xf]
        %v4643 = vld [vmem:[%s663 + $0x5c] sm:$0xf]
        %v4644 = vld [vmem:[%s663 + $0x60] sm:$0xf]
        %v4645 = vld [vmem:[%s663 + $0x64] sm:$0xf]
        %v4646 = vld [vmem:[%s663 + $0x68] sm:$0xf]
        %v4647 = vld [vmem:[%s663 + $0x6c] sm:$0xf]
        %v4648 = vld [vmem:[%s663 + $0x70] sm:$0xf]
        %v4649 = vld [vmem:[%s663 + $0x74] sm:$0xf]
        %v4650 = vld [vmem:[%s663 + $0x78] sm:$0xf]
        %v4651 = vld [vmem:[%s663 + $0x7c] sm:$0xf]
        %v4652 = vld [vmem:[%s663 + $0x80] sm:$0xf]
        %v4653 = vld [vmem:[%s663 + $0x84] sm:$0xf]
        %v4654 = vld [vmem:[%s663 + $0x88] sm:$0xf]
        %v4655 = vld [vmem:[%s663 + $0x8c] sm:$0xf]
        %v4656 = vld [vmem:[%s663 + $0x90] sm:$0xf]
        %v4657 = vld [vmem:[%s663 + $0x94] sm:$0xf]
        %v4658 = vld [vmem:[%s663 + $0x98] sm:$0xf]
        %v4659 = vld [vmem:[%s663 + $0x9c] sm:$0xf]
        %v4660 = vld [vmem:[%s663 + $0xa0] sm:$0xf]
        %v4661 = vld [vmem:[%s663 + $0xa4] sm:$0xf]
        %v4662 = vld [vmem:[%s663 + $0xa8] sm:$0xf]
        %v4663 = vld [vmem:[%s663 + $0xac] sm:$0xf]
        %v4664 = vld [vmem:[%s663 + $0xb0] sm:$0xf]
        %v4665 = vld [vmem:[%s663 + $0xb4] sm:$0xf]
        %v4666 = vld [vmem:[%s663 + $0xb8] sm:$0xf]
        %v4667 = vld [vmem:[%s663 + $0xbc] sm:$0xf]
        %v4668 = vld [vmem:[%s663 + $0xc0] sm:$0xf]
        %v4669 = vld [vmem:[%s663 + $0xc4] sm:$0xf]
        %v4670 = vld [vmem:[%s663 + $0xc8] sm:$0xf]
        %v4671 = vld [vmem:[%s663 + $0xcc] sm:$0xf]
        %v4672 = vld [vmem:[%s663 + $0xd0] sm:$0xf]
        %v4673 = vld [vmem:[%s663 + $0xd4] sm:$0xf]
        %v4674 = vld [vmem:[%s663 + $0xd8] sm:$0xf]
        %v4675 = vld [vmem:[%s663 + $0xdc] sm:$0xf]
        %v4676 = vld [vmem:[%s663 + $0xe0] sm:$0xf]
        %v4677 = vld [vmem:[%s663 + $0xe4] sm:$0xf]
        %v4678 = vld [vmem:[%s663 + $0xe8] sm:$0xf]
        %v4679 = vld [vmem:[%s663 + $0xec] sm:$0xf]
        %v4680 = vld [vmem:[%s663 + $0xf0] sm:$0xf]
        %v4681 = vld [vmem:[%s663 + $0xf4] sm:$0xf]
        %v4682 = vld [vmem:[%s663 + $0xf8] sm:$0xf]
        %v4683 = vld [vmem:[%s663 + $0xfc] sm:$0xf]
        %v4684 = vunpack.c.l.bf16 %v4620
        %v4685 = vunpack.c.l.bf16 %v4621
        %v4686 = vunpack.c.l.bf16 %v4622
        %v4687 = vunpack.c.l.bf16 %v4623
        %v4688 = vunpack.c.l.bf16 %v4624
        %v4689 = vunpack.c.l.bf16 %v4625
        %v4690 = vunpack.c.l.bf16 %v4626
        %v4691 = vunpack.c.l.bf16 %v4627
        %v4692 = vunpack.c.l.bf16 %v4628
        %v4693 = vunpack.c.l.bf16 %v4629
        %v4694 = vunpack.c.l.bf16 %v4630
        %v4695 = vunpack.c.l.bf16 %v4631
        %v4696 = vunpack.c.l.bf16 %v4632
        %v4697 = vunpack.c.l.bf16 %v4633
        %v4698 = vunpack.c.l.bf16 %v4634
        %v4699 = vunpack.c.l.bf16 %v4635
        %v4700 = vunpack.c.l.bf16 %v4636
        %v4701 = vunpack.c.l.bf16 %v4637
        %v4702 = vunpack.c.l.bf16 %v4638
        %v4703 = vunpack.c.l.bf16 %v4639
        %v4704 = vunpack.c.l.bf16 %v4640
        %v4705 = vunpack.c.l.bf16 %v4641
        %v4706 = vunpack.c.l.bf16 %v4642
        %v4707 = vunpack.c.l.bf16 %v4643
        %v4708 = vunpack.c.l.bf16 %v4644
        %v4709 = vunpack.c.l.bf16 %v4645
        %v4710 = vunpack.c.l.bf16 %v4646
        %v4711 = vunpack.c.l.bf16 %v4647
        %v4712 = vunpack.c.l.bf16 %v4648
        %v4713 = vunpack.c.l.bf16 %v4649
        %v4714 = vunpack.c.l.bf16 %v4650
        %v4715 = vunpack.c.l.bf16 %v4651
        %v4716 = vunpack.c.l.bf16 %v4652
        %v4717 = vunpack.c.l.bf16 %v4653
        %v4718 = vunpack.c.l.bf16 %v4654
        %v4719 = vunpack.c.l.bf16 %v4655
        %v4720 = vunpack.c.l.bf16 %v4656
        %v4721 = vunpack.c.l.bf16 %v4657
        %v4722 = vunpack.c.l.bf16 %v4658
        %v4723 = vunpack.c.l.bf16 %v4659
        %v4724 = vunpack.c.l.bf16 %v4660
        %v4725 = vunpack.c.l.bf16 %v4661
        %v4726 = vunpack.c.l.bf16 %v4662
        %v4727 = vunpack.c.l.bf16 %v4663
        %v4728 = vunpack.c.l.bf16 %v4664
        %v4729 = vunpack.c.l.bf16 %v4665
        %v4730 = vunpack.c.l.bf16 %v4666
        %v4731 = vunpack.c.l.bf16 %v4667
        %v4732 = vunpack.c.l.bf16 %v4668
        %v4733 = vunpack.c.l.bf16 %v4669
        %v4734 = vunpack.c.l.bf16 %v4670
        %v4735 = vunpack.c.l.bf16 %v4671
        %v4736 = vunpack.c.l.bf16 %v4672
        %v4737 = vunpack.c.l.bf16 %v4673
        %v4738 = vunpack.c.l.bf16 %v4674
        %v4739 = vunpack.c.l.bf16 %v4675
        %v4740 = vunpack.c.l.bf16 %v4676
        %v4741 = vunpack.c.l.bf16 %v4677
        %v4742 = vunpack.c.l.bf16 %v4678
        %v4743 = vunpack.c.l.bf16 %v4679
        %v4744 = vunpack.c.l.bf16 %v4680
        %v4745 = vunpack.c.l.bf16 %v4681
        %v4746 = vunpack.c.l.bf16 %v4682
        %v4747 = vunpack.c.l.bf16 %v4683
        %4748 = vmatprep.subr.bf16.mxu0 0
        %4749 = vmatpush1.bf16.xpose.msra.mxu0 0
        %4750 = vmatprep.subr.bf16.mxu0 0
        %4751 = vmatpush1.bf16.xpose.msra.mxu0 0
        %4752 = vmatprep.subr.bf16.mxu0 0
        %4753 = vmatpush1.bf16.xpose.msra.mxu0 0
        %4754 = vmatprep.subr.bf16.mxu0 0
        %4755 = vmatpush1.bf16.xpose.msra.mxu0 0
        %4756 = vmatprep.subr.bf16.mxu0 %v4619
        %4757 = vmatpush1.bf16.xpose.msra.mxu0 %v4618
        %4758 = vmatprep.subr.bf16.mxu0 %v4617
        %4759 = vmatpush1.bf16.xpose.msra.mxu0 %v4616
        %4760 = vmatprep.subr.bf16.mxu0 %v4615
        %4761 = vmatpush1.bf16.xpose.msra.mxu0 %v4614
        %4762 = vmatprep.subr.bf16.mxu0 %v4613
        %4763 = vmatpush1.bf16.xpose.msra.mxu0 %v4612
        %4764 = vmatprep.subr.bf16.mxu0 0
        %4765 = vmatpush2.bf16.xpose.msra.mxu0 0
        %4766 = vmatprep.subr.bf16.mxu0 0
        %4767 = vmatpush2.bf16.xpose.msra.mxu0 0
        %4768 = vmatprep.subr.bf16.mxu0 0
        %4769 = vmatpush2.bf16.xpose.msra.mxu0 0
        %4770 = vmatprep.subr.bf16.mxu0 0
        %4771 = vmatpush2.bf16.xpose.msra.mxu0 0
        %4772 = vmatprep.subr.bf16.mxu0 0
        %4773 = vmatpush2.bf16.xpose.msra.mxu0 0
        %4774 = vmatprep.subr.bf16.mxu0 0
        %4775 = vmatpush2.bf16.xpose.msra.mxu0 0
        %4776 = vmatprep.subr.bf16.mxu0 0
        %4777 = vmatpush2.bf16.xpose.msra.mxu0 0
        %4778 = vmatprep.subr.bf16.mxu0 0
        %4779 = vmatpush2.bf16.xpose.msra.mxu0 0
        %4780 = vmatprep.mubr.bf16.mxu0 %v4346
        %4781 = vmatmul.mubr.bf16.gmra.mxu0 %v4345
        %v4782 = vpop.f32.mrf.mxu0
        %v4783 = vadd.f32 %v4684, %v4782
        %v4784 = vpop.f32.mrf.mxu0
        %v4785 = vpop.f32.mrf.mxu0
        %v4786 = vadd.f32 %v4685, %v4785
        %v4787 = vpop.f32.mrf.mxu0
        %4788 = vmatprep.mubr.bf16.mxu0 %v4348
        %4789 = vmatmul.mubr.bf16.gmra.mxu0 %v4347
        %v4790 = vpop.f32.mrf.mxu0
        %v4791 = vadd.f32 %v4686, %v4790
        %v4792 = vpop.f32.mrf.mxu0
        %v4793 = vpop.f32.mrf.mxu0
        %v4794 = vadd.f32 %v4687, %v4793
        %v4795 = vpop.f32.mrf.mxu0
        %4796 = vmatprep.mubr.bf16.mxu0 %v4350
        %4797 = vmatmul.mubr.bf16.gmra.mxu0 %v4349
        %v4798 = vpop.f32.mrf.mxu0
        %v4799 = vadd.f32 %v4688, %v4798
        %v4800 = vpop.f32.mrf.mxu0
        %v4801 = vpop.f32.mrf.mxu0
        %v4802 = vadd.f32 %v4689, %v4801
        %v4803 = vpop.f32.mrf.mxu0
        %4804 = vmatprep.mubr.bf16.mxu0 %v4352
        %4805 = vmatmul.mubr.bf16.gmra.mxu0 %v4351
        %v4806 = vpop.f32.mrf.mxu0
        %v4807 = vadd.f32 %v4690, %v4806
        %v4808 = vpop.f32.mrf.mxu0
        %v4809 = vpop.f32.mrf.mxu0
        %v4810 = vadd.f32 %v4691, %v4809
        %v4811 = vpop.f32.mrf.mxu0
        %4812 = vmatprep.mubr.bf16.mxu0 %v4383
        %4813 = vmatmul.mubr.bf16.gmra.mxu0 %v4382
        %v4814 = vpop.f32.mrf.mxu0
        %v4815 = vadd.f32 %v4692, %v4814
        %v4816 = vpop.f32.mrf.mxu0
        %v4817 = vpop.f32.mrf.mxu0
        %v4818 = vadd.f32 %v4693, %v4817
        %v4819 = vpop.f32.mrf.mxu0
        %4820 = vmatprep.mubr.bf16.mxu0 %v4385
        %4821 = vmatmul.mubr.bf16.gmra.mxu0 %v4384
        %v4822 = vpop.f32.mrf.mxu0
        %v4823 = vadd.f32 %v4694, %v4822
        %v4824 = vpop.f32.mrf.mxu0
        %v4825 = vpop.f32.mrf.mxu0
        %v4826 = vadd.f32 %v4695, %v4825
        %v4827 = vpop.f32.mrf.mxu0
        %4828 = vmatprep.mubr.bf16.mxu0 %v4387
        %4829 = vmatmul.mubr.bf16.gmra.mxu0 %v4386
        %v4830 = vpop.f32.mrf.mxu0
        %v4831 = vadd.f32 %v4696, %v4830
        %v4832 = vpop.f32.mrf.mxu0
        %v4833 = vpop.f32.mrf.mxu0
        %v4834 = vadd.f32 %v4697, %v4833
        %v4835 = vpop.f32.mrf.mxu0
        %4836 = vmatprep.mubr.bf16.mxu0 %v4389
        %4837 = vmatmul.mubr.bf16.gmra.mxu0 %v4388
        %v4838 = vpop.f32.mrf.mxu0
        %v4839 = vadd.f32 %v4698, %v4838
        %v4840 = vpop.f32.mrf.mxu0
        %v4841 = vpop.f32.mrf.mxu0
        %v4842 = vadd.f32 %v4699, %v4841
        %v4843 = vpop.f32.mrf.mxu0
        %4844 = vmatprep.mubr.bf16.mxu0 %v4420
        %4845 = vmatmul.mubr.bf16.gmra.mxu0 %v4419
        %v4846 = vpop.f32.mrf.mxu0
        %v4847 = vadd.f32 %v4700, %v4846
        %v4848 = vpop.f32.mrf.mxu0
        %v4849 = vpop.f32.mrf.mxu0
        %v4850 = vadd.f32 %v4701, %v4849
        %v4851 = vpop.f32.mrf.mxu0
        %4852 = vmatprep.mubr.bf16.mxu0 %v4422
        %4853 = vmatmul.mubr.bf16.gmra.mxu0 %v4421
        %v4854 = vpop.f32.mrf.mxu0
        %v4855 = vadd.f32 %v4702, %v4854
        %v4856 = vpop.f32.mrf.mxu0
        %v4857 = vpop.f32.mrf.mxu0
        %v4858 = vadd.f32 %v4703, %v4857
        %v4859 = vpop.f32.mrf.mxu0
        %4860 = vmatprep.mubr.bf16.mxu0 %v4424
        %4861 = vmatmul.mubr.bf16.gmra.mxu0 %v4423
        %v4862 = vpop.f32.mrf.mxu0
        %v4863 = vadd.f32 %v4704, %v4862
        %v4864 = vpop.f32.mrf.mxu0
        %v4865 = vpop.f32.mrf.mxu0
        %v4866 = vadd.f32 %v4705, %v4865
        %v4867 = vpop.f32.mrf.mxu0
        %4868 = vmatprep.mubr.bf16.mxu0 %v4426
        %4869 = vmatmul.mubr.bf16.gmra.mxu0 %v4425
        %v4870 = vpop.f32.mrf.mxu0
        %v4871 = vadd.f32 %v4706, %v4870
        %v4872 = vpop.f32.mrf.mxu0
        %v4873 = vpop.f32.mrf.mxu0
        %v4874 = vadd.f32 %v4707, %v4873
        %v4875 = vpop.f32.mrf.mxu0
        %4876 = vmatprep.mubr.bf16.mxu0 %v4457
        %4877 = vmatmul.mubr.bf16.gmra.mxu0 %v4456
        %v4878 = vpop.f32.mrf.mxu0
        %v4879 = vadd.f32 %v4708, %v4878
        %v4880 = vpop.f32.mrf.mxu0
        %v4881 = vpop.f32.mrf.mxu0
        %v4882 = vadd.f32 %v4709, %v4881
        %v4883 = vpop.f32.mrf.mxu0
        %4884 = vmatprep.mubr.bf16.mxu0 %v4459
        %4885 = vmatmul.mubr.bf16.gmra.mxu0 %v4458
        %v4886 = vpop.f32.mrf.mxu0
        %v4887 = vadd.f32 %v4710, %v4886
        %v4888 = vpop.f32.mrf.mxu0
        %v4889 = vpop.f32.mrf.mxu0
        %v4890 = vadd.f32 %v4711, %v4889
        %v4891 = vpop.f32.mrf.mxu0
        %4892 = vmatprep.mubr.bf16.mxu0 %v4461
        %4893 = vmatmul.mubr.bf16.gmra.mxu0 %v4460
        %v4894 = vpop.f32.mrf.mxu0
        %v4895 = vadd.f32 %v4712, %v4894
        %v4896 = vpop.f32.mrf.mxu0
        %v4897 = vpop.f32.mrf.mxu0
        %v4898 = vadd.f32 %v4713, %v4897
        %v4899 = vpop.f32.mrf.mxu0
        %4900 = vmatprep.mubr.bf16.mxu0 %v4463
        %4901 = vmatmul.mubr.bf16.gmra.mxu0 %v4462
        %v4902 = vpop.f32.mrf.mxu0
        %v4903 = vadd.f32 %v4714, %v4902
        %v4904 = vpop.f32.mrf.mxu0
        %v4905 = vpop.f32.mrf.mxu0
        %v4906 = vadd.f32 %v4715, %v4905
        %v4907 = vpop.f32.mrf.mxu0
        %4908 = vmatprep.mubr.bf16.mxu0 %v4494
        %4909 = vmatmul.mubr.bf16.gmra.mxu0 %v4493
        %v4910 = vpop.f32.mrf.mxu0
        %v4911 = vadd.f32 %v4716, %v4910
        %v4912 = vpop.f32.mrf.mxu0
        %v4913 = vpop.f32.mrf.mxu0
        %v4914 = vadd.f32 %v4717, %v4913
        %v4915 = vpop.f32.mrf.mxu0
        %4916 = vmatprep.mubr.bf16.mxu0 %v4496
        %4917 = vmatmul.mubr.bf16.gmra.mxu0 %v4495
        %v4918 = vpop.f32.mrf.mxu0
        %v4919 = vadd.f32 %v4718, %v4918
        %v4920 = vpop.f32.mrf.mxu0
        %v4921 = vpop.f32.mrf.mxu0
        %v4922 = vadd.f32 %v4719, %v4921
        %v4923 = vpop.f32.mrf.mxu0
        %4924 = vmatprep.mubr.bf16.mxu0 %v4498
        %4925 = vmatmul.mubr.bf16.gmra.mxu0 %v4497
        %v4926 = vpop.f32.mrf.mxu0
        %v4927 = vadd.f32 %v4720, %v4926
        %v4928 = vpop.f32.mrf.mxu0
        %v4929 = vpop.f32.mrf.mxu0
        %v4930 = vadd.f32 %v4721, %v4929
        %v4931 = vpop.f32.mrf.mxu0
        %4932 = vmatprep.mubr.bf16.mxu0 %v4500
        %4933 = vmatmul.mubr.bf16.gmra.mxu0 %v4499
        %v4934 = vpop.f32.mrf.mxu0
        %v4935 = vadd.f32 %v4722, %v4934
        %v4936 = vpop.f32.mrf.mxu0
        %v4937 = vpop.f32.mrf.mxu0
        %v4938 = vadd.f32 %v4723, %v4937
        %v4939 = vpop.f32.mrf.mxu0
        %4940 = vmatprep.mubr.bf16.mxu0 %v4531
        %4941 = vmatmul.mubr.bf16.gmra.mxu0 %v4530
        %v4942 = vpop.f32.mrf.mxu0
        %v4943 = vadd.f32 %v4724, %v4942
        %v4944 = vpop.f32.mrf.mxu0
        %v4945 = vpop.f32.mrf.mxu0
        %v4946 = vadd.f32 %v4725, %v4945
        %v4947 = vpop.f32.mrf.mxu0
        %4948 = vmatprep.mubr.bf16.mxu0 %v4533
        %4949 = vmatmul.mubr.bf16.gmra.mxu0 %v4532
        %v4950 = vpop.f32.mrf.mxu0
        %v4951 = vadd.f32 %v4726, %v4950
        %v4952 = vpop.f32.mrf.mxu0
        %v4953 = vpop.f32.mrf.mxu0
        %v4954 = vadd.f32 %v4727, %v4953
        %v4955 = vpop.f32.mrf.mxu0
        %4956 = vmatprep.mubr.bf16.mxu0 %v4535
        %4957 = vmatmul.mubr.bf16.gmra.mxu0 %v4534
        %v4958 = vpop.f32.mrf.mxu0
        %v4959 = vadd.f32 %v4728, %v4958
        %v4960 = vpop.f32.mrf.mxu0
        %v4961 = vpop.f32.mrf.mxu0
        %v4962 = vadd.f32 %v4729, %v4961
        %v4963 = vpop.f32.mrf.mxu0
        %4964 = vmatprep.mubr.bf16.mxu0 %v4537
        %4965 = vmatmul.mubr.bf16.gmra.mxu0 %v4536
        %v4966 = vpop.f32.mrf.mxu0
        %v4967 = vadd.f32 %v4730, %v4966
        %v4968 = vpop.f32.mrf.mxu0
        %v4969 = vpop.f32.mrf.mxu0
        %v4970 = vadd.f32 %v4731, %v4969
        %v4971 = vpop.f32.mrf.mxu0
        %4972 = vmatprep.mubr.bf16.mxu0 %v4568
        %4973 = vmatmul.mubr.bf16.gmra.mxu0 %v4567
        %v4974 = vpop.f32.mrf.mxu0
        %v4975 = vadd.f32 %v4732, %v4974
        %v4976 = vpop.f32.mrf.mxu0
        %v4977 = vpop.f32.mrf.mxu0
        %v4978 = vadd.f32 %v4733, %v4977
        %v4979 = vpop.f32.mrf.mxu0
        %4980 = vmatprep.mubr.bf16.mxu0 %v4570
        %4981 = vmatmul.mubr.bf16.gmra.mxu0 %v4569
        %v4982 = vpop.f32.mrf.mxu0
        %v4983 = vadd.f32 %v4734, %v4982
        %v4984 = vpop.f32.mrf.mxu0
        %v4985 = vpop.f32.mrf.mxu0
        %v4986 = vadd.f32 %v4735, %v4985
        %v4987 = vpop.f32.mrf.mxu0
        %4988 = vmatprep.mubr.bf16.mxu0 %v4572
        %4989 = vmatmul.mubr.bf16.gmra.mxu0 %v4571
        %v4990 = vpop.f32.mrf.mxu0
        %v4991 = vadd.f32 %v4736, %v4990
        %v4992 = vpop.f32.mrf.mxu0
        %v4993 = vpop.f32.mrf.mxu0
        %v4994 = vadd.f32 %v4737, %v4993
        %v4995 = vpop.f32.mrf.mxu0
        %4996 = vmatprep.mubr.bf16.mxu0 %v4574
        %4997 = vmatmul.mubr.bf16.gmra.mxu0 %v4573
        %v4998 = vpop.f32.mrf.mxu0
        %v4999 = vadd.f32 %v4738, %v4998
        %v5000 = vpop.f32.mrf.mxu0
        %v5001 = vpop.f32.mrf.mxu0
        %v5002 = vadd.f32 %v4739, %v5001
        %v5003 = vpop.f32.mrf.mxu0
        %5004 = vmatprep.mubr.bf16.mxu0 %v4605
        %5005 = vmatmul.mubr.bf16.gmra.mxu0 %v4604
        %v5006 = vpop.f32.mrf.mxu0
        %v5007 = vadd.f32 %v4740, %v5006
        %v5008 = vpop.f32.mrf.mxu0
        %v5009 = vpop.f32.mrf.mxu0
        %v5010 = vadd.f32 %v4741, %v5009
        %v5011 = vpop.f32.mrf.mxu0
        %5012 = vmatprep.mubr.bf16.mxu0 %v4607
        %5013 = vmatmul.mubr.bf16.gmra.mxu0 %v4606
        %v5014 = vpop.f32.mrf.mxu0
        %v5015 = vadd.f32 %v4742, %v5014
        %v5016 = vpop.f32.mrf.mxu0
        %v5017 = vpop.f32.mrf.mxu0
        %v5018 = vadd.f32 %v4743, %v5017
        %v5019 = vpop.f32.mrf.mxu0
        %5020 = vmatprep.mubr.bf16.mxu0 %v4609
        %5021 = vmatmul.mubr.bf16.gmra.mxu0 %v4608
        %v5022 = vpop.f32.mrf.mxu0
        %v5023 = vadd.f32 %v4744, %v5022
        %v5024 = vpop.f32.mrf.mxu0
        %v5025 = vpop.f32.mrf.mxu0
        %v5026 = vadd.f32 %v4745, %v5025
        %v5027 = vpop.f32.mrf.mxu0
        %5028 = vmatprep.mubr.bf16.mxu0 %v4611
        %5029 = vmatmul.mubr.bf16.gmra.mxu0 %v4610
        %v5030 = vpop.f32.mrf.mxu0
        %v5031 = vadd.f32 %v4746, %v5030
        %v5032 = vpop.f32.mrf.mxu0
        %v5033 = vpop.f32.mrf.mxu0
        %v5034 = vadd.f32 %v4747, %v5033
        %v5035 = vpop.f32.mrf.mxu0
        %5036 = vdwg.mxu0
        %v5037 = vsel %vm2888, %v4783, -inf
        %5038 = vmax.xlane.f32.xlu0 %v5037
        %v5039 = vpop.xlane.xlu0 %5038
        %v5040 = vsel %vm2888, %v4786, -inf
        %5041 = vmax.xlane.f32.xlu0 %v5040
        %v5042 = vpop.xlane.xlu0 %5041
        %v5043 = vsel %vm2888, %v4791, -inf
        %5044 = vmax.xlane.f32.xlu0 %v5043
        %v5045 = vpop.xlane.xlu0 %5044
        %v5046 = vsel %vm2888, %v4794, -inf
        %5047 = vmax.xlane.f32.xlu0 %v5046
        %v5048 = vpop.xlane.xlu0 %5047
        %v5049 = vsel %vm2888, %v4799, -inf
        %5050 = vmax.xlane.f32.xlu0 %v5049
        %v5051 = vpop.xlane.xlu0 %5050
        %v5052 = vsel %vm2888, %v4802, -inf
        %5053 = vmax.xlane.f32.xlu0 %v5052
        %v5054 = vpop.xlane.xlu0 %5053
        %v5055 = vsel %vm2888, %v4807, -inf
        %5056 = vmax.xlane.f32.xlu0 %v5055
        %v5057 = vpop.xlane.xlu0 %5056
        %v5058 = vsel %vm2888, %v4810, -inf
        %5059 = vmax.xlane.f32.xlu0 %v5058
        %v5060 = vpop.xlane.xlu0 %5059
        %v5061 = vsel %vm2888, %v4815, -inf
        %5062 = vmax.xlane.f32.xlu0 %v5061
        %v5063 = vpop.xlane.xlu0 %5062
        %v5064 = vsel %vm2888, %v4818, -inf
        %5065 = vmax.xlane.f32.xlu0 %v5064
        %v5066 = vpop.xlane.xlu0 %5065
        %v5067 = vsel %vm2888, %v4823, -inf
        %5068 = vmax.xlane.f32.xlu0 %v5067
        %v5069 = vpop.xlane.xlu0 %5068
        %v5070 = vsel %vm2888, %v4826, -inf
        %5071 = vmax.xlane.f32.xlu0 %v5070
        %v5072 = vpop.xlane.xlu0 %5071
        %v5073 = vsel %vm2888, %v4831, -inf
        %5074 = vmax.xlane.f32.xlu0 %v5073
        %v5075 = vpop.xlane.xlu0 %5074
        %v5076 = vsel %vm2888, %v4834, -inf
        %5077 = vmax.xlane.f32.xlu0 %v5076
        %v5078 = vpop.xlane.xlu0 %5077
        %v5079 = vsel %vm2888, %v4839, -inf
        %5080 = vmax.xlane.f32.xlu0 %v5079
        %v5081 = vpop.xlane.xlu0 %5080
        %v5082 = vsel %vm2888, %v4842, -inf
        %5083 = vmax.xlane.f32.xlu0 %v5082
        %v5084 = vpop.xlane.xlu0 %5083
        %v5085 = vsel %vm2888, %v4847, -inf
        %5086 = vmax.xlane.f32.xlu0 %v5085
        %v5087 = vpop.xlane.xlu0 %5086
        %v5088 = vsel %vm2888, %v4850, -inf
        %5089 = vmax.xlane.f32.xlu0 %v5088
        %v5090 = vpop.xlane.xlu0 %5089
        %v5091 = vsel %vm2888, %v4855, -inf
        %5092 = vmax.xlane.f32.xlu0 %v5091
        %v5093 = vpop.xlane.xlu0 %5092
        %v5094 = vsel %vm2888, %v4858, -inf
        %5095 = vmax.xlane.f32.xlu0 %v5094
        %v5096 = vpop.xlane.xlu0 %5095
        %v5097 = vsel %vm2888, %v4863, -inf
        %5098 = vmax.xlane.f32.xlu0 %v5097
        %v5099 = vpop.xlane.xlu0 %5098
        %v5100 = vsel %vm2888, %v4866, -inf
        %5101 = vmax.xlane.f32.xlu0 %v5100
        %v5102 = vpop.xlane.xlu0 %5101
        %v5103 = vsel %vm2888, %v4871, -inf
        %5104 = vmax.xlane.f32.xlu0 %v5103
        %v5105 = vpop.xlane.xlu0 %5104
        %v5106 = vsel %vm2888, %v4874, -inf
        %5107 = vmax.xlane.f32.xlu0 %v5106
        %v5108 = vpop.xlane.xlu0 %5107
        %v5109 = vsel %vm2888, %v4879, -inf
        %5110 = vmax.xlane.f32.xlu0 %v5109
        %v5111 = vpop.xlane.xlu0 %5110
        %v5112 = vsel %vm2888, %v4882, -inf
        %5113 = vmax.xlane.f32.xlu0 %v5112
        %v5114 = vpop.xlane.xlu0 %5113
        %v5115 = vsel %vm2888, %v4887, -inf
        %5116 = vmax.xlane.f32.xlu0 %v5115
        %v5117 = vpop.xlane.xlu0 %5116
        %v5118 = vsel %vm2888, %v4890, -inf
        %5119 = vmax.xlane.f32.xlu0 %v5118
        %v5120 = vpop.xlane.xlu0 %5119
        %v5121 = vsel %vm2888, %v4895, -inf
        %5122 = vmax.xlane.f32.xlu0 %v5121
        %v5123 = vpop.xlane.xlu0 %5122
        %v5124 = vsel %vm2888, %v4898, -inf
        %5125 = vmax.xlane.f32.xlu0 %v5124
        %v5126 = vpop.xlane.xlu0 %5125
        %v5127 = vsel %vm2888, %v4903, -inf
        %5128 = vmax.xlane.f32.xlu0 %v5127
        %v5129 = vpop.xlane.xlu0 %5128
        %v5130 = vsel %vm2888, %v4906, -inf
        %5131 = vmax.xlane.f32.xlu0 %v5130
        %v5132 = vpop.xlane.xlu0 %5131
        %v5133 = vsel %vm2888, %v4911, -inf
        %5134 = vmax.xlane.f32.xlu0 %v5133
        %v5135 = vpop.xlane.xlu0 %5134
        %v5136 = vsel %vm2888, %v4914, -inf
        %5137 = vmax.xlane.f32.xlu0 %v5136
        %v5138 = vpop.xlane.xlu0 %5137
        %v5139 = vsel %vm2888, %v4919, -inf
        %5140 = vmax.xlane.f32.xlu0 %v5139
        %v5141 = vpop.xlane.xlu0 %5140
        %v5142 = vsel %vm2888, %v4922, -inf
        %5143 = vmax.xlane.f32.xlu0 %v5142
        %v5144 = vpop.xlane.xlu0 %5143
        %v5145 = vsel %vm2888, %v4927, -inf
        %5146 = vmax.xlane.f32.xlu0 %v5145
        %v5147 = vpop.xlane.xlu0 %5146
        %v5148 = vsel %vm2888, %v4930, -inf
        %5149 = vmax.xlane.f32.xlu0 %v5148
        %v5150 = vpop.xlane.xlu0 %5149
        %v5151 = vsel %vm2888, %v4935, -inf
        %5152 = vmax.xlane.f32.xlu0 %v5151
        %v5153 = vpop.xlane.xlu0 %5152
        %v5154 = vsel %vm2888, %v4938, -inf
        %5155 = vmax.xlane.f32.xlu0 %v5154
        %v5156 = vpop.xlane.xlu0 %5155
        %v5157 = vsel %vm2888, %v4943, -inf
        %5158 = vmax.xlane.f32.xlu0 %v5157
        %v5159 = vpop.xlane.xlu0 %5158
        %v5160 = vsel %vm2888, %v4946, -inf
        %5161 = vmax.xlane.f32.xlu0 %v5160
        %v5162 = vpop.xlane.xlu0 %5161
        %v5163 = vsel %vm2888, %v4951, -inf
        %5164 = vmax.xlane.f32.xlu0 %v5163
        %v5165 = vpop.xlane.xlu0 %5164
        %v5166 = vsel %vm2888, %v4954, -inf
        %5167 = vmax.xlane.f32.xlu0 %v5166
        %v5168 = vpop.xlane.xlu0 %5167
        %v5169 = vsel %vm2888, %v4959, -inf
        %5170 = vmax.xlane.f32.xlu0 %v5169
        %v5171 = vpop.xlane.xlu0 %5170
        %v5172 = vsel %vm2888, %v4962, -inf
        %5173 = vmax.xlane.f32.xlu0 %v5172
        %v5174 = vpop.xlane.xlu0 %5173
        %v5175 = vsel %vm2888, %v4967, -inf
        %5176 = vmax.xlane.f32.xlu0 %v5175
        %v5177 = vpop.xlane.xlu0 %5176
        %v5178 = vsel %vm2888, %v4970, -inf
        %5179 = vmax.xlane.f32.xlu0 %v5178
        %v5180 = vpop.xlane.xlu0 %5179
        %v5181 = vsel %vm2888, %v4975, -inf
        %5182 = vmax.xlane.f32.xlu0 %v5181
        %v5183 = vpop.xlane.xlu0 %5182
        %v5184 = vsel %vm2888, %v4978, -inf
        %5185 = vmax.xlane.f32.xlu0 %v5184
        %v5186 = vpop.xlane.xlu0 %5185
        %v5187 = vsel %vm2888, %v4983, -inf
        %5188 = vmax.xlane.f32.xlu0 %v5187
        %v5189 = vpop.xlane.xlu0 %5188
        %v5190 = vsel %vm2888, %v4986, -inf
        %5191 = vmax.xlane.f32.xlu0 %v5190
        %v5192 = vpop.xlane.xlu0 %5191
        %v5193 = vsel %vm2888, %v4991, -inf
        %5194 = vmax.xlane.f32.xlu0 %v5193
        %v5195 = vpop.xlane.xlu0 %5194
        %v5196 = vsel %vm2888, %v4994, -inf
        %5197 = vmax.xlane.f32.xlu0 %v5196
        %v5198 = vpop.xlane.xlu0 %5197
        %v5199 = vsel %vm2888, %v4999, -inf
        %5200 = vmax.xlane.f32.xlu0 %v5199
        %v5201 = vpop.xlane.xlu0 %5200
        %v5202 = vsel %vm2888, %v5002, -inf
        %5203 = vmax.xlane.f32.xlu0 %v5202
        %v5204 = vpop.xlane.xlu0 %5203
        %v5205 = vsel %vm2888, %v5007, -inf
        %5206 = vmax.xlane.f32.xlu0 %v5205
        %v5207 = vpop.xlane.xlu0 %5206
        %v5208 = vsel %vm2888, %v5010, -inf
        %5209 = vmax.xlane.f32.xlu0 %v5208
        %v5210 = vpop.xlane.xlu0 %5209
        %v5211 = vsel %vm2888, %v5015, -inf
        %5212 = vmax.xlane.f32.xlu0 %v5211
        %v5213 = vpop.xlane.xlu0 %5212
        %v5214 = vsel %vm2888, %v5018, -inf
        %5215 = vmax.xlane.f32.xlu0 %v5214
        %v5216 = vpop.xlane.xlu0 %5215
        %v5217 = vsel %vm2888, %v5023, -inf
        %5218 = vmax.xlane.f32.xlu0 %v5217
        %v5219 = vpop.xlane.xlu0 %5218
        %v5220 = vsel %vm2888, %v5026, -inf
        %5221 = vmax.xlane.f32.xlu0 %v5220
        %v5222 = vpop.xlane.xlu0 %5221
        %v5223 = vsel %vm2888, %v5031, -inf
        %5224 = vmax.xlane.f32.xlu0 %v5223
        %v5225 = vpop.xlane.xlu0 %5224
        %v5226 = vsel %vm2888, %v5034, -inf
        %5227 = vmax.xlane.f32.xlu0 %v5226
        %v5228 = vpop.xlane.xlu0 %5227
        %v5229 = vsub.f32 %v4783, %v5039
        %v5230 = vsub.f32 %v4786, %v5042
        %v5231 = vsub.f32 %v4791, %v5045
        %v5232 = vsub.f32 %v4794, %v5048
        %v5233 = vsub.f32 %v4799, %v5051
        %v5234 = vsub.f32 %v4802, %v5054
        %v5235 = vsub.f32 %v4807, %v5057
        %v5236 = vsub.f32 %v4810, %v5060
        %v5237 = vsub.f32 %v4815, %v5063
        %v5238 = vsub.f32 %v4818, %v5066
        %v5239 = vsub.f32 %v4823, %v5069
        %v5240 = vsub.f32 %v4826, %v5072
        %v5241 = vsub.f32 %v4831, %v5075
        %v5242 = vsub.f32 %v4834, %v5078
        %v5243 = vsub.f32 %v4839, %v5081
        %v5244 = vsub.f32 %v4842, %v5084
        %v5245 = vsub.f32 %v4847, %v5087
        %v5246 = vsub.f32 %v4850, %v5090
        %v5247 = vsub.f32 %v4855, %v5093
        %v5248 = vsub.f32 %v4858, %v5096
        %v5249 = vsub.f32 %v4863, %v5099
        %v5250 = vsub.f32 %v4866, %v5102
        %v5251 = vsub.f32 %v4871, %v5105
        %v5252 = vsub.f32 %v4874, %v5108
        %v5253 = vsub.f32 %v4879, %v5111
        %v5254 = vsub.f32 %v4882, %v5114
        %v5255 = vsub.f32 %v4887, %v5117
        %v5256 = vsub.f32 %v4890, %v5120
        %v5257 = vsub.f32 %v4895, %v5123
        %v5258 = vsub.f32 %v4898, %v5126
        %v5259 = vsub.f32 %v4903, %v5129
        %v5260 = vsub.f32 %v4906, %v5132
        %v5261 = vsub.f32 %v4911, %v5135
        %v5262 = vsub.f32 %v4914, %v5138
        %v5263 = vsub.f32 %v4919, %v5141
        %v5264 = vsub.f32 %v4922, %v5144
        %v5265 = vsub.f32 %v4927, %v5147
        %v5266 = vsub.f32 %v4930, %v5150
        %v5267 = vsub.f32 %v4935, %v5153
        %v5268 = vsub.f32 %v4938, %v5156
        %v5269 = vsub.f32 %v4943, %v5159
        %v5270 = vsub.f32 %v4946, %v5162
        %v5271 = vsub.f32 %v4951, %v5165
        %v5272 = vsub.f32 %v4954, %v5168
        %v5273 = vsub.f32 %v4959, %v5171
        %v5274 = vsub.f32 %v4962, %v5174
        %v5275 = vsub.f32 %v4967, %v5177
        %v5276 = vsub.f32 %v4970, %v5180
        %v5277 = vsub.f32 %v4975, %v5183
        %v5278 = vsub.f32 %v4978, %v5186
        %v5279 = vsub.f32 %v4983, %v5189
        %v5280 = vsub.f32 %v4986, %v5192
        %v5281 = vsub.f32 %v4991, %v5195
        %v5282 = vsub.f32 %v4994, %v5198
        %v5283 = vsub.f32 %v4999, %v5201
        %v5284 = vsub.f32 %v5002, %v5204
        %v5285 = vsub.f32 %v5007, %v5207
        %v5286 = vsub.f32 %v5010, %v5210
        %v5287 = vsub.f32 %v5015, %v5213
        %v5288 = vsub.f32 %v5018, %v5216
        %v5289 = vsub.f32 %v5023, %v5219
        %v5290 = vsub.f32 %v5026, %v5222
        %v5291 = vsub.f32 %v5031, %v5225
        %v5292 = vsub.f32 %v5034, %v5228
        %v5293 = vmul.f32 %v5229, 1.442695
        %v5294 = vpow.pop %v5293
        %v5295 = vmul.f32 %v5230, 1.442695
        %v5296 = vpow.pop %v5295
        %v5297 = vmul.f32 %v5231, 1.442695
        %v5298 = vpow.pop %v5297
        %v5299 = vmul.f32 %v5232, 1.442695
        %v5300 = vpow.pop %v5299
        %v5301 = vmul.f32 %v5233, 1.442695
        %v5302 = vpow.pop %v5301
        %v5303 = vmul.f32 %v5234, 1.442695
        %v5304 = vpow.pop %v5303
        %v5305 = vmul.f32 %v5235, 1.442695
        %v5306 = vpow.pop %v5305
        %v5307 = vmul.f32 %v5236, 1.442695
        %v5308 = vpow.pop %v5307
        %v5309 = vmul.f32 %v5237, 1.442695
        %v5310 = vpow.pop %v5309
        %v5311 = vmul.f32 %v5238, 1.442695
        %v5312 = vpow.pop %v5311
        %v5313 = vmul.f32 %v5239, 1.442695
        %v5314 = vpow.pop %v5313
        %v5315 = vmul.f32 %v5240, 1.442695
        %v5316 = vpow.pop %v5315
        %v5317 = vmul.f32 %v5241, 1.442695
        %v5318 = vpow.pop %v5317
        %v5319 = vmul.f32 %v5242, 1.442695
        %v5320 = vpow.pop %v5319
        %v5321 = vmul.f32 %v5243, 1.442695
        %v5322 = vpow.pop %v5321
        %v5323 = vmul.f32 %v5244, 1.442695
        %v5324 = vpow.pop %v5323
        %v5325 = vmul.f32 %v5245, 1.442695
        %v5326 = vpow.pop %v5325
        %v5327 = vmul.f32 %v5246, 1.442695
        %v5328 = vpow.pop %v5327
        %v5329 = vmul.f32 %v5247, 1.442695
        %v5330 = vpow.pop %v5329
        %v5331 = vmul.f32 %v5248, 1.442695
        %v5332 = vpow.pop %v5331
        %v5333 = vmul.f32 %v5249, 1.442695
        %v5334 = vpow.pop %v5333
        %v5335 = vmul.f32 %v5250, 1.442695
        %v5336 = vpow.pop %v5335
        %v5337 = vmul.f32 %v5251, 1.442695
        %v5338 = vpow.pop %v5337
        %v5339 = vmul.f32 %v5252, 1.442695
        %v5340 = vpow.pop %v5339
        %v5341 = vmul.f32 %v5253, 1.442695
        %v5342 = vpow.pop %v5341
        %v5343 = vmul.f32 %v5254, 1.442695
        %v5344 = vpow.pop %v5343
        %v5345 = vmul.f32 %v5255, 1.442695
        %v5346 = vpow.pop %v5345
        %v5347 = vmul.f32 %v5256, 1.442695
        %v5348 = vpow.pop %v5347
        %v5349 = vmul.f32 %v5257, 1.442695
        %v5350 = vpow.pop %v5349
        %v5351 = vmul.f32 %v5258, 1.442695
        %v5352 = vpow.pop %v5351
        %v5353 = vmul.f32 %v5259, 1.442695
        %v5354 = vpow.pop %v5353
        %v5355 = vmul.f32 %v5260, 1.442695
        %v5356 = vpow.pop %v5355
        %v5357 = vmul.f32 %v5261, 1.442695
        %v5358 = vpow.pop %v5357
        %v5359 = vmul.f32 %v5262, 1.442695
        %v5360 = vpow.pop %v5359
        %v5361 = vmul.f32 %v5263, 1.442695
        %v5362 = vpow.pop %v5361
        %v5363 = vmul.f32 %v5264, 1.442695
        %v5364 = vpow.pop %v5363
        %v5365 = vmul.f32 %v5265, 1.442695
        %v5366 = vpow.pop %v5365
        %v5367 = vmul.f32 %v5266, 1.442695
        %v5368 = vpow.pop %v5367
        %v5369 = vmul.f32 %v5267, 1.442695
        %v5370 = vpow.pop %v5369
        %v5371 = vmul.f32 %v5268, 1.442695
        %v5372 = vpow.pop %v5371
        %v5373 = vmul.f32 %v5269, 1.442695
        %v5374 = vpow.pop %v5373
        %v5375 = vmul.f32 %v5270, 1.442695
        %v5376 = vpow.pop %v5375
        %v5377 = vmul.f32 %v5271, 1.442695
        %v5378 = vpow.pop %v5377
        %v5379 = vmul.f32 %v5272, 1.442695
        %v5380 = vpow.pop %v5379
        %v5381 = vmul.f32 %v5273, 1.442695
        %v5382 = vpow.pop %v5381
        %v5383 = vmul.f32 %v5274, 1.442695
        %v5384 = vpow.pop %v5383
        %v5385 = vmul.f32 %v5275, 1.442695
        %v5386 = vpow.pop %v5385
        %v5387 = vmul.f32 %v5276, 1.442695
        %v5388 = vpow.pop %v5387
        %v5389 = vmul.f32 %v5277, 1.442695
        %v5390 = vpow.pop %v5389
        %v5391 = vmul.f32 %v5278, 1.442695
        %v5392 = vpow.pop %v5391
        %v5393 = vmul.f32 %v5279, 1.442695
        %v5394 = vpow.pop %v5393
        %v5395 = vmul.f32 %v5280, 1.442695
        %v5396 = vpow.pop %v5395
        %v5397 = vmul.f32 %v5281, 1.442695
        %v5398 = vpow.pop %v5397
        %v5399 = vmul.f32 %v5282, 1.442695
        %v5400 = vpow.pop %v5399
        %v5401 = vmul.f32 %v5283, 1.442695
        %v5402 = vpow.pop %v5401
        %v5403 = vmul.f32 %v5284, 1.442695
        %v5404 = vpow.pop %v5403
        %v5405 = vmul.f32 %v5285, 1.442695
        %v5406 = vpow.pop %v5405
        %v5407 = vmul.f32 %v5286, 1.442695
        %v5408 = vpow.pop %v5407
        %v5409 = vmul.f32 %v5287, 1.442695
        %v5410 = vpow.pop %v5409
        %v5411 = vmul.f32 %v5288, 1.442695
        %v5412 = vpow.pop %v5411
        %v5413 = vmul.f32 %v5289, 1.442695
        %v5414 = vpow.pop %v5413
        %v5415 = vmul.f32 %v5290, 1.442695
        %v5416 = vpow.pop %v5415
        %v5417 = vmul.f32 %v5291, 1.442695
        %v5418 = vpow.pop %v5417
        %v5419 = vmul.f32 %v5292, 1.442695
        %v5420 = vpow.pop %v5419
        %v5421 = vsel %vm2888, %v5294, 0.0
        %5422 = vadd.xlane.f32.xlu0 %v5421
        %v5423 = vpop.xlane.xlu0 %5422
        %v5424 = vsel %vm2888, %v5296, 0.0
        %5425 = vadd.xlane.f32.xlu0 %v5424
        %v5426 = vpop.xlane.xlu0 %5425
        %v5427 = vsel %vm2888, %v5298, 0.0
        %5428 = vadd.xlane.f32.xlu0 %v5427
        %v5429 = vpop.xlane.xlu0 %5428
        %v5430 = vsel %vm2888, %v5300, 0.0
        %5431 = vadd.xlane.f32.xlu0 %v5430
        %v5432 = vpop.xlane.xlu0 %5431
        %v5433 = vsel %vm2888, %v5302, 0.0
        %5434 = vadd.xlane.f32.xlu0 %v5433
        %v5435 = vpop.xlane.xlu0 %5434
        %v5436 = vsel %vm2888, %v5304, 0.0
        %5437 = vadd.xlane.f32.xlu0 %v5436
        %v5438 = vpop.xlane.xlu0 %5437
        %v5439 = vsel %vm2888, %v5306, 0.0
        %5440 = vadd.xlane.f32.xlu0 %v5439
        %v5441 = vpop.xlane.xlu0 %5440
        %v5442 = vsel %vm2888, %v5308, 0.0
        %5443 = vadd.xlane.f32.xlu0 %v5442
        %v5444 = vpop.xlane.xlu0 %5443
        %v5445 = vsel %vm2888, %v5310, 0.0
        %5446 = vadd.xlane.f32.xlu0 %v5445
        %v5447 = vpop.xlane.xlu0 %5446
        %v5448 = vsel %vm2888, %v5312, 0.0
        %5449 = vadd.xlane.f32.xlu0 %v5448
        %v5450 = vpop.xlane.xlu0 %5449
        %v5451 = vsel %vm2888, %v5314, 0.0
        %5452 = vadd.xlane.f32.xlu0 %v5451
        %v5453 = vpop.xlane.xlu0 %5452
        %v5454 = vsel %vm2888, %v5316, 0.0
        %5455 = vadd.xlane.f32.xlu0 %v5454
        %v5456 = vpop.xlane.xlu0 %5455
        %v5457 = vsel %vm2888, %v5318, 0.0
        %5458 = vadd.xlane.f32.xlu0 %v5457
        %v5459 = vpop.xlane.xlu0 %5458
        %v5460 = vsel %vm2888, %v5320, 0.0
        %5461 = vadd.xlane.f32.xlu0 %v5460
        %v5462 = vpop.xlane.xlu0 %5461
        %v5463 = vsel %vm2888, %v5322, 0.0
        %5464 = vadd.xlane.f32.xlu0 %v5463
        %v5465 = vpop.xlane.xlu0 %5464
        %v5466 = vsel %vm2888, %v5324, 0.0
        %5467 = vadd.xlane.f32.xlu0 %v5466
        %v5468 = vpop.xlane.xlu0 %5467
        %v5469 = vsel %vm2888, %v5326, 0.0
        %5470 = vadd.xlane.f32.xlu0 %v5469
        %v5471 = vpop.xlane.xlu0 %5470
        %v5472 = vsel %vm2888, %v5328, 0.0
        %5473 = vadd.xlane.f32.xlu0 %v5472
        %v5474 = vpop.xlane.xlu0 %5473
        %v5475 = vsel %vm2888, %v5330, 0.0
        %5476 = vadd.xlane.f32.xlu0 %v5475
        %v5477 = vpop.xlane.xlu0 %5476
        %v5478 = vsel %vm2888, %v5332, 0.0
        %5479 = vadd.xlane.f32.xlu0 %v5478
        %v5480 = vpop.xlane.xlu0 %5479
        %v5481 = vsel %vm2888, %v5334, 0.0
        %5482 = vadd.xlane.f32.xlu0 %v5481
        %v5483 = vpop.xlane.xlu0 %5482
        %v5484 = vsel %vm2888, %v5336, 0.0
        %5485 = vadd.xlane.f32.xlu0 %v5484
        %v5486 = vpop.xlane.xlu0 %5485
        %v5487 = vsel %vm2888, %v5338, 0.0
        %5488 = vadd.xlane.f32.xlu0 %v5487
        %v5489 = vpop.xlane.xlu0 %5488
        %v5490 = vsel %vm2888, %v5340, 0.0
        %5491 = vadd.xlane.f32.xlu0 %v5490
        %v5492 = vpop.xlane.xlu0 %5491
        %v5493 = vsel %vm2888, %v5342, 0.0
        %5494 = vadd.xlane.f32.xlu0 %v5493
        %v5495 = vpop.xlane.xlu0 %5494
        %v5496 = vsel %vm2888, %v5344, 0.0
        %5497 = vadd.xlane.f32.xlu0 %v5496
        %v5498 = vpop.xlane.xlu0 %5497
        %v5499 = vsel %vm2888, %v5346, 0.0
        %5500 = vadd.xlane.f32.xlu0 %v5499
        %v5501 = vpop.xlane.xlu0 %5500
        %v5502 = vsel %vm2888, %v5348, 0.0
        %5503 = vadd.xlane.f32.xlu0 %v5502
        %v5504 = vpop.xlane.xlu0 %5503
        %v5505 = vsel %vm2888, %v5350, 0.0
        %5506 = vadd.xlane.f32.xlu0 %v5505
        %v5507 = vpop.xlane.xlu0 %5506
        %v5508 = vsel %vm2888, %v5352, 0.0
        %5509 = vadd.xlane.f32.xlu0 %v5508
        %v5510 = vpop.xlane.xlu0 %5509
        %v5511 = vsel %vm2888, %v5354, 0.0
        %5512 = vadd.xlane.f32.xlu0 %v5511
        %v5513 = vpop.xlane.xlu0 %5512
        %v5514 = vsel %vm2888, %v5356, 0.0
        %5515 = vadd.xlane.f32.xlu0 %v5514
        %v5516 = vpop.xlane.xlu0 %5515
        %v5517 = vsel %vm2888, %v5358, 0.0
        %5518 = vadd.xlane.f32.xlu0 %v5517
        %v5519 = vpop.xlane.xlu0 %5518
        %v5520 = vsel %vm2888, %v5360, 0.0
        %5521 = vadd.xlane.f32.xlu0 %v5520
        %v5522 = vpop.xlane.xlu0 %5521
        %v5523 = vsel %vm2888, %v5362, 0.0
        %5524 = vadd.xlane.f32.xlu0 %v5523
        %v5525 = vpop.xlane.xlu0 %5524
        %v5526 = vsel %vm2888, %v5364, 0.0
        %5527 = vadd.xlane.f32.xlu0 %v5526
        %v5528 = vpop.xlane.xlu0 %5527
        %v5529 = vsel %vm2888, %v5366, 0.0
        %5530 = vadd.xlane.f32.xlu0 %v5529
        %v5531 = vpop.xlane.xlu0 %5530
        %v5532 = vsel %vm2888, %v5368, 0.0
        %5533 = vadd.xlane.f32.xlu0 %v5532
        %v5534 = vpop.xlane.xlu0 %5533
        %v5535 = vsel %vm2888, %v5370, 0.0
        %5536 = vadd.xlane.f32.xlu0 %v5535
        %v5537 = vpop.xlane.xlu0 %5536
        %v5538 = vsel %vm2888, %v5372, 0.0
        %5539 = vadd.xlane.f32.xlu0 %v5538
        %v5540 = vpop.xlane.xlu0 %5539
        %v5541 = vsel %vm2888, %v5374, 0.0
        %5542 = vadd.xlane.f32.xlu0 %v5541
        %v5543 = vpop.xlane.xlu0 %5542
        %v5544 = vsel %vm2888, %v5376, 0.0
        %5545 = vadd.xlane.f32.xlu0 %v5544
        %v5546 = vpop.xlane.xlu0 %5545
        %v5547 = vsel %vm2888, %v5378, 0.0
        %5548 = vadd.xlane.f32.xlu0 %v5547
        %v5549 = vpop.xlane.xlu0 %5548
        %v5550 = vsel %vm2888, %v5380, 0.0
        %5551 = vadd.xlane.f32.xlu0 %v5550
        %v5552 = vpop.xlane.xlu0 %5551
        %v5553 = vsel %vm2888, %v5382, 0.0
        %5554 = vadd.xlane.f32.xlu0 %v5553
        %v5555 = vpop.xlane.xlu0 %5554
        %v5556 = vsel %vm2888, %v5384, 0.0
        %5557 = vadd.xlane.f32.xlu0 %v5556
        %v5558 = vpop.xlane.xlu0 %5557
        %v5559 = vsel %vm2888, %v5386, 0.0
        %5560 = vadd.xlane.f32.xlu0 %v5559
        %v5561 = vpop.xlane.xlu0 %5560
        %v5562 = vsel %vm2888, %v5388, 0.0
        %5563 = vadd.xlane.f32.xlu0 %v5562
        %v5564 = vpop.xlane.xlu0 %5563
        %v5565 = vsel %vm2888, %v5390, 0.0
        %5566 = vadd.xlane.f32.xlu0 %v5565
        %v5567 = vpop.xlane.xlu0 %5566
        %v5568 = vsel %vm2888, %v5392, 0.0
        %5569 = vadd.xlane.f32.xlu0 %v5568
        %v5570 = vpop.xlane.xlu0 %5569
        %v5571 = vsel %vm2888, %v5394, 0.0
        %5572 = vadd.xlane.f32.xlu0 %v5571
        %v5573 = vpop.xlane.xlu0 %5572
        %v5574 = vsel %vm2888, %v5396, 0.0
        %5575 = vadd.xlane.f32.xlu0 %v5574
        %v5576 = vpop.xlane.xlu0 %5575
        %v5577 = vsel %vm2888, %v5398, 0.0
        %5578 = vadd.xlane.f32.xlu0 %v5577
        %v5579 = vpop.xlane.xlu0 %5578
        %v5580 = vsel %vm2888, %v5400, 0.0
        %5581 = vadd.xlane.f32.xlu0 %v5580
        %v5582 = vpop.xlane.xlu0 %5581
        %v5583 = vsel %vm2888, %v5402, 0.0
        %5584 = vadd.xlane.f32.xlu0 %v5583
        %v5585 = vpop.xlane.xlu0 %5584
        %v5586 = vsel %vm2888, %v5404, 0.0
        %5587 = vadd.xlane.f32.xlu0 %v5586
        %v5588 = vpop.xlane.xlu0 %5587
        %v5589 = vsel %vm2888, %v5406, 0.0
        %5590 = vadd.xlane.f32.xlu0 %v5589
        %v5591 = vpop.xlane.xlu0 %5590
        %v5592 = vsel %vm2888, %v5408, 0.0
        %5593 = vadd.xlane.f32.xlu0 %v5592
        %v5594 = vpop.xlane.xlu0 %5593
        %v5595 = vsel %vm2888, %v5410, 0.0
        %5596 = vadd.xlane.f32.xlu0 %v5595
        %v5597 = vpop.xlane.xlu0 %5596
        %v5598 = vsel %vm2888, %v5412, 0.0
        %5599 = vadd.xlane.f32.xlu0 %v5598
        %v5600 = vpop.xlane.xlu0 %5599
        %v5601 = vsel %vm2888, %v5414, 0.0
        %5602 = vadd.xlane.f32.xlu0 %v5601
        %v5603 = vpop.xlane.xlu0 %5602
        %v5604 = vsel %vm2888, %v5416, 0.0
        %5605 = vadd.xlane.f32.xlu0 %v5604
        %v5606 = vpop.xlane.xlu0 %5605
        %v5607 = vsel %vm2888, %v5418, 0.0
        %5608 = vadd.xlane.f32.xlu0 %v5607
        %v5609 = vpop.xlane.xlu0 %5608
        %v5610 = vsel %vm2888, %v5420, 0.0
        %5611 = vadd.xlane.f32.xlu0 %v5610
        %v5612 = vpop.xlane.xlu0 %5611
        %v5613 = vrcp.pop %v5423
        %v5614 = vrcp.pop %v5426
        %v5615 = vrcp.pop %v5429
        %v5616 = vrcp.pop %v5432
        %v5617 = vrcp.pop %v5435
        %v5618 = vrcp.pop %v5438
        %v5619 = vrcp.pop %v5441
        %v5620 = vrcp.pop %v5444
        %v5621 = vrcp.pop %v5447
        %v5622 = vrcp.pop %v5450
        %v5623 = vrcp.pop %v5453
        %v5624 = vrcp.pop %v5456
        %v5625 = vrcp.pop %v5459
        %v5626 = vrcp.pop %v5462
        %v5627 = vrcp.pop %v5465
        %v5628 = vrcp.pop %v5468
        %v5629 = vrcp.pop %v5471
        %v5630 = vrcp.pop %v5474
        %v5631 = vrcp.pop %v5477
        %v5632 = vrcp.pop %v5480
        %v5633 = vrcp.pop %v5483
        %v5634 = vrcp.pop %v5486
        %v5635 = vrcp.pop %v5489
        %v5636 = vrcp.pop %v5492
        %v5637 = vrcp.pop %v5495
        %v5638 = vrcp.pop %v5498
        %v5639 = vrcp.pop %v5501
        %v5640 = vrcp.pop %v5504
        %v5641 = vrcp.pop %v5507
        %v5642 = vrcp.pop %v5510
        %v5643 = vrcp.pop %v5513
        %v5644 = vrcp.pop %v5516
        %v5645 = vrcp.pop %v5519
        %v5646 = vrcp.pop %v5522
        %v5647 = vrcp.pop %v5525
        %v5648 = vrcp.pop %v5528
        %v5649 = vrcp.pop %v5531
        %v5650 = vrcp.pop %v5534
        %v5651 = vrcp.pop %v5537
        %v5652 = vrcp.pop %v5540
        %v5653 = vrcp.pop %v5543
        %v5654 = vrcp.pop %v5546
        %v5655 = vrcp.pop %v5549
        %v5656 = vrcp.pop %v5552
        %v5657 = vrcp.pop %v5555
        %v5658 = vrcp.pop %v5558
        %v5659 = vrcp.pop %v5561
        %v5660 = vrcp.pop %v5564
        %v5661 = vrcp.pop %v5567
        %v5662 = vrcp.pop %v5570
        %v5663 = vrcp.pop %v5573
        %v5664 = vrcp.pop %v5576
        %v5665 = vrcp.pop %v5579
        %v5666 = vrcp.pop %v5582
        %v5667 = vrcp.pop %v5585
        %v5668 = vrcp.pop %v5588
        %v5669 = vrcp.pop %v5591
        %v5670 = vrcp.pop %v5594
        %v5671 = vrcp.pop %v5597
        %v5672 = vrcp.pop %v5600
        %v5673 = vrcp.pop %v5603
        %v5674 = vrcp.pop %v5606
        %v5675 = vrcp.pop %v5609
        %v5676 = vrcp.pop %v5612
        %v5677 = vmul.f32 %v5294, %v5613
        %v5678 = vmul.f32 %v5296, %v5614
        %v5679 = vmul.f32 %v5298, %v5615
        %v5680 = vmul.f32 %v5300, %v5616
        %v5681 = vmul.f32 %v5302, %v5617
        %v5682 = vmul.f32 %v5304, %v5618
        %v5683 = vmul.f32 %v5306, %v5619
        %v5684 = vmul.f32 %v5308, %v5620
        %v5685 = vmul.f32 %v5310, %v5621
        %v5686 = vmul.f32 %v5312, %v5622
        %v5687 = vmul.f32 %v5314, %v5623
        %v5688 = vmul.f32 %v5316, %v5624
        %v5689 = vmul.f32 %v5318, %v5625
        %v5690 = vmul.f32 %v5320, %v5626
        %v5691 = vmul.f32 %v5322, %v5627
        %v5692 = vmul.f32 %v5324, %v5628
        %v5693 = vmul.f32 %v5326, %v5629
        %v5694 = vmul.f32 %v5328, %v5630
        %v5695 = vmul.f32 %v5330, %v5631
        %v5696 = vmul.f32 %v5332, %v5632
        %v5697 = vmul.f32 %v5334, %v5633
        %v5698 = vmul.f32 %v5336, %v5634
        %v5699 = vmul.f32 %v5338, %v5635
        %v5700 = vmul.f32 %v5340, %v5636
        %v5701 = vmul.f32 %v5342, %v5637
        %v5702 = vmul.f32 %v5344, %v5638
        %v5703 = vmul.f32 %v5346, %v5639
        %v5704 = vmul.f32 %v5348, %v5640
        %v5705 = vmul.f32 %v5350, %v5641
        %v5706 = vmul.f32 %v5352, %v5642
        %v5707 = vmul.f32 %v5354, %v5643
        %v5708 = vmul.f32 %v5356, %v5644
        %v5709 = vmul.f32 %v5358, %v5645
        %v5710 = vmul.f32 %v5360, %v5646
        %v5711 = vmul.f32 %v5362, %v5647
        %v5712 = vmul.f32 %v5364, %v5648
        %v5713 = vmul.f32 %v5366, %v5649
        %v5714 = vmul.f32 %v5368, %v5650
        %v5715 = vmul.f32 %v5370, %v5651
        %v5716 = vmul.f32 %v5372, %v5652
        %v5717 = vmul.f32 %v5374, %v5653
        %v5718 = vmul.f32 %v5376, %v5654
        %v5719 = vmul.f32 %v5378, %v5655
        %v5720 = vmul.f32 %v5380, %v5656
        %v5721 = vmul.f32 %v5382, %v5657
        %v5722 = vmul.f32 %v5384, %v5658
        %v5723 = vmul.f32 %v5386, %v5659
        %v5724 = vmul.f32 %v5388, %v5660
        %v5725 = vmul.f32 %v5390, %v5661
        %v5726 = vmul.f32 %v5392, %v5662
        %v5727 = vmul.f32 %v5394, %v5663
        %v5728 = vmul.f32 %v5396, %v5664
        %v5729 = vmul.f32 %v5398, %v5665
        %v5730 = vmul.f32 %v5400, %v5666
        %v5731 = vmul.f32 %v5402, %v5667
        %v5732 = vmul.f32 %v5404, %v5668
        %v5733 = vmul.f32 %v5406, %v5669
        %v5734 = vmul.f32 %v5408, %v5670
        %v5735 = vmul.f32 %v5410, %v5671
        %v5736 = vmul.f32 %v5412, %v5672
        %v5737 = vmul.f32 %v5414, %v5673
        %v5738 = vmul.f32 %v5416, %v5674
        %v5739 = vmul.f32 %v5418, %v5675
        %v5740 = vmul.f32 %v5420, %v5676
        %v5741 = vpack.c.bf16 %v5678, %v5677
        %v5742 = vpack.c.bf16 %v5680, %v5679
        %v5743 = vpack.c.bf16 %v5682, %v5681
        %v5744 = vpack.c.bf16 %v5684, %v5683
        %v5745 = vpack.c.bf16 %v5686, %v5685
        %v5746 = vpack.c.bf16 %v5688, %v5687
        %v5747 = vpack.c.bf16 %v5690, %v5689
        %v5748 = vpack.c.bf16 %v5692, %v5691
        %v5749 = vpack.c.bf16 %v5694, %v5693
        %v5750 = vpack.c.bf16 %v5696, %v5695
        %v5751 = vpack.c.bf16 %v5698, %v5697
        %v5752 = vpack.c.bf16 %v5700, %v5699
        %v5753 = vpack.c.bf16 %v5702, %v5701
        %v5754 = vpack.c.bf16 %v5704, %v5703
        %v5755 = vpack.c.bf16 %v5706, %v5705
        %v5756 = vpack.c.bf16 %v5708, %v5707
        %v5757 = vpack.c.bf16 %v5710, %v5709
        %v5758 = vpack.c.bf16 %v5712, %v5711
        %v5759 = vpack.c.bf16 %v5714, %v5713
        %v5760 = vpack.c.bf16 %v5716, %v5715
        %v5761 = vpack.c.bf16 %v5718, %v5717
        %v5762 = vpack.c.bf16 %v5720, %v5719
        %v5763 = vpack.c.bf16 %v5722, %v5721
        %v5764 = vpack.c.bf16 %v5724, %v5723
        %v5765 = vpack.c.bf16 %v5726, %v5725
        %v5766 = vpack.c.bf16 %v5728, %v5727
        %v5767 = vpack.c.bf16 %v5730, %v5729
        %v5768 = vpack.c.bf16 %v5732, %v5731
        %v5769 = vpack.c.bf16 %v5734, %v5733
        %v5770 = vpack.c.bf16 %v5736, %v5735
        %v5771 = vpack.c.bf16 %v5738, %v5737
        %v5772 = vpack.c.bf16 %v5740, %v5739
        %v5773 = vpack.c.bf16 %v4303, %v4301
        %v5774 = vpack.c.bf16 %v4304, %v4302
        %v5775 = vpack.c.bf16 %v4307, %v4305
        %v5776 = vpack.c.bf16 %v4308, %v4306
        %v5777 = vpack.c.bf16 %v4311, %v4309
        %v5778 = vpack.c.bf16 %v4312, %v4310
        %v5779 = vpack.c.bf16 %v4315, %v4313
        %v5780 = vpack.c.bf16 %v4316, %v4314
        %v5782 = vsel %vm2888, %v5741, 0
        %v5785 = vsel %vm2888, %v5742, 0
        %v5788 = vsel %vm2888, %v5743, 0
        %v5791 = vsel %vm2888, %v5744, 0
        %v5794 = vsel %vm2888, %v5745, 0
        %v5797 = vsel %vm2888, %v5746, 0
        %v5800 = vsel %vm2888, %v5747, 0
        %v5803 = vsel %vm2888, %v5748, 0
        %v5806 = vsel %vm2888, %v5749, 0
        %v5809 = vsel %vm2888, %v5750, 0
        %v5812 = vsel %vm2888, %v5751, 0
        %v5815 = vsel %vm2888, %v5752, 0
        %v5818 = vsel %vm2888, %v5753, 0
        %v5821 = vsel %vm2888, %v5754, 0
        %v5824 = vsel %vm2888, %v5755, 0
        %v5827 = vsel %vm2888, %v5756, 0
        %v5830 = vsel %vm2888, %v5757, 0
        %v5833 = vsel %vm2888, %v5758, 0
        %v5836 = vsel %vm2888, %v5759, 0
        %v5839 = vsel %vm2888, %v5760, 0
        %v5842 = vsel %vm2888, %v5761, 0
        %v5845 = vsel %vm2888, %v5762, 0
        %v5848 = vsel %vm2888, %v5763, 0
        %v5851 = vsel %vm2888, %v5764, 0
        %v5854 = vsel %vm2888, %v5765, 0
        %v5857 = vsel %vm2888, %v5766, 0
        %v5860 = vsel %vm2888, %v5767, 0
        %v5863 = vsel %vm2888, %v5768, 0
        %v5866 = vsel %vm2888, %v5769, 0
        %v5869 = vsel %vm2888, %v5770, 0
        %v5872 = vsel %vm2888, %v5771, 0
        %v5875 = vsel %vm2888, %v5772, 0
        %5877 = vmatprep.subr.bf16.mxu0 0
        %5878 = vmatpush1.bf16.msra.mxu0 0
        %5879 = vmatprep.subr.bf16.mxu0 0
        %5880 = vmatpush1.bf16.msra.mxu0 0
        %5881 = vmatprep.subr.bf16.mxu0 0
        %5882 = vmatpush1.bf16.msra.mxu0 0
        %5883 = vmatprep.subr.bf16.mxu0 0
        %5884 = vmatpush1.bf16.msra.mxu0 0
        %5885 = vmatprep.subr.bf16.mxu0 %v5780
        %5886 = vmatpush1.bf16.msra.mxu0 %v5779
        %5887 = vmatprep.subr.bf16.mxu0 %v5778
        %5888 = vmatpush1.bf16.msra.mxu0 %v5777
        %5889 = vmatprep.subr.bf16.mxu0 %v5776
        %5890 = vmatpush1.bf16.msra.mxu0 %v5775
        %5891 = vmatprep.subr.bf16.mxu0 %v5774
        %5892 = vmatpush1.bf16.msra.mxu0 %v5773
        %5893 = vmatprep.subr.bf16.mxu0 0
        %5894 = vmatpush2.bf16.msra.mxu0 0
        %5895 = vmatprep.subr.bf16.mxu0 0
        %5896 = vmatpush2.bf16.msra.mxu0 0
        %5897 = vmatprep.subr.bf16.mxu0 0
        %5898 = vmatpush2.bf16.msra.mxu0 0
        %5899 = vmatprep.subr.bf16.mxu0 0
        %5900 = vmatpush2.bf16.msra.mxu0 0
        %5901 = vmatprep.subr.bf16.mxu0 0
        %5902 = vmatpush2.bf16.msra.mxu0 0
        %5903 = vmatprep.subr.bf16.mxu0 0
        %5904 = vmatpush2.bf16.msra.mxu0 0
        %5905 = vmatprep.subr.bf16.mxu0 0
        %5906 = vmatpush2.bf16.msra.mxu0 0
        %5907 = vmatprep.subr.bf16.mxu0 0
        %5908 = vmatpush2.bf16.msra.mxu0 0
        %5909 = vmatprep.mubr.bf16.mxu0 0
        %5910 = vmatmul.mubr.bf16.gmra.mxu0 %v5782
        %v5911 = vpop.f32.mrf.mxu0
        %v5912 = vadd.f32 0.0, %v5911
        %v5913 = vpop.f32.mrf.mxu0
        %v5914 = vadd.f32 0.0, %v5913
        %v5915 = vpop.f32.mrf.mxu0
        %v5916 = vadd.f32 0.0, %v5915
        %v5917 = vpop.f32.mrf.mxu0
        %v5918 = vadd.f32 0.0, %v5917
        %5919 = vmatprep.mubr.bf16.mxu0 0
        %5920 = vmatmul.mubr.bf16.gmra.mxu0 %v5785
        %v5921 = vpop.f32.mrf.mxu0
        %v5922 = vadd.f32 0.0, %v5921
        %v5923 = vpop.f32.mrf.mxu0
        %v5924 = vadd.f32 0.0, %v5923
        %v5925 = vpop.f32.mrf.mxu0
        %v5926 = vadd.f32 0.0, %v5925
        %v5927 = vpop.f32.mrf.mxu0
        %v5928 = vadd.f32 0.0, %v5927
        %5929 = vmatprep.mubr.bf16.mxu0 0
        %5930 = vmatmul.mubr.bf16.gmra.mxu0 %v5788
        %v5931 = vpop.f32.mrf.mxu0
        %v5932 = vadd.f32 0.0, %v5931
        %v5933 = vpop.f32.mrf.mxu0
        %v5934 = vadd.f32 0.0, %v5933
        %v5935 = vpop.f32.mrf.mxu0
        %v5936 = vadd.f32 0.0, %v5935
        %v5937 = vpop.f32.mrf.mxu0
        %v5938 = vadd.f32 0.0, %v5937
        %5939 = vmatprep.mubr.bf16.mxu0 0
        %5940 = vmatmul.mubr.bf16.gmra.mxu0 %v5791
        %v5941 = vpop.f32.mrf.mxu0
        %v5942 = vadd.f32 0.0, %v5941
        %v5943 = vpop.f32.mrf.mxu0
        %v5944 = vadd.f32 0.0, %v5943
        %v5945 = vpop.f32.mrf.mxu0
        %v5946 = vadd.f32 0.0, %v5945
        %v5947 = vpop.f32.mrf.mxu0
        %v5948 = vadd.f32 0.0, %v5947
        %5949 = vmatprep.mubr.bf16.mxu0 0
        %5950 = vmatmul.mubr.bf16.gmra.mxu0 %v5794
        %v5951 = vpop.f32.mrf.mxu0
        %v5952 = vadd.f32 0.0, %v5951
        %v5953 = vpop.f32.mrf.mxu0
        %v5954 = vadd.f32 0.0, %v5953
        %v5955 = vpop.f32.mrf.mxu0
        %v5956 = vadd.f32 0.0, %v5955
        %v5957 = vpop.f32.mrf.mxu0
        %v5958 = vadd.f32 0.0, %v5957
        %5959 = vmatprep.mubr.bf16.mxu0 0
        %5960 = vmatmul.mubr.bf16.gmra.mxu0 %v5797
        %v5961 = vpop.f32.mrf.mxu0
        %v5962 = vadd.f32 0.0, %v5961
        %v5963 = vpop.f32.mrf.mxu0
        %v5964 = vadd.f32 0.0, %v5963
        %v5965 = vpop.f32.mrf.mxu0
        %v5966 = vadd.f32 0.0, %v5965
        %v5967 = vpop.f32.mrf.mxu0
        %v5968 = vadd.f32 0.0, %v5967
        %5969 = vmatprep.mubr.bf16.mxu0 0
        %5970 = vmatmul.mubr.bf16.gmra.mxu0 %v5800
        %v5971 = vpop.f32.mrf.mxu0
        %v5972 = vadd.f32 0.0, %v5971
        %v5973 = vpop.f32.mrf.mxu0
        %v5974 = vadd.f32 0.0, %v5973
        %v5975 = vpop.f32.mrf.mxu0
        %v5976 = vadd.f32 0.0, %v5975
        %v5977 = vpop.f32.mrf.mxu0
        %v5978 = vadd.f32 0.0, %v5977
        %5979 = vmatprep.mubr.bf16.mxu0 0
        %5980 = vmatmul.mubr.bf16.gmra.mxu0 %v5803
        %v5981 = vpop.f32.mrf.mxu0
        %v5982 = vadd.f32 0.0, %v5981
        %v5983 = vpop.f32.mrf.mxu0
        %v5984 = vadd.f32 0.0, %v5983
        %v5985 = vpop.f32.mrf.mxu0
        %v5986 = vadd.f32 0.0, %v5985
        %v5987 = vpop.f32.mrf.mxu0
        %v5988 = vadd.f32 0.0, %v5987
        %5989 = vmatprep.mubr.bf16.mxu0 0
        %5990 = vmatmul.mubr.bf16.gmra.mxu0 %v5806
        %v5991 = vpop.f32.mrf.mxu0
        %v5992 = vadd.f32 0.0, %v5991
        %v5993 = vpop.f32.mrf.mxu0
        %v5994 = vadd.f32 0.0, %v5993
        %v5995 = vpop.f32.mrf.mxu0
        %v5996 = vadd.f32 0.0, %v5995
        %v5997 = vpop.f32.mrf.mxu0
        %v5998 = vadd.f32 0.0, %v5997
        %5999 = vmatprep.mubr.bf16.mxu0 0
        %6000 = vmatmul.mubr.bf16.gmra.mxu0 %v5809
        %v6001 = vpop.f32.mrf.mxu0
        %v6002 = vadd.f32 0.0, %v6001
        %v6003 = vpop.f32.mrf.mxu0
        %v6004 = vadd.f32 0.0, %v6003
        %v6005 = vpop.f32.mrf.mxu0
        %v6006 = vadd.f32 0.0, %v6005
        %v6007 = vpop.f32.mrf.mxu0
        %v6008 = vadd.f32 0.0, %v6007
        %6009 = vmatprep.mubr.bf16.mxu0 0
        %6010 = vmatmul.mubr.bf16.gmra.mxu0 %v5812
        %v6011 = vpop.f32.mrf.mxu0
        %v6012 = vadd.f32 0.0, %v6011
        %v6013 = vpop.f32.mrf.mxu0
        %v6014 = vadd.f32 0.0, %v6013
        %v6015 = vpop.f32.mrf.mxu0
        %v6016 = vadd.f32 0.0, %v6015
        %v6017 = vpop.f32.mrf.mxu0
        %v6018 = vadd.f32 0.0, %v6017
        %6019 = vmatprep.mubr.bf16.mxu0 0
        %6020 = vmatmul.mubr.bf16.gmra.mxu0 %v5815
        %v6021 = vpop.f32.mrf.mxu0
        %v6022 = vadd.f32 0.0, %v6021
        %v6023 = vpop.f32.mrf.mxu0
        %v6024 = vadd.f32 0.0, %v6023
        %v6025 = vpop.f32.mrf.mxu0
        %v6026 = vadd.f32 0.0, %v6025
        %v6027 = vpop.f32.mrf.mxu0
        %v6028 = vadd.f32 0.0, %v6027
        %6029 = vmatprep.mubr.bf16.mxu0 0
        %6030 = vmatmul.mubr.bf16.gmra.mxu0 %v5818
        %v6031 = vpop.f32.mrf.mxu0
        %v6032 = vadd.f32 0.0, %v6031
        %v6033 = vpop.f32.mrf.mxu0
        %v6034 = vadd.f32 0.0, %v6033
        %v6035 = vpop.f32.mrf.mxu0
        %v6036 = vadd.f32 0.0, %v6035
        %v6037 = vpop.f32.mrf.mxu0
        %v6038 = vadd.f32 0.0, %v6037
        %6039 = vmatprep.mubr.bf16.mxu0 0
        %6040 = vmatmul.mubr.bf16.gmra.mxu0 %v5821
        %v6041 = vpop.f32.mrf.mxu0
        %v6042 = vadd.f32 0.0, %v6041
        %v6043 = vpop.f32.mrf.mxu0
        %v6044 = vadd.f32 0.0, %v6043
        %v6045 = vpop.f32.mrf.mxu0
        %v6046 = vadd.f32 0.0, %v6045
        %v6047 = vpop.f32.mrf.mxu0
        %v6048 = vadd.f32 0.0, %v6047
        %6049 = vmatprep.mubr.bf16.mxu0 0
        %6050 = vmatmul.mubr.bf16.gmra.mxu0 %v5824
        %v6051 = vpop.f32.mrf.mxu0
        %v6052 = vadd.f32 0.0, %v6051
        %v6053 = vpop.f32.mrf.mxu0
        %v6054 = vadd.f32 0.0, %v6053
        %v6055 = vpop.f32.mrf.mxu0
        %v6056 = vadd.f32 0.0, %v6055
        %v6057 = vpop.f32.mrf.mxu0
        %v6058 = vadd.f32 0.0, %v6057
        %6059 = vmatprep.mubr.bf16.mxu0 0
        %6060 = vmatmul.mubr.bf16.gmra.mxu0 %v5827
        %v6061 = vpop.f32.mrf.mxu0
        %v6062 = vadd.f32 0.0, %v6061
        %v6063 = vpop.f32.mrf.mxu0
        %v6064 = vadd.f32 0.0, %v6063
        %v6065 = vpop.f32.mrf.mxu0
        %v6066 = vadd.f32 0.0, %v6065
        %v6067 = vpop.f32.mrf.mxu0
        %v6068 = vadd.f32 0.0, %v6067
        %6069 = vmatprep.mubr.bf16.mxu0 0
        %6070 = vmatmul.mubr.bf16.gmra.mxu0 %v5830
        %v6071 = vpop.f32.mrf.mxu0
        %v6072 = vadd.f32 0.0, %v6071
        %v6073 = vpop.f32.mrf.mxu0
        %v6074 = vadd.f32 0.0, %v6073
        %v6075 = vpop.f32.mrf.mxu0
        %v6076 = vadd.f32 0.0, %v6075
        %v6077 = vpop.f32.mrf.mxu0
        %v6078 = vadd.f32 0.0, %v6077
        %6079 = vmatprep.mubr.bf16.mxu0 0
        %6080 = vmatmul.mubr.bf16.gmra.mxu0 %v5833
        %v6081 = vpop.f32.mrf.mxu0
        %v6082 = vadd.f32 0.0, %v6081
        %v6083 = vpop.f32.mrf.mxu0
        %v6084 = vadd.f32 0.0, %v6083
        %v6085 = vpop.f32.mrf.mxu0
        %v6086 = vadd.f32 0.0, %v6085
        %v6087 = vpop.f32.mrf.mxu0
        %v6088 = vadd.f32 0.0, %v6087
        %6089 = vmatprep.mubr.bf16.mxu0 0
        %6090 = vmatmul.mubr.bf16.gmra.mxu0 %v5836
        %v6091 = vpop.f32.mrf.mxu0
        %v6092 = vadd.f32 0.0, %v6091
        %v6093 = vpop.f32.mrf.mxu0
        %v6094 = vadd.f32 0.0, %v6093
        %v6095 = vpop.f32.mrf.mxu0
        %v6096 = vadd.f32 0.0, %v6095
        %v6097 = vpop.f32.mrf.mxu0
        %v6098 = vadd.f32 0.0, %v6097
        %6099 = vmatprep.mubr.bf16.mxu0 0
        %6100 = vmatmul.mubr.bf16.gmra.mxu0 %v5839
        %v6101 = vpop.f32.mrf.mxu0
        %v6102 = vadd.f32 0.0, %v6101
        %v6103 = vpop.f32.mrf.mxu0
        %v6104 = vadd.f32 0.0, %v6103
        %v6105 = vpop.f32.mrf.mxu0
        %v6106 = vadd.f32 0.0, %v6105
        %v6107 = vpop.f32.mrf.mxu0
        %v6108 = vadd.f32 0.0, %v6107
        %6109 = vmatprep.mubr.bf16.mxu0 0
        %6110 = vmatmul.mubr.bf16.gmra.mxu0 %v5842
        %v6111 = vpop.f32.mrf.mxu0
        %v6112 = vadd.f32 0.0, %v6111
        %v6113 = vpop.f32.mrf.mxu0
        %v6114 = vadd.f32 0.0, %v6113
        %v6115 = vpop.f32.mrf.mxu0
        %v6116 = vadd.f32 0.0, %v6115
        %v6117 = vpop.f32.mrf.mxu0
        %v6118 = vadd.f32 0.0, %v6117
        %6119 = vmatprep.mubr.bf16.mxu0 0
        %6120 = vmatmul.mubr.bf16.gmra.mxu0 %v5845
        %v6121 = vpop.f32.mrf.mxu0
        %v6122 = vadd.f32 0.0, %v6121
        %v6123 = vpop.f32.mrf.mxu0
        %v6124 = vadd.f32 0.0, %v6123
        %v6125 = vpop.f32.mrf.mxu0
        %v6126 = vadd.f32 0.0, %v6125
        %v6127 = vpop.f32.mrf.mxu0
        %v6128 = vadd.f32 0.0, %v6127
        %6129 = vmatprep.mubr.bf16.mxu0 0
        %6130 = vmatmul.mubr.bf16.gmra.mxu0 %v5848
        %v6131 = vpop.f32.mrf.mxu0
        %v6132 = vadd.f32 0.0, %v6131
        %v6133 = vpop.f32.mrf.mxu0
        %v6134 = vadd.f32 0.0, %v6133
        %v6135 = vpop.f32.mrf.mxu0
        %v6136 = vadd.f32 0.0, %v6135
        %v6137 = vpop.f32.mrf.mxu0
        %v6138 = vadd.f32 0.0, %v6137
        %6139 = vmatprep.mubr.bf16.mxu0 0
        %6140 = vmatmul.mubr.bf16.gmra.mxu0 %v5851
        %v6141 = vpop.f32.mrf.mxu0
        %v6142 = vadd.f32 0.0, %v6141
        %v6143 = vpop.f32.mrf.mxu0
        %v6144 = vadd.f32 0.0, %v6143
        %v6145 = vpop.f32.mrf.mxu0
        %v6146 = vadd.f32 0.0, %v6145
        %v6147 = vpop.f32.mrf.mxu0
        %v6148 = vadd.f32 0.0, %v6147
        %6149 = vmatprep.mubr.bf16.mxu0 0
        %6150 = vmatmul.mubr.bf16.gmra.mxu0 %v5854
        %v6151 = vpop.f32.mrf.mxu0
        %v6152 = vadd.f32 0.0, %v6151
        %v6153 = vpop.f32.mrf.mxu0
        %v6154 = vadd.f32 0.0, %v6153
        %v6155 = vpop.f32.mrf.mxu0
        %v6156 = vadd.f32 0.0, %v6155
        %v6157 = vpop.f32.mrf.mxu0
        %v6158 = vadd.f32 0.0, %v6157
        %6159 = vmatprep.mubr.bf16.mxu0 0
        %6160 = vmatmul.mubr.bf16.gmra.mxu0 %v5857
        %v6161 = vpop.f32.mrf.mxu0
        %v6162 = vadd.f32 0.0, %v6161
        %v6163 = vpop.f32.mrf.mxu0
        %v6164 = vadd.f32 0.0, %v6163
        %v6165 = vpop.f32.mrf.mxu0
        %v6166 = vadd.f32 0.0, %v6165
        %v6167 = vpop.f32.mrf.mxu0
        %v6168 = vadd.f32 0.0, %v6167
        %6169 = vmatprep.mubr.bf16.mxu0 0
        %6170 = vmatmul.mubr.bf16.gmra.mxu0 %v5860
        %v6171 = vpop.f32.mrf.mxu0
        %v6172 = vadd.f32 0.0, %v6171
        %v6173 = vpop.f32.mrf.mxu0
        %v6174 = vadd.f32 0.0, %v6173
        %v6175 = vpop.f32.mrf.mxu0
        %v6176 = vadd.f32 0.0, %v6175
        %v6177 = vpop.f32.mrf.mxu0
        %v6178 = vadd.f32 0.0, %v6177
        %6179 = vmatprep.mubr.bf16.mxu0 0
        %6180 = vmatmul.mubr.bf16.gmra.mxu0 %v5863
        %v6181 = vpop.f32.mrf.mxu0
        %v6182 = vadd.f32 0.0, %v6181
        %v6183 = vpop.f32.mrf.mxu0
        %v6184 = vadd.f32 0.0, %v6183
        %v6185 = vpop.f32.mrf.mxu0
        %v6186 = vadd.f32 0.0, %v6185
        %v6187 = vpop.f32.mrf.mxu0
        %v6188 = vadd.f32 0.0, %v6187
        %6189 = vmatprep.mubr.bf16.mxu0 0
        %6190 = vmatmul.mubr.bf16.gmra.mxu0 %v5866
        %v6191 = vpop.f32.mrf.mxu0
        %v6192 = vadd.f32 0.0, %v6191
        %v6193 = vpop.f32.mrf.mxu0
        %v6194 = vadd.f32 0.0, %v6193
        %v6195 = vpop.f32.mrf.mxu0
        %v6196 = vadd.f32 0.0, %v6195
        %v6197 = vpop.f32.mrf.mxu0
        %v6198 = vadd.f32 0.0, %v6197
        %6199 = vmatprep.mubr.bf16.mxu0 0
        %6200 = vmatmul.mubr.bf16.gmra.mxu0 %v5869
        %v6201 = vpop.f32.mrf.mxu0
        %v6202 = vadd.f32 0.0, %v6201
        %v6203 = vpop.f32.mrf.mxu0
        %v6204 = vadd.f32 0.0, %v6203
        %v6205 = vpop.f32.mrf.mxu0
        %v6206 = vadd.f32 0.0, %v6205
        %v6207 = vpop.f32.mrf.mxu0
        %v6208 = vadd.f32 0.0, %v6207
        %6209 = vmatprep.mubr.bf16.mxu0 0
        %6210 = vmatmul.mubr.bf16.gmra.mxu0 %v5872
        %v6211 = vpop.f32.mrf.mxu0
        %v6212 = vadd.f32 0.0, %v6211
        %v6213 = vpop.f32.mrf.mxu0
        %v6214 = vadd.f32 0.0, %v6213
        %v6215 = vpop.f32.mrf.mxu0
        %v6216 = vadd.f32 0.0, %v6215
        %v6217 = vpop.f32.mrf.mxu0
        %v6218 = vadd.f32 0.0, %v6217
        %6219 = vmatprep.mubr.bf16.mxu0 0
        %6220 = vmatmul.mubr.bf16.gmra.mxu0 %v5875
        %v6221 = vpop.f32.mrf.mxu0
        %v6222 = vadd.f32 0.0, %v6221
        %v6223 = vpop.f32.mrf.mxu0
        %v6224 = vadd.f32 0.0, %v6223
        %v6225 = vpop.f32.mrf.mxu0
        %v6226 = vadd.f32 0.0, %v6225
        %v6227 = vpop.f32.mrf.mxu0
        %v6228 = vadd.f32 0.0, %v6227
        %6229 = vdwg.mxu0
        %v6230 = vmul.f32 %v5912, %v4322
        %v6231 = vmul.f32 %v5914, %v4326
        %v6232 = vmul.f32 %v5916, %v4322
        %v6233 = vmul.f32 %v5918, %v4326
        %v6234 = vmul.f32 %v5922, %v4322
        %v6235 = vmul.f32 %v5924, %v4326
        %v6236 = vmul.f32 %v5926, %v4322
        %v6237 = vmul.f32 %v5928, %v4326
        %v6238 = vmul.f32 %v5932, %v4322
        %v6239 = vmul.f32 %v5934, %v4326
        %v6240 = vmul.f32 %v5936, %v4322
        %v6241 = vmul.f32 %v5938, %v4326
        %v6242 = vmul.f32 %v5942, %v4322
        %v6243 = vmul.f32 %v5944, %v4326
        %v6244 = vmul.f32 %v5946, %v4322
        %v6245 = vmul.f32 %v5948, %v4326
        %v6246 = vmul.f32 %v5952, %v4359
        %v6247 = vmul.f32 %v5954, %v4363
        %v6248 = vmul.f32 %v5956, %v4359
        %v6249 = vmul.f32 %v5958, %v4363
        %v6250 = vmul.f32 %v5962, %v4359
        %v6251 = vmul.f32 %v5964, %v4363
        %v6252 = vmul.f32 %v5966, %v4359
        %v6253 = vmul.f32 %v5968, %v4363
        %v6254 = vmul.f32 %v5972, %v4359
        %v6255 = vmul.f32 %v5974, %v4363
        %v6256 = vmul.f32 %v5976, %v4359
        %v6257 = vmul.f32 %v5978, %v4363
        %v6258 = vmul.f32 %v5982, %v4359
        %v6259 = vmul.f32 %v5984, %v4363
        %v6260 = vmul.f32 %v5986, %v4359
        %v6261 = vmul.f32 %v5988, %v4363
        %v6262 = vadd.f32 %v6230, %v6246
        %v6263 = vadd.f32 %v6231, %v6247
        %v6264 = vadd.f32 %v6232, %v6248
        %v6265 = vadd.f32 %v6233, %v6249
        %v6266 = vadd.f32 %v6234, %v6250
        %v6267 = vadd.f32 %v6235, %v6251
        %v6268 = vadd.f32 %v6236, %v6252
        %v6269 = vadd.f32 %v6237, %v6253
        %v6270 = vadd.f32 %v6238, %v6254
        %v6271 = vadd.f32 %v6239, %v6255
        %v6272 = vadd.f32 %v6240, %v6256
        %v6273 = vadd.f32 %v6241, %v6257
        %v6274 = vadd.f32 %v6242, %v6258
        %v6275 = vadd.f32 %v6243, %v6259
        %v6276 = vadd.f32 %v6244, %v6260
        %v6277 = vadd.f32 %v6245, %v6261
        %v6278 = vmul.f32 %v5992, %v4396
        %v6279 = vmul.f32 %v5994, %v4400
        %v6280 = vmul.f32 %v5996, %v4396
        %v6281 = vmul.f32 %v5998, %v4400
        %v6282 = vmul.f32 %v6002, %v4396
        %v6283 = vmul.f32 %v6004, %v4400
        %v6284 = vmul.f32 %v6006, %v4396
        %v6285 = vmul.f32 %v6008, %v4400
        %v6286 = vmul.f32 %v6012, %v4396
        %v6287 = vmul.f32 %v6014, %v4400
        %v6288 = vmul.f32 %v6016, %v4396
        %v6289 = vmul.f32 %v6018, %v4400
        %v6290 = vmul.f32 %v6022, %v4396
        %v6291 = vmul.f32 %v6024, %v4400
        %v6292 = vmul.f32 %v6026, %v4396
        %v6293 = vmul.f32 %v6028, %v4400
        %v6294 = vadd.f32 %v6262, %v6278
        %v6295 = vadd.f32 %v6263, %v6279
        %v6296 = vadd.f32 %v6264, %v6280
        %v6297 = vadd.f32 %v6265, %v6281
        %v6298 = vadd.f32 %v6266, %v6282
        %v6299 = vadd.f32 %v6267, %v6283
        %v6300 = vadd.f32 %v6268, %v6284
        %v6301 = vadd.f32 %v6269, %v6285
        %v6302 = vadd.f32 %v6270, %v6286
        %v6303 = vadd.f32 %v6271, %v6287
        %v6304 = vadd.f32 %v6272, %v6288
        %v6305 = vadd.f32 %v6273, %v6289
        %v6306 = vadd.f32 %v6274, %v6290
        %v6307 = vadd.f32 %v6275, %v6291
        %v6308 = vadd.f32 %v6276, %v6292
        %v6309 = vadd.f32 %v6277, %v6293
        %v6310 = vmul.f32 %v6032, %v4433
        %v6311 = vmul.f32 %v6034, %v4437
        %v6312 = vmul.f32 %v6036, %v4433
        %v6313 = vmul.f32 %v6038, %v4437
        %v6314 = vmul.f32 %v6042, %v4433
        %v6315 = vmul.f32 %v6044, %v4437
        %v6316 = vmul.f32 %v6046, %v4433
        %v6317 = vmul.f32 %v6048, %v4437
        %v6318 = vmul.f32 %v6052, %v4433
        %v6319 = vmul.f32 %v6054, %v4437
        %v6320 = vmul.f32 %v6056, %v4433
        %v6321 = vmul.f32 %v6058, %v4437
        %v6322 = vmul.f32 %v6062, %v4433
        %v6323 = vmul.f32 %v6064, %v4437
        %v6324 = vmul.f32 %v6066, %v4433
        %v6325 = vmul.f32 %v6068, %v4437
        %v6326 = vadd.f32 %v6294, %v6310
        %v6327 = vadd.f32 %v6295, %v6311
        %v6328 = vadd.f32 %v6296, %v6312
        %v6329 = vadd.f32 %v6297, %v6313
        %v6330 = vadd.f32 %v6298, %v6314
        %v6331 = vadd.f32 %v6299, %v6315
        %v6332 = vadd.f32 %v6300, %v6316
        %v6333 = vadd.f32 %v6301, %v6317
        %v6334 = vadd.f32 %v6302, %v6318
        %v6335 = vadd.f32 %v6303, %v6319
        %v6336 = vadd.f32 %v6304, %v6320
        %v6337 = vadd.f32 %v6305, %v6321
        %v6338 = vadd.f32 %v6306, %v6322
        %v6339 = vadd.f32 %v6307, %v6323
        %v6340 = vadd.f32 %v6308, %v6324
        %v6341 = vadd.f32 %v6309, %v6325
        %v6342 = vmul.f32 %v6072, %v4470
        %v6343 = vmul.f32 %v6074, %v4474
        %v6344 = vmul.f32 %v6076, %v4470
        %v6345 = vmul.f32 %v6078, %v4474
        %v6346 = vmul.f32 %v6082, %v4470
        %v6347 = vmul.f32 %v6084, %v4474
        %v6348 = vmul.f32 %v6086, %v4470
        %v6349 = vmul.f32 %v6088, %v4474
        %v6350 = vmul.f32 %v6092, %v4470
        %v6351 = vmul.f32 %v6094, %v4474
        %v6352 = vmul.f32 %v6096, %v4470
        %v6353 = vmul.f32 %v6098, %v4474
        %v6354 = vmul.f32 %v6102, %v4470
        %v6355 = vmul.f32 %v6104, %v4474
        %v6356 = vmul.f32 %v6106, %v4470
        %v6357 = vmul.f32 %v6108, %v4474
        %v6358 = vadd.f32 %v6326, %v6342
        %v6359 = vadd.f32 %v6327, %v6343
        %v6360 = vadd.f32 %v6328, %v6344
        %v6361 = vadd.f32 %v6329, %v6345
        %v6362 = vadd.f32 %v6330, %v6346
        %v6363 = vadd.f32 %v6331, %v6347
        %v6364 = vadd.f32 %v6332, %v6348
        %v6365 = vadd.f32 %v6333, %v6349
        %v6366 = vadd.f32 %v6334, %v6350
        %v6367 = vadd.f32 %v6335, %v6351
        %v6368 = vadd.f32 %v6336, %v6352
        %v6369 = vadd.f32 %v6337, %v6353
        %v6370 = vadd.f32 %v6338, %v6354
        %v6371 = vadd.f32 %v6339, %v6355
        %v6372 = vadd.f32 %v6340, %v6356
        %v6373 = vadd.f32 %v6341, %v6357
        %v6374 = vmul.f32 %v6112, %v4507
        %v6375 = vmul.f32 %v6114, %v4511
        %v6376 = vmul.f32 %v6116, %v4507
        %v6377 = vmul.f32 %v6118, %v4511
        %v6378 = vmul.f32 %v6122, %v4507
        %v6379 = vmul.f32 %v6124, %v4511
        %v6380 = vmul.f32 %v6126, %v4507
        %v6381 = vmul.f32 %v6128, %v4511
        %v6382 = vmul.f32 %v6132, %v4507
        %v6383 = vmul.f32 %v6134, %v4511
        %v6384 = vmul.f32 %v6136, %v4507
        %v6385 = vmul.f32 %v6138, %v4511
        %v6386 = vmul.f32 %v6142, %v4507
        %v6387 = vmul.f32 %v6144, %v4511
        %v6388 = vmul.f32 %v6146, %v4507
        %v6389 = vmul.f32 %v6148, %v4511
        %v6390 = vadd.f32 %v6358, %v6374
        %v6391 = vadd.f32 %v6359, %v6375
        %v6392 = vadd.f32 %v6360, %v6376
        %v6393 = vadd.f32 %v6361, %v6377
        %v6394 = vadd.f32 %v6362, %v6378
        %v6395 = vadd.f32 %v6363, %v6379
        %v6396 = vadd.f32 %v6364, %v6380
        %v6397 = vadd.f32 %v6365, %v6381
        %v6398 = vadd.f32 %v6366, %v6382
        %v6399 = vadd.f32 %v6367, %v6383
        %v6400 = vadd.f32 %v6368, %v6384
        %v6401 = vadd.f32 %v6369, %v6385
        %v6402 = vadd.f32 %v6370, %v6386
        %v6403 = vadd.f32 %v6371, %v6387
        %v6404 = vadd.f32 %v6372, %v6388
        %v6405 = vadd.f32 %v6373, %v6389
        %v6406 = vmul.f32 %v6152, %v4544
        %v6407 = vmul.f32 %v6154, %v4548
        %v6408 = vmul.f32 %v6156, %v4544
        %v6409 = vmul.f32 %v6158, %v4548
        %v6410 = vmul.f32 %v6162, %v4544
        %v6411 = vmul.f32 %v6164, %v4548
        %v6412 = vmul.f32 %v6166, %v4544
        %v6413 = vmul.f32 %v6168, %v4548
        %v6414 = vmul.f32 %v6172, %v4544
        %v6415 = vmul.f32 %v6174, %v4548
        %v6416 = vmul.f32 %v6176, %v4544
        %v6417 = vmul.f32 %v6178, %v4548
        %v6418 = vmul.f32 %v6182, %v4544
        %v6419 = vmul.f32 %v6184, %v4548
        %v6420 = vmul.f32 %v6186, %v4544
        %v6421 = vmul.f32 %v6188, %v4548
        %v6422 = vadd.f32 %v6390, %v6406
        %v6423 = vadd.f32 %v6391, %v6407
        %v6424 = vadd.f32 %v6392, %v6408
        %v6425 = vadd.f32 %v6393, %v6409
        %v6426 = vadd.f32 %v6394, %v6410
        %v6427 = vadd.f32 %v6395, %v6411
        %v6428 = vadd.f32 %v6396, %v6412
        %v6429 = vadd.f32 %v6397, %v6413
        %v6430 = vadd.f32 %v6398, %v6414
        %v6431 = vadd.f32 %v6399, %v6415
        %v6432 = vadd.f32 %v6400, %v6416
        %v6433 = vadd.f32 %v6401, %v6417
        %v6434 = vadd.f32 %v6402, %v6418
        %v6435 = vadd.f32 %v6403, %v6419
        %v6436 = vadd.f32 %v6404, %v6420
        %v6437 = vadd.f32 %v6405, %v6421
        %v6438 = vmul.f32 %v6192, %v4581
        %v6439 = vmul.f32 %v6194, %v4585
        %v6440 = vmul.f32 %v6196, %v4581
        %v6441 = vmul.f32 %v6198, %v4585
        %v6442 = vmul.f32 %v6202, %v4581
        %v6443 = vmul.f32 %v6204, %v4585
        %v6444 = vmul.f32 %v6206, %v4581
        %v6445 = vmul.f32 %v6208, %v4585
        %v6446 = vmul.f32 %v6212, %v4581
        %v6447 = vmul.f32 %v6214, %v4585
        %v6448 = vmul.f32 %v6216, %v4581
        %v6449 = vmul.f32 %v6218, %v4585
        %v6450 = vmul.f32 %v6222, %v4581
        %v6451 = vmul.f32 %v6224, %v4585
        %v6452 = vmul.f32 %v6226, %v4581
        %v6453 = vmul.f32 %v6228, %v4585
        %v6454 = vadd.f32 %v6422, %v6438
        %v6455 = vadd.f32 %v6423, %v6439
        %v6456 = vadd.f32 %v6424, %v6440
        %v6457 = vadd.f32 %v6425, %v6441
        %v6458 = vadd.f32 %v6426, %v6442
        %v6459 = vadd.f32 %v6427, %v6443
        %v6460 = vadd.f32 %v6428, %v6444
        %v6461 = vadd.f32 %v6429, %v6445
        %v6462 = vadd.f32 %v6430, %v6446
        %v6463 = vadd.f32 %v6431, %v6447
        %v6464 = vadd.f32 %v6432, %v6448
        %v6465 = vadd.f32 %v6433, %v6449
        %v6466 = vadd.f32 %v6434, %v6450
        %v6467 = vadd.f32 %v6435, %v6451
        %v6468 = vadd.f32 %v6436, %v6452
        %v6469 = vadd.f32 %v6437, %v6453
        %v6470 = vld [vmem:[%s10] sm:$0xff]
        %v6471 = vld [vmem:[%s10 + $0x8] sm:$0xff]
        %v6472 = vld [vmem:[%s10 + $0x10] sm:$0xff]
        %v6473 = vld [vmem:[%s10 + $0x18] sm:$0xff]
        %v6474 = vld [vmem:[%s10 + $0x20] sm:$0xff]
        %v6475 = vld [vmem:[%s10 + $0x28] sm:$0xff]
        %v6476 = vld [vmem:[%s10 + $0x30] sm:$0xff]
        %v6477 = vld [vmem:[%s10 + $0x38] sm:$0xff]
        %v6478 = vld [vmem:[%s10 + $0x40] sm:$0xff]
        %v6479 = vld [vmem:[%s10 + $0x48] sm:$0xff]
        %v6480 = vld [vmem:[%s10 + $0x50] sm:$0xff]
        %v6481 = vld [vmem:[%s10 + $0x58] sm:$0xff]
        %v6482 = vld [vmem:[%s10 + $0x60] sm:$0xff]
        %v6483 = vld [vmem:[%s10 + $0x68] sm:$0xff]
        %v6484 = vld [vmem:[%s10 + $0x70] sm:$0xff]
        %v6485 = vld [vmem:[%s10 + $0x78] sm:$0xff]
        %v6486 = vld [vmem:[%s10 + $0x80] sm:$0xff]
        %v6487 = vld [vmem:[%s10 + $0x88] sm:$0xff]
        %v6488 = vld [vmem:[%s10 + $0x90] sm:$0xff]
        %v6489 = vld [vmem:[%s10 + $0x98] sm:$0xff]
        %v6490 = vld [vmem:[%s10 + $0xa0] sm:$0xff]
        %v6491 = vld [vmem:[%s10 + $0xa8] sm:$0xff]
        %v6492 = vld [vmem:[%s10 + $0xb0] sm:$0xff]
        %v6493 = vld [vmem:[%s10 + $0xb8] sm:$0xff]
        %v6494 = vld [vmem:[%s10 + $0xc0] sm:$0xff]
        %v6495 = vld [vmem:[%s10 + $0xc8] sm:$0xff]
        %v6496 = vld [vmem:[%s10 + $0xd0] sm:$0xff]
        %v6497 = vld [vmem:[%s10 + $0xd8] sm:$0xff]
        %v6498 = vld [vmem:[%s10 + $0xe0] sm:$0xff]
        %v6499 = vld [vmem:[%s10 + $0xe8] sm:$0xff]
        %v6500 = vld [vmem:[%s10 + $0xf0] sm:$0xff]
        %v6501 = vld [vmem:[%s10 + $0xf8] sm:$0xff]
        %v6502 = vpack.c.bf16 %v6456, %v6454
        %v6503 = vpack.c.bf16 %v6457, %v6455
        %v6504 = vpack.c.bf16 %v6460, %v6458
        %v6505 = vpack.c.bf16 %v6461, %v6459
        %v6506 = vpack.c.bf16 %v6464, %v6462
        %v6507 = vpack.c.bf16 %v6465, %v6463
        %v6508 = vpack.c.bf16 %v6468, %v6466
        %v6509 = vpack.c.bf16 %v6469, %v6467
        %s6510 = scalar_lea.vmem %s17, 21
        %v6511 = vld [vmem:[%s6510] ss:$8 sm:$0x3]
        %v6513 = vlaneseq
        %v6514 = vshrl.u32 %v6513, 7
        %v6515 = vsub.s32 0, %v6514
        %v6516 = vrot.slane %v6511, %v6515
        %v6517 = vlaneseq
        %v6518 = vshrl.u32 %v6517, 7
        %v6519 = vsub.s32 1, %v6518
        %v6520 = vrot.slane %v6511, %v6519
        %v6555 = vunpack.c.l.b16 %v6470
        %v6556 = vunpack.c.h.b16 %v6470
        %v6557 = vunpack.c.l.b16 %v6471
        %v6558 = vunpack.c.h.b16 %v6471
        %v6559 = vunpack.c.l.b16 %v6472
        %v6560 = vunpack.c.h.b16 %v6472
        %v6561 = vunpack.c.l.b16 %v6473
        %v6562 = vunpack.c.h.b16 %v6473
        %v6563 = vunpack.c.l.b16 %v6474
        %v6564 = vunpack.c.h.b16 %v6474
        %v6565 = vunpack.c.l.b16 %v6475
        %v6566 = vunpack.c.h.b16 %v6475
        %v6567 = vunpack.c.l.b16 %v6476
        %v6568 = vunpack.c.h.b16 %v6476
        %v6569 = vunpack.c.l.b16 %v6477
        %v6570 = vunpack.c.h.b16 %v6477
        %v6571 = vunpack.c.l.b16 %v6478
        %v6572 = vunpack.c.h.b16 %v6478
        %v6573 = vunpack.c.l.b16 %v6479
        %v6574 = vunpack.c.h.b16 %v6479
        %v6575 = vunpack.c.l.b16 %v6480
        %v6576 = vunpack.c.h.b16 %v6480
        %v6577 = vunpack.c.l.b16 %v6481
        %v6578 = vunpack.c.h.b16 %v6481
        %v6579 = vunpack.c.l.b16 %v6482
        %v6580 = vunpack.c.h.b16 %v6482
        %v6581 = vunpack.c.l.b16 %v6483
        %v6582 = vunpack.c.h.b16 %v6483
        %v6583 = vunpack.c.l.b16 %v6484
        %v6584 = vunpack.c.h.b16 %v6484
        %v6585 = vunpack.c.l.b16 %v6485
        %v6586 = vunpack.c.h.b16 %v6485
        %v6587 = vunpack.c.l.b16 %v6486
        %v6588 = vunpack.c.h.b16 %v6486
        %v6589 = vunpack.c.l.b16 %v6487
        %v6590 = vunpack.c.h.b16 %v6487
        %v6591 = vunpack.c.l.b16 %v6488
        %v6592 = vunpack.c.h.b16 %v6488
        %v6593 = vunpack.c.l.b16 %v6489
        %v6594 = vunpack.c.h.b16 %v6489
        %v6595 = vunpack.c.l.b16 %v6490
        %v6596 = vunpack.c.h.b16 %v6490
        %v6597 = vunpack.c.l.b16 %v6491
        %v6598 = vunpack.c.h.b16 %v6491
        %v6599 = vunpack.c.l.b16 %v6492
        %v6600 = vunpack.c.h.b16 %v6492
        %v6601 = vunpack.c.l.b16 %v6493
        %v6602 = vunpack.c.h.b16 %v6493
        %v6603 = vunpack.c.l.b16 %v6494
        %v6604 = vunpack.c.h.b16 %v6494
        %v6605 = vunpack.c.l.b16 %v6495
        %v6606 = vunpack.c.h.b16 %v6495
        %v6607 = vunpack.c.l.b16 %v6496
        %v6608 = vunpack.c.h.b16 %v6496
        %v6609 = vunpack.c.l.b16 %v6497
        %v6610 = vunpack.c.h.b16 %v6497
        %v6611 = vunpack.c.l.b16 %v6498
        %v6612 = vunpack.c.h.b16 %v6498
        %v6613 = vunpack.c.l.b16 %v6499
        %v6614 = vunpack.c.h.b16 %v6499
        %v6615 = vunpack.c.l.b16 %v6500
        %v6616 = vunpack.c.h.b16 %v6500
        %v6617 = vunpack.c.l.b16 %v6501
        %v6618 = vunpack.c.h.b16 %v6501
        %v6619 = vpack.c.b16 %v6557, %v6555
        %v6620 = vpack.c.b16 %v6558, %v6556
        %v6621 = vpack.c.b16 %v6561, %v6559
        %v6622 = vpack.c.b16 %v6562, %v6560
        %v6623 = vpack.c.b16 %v6565, %v6563
        %v6624 = vpack.c.b16 %v6566, %v6564
        %v6625 = vpack.c.b16 %v6569, %v6567
        %v6626 = vpack.c.b16 %v6570, %v6568
        %v6627 = vpack.c.b16 %v6573, %v6571
        %v6628 = vpack.c.b16 %v6574, %v6572
        %v6629 = vpack.c.b16 %v6577, %v6575
        %v6630 = vpack.c.b16 %v6578, %v6576
        %v6631 = vpack.c.b16 %v6581, %v6579
        %v6632 = vpack.c.b16 %v6582, %v6580
        %v6633 = vpack.c.b16 %v6585, %v6583
        %v6634 = vpack.c.b16 %v6586, %v6584
        %v6635 = vpack.c.b16 %v6589, %v6587
        %v6636 = vpack.c.b16 %v6590, %v6588
        %v6637 = vpack.c.b16 %v6593, %v6591
        %v6638 = vpack.c.b16 %v6594, %v6592
        %v6639 = vpack.c.b16 %v6597, %v6595
        %v6640 = vpack.c.b16 %v6598, %v6596
        %v6641 = vpack.c.b16 %v6601, %v6599
        %v6642 = vpack.c.b16 %v6602, %v6600
        %v6643 = vpack.c.b16 %v6605, %v6603
        %v6644 = vpack.c.b16 %v6606, %v6604
        %v6645 = vpack.c.b16 %v6609, %v6607
        %v6646 = vpack.c.b16 %v6610, %v6608
        %v6647 = vpack.c.b16 %v6613, %v6611
        %v6648 = vpack.c.b16 %v6614, %v6612
        %v6649 = vpack.c.b16 %v6617, %v6615
        %v6650 = vpack.c.b16 %v6618, %v6616
        %6683 = vmatprep.subr.bf16.mxu0 %v6634
        %6684 = vmatpush1.bf16.msra.mxu0 %v6633
        %6685 = vmatprep.subr.bf16.mxu0 %v6632
        %6686 = vmatpush1.bf16.msra.mxu0 %v6631
        %6687 = vmatprep.subr.bf16.mxu0 %v6630
        %6688 = vmatpush1.bf16.msra.mxu0 %v6629
        %6689 = vmatprep.subr.bf16.mxu0 %v6628
        %6690 = vmatpush1.bf16.msra.mxu0 %v6627
        %6691 = vmatprep.subr.bf16.mxu0 %v6626
        %6692 = vmatpush1.bf16.msra.mxu0 %v6625
        %6693 = vmatprep.subr.bf16.mxu0 %v6624
        %6694 = vmatpush1.bf16.msra.mxu0 %v6623
        %6695 = vmatprep.subr.bf16.mxu0 %v6622
        %6696 = vmatpush1.bf16.msra.mxu0 %v6621
        %6697 = vmatprep.subr.bf16.mxu0 %v6620
        %6698 = vmatpush1.bf16.msra.mxu0 %v6619
        %6699 = vmatprep.subr.bf16.mxu0 %v6650
        %6700 = vmatpush2.bf16.msra.mxu0 %v6649
        %6701 = vmatprep.subr.bf16.mxu0 %v6648
        %6702 = vmatpush2.bf16.msra.mxu0 %v6647
        %6703 = vmatprep.subr.bf16.mxu0 %v6646
        %6704 = vmatpush2.bf16.msra.mxu0 %v6645
        %6705 = vmatprep.subr.bf16.mxu0 %v6644
        %6706 = vmatpush2.bf16.msra.mxu0 %v6643
        %6707 = vmatprep.subr.bf16.mxu0 %v6642
        %6708 = vmatpush2.bf16.msra.mxu0 %v6641
        %6709 = vmatprep.subr.bf16.mxu0 %v6640
        %6710 = vmatpush2.bf16.msra.mxu0 %v6639
        %6711 = vmatprep.subr.bf16.mxu0 %v6638
        %6712 = vmatpush2.bf16.msra.mxu0 %v6637
        %6713 = vmatprep.subr.bf16.mxu0 %v6636
        %6714 = vmatpush2.bf16.msra.mxu0 %v6635
        %6715 = vmatprep.mubr.bf16.mxu0 %v6503
        %6716 = vmatmul.mubr.bf16.gmra.mxu0 %v6502
        %v6717 = vpop.f32.mrf.mxu0
        %v6718 = vadd.f32 %v6516, %v6717
        %v6719 = vpop.f32.mrf.mxu0
        %v6720 = vadd.f32 %v6520, %v6719
        %v6721 = vpop.f32.mrf.mxu0
        %v6722 = vadd.f32 %v6516, %v6721
        %v6723 = vpop.f32.mrf.mxu0
        %v6724 = vadd.f32 %v6520, %v6723
        %6725 = vmatprep.mubr.bf16.mxu0 %v6505
        %6726 = vmatmul.mubr.bf16.gmra.mxu0 %v6504
        %v6727 = vpop.f32.mrf.mxu0
        %v6728 = vadd.f32 %v6516, %v6727
        %v6729 = vpop.f32.mrf.mxu0
        %v6730 = vadd.f32 %v6520, %v6729
        %v6731 = vpop.f32.mrf.mxu0
        %v6732 = vadd.f32 %v6516, %v6731
        %v6733 = vpop.f32.mrf.mxu0
        %v6734 = vadd.f32 %v6520, %v6733
        %6735 = vmatprep.mubr.bf16.mxu0 %v6507
        %6736 = vmatmul.mubr.bf16.gmra.mxu0 %v6506
        %v6737 = vpop.f32.mrf.mxu0
        %v6738 = vadd.f32 %v6516, %v6737
        %v6739 = vpop.f32.mrf.mxu0
        %v6740 = vadd.f32 %v6520, %v6739
        %v6741 = vpop.f32.mrf.mxu0
        %v6742 = vadd.f32 %v6516, %v6741
        %v6743 = vpop.f32.mrf.mxu0
        %v6744 = vadd.f32 %v6520, %v6743
        %6745 = vmatprep.mubr.bf16.mxu0 %v6509
        %6746 = vmatmul.mubr.bf16.gmra.mxu0 %v6508
        %v6747 = vpop.f32.mrf.mxu0
        %v6748 = vadd.f32 %v6516, %v6747
        %v6749 = vpop.f32.mrf.mxu0
        %v6750 = vadd.f32 %v6520, %v6749
        %v6751 = vpop.f32.mrf.mxu0
        %v6752 = vadd.f32 %v6516, %v6751
        %v6753 = vpop.f32.mrf.mxu0
        %v6754 = vadd.f32 %v6520, %v6753
        %6755 = vdwg.mxu0
        %v6756 = vadd.f32 %v3395, %v6718
        %v6757 = vadd.f32 %v3396, %v6720
        %v6758 = vadd.f32 %v3397, %v6722
        %v6759 = vadd.f32 %v3398, %v6724
        %v6760 = vadd.f32 %v3399, %v6728
        %v6761 = vadd.f32 %v3400, %v6730
        %v6762 = vadd.f32 %v3401, %v6732
        %v6763 = vadd.f32 %v3402, %v6734
        %v6764 = vadd.f32 %v3403, %v6738
        %v6765 = vadd.f32 %v3404, %v6740
        %v6766 = vadd.f32 %v3405, %v6742
        %v6767 = vadd.f32 %v3406, %v6744
        %v6768 = vadd.f32 %v3407, %v6748
        %v6769 = vadd.f32 %v3408, %v6750
        %v6770 = vadd.f32 %v3409, %v6752
        %v6771 = vadd.f32 %v3410, %v6754
        %v6772 = vadd.f32 %v6756, %v6757
        %6773 = vadd.xlane.f32.xlu0 %v6772
        %v6774 = vpop.xlane.xlu0 %6773
        %v6775 = vadd.f32 %v6758, %v6759
        %6776 = vadd.xlane.f32.xlu0 %v6775
        %v6777 = vpop.xlane.xlu0 %6776
        %v6778 = vadd.f32 %v6760, %v6761
        %6779 = vadd.xlane.f32.xlu0 %v6778
        %v6780 = vpop.xlane.xlu0 %6779
        %v6781 = vadd.f32 %v6762, %v6763
        %6782 = vadd.xlane.f32.xlu0 %v6781
        %v6783 = vpop.xlane.xlu0 %6782
        %v6784 = vadd.f32 %v6764, %v6765
        %6785 = vadd.xlane.f32.xlu0 %v6784
        %v6786 = vpop.xlane.xlu0 %6785
        %v6787 = vadd.f32 %v6766, %v6767
        %6788 = vadd.xlane.f32.xlu0 %v6787
        %v6789 = vpop.xlane.xlu0 %6788
        %v6790 = vadd.f32 %v6768, %v6769
        %6791 = vadd.xlane.f32.xlu0 %v6790
        %v6792 = vpop.xlane.xlu0 %6791
        %v6793 = vadd.f32 %v6770, %v6771
        %6794 = vadd.xlane.f32.xlu0 %v6793
        %v6795 = vpop.xlane.xlu0 %6794
        %v6796 = vmul.f32 %v6774, %v2998
        %v6797 = vmul.f32 %v6777, %v2998
        %v6798 = vmul.f32 %v6780, %v2998
        %v6799 = vmul.f32 %v6783, %v2998
        %v6800 = vmul.f32 %v6786, %v2998
        %v6801 = vmul.f32 %v6789, %v2998
        %v6802 = vmul.f32 %v6792, %v2998
        %v6803 = vmul.f32 %v6795, %v2998
        %v6804 = vmul.f32 %v6756, %v6756
        %v6805 = vmul.f32 %v6757, %v6757
        %v6806 = vmul.f32 %v6758, %v6758
        %v6807 = vmul.f32 %v6759, %v6759
        %v6808 = vmul.f32 %v6760, %v6760
        %v6809 = vmul.f32 %v6761, %v6761
        %v6810 = vmul.f32 %v6762, %v6762
        %v6811 = vmul.f32 %v6763, %v6763
        %v6812 = vmul.f32 %v6764, %v6764
        %v6813 = vmul.f32 %v6765, %v6765
        %v6814 = vmul.f32 %v6766, %v6766
        %v6815 = vmul.f32 %v6767, %v6767
        %v6816 = vmul.f32 %v6768, %v6768
        %v6817 = vmul.f32 %v6769, %v6769
        %v6818 = vmul.f32 %v6770, %v6770
        %v6819 = vmul.f32 %v6771, %v6771
        %v6820 = vadd.f32 %v6804, %v6805
        %6821 = vadd.xlane.f32.xlu0 %v6820
        %v6822 = vpop.xlane.xlu0 %6821
        %v6823 = vadd.f32 %v6806, %v6807
        %6824 = vadd.xlane.f32.xlu0 %v6823
        %v6825 = vpop.xlane.xlu0 %6824
        %v6826 = vadd.f32 %v6808, %v6809
        %6827 = vadd.xlane.f32.xlu0 %v6826
        %v6828 = vpop.xlane.xlu0 %6827
        %v6829 = vadd.f32 %v6810, %v6811
        %6830 = vadd.xlane.f32.xlu0 %v6829
        %v6831 = vpop.xlane.xlu0 %6830
        %v6832 = vadd.f32 %v6812, %v6813
        %6833 = vadd.xlane.f32.xlu0 %v6832
        %v6834 = vpop.xlane.xlu0 %6833
        %v6835 = vadd.f32 %v6814, %v6815
        %6836 = vadd.xlane.f32.xlu0 %v6835
        %v6837 = vpop.xlane.xlu0 %6836
        %v6838 = vadd.f32 %v6816, %v6817
        %6839 = vadd.xlane.f32.xlu0 %v6838
        %v6840 = vpop.xlane.xlu0 %6839
        %v6841 = vadd.f32 %v6818, %v6819
        %6842 = vadd.xlane.f32.xlu0 %v6841
        %v6843 = vpop.xlane.xlu0 %6842
        %v6844 = vmul.f32 %v6822, %v2998
        %v6845 = vmul.f32 %v6825, %v2998
        %v6846 = vmul.f32 %v6828, %v2998
        %v6847 = vmul.f32 %v6831, %v2998
        %v6848 = vmul.f32 %v6834, %v2998
        %v6849 = vmul.f32 %v6837, %v2998
        %v6850 = vmul.f32 %v6840, %v2998
        %v6851 = vmul.f32 %v6843, %v2998
        %v6852 = vmul.f32 %v6796, %v6796
        %v6853 = vmul.f32 %v6797, %v6797
        %v6854 = vmul.f32 %v6798, %v6798
        %v6855 = vmul.f32 %v6799, %v6799
        %v6856 = vmul.f32 %v6800, %v6800
        %v6857 = vmul.f32 %v6801, %v6801
        %v6858 = vmul.f32 %v6802, %v6802
        %v6859 = vmul.f32 %v6803, %v6803
        %v6860 = vsub.f32 %v6844, %v6852
        %v6861 = vsub.f32 %v6845, %v6853
        %v6862 = vsub.f32 %v6846, %v6854
        %v6863 = vsub.f32 %v6847, %v6855
        %v6864 = vsub.f32 %v6848, %v6856
        %v6865 = vsub.f32 %v6849, %v6857
        %v6866 = vsub.f32 %v6850, %v6858
        %v6867 = vsub.f32 %v6851, %v6859
        %v6868 = vmax.f32 %v6860, 0.0
        %v6869 = vmax.f32 %v6861, 0.0
        %v6870 = vmax.f32 %v6862, 0.0
        %v6871 = vmax.f32 %v6863, 0.0
        %v6872 = vmax.f32 %v6864, 0.0
        %v6873 = vmax.f32 %v6865, 0.0
        %v6874 = vmax.f32 %v6866, 0.0
        %v6875 = vmax.f32 %v6867, 0.0
        %v6876 = vsub.f32 %v6756, %v6796
        %v6877 = vsub.f32 %v6757, %v6796
        %v6878 = vsub.f32 %v6758, %v6797
        %v6879 = vsub.f32 %v6759, %v6797
        %v6880 = vsub.f32 %v6760, %v6798
        %v6881 = vsub.f32 %v6761, %v6798
        %v6882 = vsub.f32 %v6762, %v6799
        %v6883 = vsub.f32 %v6763, %v6799
        %v6884 = vsub.f32 %v6764, %v6800
        %v6885 = vsub.f32 %v6765, %v6800
        %v6886 = vsub.f32 %v6766, %v6801
        %v6887 = vsub.f32 %v6767, %v6801
        %v6888 = vsub.f32 %v6768, %v6802
        %v6889 = vsub.f32 %v6769, %v6802
        %v6890 = vsub.f32 %v6770, %v6803
        %v6891 = vsub.f32 %v6771, %v6803
        %v6892 = vadd.f32 %v6868, 1e-05
        %v6893 = vadd.f32 %v6869, 1e-05
        %v6894 = vadd.f32 %v6870, 1e-05
        %v6895 = vadd.f32 %v6871, 1e-05
        %v6896 = vadd.f32 %v6872, 1e-05
        %v6897 = vadd.f32 %v6873, 1e-05
        %v6898 = vadd.f32 %v6874, 1e-05
        %v6899 = vadd.f32 %v6875, 1e-05
        %v6900 = vrsqrt.pop %v6892
        %v6901 = vrsqrt.pop %v6893
        %v6902 = vrsqrt.pop %v6894
        %v6903 = vrsqrt.pop %v6895
        %v6904 = vrsqrt.pop %v6896
        %v6905 = vrsqrt.pop %v6897
        %v6906 = vrsqrt.pop %v6898
        %v6907 = vrsqrt.pop %v6899
        %v6908 = vmul.f32 %v6876, %v6900
        %v6909 = vmul.f32 %v6877, %v6900
        %v6910 = vmul.f32 %v6878, %v6901
        %v6911 = vmul.f32 %v6879, %v6901
        %v6912 = vmul.f32 %v6880, %v6902
        %v6913 = vmul.f32 %v6881, %v6902
        %v6914 = vmul.f32 %v6882, %v6903
        %v6915 = vmul.f32 %v6883, %v6903
        %v6916 = vmul.f32 %v6884, %v6904
        %v6917 = vmul.f32 %v6885, %v6904
        %v6918 = vmul.f32 %v6886, %v6905
        %v6919 = vmul.f32 %v6887, %v6905
        %v6920 = vmul.f32 %v6888, %v6906
        %v6921 = vmul.f32 %v6889, %v6906
        %v6922 = vmul.f32 %v6890, %v6907
        %v6923 = vmul.f32 %v6891, %v6907
        %s6924 = scalar_lea.vmem %s17, 6
        %v6925 = vld [vmem:[%s6924] ss:$8 sm:$0x3]
        %v6927 = vlaneseq
        %v6928 = vshrl.u32 %v6927, 7
        %v6929 = vsub.s32 0, %v6928
        %v6930 = vrot.slane %v6925, %v6929
        %v6931 = vlaneseq
        %v6932 = vshrl.u32 %v6931, 7
        %v6933 = vsub.s32 1, %v6932
        %v6934 = vrot.slane %v6925, %v6933
        %v6937 = vmul.f32 %v6908, %v6930
        %v6938 = vmul.f32 %v6909, %v6934
        %v6939 = vmul.f32 %v6910, %v6930
        %v6940 = vmul.f32 %v6911, %v6934
        %v6941 = vmul.f32 %v6912, %v6930
        %v6942 = vmul.f32 %v6913, %v6934
        %v6943 = vmul.f32 %v6914, %v6930
        %v6944 = vmul.f32 %v6915, %v6934
        %v6945 = vmul.f32 %v6916, %v6930
        %v6946 = vmul.f32 %v6917, %v6934
        %v6947 = vmul.f32 %v6918, %v6930
        %v6948 = vmul.f32 %v6919, %v6934
        %v6949 = vmul.f32 %v6920, %v6930
        %v6950 = vmul.f32 %v6921, %v6934
        %v6951 = vmul.f32 %v6922, %v6930
        %v6952 = vmul.f32 %v6923, %v6934
        %s6953 = scalar_lea.vmem %s17, 7
        %v6954 = vld [vmem:[%s6953] ss:$8 sm:$0x3]
        %v6956 = vlaneseq
        %v6957 = vshrl.u32 %v6956, 7
        %v6958 = vsub.s32 0, %v6957
        %v6959 = vrot.slane %v6954, %v6958
        %v6960 = vlaneseq
        %v6961 = vshrl.u32 %v6960, 7
        %v6962 = vsub.s32 1, %v6961
        %v6963 = vrot.slane %v6954, %v6962
        %v6966 = vadd.f32 %v6937, %v6959
        %v6967 = vadd.f32 %v6938, %v6963
        %v6968 = vadd.f32 %v6939, %v6959
        %v6969 = vadd.f32 %v6940, %v6963
        %v6970 = vadd.f32 %v6941, %v6959
        %v6971 = vadd.f32 %v6942, %v6963
        %v6972 = vadd.f32 %v6943, %v6959
        %v6973 = vadd.f32 %v6944, %v6963
        %v6974 = vadd.f32 %v6945, %v6959
        %v6975 = vadd.f32 %v6946, %v6963
        %v6976 = vadd.f32 %v6947, %v6959
        %v6977 = vadd.f32 %v6948, %v6963
        %v6978 = vadd.f32 %v6949, %v6959
        %v6979 = vadd.f32 %v6950, %v6963
        %v6980 = vadd.f32 %v6951, %v6959
        %v6981 = vadd.f32 %v6952, %v6963
        %v6982 = vld [vmem:[%s11] sm:$0xff]
        %v6983 = vld [vmem:[%s11 + $0x8] sm:$0xff]
        %v6984 = vld [vmem:[%s11 + $0x10] sm:$0xff]
        %v6985 = vld [vmem:[%s11 + $0x18] sm:$0xff]
        %v6986 = vld [vmem:[%s11 + $0x20] sm:$0xff]
        %v6987 = vld [vmem:[%s11 + $0x28] sm:$0xff]
        %v6988 = vld [vmem:[%s11 + $0x30] sm:$0xff]
        %v6989 = vld [vmem:[%s11 + $0x38] sm:$0xff]
        %v6990 = vld [vmem:[%s11 + $0x40] sm:$0xff]
        %v6991 = vld [vmem:[%s11 + $0x48] sm:$0xff]
        %v6992 = vld [vmem:[%s11 + $0x50] sm:$0xff]
        %v6993 = vld [vmem:[%s11 + $0x58] sm:$0xff]
        %v6994 = vld [vmem:[%s11 + $0x60] sm:$0xff]
        %v6995 = vld [vmem:[%s11 + $0x68] sm:$0xff]
        %v6996 = vld [vmem:[%s11 + $0x70] sm:$0xff]
        %v6997 = vld [vmem:[%s11 + $0x78] sm:$0xff]
        %v6998 = vld [vmem:[%s11 + $0x80] sm:$0xff]
        %v6999 = vld [vmem:[%s11 + $0x88] sm:$0xff]
        %v7000 = vld [vmem:[%s11 + $0x90] sm:$0xff]
        %v7001 = vld [vmem:[%s11 + $0x98] sm:$0xff]
        %v7002 = vld [vmem:[%s11 + $0xa0] sm:$0xff]
        %v7003 = vld [vmem:[%s11 + $0xa8] sm:$0xff]
        %v7004 = vld [vmem:[%s11 + $0xb0] sm:$0xff]
        %v7005 = vld [vmem:[%s11 + $0xb8] sm:$0xff]
        %v7006 = vld [vmem:[%s11 + $0xc0] sm:$0xff]
        %v7007 = vld [vmem:[%s11 + $0xc8] sm:$0xff]
        %v7008 = vld [vmem:[%s11 + $0xd0] sm:$0xff]
        %v7009 = vld [vmem:[%s11 + $0xd8] sm:$0xff]
        %v7010 = vld [vmem:[%s11 + $0xe0] sm:$0xff]
        %v7011 = vld [vmem:[%s11 + $0xe8] sm:$0xff]
        %v7012 = vld [vmem:[%s11 + $0xf0] sm:$0xff]
        %v7013 = vld [vmem:[%s11 + $0xf8] sm:$0xff]
        %v7014 = vld [vmem:[%s11 + $0x100] sm:$0xff]
        %v7015 = vld [vmem:[%s11 + $0x108] sm:$0xff]
        %v7016 = vld [vmem:[%s11 + $0x110] sm:$0xff]
        %v7017 = vld [vmem:[%s11 + $0x118] sm:$0xff]
        %v7018 = vld [vmem:[%s11 + $0x120] sm:$0xff]
        %v7019 = vld [vmem:[%s11 + $0x128] sm:$0xff]
        %v7020 = vld [vmem:[%s11 + $0x130] sm:$0xff]
        %v7021 = vld [vmem:[%s11 + $0x138] sm:$0xff]
        %v7022 = vld [vmem:[%s11 + $0x140] sm:$0xff]
        %v7023 = vld [vmem:[%s11 + $0x148] sm:$0xff]
        %v7024 = vld [vmem:[%s11 + $0x150] sm:$0xff]
        %v7025 = vld [vmem:[%s11 + $0x158] sm:$0xff]
        %v7026 = vld [vmem:[%s11 + $0x160] sm:$0xff]
        %v7027 = vld [vmem:[%s11 + $0x168] sm:$0xff]
        %v7028 = vld [vmem:[%s11 + $0x170] sm:$0xff]
        %v7029 = vld [vmem:[%s11 + $0x178] sm:$0xff]
        %v7030 = vld [vmem:[%s11 + $0x180] sm:$0xff]
        %v7031 = vld [vmem:[%s11 + $0x188] sm:$0xff]
        %v7032 = vld [vmem:[%s11 + $0x190] sm:$0xff]
        %v7033 = vld [vmem:[%s11 + $0x198] sm:$0xff]
        %v7034 = vld [vmem:[%s11 + $0x1a0] sm:$0xff]
        %v7035 = vld [vmem:[%s11 + $0x1a8] sm:$0xff]
        %v7036 = vld [vmem:[%s11 + $0x1b0] sm:$0xff]
        %v7037 = vld [vmem:[%s11 + $0x1b8] sm:$0xff]
        %v7038 = vld [vmem:[%s11 + $0x1c0] sm:$0xff]
        %v7039 = vld [vmem:[%s11 + $0x1c8] sm:$0xff]
        %v7040 = vld [vmem:[%s11 + $0x1d0] sm:$0xff]
        %v7041 = vld [vmem:[%s11 + $0x1d8] sm:$0xff]
        %v7042 = vld [vmem:[%s11 + $0x1e0] sm:$0xff]
        %v7043 = vld [vmem:[%s11 + $0x1e8] sm:$0xff]
        %v7044 = vld [vmem:[%s11 + $0x1f0] sm:$0xff]
        %v7045 = vld [vmem:[%s11 + $0x1f8] sm:$0xff]
        %v7046 = vpack.c.bf16 %v6968, %v6966
        %v7047 = vpack.c.bf16 %v6969, %v6967
        %v7048 = vpack.c.bf16 %v6972, %v6970
        %v7049 = vpack.c.bf16 %v6973, %v6971
        %v7050 = vpack.c.bf16 %v6976, %v6974
        %v7051 = vpack.c.bf16 %v6977, %v6975
        %v7052 = vpack.c.bf16 %v6980, %v6978
        %v7053 = vpack.c.bf16 %v6981, %v6979
        %v7054 = vld [vmem:[%s12] sm:$0xf]
        %v7056 = vlaneseq
        %v7057 = vshrl.u32 %v7056, 7
        %v7058 = vsub.s32 0, %v7057
        %v7059 = vrot.slane %v7054, %v7058
        %v7060 = vlaneseq
        %v7061 = vshrl.u32 %v7060, 7
        %v7062 = vsub.s32 1, %v7061
        %v7063 = vrot.slane %v7054, %v7062
        %v7064 = vlaneseq
        %v7065 = vshrl.u32 %v7064, 7
        %v7066 = vsub.s32 2, %v7065
        %v7067 = vrot.slane %v7054, %v7066
        %v7068 = vlaneseq
        %v7069 = vshrl.u32 %v7068, 7
        %v7070 = vsub.s32 3, %v7069
        %v7071 = vrot.slane %v7054, %v7070
        %v7140 = vunpack.c.l.b16 %v6982
        %v7141 = vunpack.c.h.b16 %v6982
        %v7142 = vunpack.c.l.b16 %v6983
        %v7143 = vunpack.c.h.b16 %v6983
        %v7144 = vunpack.c.l.b16 %v6984
        %v7145 = vunpack.c.h.b16 %v6984
        %v7146 = vunpack.c.l.b16 %v6985
        %v7147 = vunpack.c.h.b16 %v6985
        %v7148 = vunpack.c.l.b16 %v6986
        %v7149 = vunpack.c.h.b16 %v6986
        %v7150 = vunpack.c.l.b16 %v6987
        %v7151 = vunpack.c.h.b16 %v6987
        %v7152 = vunpack.c.l.b16 %v6988
        %v7153 = vunpack.c.h.b16 %v6988
        %v7154 = vunpack.c.l.b16 %v6989
        %v7155 = vunpack.c.h.b16 %v6989
        %v7156 = vunpack.c.l.b16 %v6990
        %v7157 = vunpack.c.h.b16 %v6990
        %v7158 = vunpack.c.l.b16 %v6991
        %v7159 = vunpack.c.h.b16 %v6991
        %v7160 = vunpack.c.l.b16 %v6992
        %v7161 = vunpack.c.h.b16 %v6992
        %v7162 = vunpack.c.l.b16 %v6993
        %v7163 = vunpack.c.h.b16 %v6993
        %v7164 = vunpack.c.l.b16 %v6994
        %v7165 = vunpack.c.h.b16 %v6994
        %v7166 = vunpack.c.l.b16 %v6995
        %v7167 = vunpack.c.h.b16 %v6995
        %v7168 = vunpack.c.l.b16 %v6996
        %v7169 = vunpack.c.h.b16 %v6996
        %v7170 = vunpack.c.l.b16 %v6997
        %v7171 = vunpack.c.h.b16 %v6997
        %v7172 = vunpack.c.l.b16 %v6998
        %v7173 = vunpack.c.h.b16 %v6998
        %v7174 = vunpack.c.l.b16 %v6999
        %v7175 = vunpack.c.h.b16 %v6999
        %v7176 = vunpack.c.l.b16 %v7000
        %v7177 = vunpack.c.h.b16 %v7000
        %v7178 = vunpack.c.l.b16 %v7001
        %v7179 = vunpack.c.h.b16 %v7001
        %v7180 = vunpack.c.l.b16 %v7002
        %v7181 = vunpack.c.h.b16 %v7002
        %v7182 = vunpack.c.l.b16 %v7003
        %v7183 = vunpack.c.h.b16 %v7003
        %v7184 = vunpack.c.l.b16 %v7004
        %v7185 = vunpack.c.h.b16 %v7004
        %v7186 = vunpack.c.l.b16 %v7005
        %v7187 = vunpack.c.h.b16 %v7005
        %v7188 = vunpack.c.l.b16 %v7006
        %v7189 = vunpack.c.h.b16 %v7006
        %v7190 = vunpack.c.l.b16 %v7007
        %v7191 = vunpack.c.h.b16 %v7007
        %v7192 = vunpack.c.l.b16 %v7008
        %v7193 = vunpack.c.h.b16 %v7008
        %v7194 = vunpack.c.l.b16 %v7009
        %v7195 = vunpack.c.h.b16 %v7009
        %v7196 = vunpack.c.l.b16 %v7010
        %v7197 = vunpack.c.h.b16 %v7010
        %v7198 = vunpack.c.l.b16 %v7011
        %v7199 = vunpack.c.h.b16 %v7011
        %v7200 = vunpack.c.l.b16 %v7012
        %v7201 = vunpack.c.h.b16 %v7012
        %v7202 = vunpack.c.l.b16 %v7013
        %v7203 = vunpack.c.h.b16 %v7013
        %v7204 = vunpack.c.l.b16 %v7014
        %v7205 = vunpack.c.h.b16 %v7014
        %v7206 = vunpack.c.l.b16 %v7015
        %v7207 = vunpack.c.h.b16 %v7015
        %v7208 = vunpack.c.l.b16 %v7016
        %v7209 = vunpack.c.h.b16 %v7016
        %v7210 = vunpack.c.l.b16 %v7017
        %v7211 = vunpack.c.h.b16 %v7017
        %v7212 = vunpack.c.l.b16 %v7018
        %v7213 = vunpack.c.h.b16 %v7018
        %v7214 = vunpack.c.l.b16 %v7019
        %v7215 = vunpack.c.h.b16 %v7019
        %v7216 = vunpack.c.l.b16 %v7020
        %v7217 = vunpack.c.h.b16 %v7020
        %v7218 = vunpack.c.l.b16 %v7021
        %v7219 = vunpack.c.h.b16 %v7021
        %v7220 = vunpack.c.l.b16 %v7022
        %v7221 = vunpack.c.h.b16 %v7022
        %v7222 = vunpack.c.l.b16 %v7023
        %v7223 = vunpack.c.h.b16 %v7023
        %v7224 = vunpack.c.l.b16 %v7024
        %v7225 = vunpack.c.h.b16 %v7024
        %v7226 = vunpack.c.l.b16 %v7025
        %v7227 = vunpack.c.h.b16 %v7025
        %v7228 = vunpack.c.l.b16 %v7026
        %v7229 = vunpack.c.h.b16 %v7026
        %v7230 = vunpack.c.l.b16 %v7027
        %v7231 = vunpack.c.h.b16 %v7027
        %v7232 = vunpack.c.l.b16 %v7028
        %v7233 = vunpack.c.h.b16 %v7028
        %v7234 = vunpack.c.l.b16 %v7029
        %v7235 = vunpack.c.h.b16 %v7029
        %v7236 = vunpack.c.l.b16 %v7030
        %v7237 = vunpack.c.h.b16 %v7030
        %v7238 = vunpack.c.l.b16 %v7031
        %v7239 = vunpack.c.h.b16 %v7031
        %v7240 = vunpack.c.l.b16 %v7032
        %v7241 = vunpack.c.h.b16 %v7032
        %v7242 = vunpack.c.l.b16 %v7033
        %v7243 = vunpack.c.h.b16 %v7033
        %v7244 = vunpack.c.l.b16 %v7034
        %v7245 = vunpack.c.h.b16 %v7034
        %v7246 = vunpack.c.l.b16 %v7035
        %v7247 = vunpack.c.h.b16 %v7035
        %v7248 = vunpack.c.l.b16 %v7036
        %v7249 = vunpack.c.h.b16 %v7036
        %v7250 = vunpack.c.l.b16 %v7037
        %v7251 = vunpack.c.h.b16 %v7037
        %v7252 = vunpack.c.l.b16 %v7038
        %v7253 = vunpack.c.h.b16 %v7038
        %v7254 = vunpack.c.l.b16 %v7039
        %v7255 = vunpack.c.h.b16 %v7039
        %v7256 = vunpack.c.l.b16 %v7040
        %v7257 = vunpack.c.h.b16 %v7040
        %v7258 = vunpack.c.l.b16 %v7041
        %v7259 = vunpack.c.h.b16 %v7041
        %v7260 = vunpack.c.l.b16 %v7042
        %v7261 = vunpack.c.h.b16 %v7042
        %v7262 = vunpack.c.l.b16 %v7043
        %v7263 = vunpack.c.h.b16 %v7043
        %v7264 = vunpack.c.l.b16 %v7044
        %v7265 = vunpack.c.h.b16 %v7044
        %v7266 = vunpack.c.l.b16 %v7045
        %v7267 = vunpack.c.h.b16 %v7045
        %v7268 = vpack.c.b16 %v7144, %v7140
        %v7269 = vpack.c.b16 %v7145, %v7141
        %v7270 = vpack.c.b16 %v7146, %v7142
        %v7271 = vpack.c.b16 %v7147, %v7143
        %v7272 = vpack.c.b16 %v7152, %v7148
        %v7273 = vpack.c.b16 %v7153, %v7149
        %v7274 = vpack.c.b16 %v7154, %v7150
        %v7275 = vpack.c.b16 %v7155, %v7151
        %v7276 = vpack.c.b16 %v7160, %v7156
        %v7277 = vpack.c.b16 %v7161, %v7157
        %v7278 = vpack.c.b16 %v7162, %v7158
        %v7279 = vpack.c.b16 %v7163, %v7159
        %v7280 = vpack.c.b16 %v7168, %v7164
        %v7281 = vpack.c.b16 %v7169, %v7165
        %v7282 = vpack.c.b16 %v7170, %v7166
        %v7283 = vpack.c.b16 %v7171, %v7167
        %v7284 = vpack.c.b16 %v7176, %v7172
        %v7285 = vpack.c.b16 %v7177, %v7173
        %v7286 = vpack.c.b16 %v7178, %v7174
        %v7287 = vpack.c.b16 %v7179, %v7175
        %v7288 = vpack.c.b16 %v7184, %v7180
        %v7289 = vpack.c.b16 %v7185, %v7181
        %v7290 = vpack.c.b16 %v7186, %v7182
        %v7291 = vpack.c.b16 %v7187, %v7183
        %v7292 = vpack.c.b16 %v7192, %v7188
        %v7293 = vpack.c.b16 %v7193, %v7189
        %v7294 = vpack.c.b16 %v7194, %v7190
        %v7295 = vpack.c.b16 %v7195, %v7191
        %v7296 = vpack.c.b16 %v7200, %v7196
        %v7297 = vpack.c.b16 %v7201, %v7197
        %v7298 = vpack.c.b16 %v7202, %v7198
        %v7299 = vpack.c.b16 %v7203, %v7199
        %v7300 = vpack.c.b16 %v7208, %v7204
        %v7301 = vpack.c.b16 %v7209, %v7205
        %v7302 = vpack.c.b16 %v7210, %v7206
        %v7303 = vpack.c.b16 %v7211, %v7207
        %v7304 = vpack.c.b16 %v7216, %v7212
        %v7305 = vpack.c.b16 %v7217, %v7213
        %v7306 = vpack.c.b16 %v7218, %v7214
        %v7307 = vpack.c.b16 %v7219, %v7215
        %v7308 = vpack.c.b16 %v7224, %v7220
        %v7309 = vpack.c.b16 %v7225, %v7221
        %v7310 = vpack.c.b16 %v7226, %v7222
        %v7311 = vpack.c.b16 %v7227, %v7223
        %v7312 = vpack.c.b16 %v7232, %v7228
        %v7313 = vpack.c.b16 %v7233, %v7229
        %v7314 = vpack.c.b16 %v7234, %v7230
        %v7315 = vpack.c.b16 %v7235, %v7231
        %v7316 = vpack.c.b16 %v7240, %v7236
        %v7317 = vpack.c.b16 %v7241, %v7237
        %v7318 = vpack.c.b16 %v7242, %v7238
        %v7319 = vpack.c.b16 %v7243, %v7239
        %v7320 = vpack.c.b16 %v7248, %v7244
        %v7321 = vpack.c.b16 %v7249, %v7245
        %v7322 = vpack.c.b16 %v7250, %v7246
        %v7323 = vpack.c.b16 %v7251, %v7247
        %v7324 = vpack.c.b16 %v7256, %v7252
        %v7325 = vpack.c.b16 %v7257, %v7253
        %v7326 = vpack.c.b16 %v7258, %v7254
        %v7327 = vpack.c.b16 %v7259, %v7255
        %v7328 = vpack.c.b16 %v7264, %v7260
        %v7329 = vpack.c.b16 %v7265, %v7261
        %v7330 = vpack.c.b16 %v7266, %v7262
        %v7331 = vpack.c.b16 %v7267, %v7263
        %7396 = vmatprep.subr.bf16.mxu0 %v7297
        %7397 = vmatpush1.bf16.msra.mxu0 %v7296
        %7398 = vmatprep.subr.bf16.mxu0 %v7293
        %7399 = vmatpush1.bf16.msra.mxu0 %v7292
        %7400 = vmatprep.subr.bf16.mxu0 %v7289
        %7401 = vmatpush1.bf16.msra.mxu0 %v7288
        %7402 = vmatprep.subr.bf16.mxu0 %v7285
        %7403 = vmatpush1.bf16.msra.mxu0 %v7284
        %7404 = vmatprep.subr.bf16.mxu0 %v7281
        %7405 = vmatpush1.bf16.msra.mxu0 %v7280
        %7406 = vmatprep.subr.bf16.mxu0 %v7277
        %7407 = vmatpush1.bf16.msra.mxu0 %v7276
        %7408 = vmatprep.subr.bf16.mxu0 %v7273
        %7409 = vmatpush1.bf16.msra.mxu0 %v7272
        %7410 = vmatprep.subr.bf16.mxu0 %v7269
        %7411 = vmatpush1.bf16.msra.mxu0 %v7268
        %7412 = vmatprep.subr.bf16.mxu0 %v7329
        %7413 = vmatpush2.bf16.msra.mxu0 %v7328
        %7414 = vmatprep.subr.bf16.mxu0 %v7325
        %7415 = vmatpush2.bf16.msra.mxu0 %v7324
        %7416 = vmatprep.subr.bf16.mxu0 %v7321
        %7417 = vmatpush2.bf16.msra.mxu0 %v7320
        %7418 = vmatprep.subr.bf16.mxu0 %v7317
        %7419 = vmatpush2.bf16.msra.mxu0 %v7316
        %7420 = vmatprep.subr.bf16.mxu0 %v7313
        %7421 = vmatpush2.bf16.msra.mxu0 %v7312
        %7422 = vmatprep.subr.bf16.mxu0 %v7309
        %7423 = vmatpush2.bf16.msra.mxu0 %v7308
        %7424 = vmatprep.subr.bf16.mxu0 %v7305
        %7425 = vmatpush2.bf16.msra.mxu0 %v7304
        %7426 = vmatprep.subr.bf16.mxu0 %v7301
        %7427 = vmatpush2.bf16.msra.mxu0 %v7300
        %7428 = vmatprep.mubr.bf16.mxu0 %v7047
        %7429 = vmatmul.mubr.bf16.gmra.mxu0 %v7046
        %v7430 = vpop.f32.mrf.mxu0
        %v7431 = vadd.f32 %v7059, %v7430
        %v7432 = vpop.f32.mrf.mxu0
        %v7433 = vadd.f32 %v7063, %v7432
        %v7434 = vpop.f32.mrf.mxu0
        %v7435 = vadd.f32 %v7059, %v7434
        %v7436 = vpop.f32.mrf.mxu0
        %v7437 = vadd.f32 %v7063, %v7436
        %7438 = vmatprep.mubr.bf16.mxu0 %v7049
        %7439 = vmatmul.mubr.bf16.gmra.mxu0 %v7048
        %v7440 = vpop.f32.mrf.mxu0
        %v7441 = vadd.f32 %v7059, %v7440
        %v7442 = vpop.f32.mrf.mxu0
        %v7443 = vadd.f32 %v7063, %v7442
        %v7444 = vpop.f32.mrf.mxu0
        %v7445 = vadd.f32 %v7059, %v7444
        %v7446 = vpop.f32.mrf.mxu0
        %v7447 = vadd.f32 %v7063, %v7446
        %7448 = vmatprep.mubr.bf16.mxu0 %v7051
        %7449 = vmatmul.mubr.bf16.gmra.mxu0 %v7050
        %v7450 = vpop.f32.mrf.mxu0
        %v7451 = vadd.f32 %v7059, %v7450
        %v7452 = vpop.f32.mrf.mxu0
        %v7453 = vadd.f32 %v7063, %v7452
        %v7454 = vpop.f32.mrf.mxu0
        %v7455 = vadd.f32 %v7059, %v7454
        %v7456 = vpop.f32.mrf.mxu0
        %v7457 = vadd.f32 %v7063, %v7456
        %7458 = vmatprep.mubr.bf16.mxu0 %v7053
        %7459 = vmatmul.mubr.bf16.gmra.mxu0 %v7052
        %v7460 = vpop.f32.mrf.mxu0
        %v7461 = vadd.f32 %v7059, %v7460
        %v7462 = vpop.f32.mrf.mxu0
        %v7463 = vadd.f32 %v7063, %v7462
        %v7464 = vpop.f32.mrf.mxu0
        %v7465 = vadd.f32 %v7059, %v7464
        %v7466 = vpop.f32.mrf.mxu0
        %v7467 = vadd.f32 %v7063, %v7466
        %7468 = vdwg.mxu0
        %7469 = vmatprep.subr.bf16.mxu0 %v7299
        %7470 = vmatpush1.bf16.msra.mxu0 %v7298
        %7471 = vmatprep.subr.bf16.mxu0 %v7295
        %7472 = vmatpush1.bf16.msra.mxu0 %v7294
        %7473 = vmatprep.subr.bf16.mxu0 %v7291
        %7474 = vmatpush1.bf16.msra.mxu0 %v7290
        %7475 = vmatprep.subr.bf16.mxu0 %v7287
        %7476 = vmatpush1.bf16.msra.mxu0 %v7286
        %7477 = vmatprep.subr.bf16.mxu0 %v7283
        %7478 = vmatpush1.bf16.msra.mxu0 %v7282
        %7479 = vmatprep.subr.bf16.mxu0 %v7279
        %7480 = vmatpush1.bf16.msra.mxu0 %v7278
        %7481 = vmatprep.subr.bf16.mxu0 %v7275
        %7482 = vmatpush1.bf16.msra.mxu0 %v7274
        %7483 = vmatprep.subr.bf16.mxu0 %v7271
        %7484 = vmatpush1.bf16.msra.mxu0 %v7270
        %7485 = vmatprep.subr.bf16.mxu0 %v7331
        %7486 = vmatpush2.bf16.msra.mxu0 %v7330
        %7487 = vmatprep.subr.bf16.mxu0 %v7327
        %7488 = vmatpush2.bf16.msra.mxu0 %v7326
        %7489 = vmatprep.subr.bf16.mxu0 %v7323
        %7490 = vmatpush2.bf16.msra.mxu0 %v7322
        %7491 = vmatprep.subr.bf16.mxu0 %v7319
        %7492 = vmatpush2.bf16.msra.mxu0 %v7318
        %7493 = vmatprep.subr.bf16.mxu0 %v7315
        %7494 = vmatpush2.bf16.msra.mxu0 %v7314
        %7495 = vmatprep.subr.bf16.mxu0 %v7311
        %7496 = vmatpush2.bf16.msra.mxu0 %v7310
        %7497 = vmatprep.subr.bf16.mxu0 %v7307
        %7498 = vmatpush2.bf16.msra.mxu0 %v7306
        %7499 = vmatprep.subr.bf16.mxu0 %v7303
        %7500 = vmatpush2.bf16.msra.mxu0 %v7302
        %7501 = vmatprep.mubr.bf16.mxu0 %v7047
        %7502 = vmatmul.mubr.bf16.gmra.mxu0 %v7046
        %v7503 = vpop.f32.mrf.mxu0
        %v7504 = vadd.f32 %v7067, %v7503
        %v7505 = vpop.f32.mrf.mxu0
        %v7506 = vadd.f32 %v7071, %v7505
        %v7507 = vpop.f32.mrf.mxu0
        %v7508 = vadd.f32 %v7067, %v7507
        %v7509 = vpop.f32.mrf.mxu0
        %v7510 = vadd.f32 %v7071, %v7509
        %7511 = vmatprep.mubr.bf16.mxu0 %v7049
        %7512 = vmatmul.mubr.bf16.gmra.mxu0 %v7048
        %v7513 = vpop.f32.mrf.mxu0
        %v7514 = vadd.f32 %v7067, %v7513
        %v7515 = vpop.f32.mrf.mxu0
        %v7516 = vadd.f32 %v7071, %v7515
        %v7517 = vpop.f32.mrf.mxu0
        %v7518 = vadd.f32 %v7067, %v7517
        %v7519 = vpop.f32.mrf.mxu0
        %v7520 = vadd.f32 %v7071, %v7519
        %7521 = vmatprep.mubr.bf16.mxu0 %v7051
        %7522 = vmatmul.mubr.bf16.gmra.mxu0 %v7050
        %v7523 = vpop.f32.mrf.mxu0
        %v7524 = vadd.f32 %v7067, %v7523
        %v7525 = vpop.f32.mrf.mxu0
        %v7526 = vadd.f32 %v7071, %v7525
        %v7527 = vpop.f32.mrf.mxu0
        %v7528 = vadd.f32 %v7067, %v7527
        %v7529 = vpop.f32.mrf.mxu0
        %v7530 = vadd.f32 %v7071, %v7529
        %7531 = vmatprep.mubr.bf16.mxu0 %v7053
        %7532 = vmatmul.mubr.bf16.gmra.mxu0 %v7052
        %v7533 = vpop.f32.mrf.mxu0
        %v7534 = vadd.f32 %v7067, %v7533
        %v7535 = vpop.f32.mrf.mxu0
        %v7536 = vadd.f32 %v7071, %v7535
        %v7537 = vpop.f32.mrf.mxu0
        %v7538 = vadd.f32 %v7067, %v7537
        %v7539 = vpop.f32.mrf.mxu0
        %v7540 = vadd.f32 %v7071, %v7539
        %7541 = vdwg.mxu0
        %v7542 = vmax.f32 %v7431, 0.0
        %v7543 = vmax.f32 %v7433, 0.0
        %v7544 = vmax.f32 %v7504, 0.0
        %v7545 = vmax.f32 %v7506, 0.0
        %v7546 = vmax.f32 %v7435, 0.0
        %v7547 = vmax.f32 %v7437, 0.0
        %v7548 = vmax.f32 %v7508, 0.0
        %v7549 = vmax.f32 %v7510, 0.0
        %v7550 = vmax.f32 %v7441, 0.0
        %v7551 = vmax.f32 %v7443, 0.0
        %v7552 = vmax.f32 %v7514, 0.0
        %v7553 = vmax.f32 %v7516, 0.0
        %v7554 = vmax.f32 %v7445, 0.0
        %v7555 = vmax.f32 %v7447, 0.0
        %v7556 = vmax.f32 %v7518, 0.0
        %v7557 = vmax.f32 %v7520, 0.0
        %v7558 = vmax.f32 %v7451, 0.0
        %v7559 = vmax.f32 %v7453, 0.0
        %v7560 = vmax.f32 %v7524, 0.0
        %v7561 = vmax.f32 %v7526, 0.0
        %v7562 = vmax.f32 %v7455, 0.0
        %v7563 = vmax.f32 %v7457, 0.0
        %v7564 = vmax.f32 %v7528, 0.0
        %v7565 = vmax.f32 %v7530, 0.0
        %v7566 = vmax.f32 %v7461, 0.0
        %v7567 = vmax.f32 %v7463, 0.0
        %v7568 = vmax.f32 %v7534, 0.0
        %v7569 = vmax.f32 %v7536, 0.0
        %v7570 = vmax.f32 %v7465, 0.0
        %v7571 = vmax.f32 %v7467, 0.0
        %v7572 = vmax.f32 %v7538, 0.0
        %v7573 = vmax.f32 %v7540, 0.0
        %v7574 = vld [vmem:[%s13] sm:$0xff]
        %v7575 = vld [vmem:[%s13 + $0x8] sm:$0xff]
        %v7576 = vld [vmem:[%s13 + $0x10] sm:$0xff]
        %v7577 = vld [vmem:[%s13 + $0x18] sm:$0xff]
        %v7578 = vld [vmem:[%s13 + $0x20] sm:$0xff]
        %v7579 = vld [vmem:[%s13 + $0x28] sm:$0xff]
        %v7580 = vld [vmem:[%s13 + $0x30] sm:$0xff]
        %v7581 = vld [vmem:[%s13 + $0x38] sm:$0xff]
        %v7582 = vld [vmem:[%s13 + $0x40] sm:$0xff]
        %v7583 = vld [vmem:[%s13 + $0x48] sm:$0xff]
        %v7584 = vld [vmem:[%s13 + $0x50] sm:$0xff]
        %v7585 = vld [vmem:[%s13 + $0x58] sm:$0xff]
        %v7586 = vld [vmem:[%s13 + $0x60] sm:$0xff]
        %v7587 = vld [vmem:[%s13 + $0x68] sm:$0xff]
        %v7588 = vld [vmem:[%s13 + $0x70] sm:$0xff]
        %v7589 = vld [vmem:[%s13 + $0x78] sm:$0xff]
        %v7590 = vld [vmem:[%s13 + $0x80] sm:$0xff]
        %v7591 = vld [vmem:[%s13 + $0x88] sm:$0xff]
        %v7592 = vld [vmem:[%s13 + $0x90] sm:$0xff]
        %v7593 = vld [vmem:[%s13 + $0x98] sm:$0xff]
        %v7594 = vld [vmem:[%s13 + $0xa0] sm:$0xff]
        %v7595 = vld [vmem:[%s13 + $0xa8] sm:$0xff]
        %v7596 = vld [vmem:[%s13 + $0xb0] sm:$0xff]
        %v7597 = vld [vmem:[%s13 + $0xb8] sm:$0xff]
        %v7598 = vld [vmem:[%s13 + $0xc0] sm:$0xff]
        %v7599 = vld [vmem:[%s13 + $0xc8] sm:$0xff]
        %v7600 = vld [vmem:[%s13 + $0xd0] sm:$0xff]
        %v7601 = vld [vmem:[%s13 + $0xd8] sm:$0xff]
        %v7602 = vld [vmem:[%s13 + $0xe0] sm:$0xff]
        %v7603 = vld [vmem:[%s13 + $0xe8] sm:$0xff]
        %v7604 = vld [vmem:[%s13 + $0xf0] sm:$0xff]
        %v7605 = vld [vmem:[%s13 + $0xf8] sm:$0xff]
        %v7606 = vld [vmem:[%s13 + $0x100] sm:$0xff]
        %v7607 = vld [vmem:[%s13 + $0x108] sm:$0xff]
        %v7608 = vld [vmem:[%s13 + $0x110] sm:$0xff]
        %v7609 = vld [vmem:[%s13 + $0x118] sm:$0xff]
        %v7610 = vld [vmem:[%s13 + $0x120] sm:$0xff]
        %v7611 = vld [vmem:[%s13 + $0x128] sm:$0xff]
        %v7612 = vld [vmem:[%s13 + $0x130] sm:$0xff]
        %v7613 = vld [vmem:[%s13 + $0x138] sm:$0xff]
        %v7614 = vld [vmem:[%s13 + $0x140] sm:$0xff]
        %v7615 = vld [vmem:[%s13 + $0x148] sm:$0xff]
        %v7616 = vld [vmem:[%s13 + $0x150] sm:$0xff]
        %v7617 = vld [vmem:[%s13 + $0x158] sm:$0xff]
        %v7618 = vld [vmem:[%s13 + $0x160] sm:$0xff]
        %v7619 = vld [vmem:[%s13 + $0x168] sm:$0xff]
        %v7620 = vld [vmem:[%s13 + $0x170] sm:$0xff]
        %v7621 = vld [vmem:[%s13 + $0x178] sm:$0xff]
        %v7622 = vld [vmem:[%s13 + $0x180] sm:$0xff]
        %v7623 = vld [vmem:[%s13 + $0x188] sm:$0xff]
        %v7624 = vld [vmem:[%s13 + $0x190] sm:$0xff]
        %v7625 = vld [vmem:[%s13 + $0x198] sm:$0xff]
        %v7626 = vld [vmem:[%s13 + $0x1a0] sm:$0xff]
        %v7627 = vld [vmem:[%s13 + $0x1a8] sm:$0xff]
        %v7628 = vld [vmem:[%s13 + $0x1b0] sm:$0xff]
        %v7629 = vld [vmem:[%s13 + $0x1b8] sm:$0xff]
        %v7630 = vld [vmem:[%s13 + $0x1c0] sm:$0xff]
        %v7631 = vld [vmem:[%s13 + $0x1c8] sm:$0xff]
        %v7632 = vld [vmem:[%s13 + $0x1d0] sm:$0xff]
        %v7633 = vld [vmem:[%s13 + $0x1d8] sm:$0xff]
        %v7634 = vld [vmem:[%s13 + $0x1e0] sm:$0xff]
        %v7635 = vld [vmem:[%s13 + $0x1e8] sm:$0xff]
        %v7636 = vld [vmem:[%s13 + $0x1f0] sm:$0xff]
        %v7637 = vld [vmem:[%s13 + $0x1f8] sm:$0xff]
        %v7638 = vpack.c.bf16 %v7546, %v7542
        %v7639 = vpack.c.bf16 %v7547, %v7543
        %v7640 = vpack.c.bf16 %v7548, %v7544
        %v7641 = vpack.c.bf16 %v7549, %v7545
        %v7642 = vpack.c.bf16 %v7554, %v7550
        %v7643 = vpack.c.bf16 %v7555, %v7551
        %v7644 = vpack.c.bf16 %v7556, %v7552
        %v7645 = vpack.c.bf16 %v7557, %v7553
        %v7646 = vpack.c.bf16 %v7562, %v7558
        %v7647 = vpack.c.bf16 %v7563, %v7559
        %v7648 = vpack.c.bf16 %v7564, %v7560
        %v7649 = vpack.c.bf16 %v7565, %v7561
        %v7650 = vpack.c.bf16 %v7570, %v7566
        %v7651 = vpack.c.bf16 %v7571, %v7567
        %v7652 = vpack.c.bf16 %v7572, %v7568
        %v7653 = vpack.c.bf16 %v7573, %v7569
        %s7654 = scalar_lea.vmem %s17, 32
        %v7655 = vld [vmem:[%s7654] ss:$8 sm:$0x3]
        %v7657 = vlaneseq
        %v7658 = vshrl.u32 %v7657, 7
        %v7659 = vsub.s32 0, %v7658
        %v7660 = vrot.slane %v7655, %v7659
        %v7661 = vlaneseq
        %v7662 = vshrl.u32 %v7661, 7
        %v7663 = vsub.s32 1, %v7662
        %v7664 = vrot.slane %v7655, %v7663
        %v7731 = vunpack.c.l.b16 %v7574
        %v7732 = vunpack.c.h.b16 %v7574
        %v7733 = vunpack.c.l.b16 %v7575
        %v7734 = vunpack.c.h.b16 %v7575
        %v7735 = vunpack.c.l.b16 %v7576
        %v7736 = vunpack.c.h.b16 %v7576
        %v7737 = vunpack.c.l.b16 %v7577
        %v7738 = vunpack.c.h.b16 %v7577
        %v7739 = vunpack.c.l.b16 %v7578
        %v7740 = vunpack.c.h.b16 %v7578
        %v7741 = vunpack.c.l.b16 %v7579
        %v7742 = vunpack.c.h.b16 %v7579
        %v7743 = vunpack.c.l.b16 %v7580
        %v7744 = vunpack.c.h.b16 %v7580
        %v7745 = vunpack.c.l.b16 %v7581
        %v7746 = vunpack.c.h.b16 %v7581
        %v7747 = vunpack.c.l.b16 %v7582
        %v7748 = vunpack.c.h.b16 %v7582
        %v7749 = vunpack.c.l.b16 %v7583
        %v7750 = vunpack.c.h.b16 %v7583
        %v7751 = vunpack.c.l.b16 %v7584
        %v7752 = vunpack.c.h.b16 %v7584
        %v7753 = vunpack.c.l.b16 %v7585
        %v7754 = vunpack.c.h.b16 %v7585
        %v7755 = vunpack.c.l.b16 %v7586
        %v7756 = vunpack.c.h.b16 %v7586
        %v7757 = vunpack.c.l.b16 %v7587
        %v7758 = vunpack.c.h.b16 %v7587
        %v7759 = vunpack.c.l.b16 %v7588
        %v7760 = vunpack.c.h.b16 %v7588
        %v7761 = vunpack.c.l.b16 %v7589
        %v7762 = vunpack.c.h.b16 %v7589
        %v7763 = vunpack.c.l.b16 %v7590
        %v7764 = vunpack.c.h.b16 %v7590
        %v7765 = vunpack.c.l.b16 %v7591
        %v7766 = vunpack.c.h.b16 %v7591
        %v7767 = vunpack.c.l.b16 %v7592
        %v7768 = vunpack.c.h.b16 %v7592
        %v7769 = vunpack.c.l.b16 %v7593
        %v7770 = vunpack.c.h.b16 %v7593
        %v7771 = vunpack.c.l.b16 %v7594
        %v7772 = vunpack.c.h.b16 %v7594
        %v7773 = vunpack.c.l.b16 %v7595
        %v7774 = vunpack.c.h.b16 %v7595
        %v7775 = vunpack.c.l.b16 %v7596
        %v7776 = vunpack.c.h.b16 %v7596
        %v7777 = vunpack.c.l.b16 %v7597
        %v7778 = vunpack.c.h.b16 %v7597
        %v7779 = vunpack.c.l.b16 %v7598
        %v7780 = vunpack.c.h.b16 %v7598
        %v7781 = vunpack.c.l.b16 %v7599
        %v7782 = vunpack.c.h.b16 %v7599
        %v7783 = vunpack.c.l.b16 %v7600
        %v7784 = vunpack.c.h.b16 %v7600
        %v7785 = vunpack.c.l.b16 %v7601
        %v7786 = vunpack.c.h.b16 %v7601
        %v7787 = vunpack.c.l.b16 %v7602
        %v7788 = vunpack.c.h.b16 %v7602
        %v7789 = vunpack.c.l.b16 %v7603
        %v7790 = vunpack.c.h.b16 %v7603
        %v7791 = vunpack.c.l.b16 %v7604
        %v7792 = vunpack.c.h.b16 %v7604
        %v7793 = vunpack.c.l.b16 %v7605
        %v7794 = vunpack.c.h.b16 %v7605
        %v7795 = vunpack.c.l.b16 %v7606
        %v7796 = vunpack.c.h.b16 %v7606
        %v7797 = vunpack.c.l.b16 %v7607
        %v7798 = vunpack.c.h.b16 %v7607
        %v7799 = vunpack.c.l.b16 %v7608
        %v7800 = vunpack.c.h.b16 %v7608
        %v7801 = vunpack.c.l.b16 %v7609
        %v7802 = vunpack.c.h.b16 %v7609
        %v7803 = vunpack.c.l.b16 %v7610
        %v7804 = vunpack.c.h.b16 %v7610
        %v7805 = vunpack.c.l.b16 %v7611
        %v7806 = vunpack.c.h.b16 %v7611
        %v7807 = vunpack.c.l.b16 %v7612
        %v7808 = vunpack.c.h.b16 %v7612
        %v7809 = vunpack.c.l.b16 %v7613
        %v7810 = vunpack.c.h.b16 %v7613
        %v7811 = vunpack.c.l.b16 %v7614
        %v7812 = vunpack.c.h.b16 %v7614
        %v7813 = vunpack.c.l.b16 %v7615
        %v7814 = vunpack.c.h.b16 %v7615
        %v7815 = vunpack.c.l.b16 %v7616
        %v7816 = vunpack.c.h.b16 %v7616
        %v7817 = vunpack.c.l.b16 %v7617
        %v7818 = vunpack.c.h.b16 %v7617
        %v7819 = vunpack.c.l.b16 %v7618
        %v7820 = vunpack.c.h.b16 %v7618
        %v7821 = vunpack.c.l.b16 %v7619
        %v7822 = vunpack.c.h.b16 %v7619
        %v7823 = vunpack.c.l.b16 %v7620
        %v7824 = vunpack.c.h.b16 %v7620
        %v7825 = vunpack.c.l.b16 %v7621
        %v7826 = vunpack.c.h.b16 %v7621
        %v7827 = vunpack.c.l.b16 %v7622
        %v7828 = vunpack.c.h.b16 %v7622
        %v7829 = vunpack.c.l.b16 %v7623
        %v7830 = vunpack.c.h.b16 %v7623
        %v7831 = vunpack.c.l.b16 %v7624
        %v7832 = vunpack.c.h.b16 %v7624
        %v7833 = vunpack.c.l.b16 %v7625
        %v7834 = vunpack.c.h.b16 %v7625
        %v7835 = vunpack.c.l.b16 %v7626
        %v7836 = vunpack.c.h.b16 %v7626
        %v7837 = vunpack.c.l.b16 %v7627
        %v7838 = vunpack.c.h.b16 %v7627
        %v7839 = vunpack.c.l.b16 %v7628
        %v7840 = vunpack.c.h.b16 %v7628
        %v7841 = vunpack.c.l.b16 %v7629
        %v7842 = vunpack.c.h.b16 %v7629
        %v7843 = vunpack.c.l.b16 %v7630
        %v7844 = vunpack.c.h.b16 %v7630
        %v7845 = vunpack.c.l.b16 %v7631
        %v7846 = vunpack.c.h.b16 %v7631
        %v7847 = vunpack.c.l.b16 %v7632
        %v7848 = vunpack.c.h.b16 %v7632
        %v7849 = vunpack.c.l.b16 %v7633
        %v7850 = vunpack.c.h.b16 %v7633
        %v7851 = vunpack.c.l.b16 %v7634
        %v7852 = vunpack.c.h.b16 %v7634
        %v7853 = vunpack.c.l.b16 %v7635
        %v7854 = vunpack.c.h.b16 %v7635
        %v7855 = vunpack.c.l.b16 %v7636
        %v7856 = vunpack.c.h.b16 %v7636
        %v7857 = vunpack.c.l.b16 %v7637
        %v7858 = vunpack.c.h.b16 %v7637
        %v7859 = vpack.c.b16 %v7733, %v7731
        %v7860 = vpack.c.b16 %v7734, %v7732
        %v7861 = vpack.c.b16 %v7737, %v7735
        %v7862 = vpack.c.b16 %v7738, %v7736
        %v7863 = vpack.c.b16 %v7741, %v7739
        %v7864 = vpack.c.b16 %v7742, %v7740
        %v7865 = vpack.c.b16 %v7745, %v7743
        %v7866 = vpack.c.b16 %v7746, %v7744
        %v7867 = vpack.c.b16 %v7749, %v7747
        %v7868 = vpack.c.b16 %v7750, %v7748
        %v7869 = vpack.c.b16 %v7753, %v7751
        %v7870 = vpack.c.b16 %v7754, %v7752
        %v7871 = vpack.c.b16 %v7757, %v7755
        %v7872 = vpack.c.b16 %v7758, %v7756
        %v7873 = vpack.c.b16 %v7761, %v7759
        %v7874 = vpack.c.b16 %v7762, %v7760
        %v7875 = vpack.c.b16 %v7765, %v7763
        %v7876 = vpack.c.b16 %v7766, %v7764
        %v7877 = vpack.c.b16 %v7769, %v7767
        %v7878 = vpack.c.b16 %v7770, %v7768
        %v7879 = vpack.c.b16 %v7773, %v7771
        %v7880 = vpack.c.b16 %v7774, %v7772
        %v7881 = vpack.c.b16 %v7777, %v7775
        %v7882 = vpack.c.b16 %v7778, %v7776
        %v7883 = vpack.c.b16 %v7781, %v7779
        %v7884 = vpack.c.b16 %v7782, %v7780
        %v7885 = vpack.c.b16 %v7785, %v7783
        %v7886 = vpack.c.b16 %v7786, %v7784
        %v7887 = vpack.c.b16 %v7789, %v7787
        %v7888 = vpack.c.b16 %v7790, %v7788
        %v7889 = vpack.c.b16 %v7793, %v7791
        %v7890 = vpack.c.b16 %v7794, %v7792
        %v7891 = vpack.c.b16 %v7797, %v7795
        %v7892 = vpack.c.b16 %v7798, %v7796
        %v7893 = vpack.c.b16 %v7801, %v7799
        %v7894 = vpack.c.b16 %v7802, %v7800
        %v7895 = vpack.c.b16 %v7805, %v7803
        %v7896 = vpack.c.b16 %v7806, %v7804
        %v7897 = vpack.c.b16 %v7809, %v7807
        %v7898 = vpack.c.b16 %v7810, %v7808
        %v7899 = vpack.c.b16 %v7813, %v7811
        %v7900 = vpack.c.b16 %v7814, %v7812
        %v7901 = vpack.c.b16 %v7817, %v7815
        %v7902 = vpack.c.b16 %v7818, %v7816
        %v7903 = vpack.c.b16 %v7821, %v7819
        %v7904 = vpack.c.b16 %v7822, %v7820
        %v7905 = vpack.c.b16 %v7825, %v7823
        %v7906 = vpack.c.b16 %v7826, %v7824
        %v7907 = vpack.c.b16 %v7829, %v7827
        %v7908 = vpack.c.b16 %v7830, %v7828
        %v7909 = vpack.c.b16 %v7833, %v7831
        %v7910 = vpack.c.b16 %v7834, %v7832
        %v7911 = vpack.c.b16 %v7837, %v7835
        %v7912 = vpack.c.b16 %v7838, %v7836
        %v7913 = vpack.c.b16 %v7841, %v7839
        %v7914 = vpack.c.b16 %v7842, %v7840
        %v7915 = vpack.c.b16 %v7845, %v7843
        %v7916 = vpack.c.b16 %v7846, %v7844
        %v7917 = vpack.c.b16 %v7849, %v7847
        %v7918 = vpack.c.b16 %v7850, %v7848
        %v7919 = vpack.c.b16 %v7853, %v7851
        %v7920 = vpack.c.b16 %v7854, %v7852
        %v7921 = vpack.c.b16 %v7857, %v7855
        %v7922 = vpack.c.b16 %v7858, %v7856
        %7987 = vmatprep.subr.bf16.mxu0 %v7874
        %7988 = vmatpush1.bf16.msra.mxu0 %v7873
        %7989 = vmatprep.subr.bf16.mxu0 %v7872
        %7990 = vmatpush1.bf16.msra.mxu0 %v7871
        %7991 = vmatprep.subr.bf16.mxu0 %v7870
        %7992 = vmatpush1.bf16.msra.mxu0 %v7869
        %7993 = vmatprep.subr.bf16.mxu0 %v7868
        %7994 = vmatpush1.bf16.msra.mxu0 %v7867
        %7995 = vmatprep.subr.bf16.mxu0 %v7866
        %7996 = vmatpush1.bf16.msra.mxu0 %v7865
        %7997 = vmatprep.subr.bf16.mxu0 %v7864
        %7998 = vmatpush1.bf16.msra.mxu0 %v7863
        %7999 = vmatprep.subr.bf16.mxu0 %v7862
        %8000 = vmatpush1.bf16.msra.mxu0 %v7861
        %8001 = vmatprep.subr.bf16.mxu0 %v7860
        %8002 = vmatpush1.bf16.msra.mxu0 %v7859
        %8003 = vmatprep.subr.bf16.mxu0 %v7890
        %8004 = vmatpush2.bf16.msra.mxu0 %v7889
        %8005 = vmatprep.subr.bf16.mxu0 %v7888
        %8006 = vmatpush2.bf16.msra.mxu0 %v7887
        %8007 = vmatprep.subr.bf16.mxu0 %v7886
        %8008 = vmatpush2.bf16.msra.mxu0 %v7885
        %8009 = vmatprep.subr.bf16.mxu0 %v7884
        %8010 = vmatpush2.bf16.msra.mxu0 %v7883
        %8011 = vmatprep.subr.bf16.mxu0 %v7882
        %8012 = vmatpush2.bf16.msra.mxu0 %v7881
        %8013 = vmatprep.subr.bf16.mxu0 %v7880
        %8014 = vmatpush2.bf16.msra.mxu0 %v7879
        %8015 = vmatprep.subr.bf16.mxu0 %v7878
        %8016 = vmatpush2.bf16.msra.mxu0 %v7877
        %8017 = vmatprep.subr.bf16.mxu0 %v7876
        %8018 = vmatpush2.bf16.msra.mxu0 %v7875
        %8019 = vmatprep.mubr.bf16.mxu0 %v7639
        %8020 = vmatmul.mubr.bf16.gmra.mxu0 %v7638
        %v8021 = vpop.f32.mrf.mxu0
        %v8022 = vadd.f32 %v7660, %v8021
        %v8023 = vpop.f32.mrf.mxu0
        %v8024 = vadd.f32 %v7664, %v8023
        %v8025 = vpop.f32.mrf.mxu0
        %v8026 = vadd.f32 %v7660, %v8025
        %v8027 = vpop.f32.mrf.mxu0
        %v8028 = vadd.f32 %v7664, %v8027
        %8029 = vmatprep.mubr.bf16.mxu0 %v7643
        %8030 = vmatmul.mubr.bf16.gmra.mxu0 %v7642
        %v8031 = vpop.f32.mrf.mxu0
        %v8032 = vadd.f32 %v7660, %v8031
        %v8033 = vpop.f32.mrf.mxu0
        %v8034 = vadd.f32 %v7664, %v8033
        %v8035 = vpop.f32.mrf.mxu0
        %v8036 = vadd.f32 %v7660, %v8035
        %v8037 = vpop.f32.mrf.mxu0
        %v8038 = vadd.f32 %v7664, %v8037
        %8039 = vmatprep.mubr.bf16.mxu0 %v7647
        %8040 = vmatmul.mubr.bf16.gmra.mxu0 %v7646
        %v8041 = vpop.f32.mrf.mxu0
        %v8042 = vadd.f32 %v7660, %v8041
        %v8043 = vpop.f32.mrf.mxu0
        %v8044 = vadd.f32 %v7664, %v8043
        %v8045 = vpop.f32.mrf.mxu0
        %v8046 = vadd.f32 %v7660, %v8045
        %v8047 = vpop.f32.mrf.mxu0
        %v8048 = vadd.f32 %v7664, %v8047
        %8049 = vmatprep.mubr.bf16.mxu0 %v7651
        %8050 = vmatmul.mubr.bf16.gmra.mxu0 %v7650
        %v8051 = vpop.f32.mrf.mxu0
        %v8052 = vadd.f32 %v7660, %v8051
        %v8053 = vpop.f32.mrf.mxu0
        %v8054 = vadd.f32 %v7664, %v8053
        %v8055 = vpop.f32.mrf.mxu0
        %v8056 = vadd.f32 %v7660, %v8055
        %v8057 = vpop.f32.mrf.mxu0
        %v8058 = vadd.f32 %v7664, %v8057
        %8059 = vdwg.mxu0
        %8060 = vmatprep.subr.bf16.mxu0 %v7906
        %8061 = vmatpush1.bf16.msra.mxu0 %v7905
        %8062 = vmatprep.subr.bf16.mxu0 %v7904
        %8063 = vmatpush1.bf16.msra.mxu0 %v7903
        %8064 = vmatprep.subr.bf16.mxu0 %v7902
        %8065 = vmatpush1.bf16.msra.mxu0 %v7901
        %8066 = vmatprep.subr.bf16.mxu0 %v7900
        %8067 = vmatpush1.bf16.msra.mxu0 %v7899
        %8068 = vmatprep.subr.bf16.mxu0 %v7898
        %8069 = vmatpush1.bf16.msra.mxu0 %v7897
        %8070 = vmatprep.subr.bf16.mxu0 %v7896
        %8071 = vmatpush1.bf16.msra.mxu0 %v7895
        %8072 = vmatprep.subr.bf16.mxu0 %v7894
        %8073 = vmatpush1.bf16.msra.mxu0 %v7893
        %8074 = vmatprep.subr.bf16.mxu0 %v7892
        %8075 = vmatpush1.bf16.msra.mxu0 %v7891
        %8076 = vmatprep.subr.bf16.mxu0 %v7922
        %8077 = vmatpush2.bf16.msra.mxu0 %v7921
        %8078 = vmatprep.subr.bf16.mxu0 %v7920
        %8079 = vmatpush2.bf16.msra.mxu0 %v7919
        %8080 = vmatprep.subr.bf16.mxu0 %v7918
        %8081 = vmatpush2.bf16.msra.mxu0 %v7917
        %8082 = vmatprep.subr.bf16.mxu0 %v7916
        %8083 = vmatpush2.bf16.msra.mxu0 %v7915
        %8084 = vmatprep.subr.bf16.mxu0 %v7914
        %8085 = vmatpush2.bf16.msra.mxu0 %v7913
        %8086 = vmatprep.subr.bf16.mxu0 %v7912
        %8087 = vmatpush2.bf16.msra.mxu0 %v7911
        %8088 = vmatprep.subr.bf16.mxu0 %v7910
        %8089 = vmatpush2.bf16.msra.mxu0 %v7909
        %8090 = vmatprep.subr.bf16.mxu0 %v7908
        %8091 = vmatpush2.bf16.msra.mxu0 %v7907
        %8092 = vmatprep.mubr.bf16.mxu0 %v7641
        %8093 = vmatmul.mubr.bf16.gmra.mxu0 %v7640
        %v8094 = vpop.f32.mrf.mxu0
        %v8095 = vadd.f32 %v8022, %v8094
        %v8096 = vpop.f32.mrf.mxu0
        %v8097 = vadd.f32 %v8024, %v8096
        %v8098 = vpop.f32.mrf.mxu0
        %v8099 = vadd.f32 %v8026, %v8098
        %v8100 = vpop.f32.mrf.mxu0
        %v8101 = vadd.f32 %v8028, %v8100
        %8102 = vmatprep.mubr.bf16.mxu0 %v7645
        %8103 = vmatmul.mubr.bf16.gmra.mxu0 %v7644
        %v8104 = vpop.f32.mrf.mxu0
        %v8105 = vadd.f32 %v8032, %v8104
        %v8106 = vpop.f32.mrf.mxu0
        %v8107 = vadd.f32 %v8034, %v8106
        %v8108 = vpop.f32.mrf.mxu0
        %v8109 = vadd.f32 %v8036, %v8108
        %v8110 = vpop.f32.mrf.mxu0
        %v8111 = vadd.f32 %v8038, %v8110
        %8112 = vmatprep.mubr.bf16.mxu0 %v7649
        %8113 = vmatmul.mubr.bf16.gmra.mxu0 %v7648
        %v8114 = vpop.f32.mrf.mxu0
        %v8115 = vadd.f32 %v8042, %v8114
        %v8116 = vpop.f32.mrf.mxu0
        %v8117 = vadd.f32 %v8044, %v8116
        %v8118 = vpop.f32.mrf.mxu0
        %v8119 = vadd.f32 %v8046, %v8118
        %v8120 = vpop.f32.mrf.mxu0
        %v8121 = vadd.f32 %v8048, %v8120
        %8122 = vmatprep.mubr.bf16.mxu0 %v7653
        %8123 = vmatmul.mubr.bf16.gmra.mxu0 %v7652
        %v8124 = vpop.f32.mrf.mxu0
        %v8125 = vadd.f32 %v8052, %v8124
        %v8126 = vpop.f32.mrf.mxu0
        %v8127 = vadd.f32 %v8054, %v8126
        %v8128 = vpop.f32.mrf.mxu0
        %v8129 = vadd.f32 %v8056, %v8128
        %v8130 = vpop.f32.mrf.mxu0
        %v8131 = vadd.f32 %v8058, %v8130
        %8132 = vdwg.mxu0
        %v8133 = vadd.f32 %v6966, %v8095
        %v8134 = vadd.f32 %v6967, %v8097
        %v8135 = vadd.f32 %v6968, %v8099
        %v8136 = vadd.f32 %v6969, %v8101
        %v8137 = vadd.f32 %v6970, %v8105
        %v8138 = vadd.f32 %v6971, %v8107
        %v8139 = vadd.f32 %v6972, %v8109
        %v8140 = vadd.f32 %v6973, %v8111
        %v8141 = vadd.f32 %v6974, %v8115
        %v8142 = vadd.f32 %v6975, %v8117
        %v8143 = vadd.f32 %v6976, %v8119
        %v8144 = vadd.f32 %v6977, %v8121
        %v8145 = vadd.f32 %v6978, %v8125
        %v8146 = vadd.f32 %v6979, %v8127
        %v8147 = vadd.f32 %v6980, %v8129
        %v8148 = vadd.f32 %v6981, %v8131
        %v8149 = vadd.f32 %v8133, %v8134
        %8150 = vadd.xlane.f32.xlu0 %v8149
        %v8151 = vpop.xlane.xlu0 %8150
        %v8152 = vadd.f32 %v8135, %v8136
        %8153 = vadd.xlane.f32.xlu0 %v8152
        %v8154 = vpop.xlane.xlu0 %8153
        %v8155 = vadd.f32 %v8137, %v8138
        %8156 = vadd.xlane.f32.xlu0 %v8155
        %v8157 = vpop.xlane.xlu0 %8156
        %v8158 = vadd.f32 %v8139, %v8140
        %8159 = vadd.xlane.f32.xlu0 %v8158
        %v8160 = vpop.xlane.xlu0 %8159
        %v8161 = vadd.f32 %v8141, %v8142
        %8162 = vadd.xlane.f32.xlu0 %v8161
        %v8163 = vpop.xlane.xlu0 %8162
        %v8164 = vadd.f32 %v8143, %v8144
        %8165 = vadd.xlane.f32.xlu0 %v8164
        %v8166 = vpop.xlane.xlu0 %8165
        %v8167 = vadd.f32 %v8145, %v8146
        %8168 = vadd.xlane.f32.xlu0 %v8167
        %v8169 = vpop.xlane.xlu0 %8168
        %v8170 = vadd.f32 %v8147, %v8148
        %8171 = vadd.xlane.f32.xlu0 %v8170
        %v8172 = vpop.xlane.xlu0 %8171
        %v8173 = vmul.f32 %v8151, %v2998
        %v8174 = vmul.f32 %v8154, %v2998
        %v8175 = vmul.f32 %v8157, %v2998
        %v8176 = vmul.f32 %v8160, %v2998
        %v8177 = vmul.f32 %v8163, %v2998
        %v8178 = vmul.f32 %v8166, %v2998
        %v8179 = vmul.f32 %v8169, %v2998
        %v8180 = vmul.f32 %v8172, %v2998
        %v8181 = vmul.f32 %v8133, %v8133
        %v8182 = vmul.f32 %v8134, %v8134
        %v8183 = vmul.f32 %v8135, %v8135
        %v8184 = vmul.f32 %v8136, %v8136
        %v8185 = vmul.f32 %v8137, %v8137
        %v8186 = vmul.f32 %v8138, %v8138
        %v8187 = vmul.f32 %v8139, %v8139
        %v8188 = vmul.f32 %v8140, %v8140
        %v8189 = vmul.f32 %v8141, %v8141
        %v8190 = vmul.f32 %v8142, %v8142
        %v8191 = vmul.f32 %v8143, %v8143
        %v8192 = vmul.f32 %v8144, %v8144
        %v8193 = vmul.f32 %v8145, %v8145
        %v8194 = vmul.f32 %v8146, %v8146
        %v8195 = vmul.f32 %v8147, %v8147
        %v8196 = vmul.f32 %v8148, %v8148
        %v8197 = vadd.f32 %v8181, %v8182
        %8198 = vadd.xlane.f32.xlu0 %v8197
        %v8199 = vpop.xlane.xlu0 %8198
        %v8200 = vadd.f32 %v8183, %v8184
        %8201 = vadd.xlane.f32.xlu0 %v8200
        %v8202 = vpop.xlane.xlu0 %8201
        %v8203 = vadd.f32 %v8185, %v8186
        %8204 = vadd.xlane.f32.xlu0 %v8203
        %v8205 = vpop.xlane.xlu0 %8204
        %v8206 = vadd.f32 %v8187, %v8188
        %8207 = vadd.xlane.f32.xlu0 %v8206
        %v8208 = vpop.xlane.xlu0 %8207
        %v8209 = vadd.f32 %v8189, %v8190
        %8210 = vadd.xlane.f32.xlu0 %v8209
        %v8211 = vpop.xlane.xlu0 %8210
        %v8212 = vadd.f32 %v8191, %v8192
        %8213 = vadd.xlane.f32.xlu0 %v8212
        %v8214 = vpop.xlane.xlu0 %8213
        %v8215 = vadd.f32 %v8193, %v8194
        %8216 = vadd.xlane.f32.xlu0 %v8215
        %v8217 = vpop.xlane.xlu0 %8216
        %v8218 = vadd.f32 %v8195, %v8196
        %8219 = vadd.xlane.f32.xlu0 %v8218
        %v8220 = vpop.xlane.xlu0 %8219
        %v8221 = vmul.f32 %v8199, %v2998
        %v8222 = vmul.f32 %v8202, %v2998
        %v8223 = vmul.f32 %v8205, %v2998
        %v8224 = vmul.f32 %v8208, %v2998
        %v8225 = vmul.f32 %v8211, %v2998
        %v8226 = vmul.f32 %v8214, %v2998
        %v8227 = vmul.f32 %v8217, %v2998
        %v8228 = vmul.f32 %v8220, %v2998
        %v8229 = vmul.f32 %v8173, %v8173
        %v8230 = vmul.f32 %v8174, %v8174
        %v8231 = vmul.f32 %v8175, %v8175
        %v8232 = vmul.f32 %v8176, %v8176
        %v8233 = vmul.f32 %v8177, %v8177
        %v8234 = vmul.f32 %v8178, %v8178
        %v8235 = vmul.f32 %v8179, %v8179
        %v8236 = vmul.f32 %v8180, %v8180
        %v8237 = vsub.f32 %v8221, %v8229
        %v8238 = vsub.f32 %v8222, %v8230
        %v8239 = vsub.f32 %v8223, %v8231
        %v8240 = vsub.f32 %v8224, %v8232
        %v8241 = vsub.f32 %v8225, %v8233
        %v8242 = vsub.f32 %v8226, %v8234
        %v8243 = vsub.f32 %v8227, %v8235
        %v8244 = vsub.f32 %v8228, %v8236
        %v8245 = vmax.f32 %v8237, 0.0
        %v8246 = vmax.f32 %v8238, 0.0
        %v8247 = vmax.f32 %v8239, 0.0
        %v8248 = vmax.f32 %v8240, 0.0
        %v8249 = vmax.f32 %v8241, 0.0
        %v8250 = vmax.f32 %v8242, 0.0
        %v8251 = vmax.f32 %v8243, 0.0
        %v8252 = vmax.f32 %v8244, 0.0
        %v8253 = vsub.f32 %v8133, %v8173
        %v8254 = vsub.f32 %v8134, %v8173
        %v8255 = vsub.f32 %v8135, %v8174
        %v8256 = vsub.f32 %v8136, %v8174
        %v8257 = vsub.f32 %v8137, %v8175
        %v8258 = vsub.f32 %v8138, %v8175
        %v8259 = vsub.f32 %v8139, %v8176
        %v8260 = vsub.f32 %v8140, %v8176
        %v8261 = vsub.f32 %v8141, %v8177
        %v8262 = vsub.f32 %v8142, %v8177
        %v8263 = vsub.f32 %v8143, %v8178
        %v8264 = vsub.f32 %v8144, %v8178
        %v8265 = vsub.f32 %v8145, %v8179
        %v8266 = vsub.f32 %v8146, %v8179
        %v8267 = vsub.f32 %v8147, %v8180
        %v8268 = vsub.f32 %v8148, %v8180
        %v8269 = vadd.f32 %v8245, 1e-05
        %v8270 = vadd.f32 %v8246, 1e-05
        %v8271 = vadd.f32 %v8247, 1e-05
        %v8272 = vadd.f32 %v8248, 1e-05
        %v8273 = vadd.f32 %v8249, 1e-05
        %v8274 = vadd.f32 %v8250, 1e-05
        %v8275 = vadd.f32 %v8251, 1e-05
        %v8276 = vadd.f32 %v8252, 1e-05
        %v8277 = vrsqrt.pop %v8269
        %v8278 = vrsqrt.pop %v8270
        %v8279 = vrsqrt.pop %v8271
        %v8280 = vrsqrt.pop %v8272
        %v8281 = vrsqrt.pop %v8273
        %v8282 = vrsqrt.pop %v8274
        %v8283 = vrsqrt.pop %v8275
        %v8284 = vrsqrt.pop %v8276
        %v8285 = vmul.f32 %v8253, %v8277
        %v8286 = vmul.f32 %v8254, %v8277
        %v8287 = vmul.f32 %v8255, %v8278
        %v8288 = vmul.f32 %v8256, %v8278
        %v8289 = vmul.f32 %v8257, %v8279
        %v8290 = vmul.f32 %v8258, %v8279
        %v8291 = vmul.f32 %v8259, %v8280
        %v8292 = vmul.f32 %v8260, %v8280
        %v8293 = vmul.f32 %v8261, %v8281
        %v8294 = vmul.f32 %v8262, %v8281
        %v8295 = vmul.f32 %v8263, %v8282
        %v8296 = vmul.f32 %v8264, %v8282
        %v8297 = vmul.f32 %v8265, %v8283
        %v8298 = vmul.f32 %v8266, %v8283
        %v8299 = vmul.f32 %v8267, %v8284
        %v8300 = vmul.f32 %v8268, %v8284
        %s8301 = scalar_lea.vmem %s17, 16
        %v8302 = vld [vmem:[%s8301] ss:$8 sm:$0x3]
        %v8304 = vlaneseq
        %v8305 = vshrl.u32 %v8304, 7
        %v8306 = vsub.s32 0, %v8305
        %v8307 = vrot.slane %v8302, %v8306
        %v8308 = vlaneseq
        %v8309 = vshrl.u32 %v8308, 7
        %v8310 = vsub.s32 1, %v8309
        %v8311 = vrot.slane %v8302, %v8310
        %v8314 = vmul.f32 %v8285, %v8307
        %v8315 = vmul.f32 %v8286, %v8311
        %v8316 = vmul.f32 %v8287, %v8307
        %v8317 = vmul.f32 %v8288, %v8311
        %v8318 = vmul.f32 %v8289, %v8307
        %v8319 = vmul.f32 %v8290, %v8311
        %v8320 = vmul.f32 %v8291, %v8307
        %v8321 = vmul.f32 %v8292, %v8311
        %v8322 = vmul.f32 %v8293, %v8307
        %v8323 = vmul.f32 %v8294, %v8311
        %v8324 = vmul.f32 %v8295, %v8307
        %v8325 = vmul.f32 %v8296, %v8311
        %v8326 = vmul.f32 %v8297, %v8307
        %v8327 = vmul.f32 %v8298, %v8311
        %v8328 = vmul.f32 %v8299, %v8307
        %v8329 = vmul.f32 %v8300, %v8311
        %s8330 = scalar_lea.vmem %s17, 17
        %v8331 = vld [vmem:[%s8330] ss:$8 sm:$0x3]
        %v8333 = vlaneseq
        %v8334 = vshrl.u32 %v8333, 7
        %v8335 = vsub.s32 0, %v8334
        %v8336 = vrot.slane %v8331, %v8335
        %v8337 = vlaneseq
        %v8338 = vshrl.u32 %v8337, 7
        %v8339 = vsub.s32 1, %v8338
        %v8340 = vrot.slane %v8331, %v8339
        %v8343 = vadd.f32 %v8314, %v8336
        %v8344 = vadd.f32 %v8315, %v8340
        %v8345 = vadd.f32 %v8316, %v8336
        %v8346 = vadd.f32 %v8317, %v8340
        %v8347 = vadd.f32 %v8318, %v8336
        %v8348 = vadd.f32 %v8319, %v8340
        %v8349 = vadd.f32 %v8320, %v8336
        %v8350 = vadd.f32 %v8321, %v8340
        %v8351 = vadd.f32 %v8322, %v8336
        %v8352 = vadd.f32 %v8323, %v8340
        %v8353 = vadd.f32 %v8324, %v8336
        %v8354 = vadd.f32 %v8325, %v8340
        %v8355 = vadd.f32 %v8326, %v8336
        %v8356 = vadd.f32 %v8327, %v8340
        %v8357 = vadd.f32 %v8328, %v8336
        %v8358 = vadd.f32 %v8329, %v8340
        %v8359 = vpack.c.bf16 %v8345, %v8343
        %v8360 = vpack.c.bf16 %v8346, %v8344
        %v8361 = vpack.c.bf16 %v8349, %v8347
        %v8362 = vpack.c.bf16 %v8350, %v8348
        %v8363 = vpack.c.bf16 %v8353, %v8351
        %v8364 = vpack.c.bf16 %v8354, %v8352
        %v8365 = vpack.c.bf16 %v8357, %v8355
        %v8366 = vpack.c.bf16 %v8358, %v8356
        %v8367 = vld [vmem:[%s14] sm:$0xff]
        %v8368 = vld [vmem:[%s14 + $0x8] sm:$0xff]
        %v8369 = vld [vmem:[%s14 + $0x10] sm:$0xff]
        %v8370 = vld [vmem:[%s14 + $0x18] sm:$0xff]
        %v8371 = vld [vmem:[%s14 + $0x20] sm:$0xff]
        %v8372 = vld [vmem:[%s14 + $0x28] sm:$0xff]
        %v8373 = vld [vmem:[%s14 + $0x30] sm:$0xff]
        %v8374 = vld [vmem:[%s14 + $0x38] sm:$0xff]
        %v8375 = vld [vmem:[%s14 + $0x40] sm:$0xff]
        %v8376 = vld [vmem:[%s14 + $0x48] sm:$0xff]
        %v8377 = vld [vmem:[%s14 + $0x50] sm:$0xff]
        %v8378 = vld [vmem:[%s14 + $0x58] sm:$0xff]
        %v8379 = vld [vmem:[%s14 + $0x60] sm:$0xff]
        %v8380 = vld [vmem:[%s14 + $0x68] sm:$0xff]
        %v8381 = vld [vmem:[%s14 + $0x70] sm:$0xff]
        %v8382 = vld [vmem:[%s14 + $0x78] sm:$0xff]
        %v8383 = vld [vmem:[%s14 + $0x80] sm:$0xff]
        %v8384 = vld [vmem:[%s14 + $0x88] sm:$0xff]
        %v8385 = vld [vmem:[%s14 + $0x90] sm:$0xff]
        %v8386 = vld [vmem:[%s14 + $0x98] sm:$0xff]
        %v8387 = vld [vmem:[%s14 + $0xa0] sm:$0xff]
        %v8388 = vld [vmem:[%s14 + $0xa8] sm:$0xff]
        %v8389 = vld [vmem:[%s14 + $0xb0] sm:$0xff]
        %v8390 = vld [vmem:[%s14 + $0xb8] sm:$0xff]
        %v8391 = vld [vmem:[%s14 + $0xc0] sm:$0xff]
        %v8392 = vld [vmem:[%s14 + $0xc8] sm:$0xff]
        %v8393 = vld [vmem:[%s14 + $0xd0] sm:$0xff]
        %v8394 = vld [vmem:[%s14 + $0xd8] sm:$0xff]
        %v8395 = vld [vmem:[%s14 + $0xe0] sm:$0xff]
        %v8396 = vld [vmem:[%s14 + $0xe8] sm:$0xff]
        %v8397 = vld [vmem:[%s14 + $0xf0] sm:$0xff]
        %v8398 = vld [vmem:[%s14 + $0xf8] sm:$0xff]
        %v8399 = vld [vmem:[%s14 + $0x100] sm:$0xff]
        %v8400 = vld [vmem:[%s14 + $0x108] sm:$0xff]
        %v8401 = vld [vmem:[%s14 + $0x110] sm:$0xff]
        %v8402 = vld [vmem:[%s14 + $0x118] sm:$0xff]
        %v8403 = vld [vmem:[%s14 + $0x120] sm:$0xff]
        %v8404 = vld [vmem:[%s14 + $0x128] sm:$0xff]
        %v8405 = vld [vmem:[%s14 + $0x130] sm:$0xff]
        %v8406 = vld [vmem:[%s14 + $0x138] sm:$0xff]
        %v8407 = vld [vmem:[%s14 + $0x140] sm:$0xff]
        %v8408 = vld [vmem:[%s14 + $0x148] sm:$0xff]
        %v8409 = vld [vmem:[%s14 + $0x150] sm:$0xff]
        %v8410 = vld [vmem:[%s14 + $0x158] sm:$0xff]
        %v8411 = vld [vmem:[%s14 + $0x160] sm:$0xff]
        %v8412 = vld [vmem:[%s14 + $0x168] sm:$0xff]
        %v8413 = vld [vmem:[%s14 + $0x170] sm:$0xff]
        %v8414 = vld [vmem:[%s14 + $0x178] sm:$0xff]
        %v8415 = vld [vmem:[%s14 + $0x180] sm:$0xff]
        %v8416 = vld [vmem:[%s14 + $0x188] sm:$0xff]
        %v8417 = vld [vmem:[%s14 + $0x190] sm:$0xff]
        %v8418 = vld [vmem:[%s14 + $0x198] sm:$0xff]
        %v8419 = vld [vmem:[%s14 + $0x1a0] sm:$0xff]
        %v8420 = vld [vmem:[%s14 + $0x1a8] sm:$0xff]
        %v8421 = vld [vmem:[%s14 + $0x1b0] sm:$0xff]
        %v8422 = vld [vmem:[%s14 + $0x1b8] sm:$0xff]
        %v8423 = vld [vmem:[%s14 + $0x1c0] sm:$0xff]
        %v8424 = vld [vmem:[%s14 + $0x1c8] sm:$0xff]
        %v8425 = vld [vmem:[%s14 + $0x1d0] sm:$0xff]
        %v8426 = vld [vmem:[%s14 + $0x1d8] sm:$0xff]
        %v8427 = vld [vmem:[%s14 + $0x1e0] sm:$0xff]
        %v8428 = vld [vmem:[%s14 + $0x1e8] sm:$0xff]
        %v8429 = vld [vmem:[%s14 + $0x1f0] sm:$0xff]
        %v8430 = vld [vmem:[%s14 + $0x1f8] sm:$0xff]
        %s8431 = scalar_lea.vmem %s17, 22
        %v8432 = vld [vmem:[%s8431] ss:$8 sm:$0x3]
        %v8434 = vlaneseq
        %v8435 = vshrl.u32 %v8434, 7
        %v8436 = vsub.s32 0, %v8435
        %v8437 = vrot.slane %v8432, %v8436
        %v8438 = vlaneseq
        %v8439 = vshrl.u32 %v8438, 7
        %v8440 = vsub.s32 1, %v8439
        %v8441 = vrot.slane %v8432, %v8440
        %v8508 = vunpack.c.l.b16 %v8367
        %v8509 = vunpack.c.h.b16 %v8367
        %v8510 = vunpack.c.l.b16 %v8368
        %v8511 = vunpack.c.h.b16 %v8368
        %v8512 = vunpack.c.l.b16 %v8369
        %v8513 = vunpack.c.h.b16 %v8369
        %v8514 = vunpack.c.l.b16 %v8370
        %v8515 = vunpack.c.h.b16 %v8370
        %v8516 = vunpack.c.l.b16 %v8371
        %v8517 = vunpack.c.h.b16 %v8371
        %v8518 = vunpack.c.l.b16 %v8372
        %v8519 = vunpack.c.h.b16 %v8372
        %v8520 = vunpack.c.l.b16 %v8373
        %v8521 = vunpack.c.h.b16 %v8373
        %v8522 = vunpack.c.l.b16 %v8374
        %v8523 = vunpack.c.h.b16 %v8374
        %v8524 = vunpack.c.l.b16 %v8375
        %v8525 = vunpack.c.h.b16 %v8375
        %v8526 = vunpack.c.l.b16 %v8376
        %v8527 = vunpack.c.h.b16 %v8376
        %v8528 = vunpack.c.l.b16 %v8377
        %v8529 = vunpack.c.h.b16 %v8377
        %v8530 = vunpack.c.l.b16 %v8378
        %v8531 = vunpack.c.h.b16 %v8378
        %v8532 = vunpack.c.l.b16 %v8379
        %v8533 = vunpack.c.h.b16 %v8379
        %v8534 = vunpack.c.l.b16 %v8380
        %v8535 = vunpack.c.h.b16 %v8380
        %v8536 = vunpack.c.l.b16 %v8381
        %v8537 = vunpack.c.h.b16 %v8381
        %v8538 = vunpack.c.l.b16 %v8382
        %v8539 = vunpack.c.h.b16 %v8382
        %v8540 = vunpack.c.l.b16 %v8383
        %v8541 = vunpack.c.h.b16 %v8383
        %v8542 = vunpack.c.l.b16 %v8384
        %v8543 = vunpack.c.h.b16 %v8384
        %v8544 = vunpack.c.l.b16 %v8385
        %v8545 = vunpack.c.h.b16 %v8385
        %v8546 = vunpack.c.l.b16 %v8386
        %v8547 = vunpack.c.h.b16 %v8386
        %v8548 = vunpack.c.l.b16 %v8387
        %v8549 = vunpack.c.h.b16 %v8387
        %v8550 = vunpack.c.l.b16 %v8388
        %v8551 = vunpack.c.h.b16 %v8388
        %v8552 = vunpack.c.l.b16 %v8389
        %v8553 = vunpack.c.h.b16 %v8389
        %v8554 = vunpack.c.l.b16 %v8390
        %v8555 = vunpack.c.h.b16 %v8390
        %v8556 = vunpack.c.l.b16 %v8391
        %v8557 = vunpack.c.h.b16 %v8391
        %v8558 = vunpack.c.l.b16 %v8392
        %v8559 = vunpack.c.h.b16 %v8392
        %v8560 = vunpack.c.l.b16 %v8393
        %v8561 = vunpack.c.h.b16 %v8393
        %v8562 = vunpack.c.l.b16 %v8394
        %v8563 = vunpack.c.h.b16 %v8394
        %v8564 = vunpack.c.l.b16 %v8395
        %v8565 = vunpack.c.h.b16 %v8395
        %v8566 = vunpack.c.l.b16 %v8396
        %v8567 = vunpack.c.h.b16 %v8396
        %v8568 = vunpack.c.l.b16 %v8397
        %v8569 = vunpack.c.h.b16 %v8397
        %v8570 = vunpack.c.l.b16 %v8398
        %v8571 = vunpack.c.h.b16 %v8398
        %v8572 = vunpack.c.l.b16 %v8399
        %v8573 = vunpack.c.h.b16 %v8399
        %v8574 = vunpack.c.l.b16 %v8400
        %v8575 = vunpack.c.h.b16 %v8400
        %v8576 = vunpack.c.l.b16 %v8401
        %v8577 = vunpack.c.h.b16 %v8401
        %v8578 = vunpack.c.l.b16 %v8402
        %v8579 = vunpack.c.h.b16 %v8402
        %v8580 = vunpack.c.l.b16 %v8403
        %v8581 = vunpack.c.h.b16 %v8403
        %v8582 = vunpack.c.l.b16 %v8404
        %v8583 = vunpack.c.h.b16 %v8404
        %v8584 = vunpack.c.l.b16 %v8405
        %v8585 = vunpack.c.h.b16 %v8405
        %v8586 = vunpack.c.l.b16 %v8406
        %v8587 = vunpack.c.h.b16 %v8406
        %v8588 = vunpack.c.l.b16 %v8407
        %v8589 = vunpack.c.h.b16 %v8407
        %v8590 = vunpack.c.l.b16 %v8408
        %v8591 = vunpack.c.h.b16 %v8408
        %v8592 = vunpack.c.l.b16 %v8409
        %v8593 = vunpack.c.h.b16 %v8409
        %v8594 = vunpack.c.l.b16 %v8410
        %v8595 = vunpack.c.h.b16 %v8410
        %v8596 = vunpack.c.l.b16 %v8411
        %v8597 = vunpack.c.h.b16 %v8411
        %v8598 = vunpack.c.l.b16 %v8412
        %v8599 = vunpack.c.h.b16 %v8412
        %v8600 = vunpack.c.l.b16 %v8413
        %v8601 = vunpack.c.h.b16 %v8413
        %v8602 = vunpack.c.l.b16 %v8414
        %v8603 = vunpack.c.h.b16 %v8414
        %v8604 = vunpack.c.l.b16 %v8415
        %v8605 = vunpack.c.h.b16 %v8415
        %v8606 = vunpack.c.l.b16 %v8416
        %v8607 = vunpack.c.h.b16 %v8416
        %v8608 = vunpack.c.l.b16 %v8417
        %v8609 = vunpack.c.h.b16 %v8417
        %v8610 = vunpack.c.l.b16 %v8418
        %v8611 = vunpack.c.h.b16 %v8418
        %v8612 = vunpack.c.l.b16 %v8419
        %v8613 = vunpack.c.h.b16 %v8419
        %v8614 = vunpack.c.l.b16 %v8420
        %v8615 = vunpack.c.h.b16 %v8420
        %v8616 = vunpack.c.l.b16 %v8421
        %v8617 = vunpack.c.h.b16 %v8421
        %v8618 = vunpack.c.l.b16 %v8422
        %v8619 = vunpack.c.h.b16 %v8422
        %v8620 = vunpack.c.l.b16 %v8423
        %v8621 = vunpack.c.h.b16 %v8423
        %v8622 = vunpack.c.l.b16 %v8424
        %v8623 = vunpack.c.h.b16 %v8424
        %v8624 = vunpack.c.l.b16 %v8425
        %v8625 = vunpack.c.h.b16 %v8425
        %v8626 = vunpack.c.l.b16 %v8426
        %v8627 = vunpack.c.h.b16 %v8426
        %v8628 = vunpack.c.l.b16 %v8427
        %v8629 = vunpack.c.h.b16 %v8427
        %v8630 = vunpack.c.l.b16 %v8428
        %v8631 = vunpack.c.h.b16 %v8428
        %v8632 = vunpack.c.l.b16 %v8429
        %v8633 = vunpack.c.h.b16 %v8429
        %v8634 = vunpack.c.l.b16 %v8430
        %v8635 = vunpack.c.h.b16 %v8430
        %v8636 = vpack.c.b16 %v8510, %v8508
        %v8637 = vpack.c.b16 %v8511, %v8509
        %v8638 = vpack.c.b16 %v8514, %v8512
        %v8639 = vpack.c.b16 %v8515, %v8513
        %v8640 = vpack.c.b16 %v8518, %v8516
        %v8641 = vpack.c.b16 %v8519, %v8517
        %v8642 = vpack.c.b16 %v8522, %v8520
        %v8643 = vpack.c.b16 %v8523, %v8521
        %v8644 = vpack.c.b16 %v8526, %v8524
        %v8645 = vpack.c.b16 %v8527, %v8525
        %v8646 = vpack.c.b16 %v8530, %v8528
        %v8647 = vpack.c.b16 %v8531, %v8529
        %v8648 = vpack.c.b16 %v8534, %v8532
        %v8649 = vpack.c.b16 %v8535, %v8533
        %v8650 = vpack.c.b16 %v8538, %v8536
        %v8651 = vpack.c.b16 %v8539, %v8537
        %v8652 = vpack.c.b16 %v8542, %v8540
        %v8653 = vpack.c.b16 %v8543, %v8541
        %v8654 = vpack.c.b16 %v8546, %v8544
        %v8655 = vpack.c.b16 %v8547, %v8545
        %v8656 = vpack.c.b16 %v8550, %v8548
        %v8657 = vpack.c.b16 %v8551, %v8549
        %v8658 = vpack.c.b16 %v8554, %v8552
        %v8659 = vpack.c.b16 %v8555, %v8553
        %v8660 = vpack.c.b16 %v8558, %v8556
        %v8661 = vpack.c.b16 %v8559, %v8557
        %v8662 = vpack.c.b16 %v8562, %v8560
        %v8663 = vpack.c.b16 %v8563, %v8561
        %v8664 = vpack.c.b16 %v8566, %v8564
        %v8665 = vpack.c.b16 %v8567, %v8565
        %v8666 = vpack.c.b16 %v8570, %v8568
        %v8667 = vpack.c.b16 %v8571, %v8569
        %v8668 = vpack.c.b16 %v8574, %v8572
        %v8669 = vpack.c.b16 %v8575, %v8573
        %v8670 = vpack.c.b16 %v8578, %v8576
        %v8671 = vpack.c.b16 %v8579, %v8577
        %v8672 = vpack.c.b16 %v8582, %v8580
        %v8673 = vpack.c.b16 %v8583, %v8581
        %v8674 = vpack.c.b16 %v8586, %v8584
        %v8675 = vpack.c.b16 %v8587, %v8585
        %v8676 = vpack.c.b16 %v8590, %v8588
        %v8677 = vpack.c.b16 %v8591, %v8589
        %v8678 = vpack.c.b16 %v8594, %v8592
        %v8679 = vpack.c.b16 %v8595, %v8593
        %v8680 = vpack.c.b16 %v8598, %v8596
        %v8681 = vpack.c.b16 %v8599, %v8597
        %v8682 = vpack.c.b16 %v8602, %v8600
        %v8683 = vpack.c.b16 %v8603, %v8601
        %v8684 = vpack.c.b16 %v8606, %v8604
        %v8685 = vpack.c.b16 %v8607, %v8605
        %v8686 = vpack.c.b16 %v8610, %v8608
        %v8687 = vpack.c.b16 %v8611, %v8609
        %v8688 = vpack.c.b16 %v8614, %v8612
        %v8689 = vpack.c.b16 %v8615, %v8613
        %v8690 = vpack.c.b16 %v8618, %v8616
        %v8691 = vpack.c.b16 %v8619, %v8617
        %v8692 = vpack.c.b16 %v8622, %v8620
        %v8693 = vpack.c.b16 %v8623, %v8621
        %v8694 = vpack.c.b16 %v8626, %v8624
        %v8695 = vpack.c.b16 %v8627, %v8625
        %v8696 = vpack.c.b16 %v8630, %v8628
        %v8697 = vpack.c.b16 %v8631, %v8629
        %v8698 = vpack.c.b16 %v8634, %v8632
        %v8699 = vpack.c.b16 %v8635, %v8633
        %8764 = vmatprep.subr.bf16.mxu0 %v8651
        %8765 = vmatpush1.bf16.msra.mxu0 %v8650
        %8766 = vmatprep.subr.bf16.mxu0 %v8649
        %8767 = vmatpush1.bf16.msra.mxu0 %v8648
        %8768 = vmatprep.subr.bf16.mxu0 %v8647
        %8769 = vmatpush1.bf16.msra.mxu0 %v8646
        %8770 = vmatprep.subr.bf16.mxu0 %v8645
        %8771 = vmatpush1.bf16.msra.mxu0 %v8644
        %8772 = vmatprep.subr.bf16.mxu0 %v8643
        %8773 = vmatpush1.bf16.msra.mxu0 %v8642
        %8774 = vmatprep.subr.bf16.mxu0 %v8641
        %8775 = vmatpush1.bf16.msra.mxu0 %v8640
        %8776 = vmatprep.subr.bf16.mxu0 %v8639
        %8777 = vmatpush1.bf16.msra.mxu0 %v8638
        %8778 = vmatprep.subr.bf16.mxu0 %v8637
        %8779 = vmatpush1.bf16.msra.mxu0 %v8636
        %8780 = vmatprep.subr.bf16.mxu0 %v8667
        %8781 = vmatpush2.bf16.msra.mxu0 %v8666
        %8782 = vmatprep.subr.bf16.mxu0 %v8665
        %8783 = vmatpush2.bf16.msra.mxu0 %v8664
        %8784 = vmatprep.subr.bf16.mxu0 %v8663
        %8785 = vmatpush2.bf16.msra.mxu0 %v8662
        %8786 = vmatprep.subr.bf16.mxu0 %v8661
        %8787 = vmatpush2.bf16.msra.mxu0 %v8660
        %8788 = vmatprep.subr.bf16.mxu0 %v8659
        %8789 = vmatpush2.bf16.msra.mxu0 %v8658
        %8790 = vmatprep.subr.bf16.mxu0 %v8657
        %8791 = vmatpush2.bf16.msra.mxu0 %v8656
        %8792 = vmatprep.subr.bf16.mxu0 %v8655
        %8793 = vmatpush2.bf16.msra.mxu0 %v8654
        %8794 = vmatprep.subr.bf16.mxu0 %v8653
        %8795 = vmatpush2.bf16.msra.mxu0 %v8652
        %8796 = vmatprep.mubr.bf16.mxu0 %v8360
        %8797 = vmatmul.mubr.bf16.gmra.mxu0 %v8359
        %v8798 = vpop.f32.mrf.mxu0
        %v8799 = vadd.f32 %v8437, %v8798
        %v8800 = vpop.f32.mrf.mxu0
        %v8801 = vadd.f32 %v8441, %v8800
        %v8802 = vpop.f32.mrf.mxu0
        %v8803 = vadd.f32 %v8437, %v8802
        %v8804 = vpop.f32.mrf.mxu0
        %v8805 = vadd.f32 %v8441, %v8804
        %8806 = vmatprep.mubr.bf16.mxu0 %v8362
        %8807 = vmatmul.mubr.bf16.gmra.mxu0 %v8361
        %v8808 = vpop.f32.mrf.mxu0
        %v8809 = vadd.f32 %v8437, %v8808
        %v8810 = vpop.f32.mrf.mxu0
        %v8811 = vadd.f32 %v8441, %v8810
        %v8812 = vpop.f32.mrf.mxu0
        %v8813 = vadd.f32 %v8437, %v8812
        %v8814 = vpop.f32.mrf.mxu0
        %v8815 = vadd.f32 %v8441, %v8814
        %8816 = vmatprep.mubr.bf16.mxu0 %v8364
        %8817 = vmatmul.mubr.bf16.gmra.mxu0 %v8363
        %v8818 = vpop.f32.mrf.mxu0
        %v8819 = vadd.f32 %v8437, %v8818
        %v8820 = vpop.f32.mrf.mxu0
        %v8821 = vadd.f32 %v8441, %v8820
        %v8822 = vpop.f32.mrf.mxu0
        %v8823 = vadd.f32 %v8437, %v8822
        %v8824 = vpop.f32.mrf.mxu0
        %v8825 = vadd.f32 %v8441, %v8824
        %8826 = vmatprep.mubr.bf16.mxu0 %v8366
        %8827 = vmatmul.mubr.bf16.gmra.mxu0 %v8365
        %v8828 = vpop.f32.mrf.mxu0
        %v8829 = vadd.f32 %v8437, %v8828
        %v8830 = vpop.f32.mrf.mxu0
        %v8831 = vadd.f32 %v8441, %v8830
        %v8832 = vpop.f32.mrf.mxu0
        %v8833 = vadd.f32 %v8437, %v8832
        %v8834 = vpop.f32.mrf.mxu0
        %v8835 = vadd.f32 %v8441, %v8834
        %8836 = vdwg.mxu0
        %8837 = vmatprep.subr.bf16.mxu0 %v8683
        %8838 = vmatpush1.bf16.msra.mxu0 %v8682
        %8839 = vmatprep.subr.bf16.mxu0 %v8681
        %8840 = vmatpush1.bf16.msra.mxu0 %v8680
        %8841 = vmatprep.subr.bf16.mxu0 %v8679
        %8842 = vmatpush1.bf16.msra.mxu0 %v8678
        %8843 = vmatprep.subr.bf16.mxu0 %v8677
        %8844 = vmatpush1.bf16.msra.mxu0 %v8676
        %8845 = vmatprep.subr.bf16.mxu0 %v8675
        %8846 = vmatpush1.bf16.msra.mxu0 %v8674
        %8847 = vmatprep.subr.bf16.mxu0 %v8673
        %8848 = vmatpush1.bf16.msra.mxu0 %v8672
        %8849 = vmatprep.subr.bf16.mxu0 %v8671
        %8850 = vmatpush1.bf16.msra.mxu0 %v8670
        %8851 = vmatprep.subr.bf16.mxu0 %v8669
        %8852 = vmatpush1.bf16.msra.mxu0 %v8668
        %8853 = vmatprep.subr.bf16.mxu0 %v8699
        %8854 = vmatpush2.bf16.msra.mxu0 %v8698
        %8855 = vmatprep.subr.bf16.mxu0 %v8697
        %8856 = vmatpush2.bf16.msra.mxu0 %v8696
        %8857 = vmatprep.subr.bf16.mxu0 %v8695
        %8858 = vmatpush2.bf16.msra.mxu0 %v8694
        %8859 = vmatprep.subr.bf16.mxu0 %v8693
        %8860 = vmatpush2.bf16.msra.mxu0 %v8692
        %8861 = vmatprep.subr.bf16.mxu0 %v8691
        %8862 = vmatpush2.bf16.msra.mxu0 %v8690
        %8863 = vmatprep.subr.bf16.mxu0 %v8689
        %8864 = vmatpush2.bf16.msra.mxu0 %v8688
        %8865 = vmatprep.subr.bf16.mxu0 %v8687
        %8866 = vmatpush2.bf16.msra.mxu0 %v8686
        %8867 = vmatprep.subr.bf16.mxu0 %v8685
        %8868 = vmatpush2.bf16.msra.mxu0 %v8684
        %8869 = vmatprep.mubr.bf16.mxu0 %v2342
        %8870 = vmatmul.mubr.bf16.gmra.mxu0 %v2341
        %v8871 = vpop.f32.mrf.mxu0
        %v8872 = vadd.f32 %v8799, %v8871
        %v8873 = vpop.f32.mrf.mxu0
        %v8874 = vadd.f32 %v8801, %v8873
        %v8875 = vpop.f32.mrf.mxu0
        %v8876 = vadd.f32 %v8803, %v8875
        %v8877 = vpop.f32.mrf.mxu0
        %v8878 = vadd.f32 %v8805, %v8877
        %8879 = vmatprep.mubr.bf16.mxu0 %v2344
        %8880 = vmatmul.mubr.bf16.gmra.mxu0 %v2343
        %v8881 = vpop.f32.mrf.mxu0
        %v8882 = vadd.f32 %v8809, %v8881
        %v8883 = vpop.f32.mrf.mxu0
        %v8884 = vadd.f32 %v8811, %v8883
        %v8885 = vpop.f32.mrf.mxu0
        %v8886 = vadd.f32 %v8813, %v8885
        %v8887 = vpop.f32.mrf.mxu0
        %v8888 = vadd.f32 %v8815, %v8887
        %8889 = vmatprep.mubr.bf16.mxu0 %v2346
        %8890 = vmatmul.mubr.bf16.gmra.mxu0 %v2345
        %v8891 = vpop.f32.mrf.mxu0
        %v8892 = vadd.f32 %v8819, %v8891
        %v8893 = vpop.f32.mrf.mxu0
        %v8894 = vadd.f32 %v8821, %v8893
        %v8895 = vpop.f32.mrf.mxu0
        %v8896 = vadd.f32 %v8823, %v8895
        %v8897 = vpop.f32.mrf.mxu0
        %v8898 = vadd.f32 %v8825, %v8897
        %8899 = vmatprep.mubr.bf16.mxu0 %v2348
        %8900 = vmatmul.mubr.bf16.gmra.mxu0 %v2347
        %v8901 = vpop.f32.mrf.mxu0
        %v8902 = vadd.f32 %v8829, %v8901
        %v8903 = vpop.f32.mrf.mxu0
        %v8904 = vadd.f32 %v8831, %v8903
        %v8905 = vpop.f32.mrf.mxu0
        %v8906 = vadd.f32 %v8833, %v8905
        %v8907 = vpop.f32.mrf.mxu0
        %v8908 = vadd.f32 %v8835, %v8907
        %8909 = vdwg.mxu0
        %v8910 = vld [vmem:[%s15] sm:$0xff]
        %v8911 = vld [vmem:[%s15 + $0x8] sm:$0xff]
        %v8912 = vld [vmem:[%s15 + $0x10] sm:$0xff]
        %v8913 = vld [vmem:[%s15 + $0x18] sm:$0xff]
        %v8914 = vld [vmem:[%s15 + $0x20] sm:$0xff]
        %v8915 = vld [vmem:[%s15 + $0x28] sm:$0xff]
        %v8916 = vld [vmem:[%s15 + $0x30] sm:$0xff]
        %v8917 = vld [vmem:[%s15 + $0x38] sm:$0xff]
        %v8918 = vld [vmem:[%s15 + $0x40] sm:$0xff]
        %v8919 = vld [vmem:[%s15 + $0x48] sm:$0xff]
        %v8920 = vld [vmem:[%s15 + $0x50] sm:$0xff]
        %v8921 = vld [vmem:[%s15 + $0x58] sm:$0xff]
        %v8922 = vld [vmem:[%s15 + $0x60] sm:$0xff]
        %v8923 = vld [vmem:[%s15 + $0x68] sm:$0xff]
        %v8924 = vld [vmem:[%s15 + $0x70] sm:$0xff]
        %v8925 = vld [vmem:[%s15 + $0x78] sm:$0xff]
        %v8926 = vld [vmem:[%s15 + $0x80] sm:$0xff]
        %v8927 = vld [vmem:[%s15 + $0x88] sm:$0xff]
        %v8928 = vld [vmem:[%s15 + $0x90] sm:$0xff]
        %v8929 = vld [vmem:[%s15 + $0x98] sm:$0xff]
        %v8930 = vld [vmem:[%s15 + $0xa0] sm:$0xff]
        %v8931 = vld [vmem:[%s15 + $0xa8] sm:$0xff]
        %v8932 = vld [vmem:[%s15 + $0xb0] sm:$0xff]
        %v8933 = vld [vmem:[%s15 + $0xb8] sm:$0xff]
        %v8934 = vld [vmem:[%s15 + $0xc0] sm:$0xff]
        %v8935 = vld [vmem:[%s15 + $0xc8] sm:$0xff]
        %v8936 = vld [vmem:[%s15 + $0xd0] sm:$0xff]
        %v8937 = vld [vmem:[%s15 + $0xd8] sm:$0xff]
        %v8938 = vld [vmem:[%s15 + $0xe0] sm:$0xff]
        %v8939 = vld [vmem:[%s15 + $0xe8] sm:$0xff]
        %v8940 = vld [vmem:[%s15 + $0xf0] sm:$0xff]
        %v8941 = vld [vmem:[%s15 + $0xf8] sm:$0xff]
        %v8942 = vpack.c.bf16 %v8876, %v8872
        %v8943 = vpack.c.bf16 %v8878, %v8874
        %v8944 = vpack.c.bf16 %v8886, %v8882
        %v8945 = vpack.c.bf16 %v8888, %v8884
        %v8946 = vpack.c.bf16 %v8896, %v8892
        %v8947 = vpack.c.bf16 %v8898, %v8894
        %v8948 = vpack.c.bf16 %v8906, %v8902
        %v8949 = vpack.c.bf16 %v8908, %v8904
        %v8982 = vunpack.c.l.b16 %v8910
        %v8983 = vunpack.c.h.b16 %v8910
        %v8984 = vunpack.c.l.b16 %v8911
        %v8985 = vunpack.c.h.b16 %v8911
        %v8986 = vunpack.c.l.b16 %v8912
        %v8987 = vunpack.c.h.b16 %v8912
        %v8988 = vunpack.c.l.b16 %v8913
        %v8989 = vunpack.c.h.b16 %v8913
        %v8990 = vunpack.c.l.b16 %v8914
        %v8991 = vunpack.c.h.b16 %v8914
        %v8992 = vunpack.c.l.b16 %v8915
        %v8993 = vunpack.c.h.b16 %v8915
        %v8994 = vunpack.c.l.b16 %v8916
        %v8995 = vunpack.c.h.b16 %v8916
        %v8996 = vunpack.c.l.b16 %v8917
        %v8997 = vunpack.c.h.b16 %v8917
        %v8998 = vunpack.c.l.b16 %v8918
        %v8999 = vunpack.c.h.b16 %v8918
        %v9000 = vunpack.c.l.b16 %v8919
        %v9001 = vunpack.c.h.b16 %v8919
        %v9002 = vunpack.c.l.b16 %v8920
        %v9003 = vunpack.c.h.b16 %v8920
        %v9004 = vunpack.c.l.b16 %v8921
        %v9005 = vunpack.c.h.b16 %v8921
        %v9006 = vunpack.c.l.b16 %v8922
        %v9007 = vunpack.c.h.b16 %v8922
        %v9008 = vunpack.c.l.b16 %v8923
        %v9009 = vunpack.c.h.b16 %v8923
        %v9010 = vunpack.c.l.b16 %v8924
        %v9011 = vunpack.c.h.b16 %v8924
        %v9012 = vunpack.c.l.b16 %v8925
        %v9013 = vunpack.c.h.b16 %v8925
        %v9014 = vunpack.c.l.b16 %v8926
        %v9015 = vunpack.c.h.b16 %v8926
        %v9016 = vunpack.c.l.b16 %v8927
        %v9017 = vunpack.c.h.b16 %v8927
        %v9018 = vunpack.c.l.b16 %v8928
        %v9019 = vunpack.c.h.b16 %v8928
        %v9020 = vunpack.c.l.b16 %v8929
        %v9021 = vunpack.c.h.b16 %v8929
        %v9022 = vunpack.c.l.b16 %v8930
        %v9023 = vunpack.c.h.b16 %v8930
        %v9024 = vunpack.c.l.b16 %v8931
        %v9025 = vunpack.c.h.b16 %v8931
        %v9026 = vunpack.c.l.b16 %v8932
        %v9027 = vunpack.c.h.b16 %v8932
        %v9028 = vunpack.c.l.b16 %v8933
        %v9029 = vunpack.c.h.b16 %v8933
        %v9030 = vunpack.c.l.b16 %v8934
        %v9031 = vunpack.c.h.b16 %v8934
        %v9032 = vunpack.c.l.b16 %v8935
        %v9033 = vunpack.c.h.b16 %v8935
        %v9034 = vunpack.c.l.b16 %v8936
        %v9035 = vunpack.c.h.b16 %v8936
        %v9036 = vunpack.c.l.b16 %v8937
        %v9037 = vunpack.c.h.b16 %v8937
        %v9038 = vunpack.c.l.b16 %v8938
        %v9039 = vunpack.c.h.b16 %v8938
        %v9040 = vunpack.c.l.b16 %v8939
        %v9041 = vunpack.c.h.b16 %v8939
        %v9042 = vunpack.c.l.b16 %v8940
        %v9043 = vunpack.c.h.b16 %v8940
        %v9044 = vunpack.c.l.b16 %v8941
        %v9045 = vunpack.c.h.b16 %v8941
        %v9046 = vpack.c.b16 %v8984, %v8982
        %v9047 = vpack.c.b16 %v8985, %v8983
        %v9048 = vpack.c.b16 %v8988, %v8986
        %v9049 = vpack.c.b16 %v8989, %v8987
        %v9050 = vpack.c.b16 %v8992, %v8990
        %v9051 = vpack.c.b16 %v8993, %v8991
        %v9052 = vpack.c.b16 %v8996, %v8994
        %v9053 = vpack.c.b16 %v8997, %v8995
        %v9054 = vpack.c.b16 %v9000, %v8998
        %v9055 = vpack.c.b16 %v9001, %v8999
        %v9056 = vpack.c.b16 %v9004, %v9002
        %v9057 = vpack.c.b16 %v9005, %v9003
        %v9058 = vpack.c.b16 %v9008, %v9006
        %v9059 = vpack.c.b16 %v9009, %v9007
        %v9060 = vpack.c.b16 %v9012, %v9010
        %v9061 = vpack.c.b16 %v9013, %v9011
        %v9062 = vpack.c.b16 %v9016, %v9014
        %v9063 = vpack.c.b16 %v9017, %v9015
        %v9064 = vpack.c.b16 %v9020, %v9018
        %v9065 = vpack.c.b16 %v9021, %v9019
        %v9066 = vpack.c.b16 %v9024, %v9022
        %v9067 = vpack.c.b16 %v9025, %v9023
        %v9068 = vpack.c.b16 %v9028, %v9026
        %v9069 = vpack.c.b16 %v9029, %v9027
        %v9070 = vpack.c.b16 %v9032, %v9030
        %v9071 = vpack.c.b16 %v9033, %v9031
        %v9072 = vpack.c.b16 %v9036, %v9034
        %v9073 = vpack.c.b16 %v9037, %v9035
        %v9074 = vpack.c.b16 %v9040, %v9038
        %v9075 = vpack.c.b16 %v9041, %v9039
        %v9076 = vpack.c.b16 %v9044, %v9042
        %v9077 = vpack.c.b16 %v9045, %v9043
        %9110 = vmatprep.subr.bf16.mxu0 %v9061
        %9111 = vmatpush1.bf16.msra.mxu0 %v9060
        %9112 = vmatprep.subr.bf16.mxu0 %v9059
        %9113 = vmatpush1.bf16.msra.mxu0 %v9058
        %9114 = vmatprep.subr.bf16.mxu0 %v9057
        %9115 = vmatpush1.bf16.msra.mxu0 %v9056
        %9116 = vmatprep.subr.bf16.mxu0 %v9055
        %9117 = vmatpush1.bf16.msra.mxu0 %v9054
        %9118 = vmatprep.subr.bf16.mxu0 %v9053
        %9119 = vmatpush1.bf16.msra.mxu0 %v9052
        %9120 = vmatprep.subr.bf16.mxu0 %v9051
        %9121 = vmatpush1.bf16.msra.mxu0 %v9050
        %9122 = vmatprep.subr.bf16.mxu0 %v9049
        %9123 = vmatpush1.bf16.msra.mxu0 %v9048
        %9124 = vmatprep.subr.bf16.mxu0 %v9047
        %9125 = vmatpush1.bf16.msra.mxu0 %v9046
        %9126 = vmatprep.subr.bf16.mxu0 %v9077
        %9127 = vmatpush2.bf16.msra.mxu0 %v9076
        %9128 = vmatprep.subr.bf16.mxu0 %v9075
        %9129 = vmatpush2.bf16.msra.mxu0 %v9074
        %9130 = vmatprep.subr.bf16.mxu0 %v9073
        %9131 = vmatpush2.bf16.msra.mxu0 %v9072
        %9132 = vmatprep.subr.bf16.mxu0 %v9071
        %9133 = vmatpush2.bf16.msra.mxu0 %v9070
        %9134 = vmatprep.subr.bf16.mxu0 %v9069
        %9135 = vmatpush2.bf16.msra.mxu0 %v9068
        %9136 = vmatprep.subr.bf16.mxu0 %v9067
        %9137 = vmatpush2.bf16.msra.mxu0 %v9066
        %9138 = vmatprep.subr.bf16.mxu0 %v9065
        %9139 = vmatpush2.bf16.msra.mxu0 %v9064
        %9140 = vmatprep.subr.bf16.mxu0 %v9063
        %9141 = vmatpush2.bf16.msra.mxu0 %v9062
        %9142 = vmatprep.mubr.bf16.mxu0 %v8943
        %9143 = vmatmul.mubr.bf16.gmra.mxu0 %v8942
        %v9144 = vpop.f32.mrf.mxu0
        %v9145 = vadd.f32 0.0, %v9144
        %v9146 = vpop.f32.mrf.mxu0
        %v9147 = vadd.f32 0.0, %v9146
        %v9148 = vpop.f32.mrf.mxu0
        %v9149 = vadd.f32 0.0, %v9148
        %v9150 = vpop.f32.mrf.mxu0
        %v9151 = vadd.f32 0.0, %v9150
        %9152 = vmatprep.mubr.bf16.mxu0 %v8945
        %9153 = vmatmul.mubr.bf16.gmra.mxu0 %v8944
        %v9154 = vpop.f32.mrf.mxu0
        %v9155 = vadd.f32 0.0, %v9154
        %v9156 = vpop.f32.mrf.mxu0
        %v9157 = vadd.f32 0.0, %v9156
        %v9158 = vpop.f32.mrf.mxu0
        %v9159 = vadd.f32 0.0, %v9158
        %v9160 = vpop.f32.mrf.mxu0
        %v9161 = vadd.f32 0.0, %v9160
        %9162 = vmatprep.mubr.bf16.mxu0 %v8947
        %9163 = vmatmul.mubr.bf16.gmra.mxu0 %v8946
        %v9164 = vpop.f32.mrf.mxu0
        %v9165 = vadd.f32 0.0, %v9164
        %v9166 = vpop.f32.mrf.mxu0
        %v9167 = vadd.f32 0.0, %v9166
        %v9168 = vpop.f32.mrf.mxu0
        %v9169 = vadd.f32 0.0, %v9168
        %v9170 = vpop.f32.mrf.mxu0
        %v9171 = vadd.f32 0.0, %v9170
        %9172 = vmatprep.mubr.bf16.mxu0 %v8949
        %9173 = vmatmul.mubr.bf16.gmra.mxu0 %v8948
        %v9174 = vpop.f32.mrf.mxu0
        %v9175 = vadd.f32 0.0, %v9174
        %v9176 = vpop.f32.mrf.mxu0
        %v9177 = vadd.f32 0.0, %v9176
        %v9178 = vpop.f32.mrf.mxu0
        %v9179 = vadd.f32 0.0, %v9178
        %v9180 = vpop.f32.mrf.mxu0
        %v9181 = vadd.f32 0.0, %v9180
        %9182 = vdwg.mxu0
        %v9183 = vadd.f32 %v9145, %v9147
        %9184 = vadd.xlane.f32.xlu0 %v9183
        %v9185 = vpop.xlane.xlu0 %9184
        %v9186 = vadd.f32 %v9149, %v9151
        %9187 = vadd.xlane.f32.xlu0 %v9186
        %v9188 = vpop.xlane.xlu0 %9187
        %v9189 = vadd.f32 %v9155, %v9157
        %9190 = vadd.xlane.f32.xlu0 %v9189
        %v9191 = vpop.xlane.xlu0 %9190
        %v9192 = vadd.f32 %v9159, %v9161
        %9193 = vadd.xlane.f32.xlu0 %v9192
        %v9194 = vpop.xlane.xlu0 %9193
        %v9195 = vadd.f32 %v9165, %v9167
        %9196 = vadd.xlane.f32.xlu0 %v9195
        %v9197 = vpop.xlane.xlu0 %9196
        %v9198 = vadd.f32 %v9169, %v9171
        %9199 = vadd.xlane.f32.xlu0 %v9198
        %v9200 = vpop.xlane.xlu0 %9199
        %v9201 = vadd.f32 %v9175, %v9177
        %9202 = vadd.xlane.f32.xlu0 %v9201
        %v9203 = vpop.xlane.xlu0 %9202
        %v9204 = vadd.f32 %v9179, %v9181
        %9205 = vadd.xlane.f32.xlu0 %v9204
        %v9206 = vpop.xlane.xlu0 %9205
        %v9207 = vmul.f32 %v9185, %v2998
        %v9208 = vmul.f32 %v9188, %v2998
        %v9209 = vmul.f32 %v9191, %v2998
        %v9210 = vmul.f32 %v9194, %v2998
        %v9211 = vmul.f32 %v9197, %v2998
        %v9212 = vmul.f32 %v9200, %v2998
        %v9213 = vmul.f32 %v9203, %v2998
        %v9214 = vmul.f32 %v9206, %v2998
        %v9215 = vmul.f32 %v9145, %v9145
        %v9216 = vmul.f32 %v9147, %v9147
        %v9217 = vmul.f32 %v9149, %v9149
        %v9218 = vmul.f32 %v9151, %v9151
        %v9219 = vmul.f32 %v9155, %v9155
        %v9220 = vmul.f32 %v9157, %v9157
        %v9221 = vmul.f32 %v9159, %v9159
        %v9222 = vmul.f32 %v9161, %v9161
        %v9223 = vmul.f32 %v9165, %v9165
        %v9224 = vmul.f32 %v9167, %v9167
        %v9225 = vmul.f32 %v9169, %v9169
        %v9226 = vmul.f32 %v9171, %v9171
        %v9227 = vmul.f32 %v9175, %v9175
        %v9228 = vmul.f32 %v9177, %v9177
        %v9229 = vmul.f32 %v9179, %v9179
        %v9230 = vmul.f32 %v9181, %v9181
        %v9231 = vadd.f32 %v9215, %v9216
        %9232 = vadd.xlane.f32.xlu0 %v9231
        %v9233 = vpop.xlane.xlu0 %9232
        %v9234 = vadd.f32 %v9217, %v9218
        %9235 = vadd.xlane.f32.xlu0 %v9234
        %v9236 = vpop.xlane.xlu0 %9235
        %v9237 = vadd.f32 %v9219, %v9220
        %9238 = vadd.xlane.f32.xlu0 %v9237
        %v9239 = vpop.xlane.xlu0 %9238
        %v9240 = vadd.f32 %v9221, %v9222
        %9241 = vadd.xlane.f32.xlu0 %v9240
        %v9242 = vpop.xlane.xlu0 %9241
        %v9243 = vadd.f32 %v9223, %v9224
        %9244 = vadd.xlane.f32.xlu0 %v9243
        %v9245 = vpop.xlane.xlu0 %9244
        %v9246 = vadd.f32 %v9225, %v9226
        %9247 = vadd.xlane.f32.xlu0 %v9246
        %v9248 = vpop.xlane.xlu0 %9247
        %v9249 = vadd.f32 %v9227, %v9228
        %9250 = vadd.xlane.f32.xlu0 %v9249
        %v9251 = vpop.xlane.xlu0 %9250
        %v9252 = vadd.f32 %v9229, %v9230
        %9253 = vadd.xlane.f32.xlu0 %v9252
        %v9254 = vpop.xlane.xlu0 %9253
        %v9255 = vmul.f32 %v9233, %v2998
        %v9256 = vmul.f32 %v9236, %v2998
        %v9257 = vmul.f32 %v9239, %v2998
        %v9258 = vmul.f32 %v9242, %v2998
        %v9259 = vmul.f32 %v9245, %v2998
        %v9260 = vmul.f32 %v9248, %v2998
        %v9261 = vmul.f32 %v9251, %v2998
        %v9262 = vmul.f32 %v9254, %v2998
        %v9263 = vmul.f32 %v9207, %v9207
        %v9264 = vmul.f32 %v9208, %v9208
        %v9265 = vmul.f32 %v9209, %v9209
        %v9266 = vmul.f32 %v9210, %v9210
        %v9267 = vmul.f32 %v9211, %v9211
        %v9268 = vmul.f32 %v9212, %v9212
        %v9269 = vmul.f32 %v9213, %v9213
        %v9270 = vmul.f32 %v9214, %v9214
        %v9271 = vsub.f32 %v9255, %v9263
        %v9272 = vsub.f32 %v9256, %v9264
        %v9273 = vsub.f32 %v9257, %v9265
        %v9274 = vsub.f32 %v9258, %v9266
        %v9275 = vsub.f32 %v9259, %v9267
        %v9276 = vsub.f32 %v9260, %v9268
        %v9277 = vsub.f32 %v9261, %v9269
        %v9278 = vsub.f32 %v9262, %v9270
        %v9279 = vmax.f32 %v9271, 0.0
        %v9280 = vmax.f32 %v9272, 0.0
        %v9281 = vmax.f32 %v9273, 0.0
        %v9282 = vmax.f32 %v9274, 0.0
        %v9283 = vmax.f32 %v9275, 0.0
        %v9284 = vmax.f32 %v9276, 0.0
        %v9285 = vmax.f32 %v9277, 0.0
        %v9286 = vmax.f32 %v9278, 0.0
        %v9287 = vsub.f32 %v9145, %v9207
        %v9288 = vsub.f32 %v9147, %v9207
        %v9289 = vsub.f32 %v9149, %v9208
        %v9290 = vsub.f32 %v9151, %v9208
        %v9291 = vsub.f32 %v9155, %v9209
        %v9292 = vsub.f32 %v9157, %v9209
        %v9293 = vsub.f32 %v9159, %v9210
        %v9294 = vsub.f32 %v9161, %v9210
        %v9295 = vsub.f32 %v9165, %v9211
        %v9296 = vsub.f32 %v9167, %v9211
        %v9297 = vsub.f32 %v9169, %v9212
        %v9298 = vsub.f32 %v9171, %v9212
        %v9299 = vsub.f32 %v9175, %v9213
        %v9300 = vsub.f32 %v9177, %v9213
        %v9301 = vsub.f32 %v9179, %v9214
        %v9302 = vsub.f32 %v9181, %v9214
        %v9303 = vadd.f32 %v9279, 1e-05
        %v9304 = vadd.f32 %v9280, 1e-05
        %v9305 = vadd.f32 %v9281, 1e-05
        %v9306 = vadd.f32 %v9282, 1e-05
        %v9307 = vadd.f32 %v9283, 1e-05
        %v9308 = vadd.f32 %v9284, 1e-05
        %v9309 = vadd.f32 %v9285, 1e-05
        %v9310 = vadd.f32 %v9286, 1e-05
        %v9311 = vrsqrt.pop %v9303
        %v9312 = vrsqrt.pop %v9304
        %v9313 = vrsqrt.pop %v9305
        %v9314 = vrsqrt.pop %v9306
        %v9315 = vrsqrt.pop %v9307
        %v9316 = vrsqrt.pop %v9308
        %v9317 = vrsqrt.pop %v9309
        %v9318 = vrsqrt.pop %v9310
        %v9319 = vmul.f32 %v9287, %v9311
        %v9320 = vmul.f32 %v9288, %v9311
        %v9321 = vmul.f32 %v9289, %v9312
        %v9322 = vmul.f32 %v9290, %v9312
        %v9323 = vmul.f32 %v9291, %v9313
        %v9324 = vmul.f32 %v9292, %v9313
        %v9325 = vmul.f32 %v9293, %v9314
        %v9326 = vmul.f32 %v9294, %v9314
        %v9327 = vmul.f32 %v9295, %v9315
        %v9328 = vmul.f32 %v9296, %v9315
        %v9329 = vmul.f32 %v9297, %v9316
        %v9330 = vmul.f32 %v9298, %v9316
        %v9331 = vmul.f32 %v9299, %v9317
        %v9332 = vmul.f32 %v9300, %v9317
        %v9333 = vmul.f32 %v9301, %v9318
        %v9334 = vmul.f32 %v9302, %v9318
        %s9335 = scalar_lea.vmem %s17, 33
        %v9336 = vld [vmem:[%s9335] ss:$8 sm:$0x3]
        %v9338 = vlaneseq
        %v9339 = vshrl.u32 %v9338, 7
        %v9340 = vsub.s32 0, %v9339
        %v9341 = vrot.slane %v9336, %v9340
        %v9342 = vlaneseq
        %v9343 = vshrl.u32 %v9342, 7
        %v9344 = vsub.s32 1, %v9343
        %v9345 = vrot.slane %v9336, %v9344
        %v9348 = vmul.f32 %v9319, %v9341
        %v9349 = vmul.f32 %v9320, %v9345
        %v9350 = vmul.f32 %v9321, %v9341
        %v9351 = vmul.f32 %v9322, %v9345
        %v9352 = vmul.f32 %v9323, %v9341
        %v9353 = vmul.f32 %v9324, %v9345
        %v9354 = vmul.f32 %v9325, %v9341
        %v9355 = vmul.f32 %v9326, %v9345
        %v9356 = vmul.f32 %v9327, %v9341
        %v9357 = vmul.f32 %v9328, %v9345
        %v9358 = vmul.f32 %v9329, %v9341
        %v9359 = vmul.f32 %v9330, %v9345
        %v9360 = vmul.f32 %v9331, %v9341
        %v9361 = vmul.f32 %v9332, %v9345
        %v9362 = vmul.f32 %v9333, %v9341
        %v9363 = vmul.f32 %v9334, %v9345
        %s9364 = scalar_lea.vmem %s17, 34
        %v9365 = vld [vmem:[%s9364] ss:$8 sm:$0x3]
        %v9367 = vlaneseq
        %v9368 = vshrl.u32 %v9367, 7
        %v9369 = vsub.s32 0, %v9368
        %v9370 = vrot.slane %v9365, %v9369
        %v9371 = vlaneseq
        %v9372 = vshrl.u32 %v9371, 7
        %v9373 = vsub.s32 1, %v9372
        %v9374 = vrot.slane %v9365, %v9373
        %v9377 = vadd.f32 %v9348, %v9370
        %v9378 = vadd.f32 %v9349, %v9374
        %v9379 = vadd.f32 %v9350, %v9370
        %v9380 = vadd.f32 %v9351, %v9374
        %v9381 = vadd.f32 %v9352, %v9370
        %v9382 = vadd.f32 %v9353, %v9374
        %v9383 = vadd.f32 %v9354, %v9370
        %v9384 = vadd.f32 %v9355, %v9374
        %v9385 = vadd.f32 %v9356, %v9370
        %v9386 = vadd.f32 %v9357, %v9374
        %v9387 = vadd.f32 %v9358, %v9370
        %v9388 = vadd.f32 %v9359, %v9374
        %v9389 = vadd.f32 %v9360, %v9370
        %v9390 = vadd.f32 %v9361, %v9374
        %v9391 = vadd.f32 %v9362, %v9370
        %v9392 = vadd.f32 %v9363, %v9374
        %v9393 = vmax.f32 %v9377, 0.0
        %v9394 = vmax.f32 %v9378, 0.0
        %v9395 = vmax.f32 %v9379, 0.0
        %v9396 = vmax.f32 %v9380, 0.0
        %v9397 = vmax.f32 %v9381, 0.0
        %v9398 = vmax.f32 %v9382, 0.0
        %v9399 = vmax.f32 %v9383, 0.0
        %v9400 = vmax.f32 %v9384, 0.0
        %v9401 = vmax.f32 %v9385, 0.0
        %v9402 = vmax.f32 %v9386, 0.0
        %v9403 = vmax.f32 %v9387, 0.0
        %v9404 = vmax.f32 %v9388, 0.0
        %v9405 = vmax.f32 %v9389, 0.0
        %v9406 = vmax.f32 %v9390, 0.0
        %v9407 = vmax.f32 %v9391, 0.0
        %v9408 = vmax.f32 %v9392, 0.0
        %s9409 = scalar_lea.vmem %s15, 256
        %v9410 = vld [vmem:[%s9409] sm:$0xff]
        %v9411 = vld [vmem:[%s9409 + $0x8] sm:$0xff]
        %v9412 = vld [vmem:[%s9409 + $0x10] sm:$0xff]
        %v9413 = vld [vmem:[%s9409 + $0x18] sm:$0xff]
        %v9414 = vld [vmem:[%s9409 + $0x20] sm:$0xff]
        %v9415 = vld [vmem:[%s9409 + $0x28] sm:$0xff]
        %v9416 = vld [vmem:[%s9409 + $0x30] sm:$0xff]
        %v9417 = vld [vmem:[%s9409 + $0x38] sm:$0xff]
        %v9418 = vld [vmem:[%s9409 + $0x40] sm:$0xff]
        %v9419 = vld [vmem:[%s9409 + $0x48] sm:$0xff]
        %v9420 = vld [vmem:[%s9409 + $0x50] sm:$0xff]
        %v9421 = vld [vmem:[%s9409 + $0x58] sm:$0xff]
        %v9422 = vld [vmem:[%s9409 + $0x60] sm:$0xff]
        %v9423 = vld [vmem:[%s9409 + $0x68] sm:$0xff]
        %v9424 = vld [vmem:[%s9409 + $0x70] sm:$0xff]
        %v9425 = vld [vmem:[%s9409 + $0x78] sm:$0xff]
        %v9426 = vld [vmem:[%s9409 + $0x80] sm:$0xff]
        %v9427 = vld [vmem:[%s9409 + $0x88] sm:$0xff]
        %v9428 = vld [vmem:[%s9409 + $0x90] sm:$0xff]
        %v9429 = vld [vmem:[%s9409 + $0x98] sm:$0xff]
        %v9430 = vld [vmem:[%s9409 + $0xa0] sm:$0xff]
        %v9431 = vld [vmem:[%s9409 + $0xa8] sm:$0xff]
        %v9432 = vld [vmem:[%s9409 + $0xb0] sm:$0xff]
        %v9433 = vld [vmem:[%s9409 + $0xb8] sm:$0xff]
        %v9434 = vld [vmem:[%s9409 + $0xc0] sm:$0xff]
        %v9435 = vld [vmem:[%s9409 + $0xc8] sm:$0xff]
        %v9436 = vld [vmem:[%s9409 + $0xd0] sm:$0xff]
        %v9437 = vld [vmem:[%s9409 + $0xd8] sm:$0xff]
        %v9438 = vld [vmem:[%s9409 + $0xe0] sm:$0xff]
        %v9439 = vld [vmem:[%s9409 + $0xe8] sm:$0xff]
        %v9440 = vld [vmem:[%s9409 + $0xf0] sm:$0xff]
        %v9441 = vld [vmem:[%s9409 + $0xf8] sm:$0xff]
        %v9442 = vpack.c.bf16 %v9395, %v9393
        %v9443 = vpack.c.bf16 %v9396, %v9394
        %v9444 = vpack.c.bf16 %v9399, %v9397
        %v9445 = vpack.c.bf16 %v9400, %v9398
        %v9446 = vpack.c.bf16 %v9403, %v9401
        %v9447 = vpack.c.bf16 %v9404, %v9402
        %v9448 = vpack.c.bf16 %v9407, %v9405
        %v9449 = vpack.c.bf16 %v9408, %v9406
        %v9482 = vunpack.c.l.b16 %v9410
        %v9483 = vunpack.c.h.b16 %v9410
        %v9484 = vunpack.c.l.b16 %v9411
        %v9485 = vunpack.c.h.b16 %v9411
        %v9486 = vunpack.c.l.b16 %v9412
        %v9487 = vunpack.c.h.b16 %v9412
        %v9488 = vunpack.c.l.b16 %v9413
        %v9489 = vunpack.c.h.b16 %v9413
        %v9490 = vunpack.c.l.b16 %v9414
        %v9491 = vunpack.c.h.b16 %v9414
        %v9492 = vunpack.c.l.b16 %v9415
        %v9493 = vunpack.c.h.b16 %v9415
        %v9494 = vunpack.c.l.b16 %v9416
        %v9495 = vunpack.c.h.b16 %v9416
        %v9496 = vunpack.c.l.b16 %v9417
        %v9497 = vunpack.c.h.b16 %v9417
        %v9498 = vunpack.c.l.b16 %v9418
        %v9499 = vunpack.c.h.b16 %v9418
        %v9500 = vunpack.c.l.b16 %v9419
        %v9501 = vunpack.c.h.b16 %v9419
        %v9502 = vunpack.c.l.b16 %v9420
        %v9503 = vunpack.c.h.b16 %v9420
        %v9504 = vunpack.c.l.b16 %v9421
        %v9505 = vunpack.c.h.b16 %v9421
        %v9506 = vunpack.c.l.b16 %v9422
        %v9507 = vunpack.c.h.b16 %v9422
        %v9508 = vunpack.c.l.b16 %v9423
        %v9509 = vunpack.c.h.b16 %v9423
        %v9510 = vunpack.c.l.b16 %v9424
        %v9511 = vunpack.c.h.b16 %v9424
        %v9512 = vunpack.c.l.b16 %v9425
        %v9513 = vunpack.c.h.b16 %v9425
        %v9514 = vunpack.c.l.b16 %v9426
        %v9515 = vunpack.c.h.b16 %v9426
        %v9516 = vunpack.c.l.b16 %v9427
        %v9517 = vunpack.c.h.b16 %v9427
        %v9518 = vunpack.c.l.b16 %v9428
        %v9519 = vunpack.c.h.b16 %v9428
        %v9520 = vunpack.c.l.b16 %v9429
        %v9521 = vunpack.c.h.b16 %v9429
        %v9522 = vunpack.c.l.b16 %v9430
        %v9523 = vunpack.c.h.b16 %v9430
        %v9524 = vunpack.c.l.b16 %v9431
        %v9525 = vunpack.c.h.b16 %v9431
        %v9526 = vunpack.c.l.b16 %v9432
        %v9527 = vunpack.c.h.b16 %v9432
        %v9528 = vunpack.c.l.b16 %v9433
        %v9529 = vunpack.c.h.b16 %v9433
        %v9530 = vunpack.c.l.b16 %v9434
        %v9531 = vunpack.c.h.b16 %v9434
        %v9532 = vunpack.c.l.b16 %v9435
        %v9533 = vunpack.c.h.b16 %v9435
        %v9534 = vunpack.c.l.b16 %v9436
        %v9535 = vunpack.c.h.b16 %v9436
        %v9536 = vunpack.c.l.b16 %v9437
        %v9537 = vunpack.c.h.b16 %v9437
        %v9538 = vunpack.c.l.b16 %v9438
        %v9539 = vunpack.c.h.b16 %v9438
        %v9540 = vunpack.c.l.b16 %v9439
        %v9541 = vunpack.c.h.b16 %v9439
        %v9542 = vunpack.c.l.b16 %v9440
        %v9543 = vunpack.c.h.b16 %v9440
        %v9544 = vunpack.c.l.b16 %v9441
        %v9545 = vunpack.c.h.b16 %v9441
        %v9546 = vpack.c.b16 %v9484, %v9482
        %v9547 = vpack.c.b16 %v9485, %v9483
        %v9548 = vpack.c.b16 %v9488, %v9486
        %v9549 = vpack.c.b16 %v9489, %v9487
        %v9550 = vpack.c.b16 %v9492, %v9490
        %v9551 = vpack.c.b16 %v9493, %v9491
        %v9552 = vpack.c.b16 %v9496, %v9494
        %v9553 = vpack.c.b16 %v9497, %v9495
        %v9554 = vpack.c.b16 %v9500, %v9498
        %v9555 = vpack.c.b16 %v9501, %v9499
        %v9556 = vpack.c.b16 %v9504, %v9502
        %v9557 = vpack.c.b16 %v9505, %v9503
        %v9558 = vpack.c.b16 %v9508, %v9506
        %v9559 = vpack.c.b16 %v9509, %v9507
        %v9560 = vpack.c.b16 %v9512, %v9510
        %v9561 = vpack.c.b16 %v9513, %v9511
        %v9562 = vpack.c.b16 %v9516, %v9514
        %v9563 = vpack.c.b16 %v9517, %v9515
        %v9564 = vpack.c.b16 %v9520, %v9518
        %v9565 = vpack.c.b16 %v9521, %v9519
        %v9566 = vpack.c.b16 %v9524, %v9522
        %v9567 = vpack.c.b16 %v9525, %v9523
        %v9568 = vpack.c.b16 %v9528, %v9526
        %v9569 = vpack.c.b16 %v9529, %v9527
        %v9570 = vpack.c.b16 %v9532, %v9530
        %v9571 = vpack.c.b16 %v9533, %v9531
        %v9572 = vpack.c.b16 %v9536, %v9534
        %v9573 = vpack.c.b16 %v9537, %v9535
        %v9574 = vpack.c.b16 %v9540, %v9538
        %v9575 = vpack.c.b16 %v9541, %v9539
        %v9576 = vpack.c.b16 %v9544, %v9542
        %v9577 = vpack.c.b16 %v9545, %v9543
        %9610 = vmatprep.subr.bf16.mxu0 %v9561
        %9611 = vmatpush1.bf16.msra.mxu0 %v9560
        %9612 = vmatprep.subr.bf16.mxu0 %v9559
        %9613 = vmatpush1.bf16.msra.mxu0 %v9558
        %9614 = vmatprep.subr.bf16.mxu0 %v9557
        %9615 = vmatpush1.bf16.msra.mxu0 %v9556
        %9616 = vmatprep.subr.bf16.mxu0 %v9555
        %9617 = vmatpush1.bf16.msra.mxu0 %v9554
        %9618 = vmatprep.subr.bf16.mxu0 %v9553
        %9619 = vmatpush1.bf16.msra.mxu0 %v9552
        %9620 = vmatprep.subr.bf16.mxu0 %v9551
        %9621 = vmatpush1.bf16.msra.mxu0 %v9550
        %9622 = vmatprep.subr.bf16.mxu0 %v9549
        %9623 = vmatpush1.bf16.msra.mxu0 %v9548
        %9624 = vmatprep.subr.bf16.mxu0 %v9547
        %9625 = vmatpush1.bf16.msra.mxu0 %v9546
        %9626 = vmatprep.subr.bf16.mxu0 %v9577
        %9627 = vmatpush2.bf16.msra.mxu0 %v9576
        %9628 = vmatprep.subr.bf16.mxu0 %v9575
        %9629 = vmatpush2.bf16.msra.mxu0 %v9574
        %9630 = vmatprep.subr.bf16.mxu0 %v9573
        %9631 = vmatpush2.bf16.msra.mxu0 %v9572
        %9632 = vmatprep.subr.bf16.mxu0 %v9571
        %9633 = vmatpush2.bf16.msra.mxu0 %v9570
        %9634 = vmatprep.subr.bf16.mxu0 %v9569
        %9635 = vmatpush2.bf16.msra.mxu0 %v9568
        %9636 = vmatprep.subr.bf16.mxu0 %v9567
        %9637 = vmatpush2.bf16.msra.mxu0 %v9566
        %9638 = vmatprep.subr.bf16.mxu0 %v9565
        %9639 = vmatpush2.bf16.msra.mxu0 %v9564
        %9640 = vmatprep.subr.bf16.mxu0 %v9563
        %9641 = vmatpush2.bf16.msra.mxu0 %v9562
        %9642 = vmatprep.mubr.bf16.mxu0 %v9443
        %9643 = vmatmul.mubr.bf16.gmra.mxu0 %v9442
        %v9644 = vpop.f32.mrf.mxu0
        %v9645 = vadd.f32 0.0, %v9644
        %v9646 = vpop.f32.mrf.mxu0
        %v9647 = vadd.f32 0.0, %v9646
        %v9648 = vpop.f32.mrf.mxu0
        %v9649 = vadd.f32 0.0, %v9648
        %v9650 = vpop.f32.mrf.mxu0
        %v9651 = vadd.f32 0.0, %v9650
        %9652 = vmatprep.mubr.bf16.mxu0 %v9445
        %9653 = vmatmul.mubr.bf16.gmra.mxu0 %v9444
        %v9654 = vpop.f32.mrf.mxu0
        %v9655 = vadd.f32 0.0, %v9654
        %v9656 = vpop.f32.mrf.mxu0
        %v9657 = vadd.f32 0.0, %v9656
        %v9658 = vpop.f32.mrf.mxu0
        %v9659 = vadd.f32 0.0, %v9658
        %v9660 = vpop.f32.mrf.mxu0
        %v9661 = vadd.f32 0.0, %v9660
        %9662 = vmatprep.mubr.bf16.mxu0 %v9447
        %9663 = vmatmul.mubr.bf16.gmra.mxu0 %v9446
        %v9664 = vpop.f32.mrf.mxu0
        %v9665 = vadd.f32 0.0, %v9664
        %v9666 = vpop.f32.mrf.mxu0
        %v9667 = vadd.f32 0.0, %v9666
        %v9668 = vpop.f32.mrf.mxu0
        %v9669 = vadd.f32 0.0, %v9668
        %v9670 = vpop.f32.mrf.mxu0
        %v9671 = vadd.f32 0.0, %v9670
        %9672 = vmatprep.mubr.bf16.mxu0 %v9449
        %9673 = vmatmul.mubr.bf16.gmra.mxu0 %v9448
        %v9674 = vpop.f32.mrf.mxu0
        %v9675 = vadd.f32 0.0, %v9674
        %v9676 = vpop.f32.mrf.mxu0
        %v9677 = vadd.f32 0.0, %v9676
        %v9678 = vpop.f32.mrf.mxu0
        %v9679 = vadd.f32 0.0, %v9678
        %v9680 = vpop.f32.mrf.mxu0
        %v9681 = vadd.f32 0.0, %v9680
        %9682 = vdwg.mxu0
        %v9683 = vadd.f32 %v9645, %v9647
        %9684 = vadd.xlane.f32.xlu0 %v9683
        %v9685 = vpop.xlane.xlu0 %9684
        %v9686 = vadd.f32 %v9649, %v9651
        %9687 = vadd.xlane.f32.xlu0 %v9686
        %v9688 = vpop.xlane.xlu0 %9687
        %v9689 = vadd.f32 %v9655, %v9657
        %9690 = vadd.xlane.f32.xlu0 %v9689
        %v9691 = vpop.xlane.xlu0 %9690
        %v9692 = vadd.f32 %v9659, %v9661
        %9693 = vadd.xlane.f32.xlu0 %v9692
        %v9694 = vpop.xlane.xlu0 %9693
        %v9695 = vadd.f32 %v9665, %v9667
        %9696 = vadd.xlane.f32.xlu0 %v9695
        %v9697 = vpop.xlane.xlu0 %9696
        %v9698 = vadd.f32 %v9669, %v9671
        %9699 = vadd.xlane.f32.xlu0 %v9698
        %v9700 = vpop.xlane.xlu0 %9699
        %v9701 = vadd.f32 %v9675, %v9677
        %9702 = vadd.xlane.f32.xlu0 %v9701
        %v9703 = vpop.xlane.xlu0 %9702
        %v9704 = vadd.f32 %v9679, %v9681
        %9705 = vadd.xlane.f32.xlu0 %v9704
        %v9706 = vpop.xlane.xlu0 %9705
        %v9707 = vmul.f32 %v9685, %v2998
        %v9708 = vmul.f32 %v9688, %v2998
        %v9709 = vmul.f32 %v9691, %v2998
        %v9710 = vmul.f32 %v9694, %v2998
        %v9711 = vmul.f32 %v9697, %v2998
        %v9712 = vmul.f32 %v9700, %v2998
        %v9713 = vmul.f32 %v9703, %v2998
        %v9714 = vmul.f32 %v9706, %v2998
        %v9715 = vmul.f32 %v9645, %v9645
        %v9716 = vmul.f32 %v9647, %v9647
        %v9717 = vmul.f32 %v9649, %v9649
        %v9718 = vmul.f32 %v9651, %v9651
        %v9719 = vmul.f32 %v9655, %v9655
        %v9720 = vmul.f32 %v9657, %v9657
        %v9721 = vmul.f32 %v9659, %v9659
        %v9722 = vmul.f32 %v9661, %v9661
        %v9723 = vmul.f32 %v9665, %v9665
        %v9724 = vmul.f32 %v9667, %v9667
        %v9725 = vmul.f32 %v9669, %v9669
        %v9726 = vmul.f32 %v9671, %v9671
        %v9727 = vmul.f32 %v9675, %v9675
        %v9728 = vmul.f32 %v9677, %v9677
        %v9729 = vmul.f32 %v9679, %v9679
        %v9730 = vmul.f32 %v9681, %v9681
        %v9731 = vadd.f32 %v9715, %v9716
        %9732 = vadd.xlane.f32.xlu0 %v9731
        %v9733 = vpop.xlane.xlu0 %9732
        %v9734 = vadd.f32 %v9717, %v9718
        %9735 = vadd.xlane.f32.xlu0 %v9734
        %v9736 = vpop.xlane.xlu0 %9735
        %v9737 = vadd.f32 %v9719, %v9720
        %9738 = vadd.xlane.f32.xlu0 %v9737
        %v9739 = vpop.xlane.xlu0 %9738
        %v9740 = vadd.f32 %v9721, %v9722
        %9741 = vadd.xlane.f32.xlu0 %v9740
        %v9742 = vpop.xlane.xlu0 %9741
        %v9743 = vadd.f32 %v9723, %v9724
        %9744 = vadd.xlane.f32.xlu0 %v9743
        %v9745 = vpop.xlane.xlu0 %9744
        %v9746 = vadd.f32 %v9725, %v9726
        %9747 = vadd.xlane.f32.xlu0 %v9746
        %v9748 = vpop.xlane.xlu0 %9747
        %v9749 = vadd.f32 %v9727, %v9728
        %9750 = vadd.xlane.f32.xlu0 %v9749
        %v9751 = vpop.xlane.xlu0 %9750
        %v9752 = vadd.f32 %v9729, %v9730
        %9753 = vadd.xlane.f32.xlu0 %v9752
        %v9754 = vpop.xlane.xlu0 %9753
        %v9755 = vmul.f32 %v9733, %v2998
        %v9756 = vmul.f32 %v9736, %v2998
        %v9757 = vmul.f32 %v9739, %v2998
        %v9758 = vmul.f32 %v9742, %v2998
        %v9759 = vmul.f32 %v9745, %v2998
        %v9760 = vmul.f32 %v9748, %v2998
        %v9761 = vmul.f32 %v9751, %v2998
        %v9762 = vmul.f32 %v9754, %v2998
        %v9763 = vmul.f32 %v9707, %v9707
        %v9764 = vmul.f32 %v9708, %v9708
        %v9765 = vmul.f32 %v9709, %v9709
        %v9766 = vmul.f32 %v9710, %v9710
        %v9767 = vmul.f32 %v9711, %v9711
        %v9768 = vmul.f32 %v9712, %v9712
        %v9769 = vmul.f32 %v9713, %v9713
        %v9770 = vmul.f32 %v9714, %v9714
        %v9771 = vsub.f32 %v9755, %v9763
        %v9772 = vsub.f32 %v9756, %v9764
        %v9773 = vsub.f32 %v9757, %v9765
        %v9774 = vsub.f32 %v9758, %v9766
        %v9775 = vsub.f32 %v9759, %v9767
        %v9776 = vsub.f32 %v9760, %v9768
        %v9777 = vsub.f32 %v9761, %v9769
        %v9778 = vsub.f32 %v9762, %v9770
        %v9779 = vmax.f32 %v9771, 0.0
        %v9780 = vmax.f32 %v9772, 0.0
        %v9781 = vmax.f32 %v9773, 0.0
        %v9782 = vmax.f32 %v9774, 0.0
        %v9783 = vmax.f32 %v9775, 0.0
        %v9784 = vmax.f32 %v9776, 0.0
        %v9785 = vmax.f32 %v9777, 0.0
        %v9786 = vmax.f32 %v9778, 0.0
        %v9787 = vsub.f32 %v9645, %v9707
        %v9788 = vsub.f32 %v9647, %v9707
        %v9789 = vsub.f32 %v9649, %v9708
        %v9790 = vsub.f32 %v9651, %v9708
        %v9791 = vsub.f32 %v9655, %v9709
        %v9792 = vsub.f32 %v9657, %v9709
        %v9793 = vsub.f32 %v9659, %v9710
        %v9794 = vsub.f32 %v9661, %v9710
        %v9795 = vsub.f32 %v9665, %v9711
        %v9796 = vsub.f32 %v9667, %v9711
        %v9797 = vsub.f32 %v9669, %v9712
        %v9798 = vsub.f32 %v9671, %v9712
        %v9799 = vsub.f32 %v9675, %v9713
        %v9800 = vsub.f32 %v9677, %v9713
        %v9801 = vsub.f32 %v9679, %v9714
        %v9802 = vsub.f32 %v9681, %v9714
        %v9803 = vadd.f32 %v9779, 1e-05
        %v9804 = vadd.f32 %v9780, 1e-05
        %v9805 = vadd.f32 %v9781, 1e-05
        %v9806 = vadd.f32 %v9782, 1e-05
        %v9807 = vadd.f32 %v9783, 1e-05
        %v9808 = vadd.f32 %v9784, 1e-05
        %v9809 = vadd.f32 %v9785, 1e-05
        %v9810 = vadd.f32 %v9786, 1e-05
        %v9811 = vrsqrt.pop %v9803
        %v9812 = vrsqrt.pop %v9804
        %v9813 = vrsqrt.pop %v9805
        %v9814 = vrsqrt.pop %v9806
        %v9815 = vrsqrt.pop %v9807
        %v9816 = vrsqrt.pop %v9808
        %v9817 = vrsqrt.pop %v9809
        %v9818 = vrsqrt.pop %v9810
        %v9819 = vmul.f32 %v9787, %v9811
        %v9820 = vmul.f32 %v9788, %v9811
        %v9821 = vmul.f32 %v9789, %v9812
        %v9822 = vmul.f32 %v9790, %v9812
        %v9823 = vmul.f32 %v9791, %v9813
        %v9824 = vmul.f32 %v9792, %v9813
        %v9825 = vmul.f32 %v9793, %v9814
        %v9826 = vmul.f32 %v9794, %v9814
        %v9827 = vmul.f32 %v9795, %v9815
        %v9828 = vmul.f32 %v9796, %v9815
        %v9829 = vmul.f32 %v9797, %v9816
        %v9830 = vmul.f32 %v9798, %v9816
        %v9831 = vmul.f32 %v9799, %v9817
        %v9832 = vmul.f32 %v9800, %v9817
        %v9833 = vmul.f32 %v9801, %v9818
        %v9834 = vmul.f32 %v9802, %v9818
        %s9835 = scalar_lea.vmem %s17, 35
        %v9836 = vld [vmem:[%s9835] ss:$8 sm:$0x3]
        %v9838 = vlaneseq
        %v9839 = vshrl.u32 %v9838, 7
        %v9840 = vsub.s32 0, %v9839
        %v9841 = vrot.slane %v9836, %v9840
        %v9842 = vlaneseq
        %v9843 = vshrl.u32 %v9842, 7
        %v9844 = vsub.s32 1, %v9843
        %v9845 = vrot.slane %v9836, %v9844
        %v9848 = vmul.f32 %v9819, %v9841
        %v9849 = vmul.f32 %v9820, %v9845
        %v9850 = vmul.f32 %v9821, %v9841
        %v9851 = vmul.f32 %v9822, %v9845
        %v9852 = vmul.f32 %v9823, %v9841
        %v9853 = vmul.f32 %v9824, %v9845
        %v9854 = vmul.f32 %v9825, %v9841
        %v9855 = vmul.f32 %v9826, %v9845
        %v9856 = vmul.f32 %v9827, %v9841
        %v9857 = vmul.f32 %v9828, %v9845
        %v9858 = vmul.f32 %v9829, %v9841
        %v9859 = vmul.f32 %v9830, %v9845
        %v9860 = vmul.f32 %v9831, %v9841
        %v9861 = vmul.f32 %v9832, %v9845
        %v9862 = vmul.f32 %v9833, %v9841
        %v9863 = vmul.f32 %v9834, %v9845
        %s9864 = scalar_lea.vmem %s17, 36
        %v9865 = vld [vmem:[%s9864] ss:$8 sm:$0x3]
        %v9867 = vlaneseq
        %v9868 = vshrl.u32 %v9867, 7
        %v9869 = vsub.s32 0, %v9868
        %v9870 = vrot.slane %v9865, %v9869
        %v9871 = vlaneseq
        %v9872 = vshrl.u32 %v9871, 7
        %v9873 = vsub.s32 1, %v9872
        %v9874 = vrot.slane %v9865, %v9873
        %v9877 = vadd.f32 %v9848, %v9870
        %v9878 = vadd.f32 %v9849, %v9874
        %v9879 = vadd.f32 %v9850, %v9870
        %v9880 = vadd.f32 %v9851, %v9874
        %v9881 = vadd.f32 %v9852, %v9870
        %v9882 = vadd.f32 %v9853, %v9874
        %v9883 = vadd.f32 %v9854, %v9870
        %v9884 = vadd.f32 %v9855, %v9874
        %v9885 = vadd.f32 %v9856, %v9870
        %v9886 = vadd.f32 %v9857, %v9874
        %v9887 = vadd.f32 %v9858, %v9870
        %v9888 = vadd.f32 %v9859, %v9874
        %v9889 = vadd.f32 %v9860, %v9870
        %v9890 = vadd.f32 %v9861, %v9874
        %v9891 = vadd.f32 %v9862, %v9870
        %v9892 = vadd.f32 %v9863, %v9874
        %v9893 = vmax.f32 %v9877, 0.0
        %v9894 = vmax.f32 %v9878, 0.0
        %v9895 = vmax.f32 %v9879, 0.0
        %v9896 = vmax.f32 %v9880, 0.0
        %v9897 = vmax.f32 %v9881, 0.0
        %v9898 = vmax.f32 %v9882, 0.0
        %v9899 = vmax.f32 %v9883, 0.0
        %v9900 = vmax.f32 %v9884, 0.0
        %v9901 = vmax.f32 %v9885, 0.0
        %v9902 = vmax.f32 %v9886, 0.0
        %v9903 = vmax.f32 %v9887, 0.0
        %v9904 = vmax.f32 %v9888, 0.0
        %v9905 = vmax.f32 %v9889, 0.0
        %v9906 = vmax.f32 %v9890, 0.0
        %v9907 = vmax.f32 %v9891, 0.0
        %v9908 = vmax.f32 %v9892, 0.0
        %s9909 = scalar_lea.vmem %s15, 512
        %v9910 = vld [vmem:[%s9909] sm:$0xff]
        %v9911 = vld [vmem:[%s9909 + $0x8] sm:$0xff]
        %v9912 = vld [vmem:[%s9909 + $0x10] sm:$0xff]
        %v9913 = vld [vmem:[%s9909 + $0x18] sm:$0xff]
        %v9914 = vld [vmem:[%s9909 + $0x20] sm:$0xff]
        %v9915 = vld [vmem:[%s9909 + $0x28] sm:$0xff]
        %v9916 = vld [vmem:[%s9909 + $0x30] sm:$0xff]
        %v9917 = vld [vmem:[%s9909 + $0x38] sm:$0xff]
        %v9918 = vld [vmem:[%s9909 + $0x40] sm:$0xff]
        %v9919 = vld [vmem:[%s9909 + $0x48] sm:$0xff]
        %v9920 = vld [vmem:[%s9909 + $0x50] sm:$0xff]
        %v9921 = vld [vmem:[%s9909 + $0x58] sm:$0xff]
        %v9922 = vld [vmem:[%s9909 + $0x60] sm:$0xff]
        %v9923 = vld [vmem:[%s9909 + $0x68] sm:$0xff]
        %v9924 = vld [vmem:[%s9909 + $0x70] sm:$0xff]
        %v9925 = vld [vmem:[%s9909 + $0x78] sm:$0xff]
        %v9926 = vld [vmem:[%s9909 + $0x80] sm:$0xff]
        %v9927 = vld [vmem:[%s9909 + $0x88] sm:$0xff]
        %v9928 = vld [vmem:[%s9909 + $0x90] sm:$0xff]
        %v9929 = vld [vmem:[%s9909 + $0x98] sm:$0xff]
        %v9930 = vld [vmem:[%s9909 + $0xa0] sm:$0xff]
        %v9931 = vld [vmem:[%s9909 + $0xa8] sm:$0xff]
        %v9932 = vld [vmem:[%s9909 + $0xb0] sm:$0xff]
        %v9933 = vld [vmem:[%s9909 + $0xb8] sm:$0xff]
        %v9934 = vld [vmem:[%s9909 + $0xc0] sm:$0xff]
        %v9935 = vld [vmem:[%s9909 + $0xc8] sm:$0xff]
        %v9936 = vld [vmem:[%s9909 + $0xd0] sm:$0xff]
        %v9937 = vld [vmem:[%s9909 + $0xd8] sm:$0xff]
        %v9938 = vld [vmem:[%s9909 + $0xe0] sm:$0xff]
        %v9939 = vld [vmem:[%s9909 + $0xe8] sm:$0xff]
        %v9940 = vld [vmem:[%s9909 + $0xf0] sm:$0xff]
        %v9941 = vld [vmem:[%s9909 + $0xf8] sm:$0xff]
        %v9942 = vpack.c.bf16 %v9895, %v9893
        %v9943 = vpack.c.bf16 %v9896, %v9894
        %v9944 = vpack.c.bf16 %v9899, %v9897
        %v9945 = vpack.c.bf16 %v9900, %v9898
        %v9946 = vpack.c.bf16 %v9903, %v9901
        %v9947 = vpack.c.bf16 %v9904, %v9902
        %v9948 = vpack.c.bf16 %v9907, %v9905
        %v9949 = vpack.c.bf16 %v9908, %v9906
        %v9982 = vunpack.c.l.b16 %v9910
        %v9983 = vunpack.c.h.b16 %v9910
        %v9984 = vunpack.c.l.b16 %v9911
        %v9985 = vunpack.c.h.b16 %v9911
        %v9986 = vunpack.c.l.b16 %v9912
        %v9987 = vunpack.c.h.b16 %v9912
        %v9988 = vunpack.c.l.b16 %v9913
        %v9989 = vunpack.c.h.b16 %v9913
        %v9990 = vunpack.c.l.b16 %v9914
        %v9991 = vunpack.c.h.b16 %v9914
        %v9992 = vunpack.c.l.b16 %v9915
        %v9993 = vunpack.c.h.b16 %v9915
        %v9994 = vunpack.c.l.b16 %v9916
        %v9995 = vunpack.c.h.b16 %v9916
        %v9996 = vunpack.c.l.b16 %v9917
        %v9997 = vunpack.c.h.b16 %v9917
        %v9998 = vunpack.c.l.b16 %v9918
        %v9999 = vunpack.c.h.b16 %v9918
        %v10000 = vunpack.c.l.b16 %v9919
        %v10001 = vunpack.c.h.b16 %v9919
        %v10002 = vunpack.c.l.b16 %v9920
        %v10003 = vunpack.c.h.b16 %v9920
        %v10004 = vunpack.c.l.b16 %v9921
        %v10005 = vunpack.c.h.b16 %v9921
        %v10006 = vunpack.c.l.b16 %v9922
        %v10007 = vunpack.c.h.b16 %v9922
        %v10008 = vunpack.c.l.b16 %v9923
        %v10009 = vunpack.c.h.b16 %v9923
        %v10010 = vunpack.c.l.b16 %v9924
        %v10011 = vunpack.c.h.b16 %v9924
        %v10012 = vunpack.c.l.b16 %v9925
        %v10013 = vunpack.c.h.b16 %v9925
        %v10014 = vunpack.c.l.b16 %v9926
        %v10015 = vunpack.c.h.b16 %v9926
        %v10016 = vunpack.c.l.b16 %v9927
        %v10017 = vunpack.c.h.b16 %v9927
        %v10018 = vunpack.c.l.b16 %v9928
        %v10019 = vunpack.c.h.b16 %v9928
        %v10020 = vunpack.c.l.b16 %v9929
        %v10021 = vunpack.c.h.b16 %v9929
        %v10022 = vunpack.c.l.b16 %v9930
        %v10023 = vunpack.c.h.b16 %v9930
        %v10024 = vunpack.c.l.b16 %v9931
        %v10025 = vunpack.c.h.b16 %v9931
        %v10026 = vunpack.c.l.b16 %v9932
        %v10027 = vunpack.c.h.b16 %v9932
        %v10028 = vunpack.c.l.b16 %v9933
        %v10029 = vunpack.c.h.b16 %v9933
        %v10030 = vunpack.c.l.b16 %v9934
        %v10031 = vunpack.c.h.b16 %v9934
        %v10032 = vunpack.c.l.b16 %v9935
        %v10033 = vunpack.c.h.b16 %v9935
        %v10034 = vunpack.c.l.b16 %v9936
        %v10035 = vunpack.c.h.b16 %v9936
        %v10036 = vunpack.c.l.b16 %v9937
        %v10037 = vunpack.c.h.b16 %v9937
        %v10038 = vunpack.c.l.b16 %v9938
        %v10039 = vunpack.c.h.b16 %v9938
        %v10040 = vunpack.c.l.b16 %v9939
        %v10041 = vunpack.c.h.b16 %v9939
        %v10042 = vunpack.c.l.b16 %v9940
        %v10043 = vunpack.c.h.b16 %v9940
        %v10044 = vunpack.c.l.b16 %v9941
        %v10045 = vunpack.c.h.b16 %v9941
        %v10046 = vpack.c.b16 %v9984, %v9982
        %v10047 = vpack.c.b16 %v9985, %v9983
        %v10048 = vpack.c.b16 %v9988, %v9986
        %v10049 = vpack.c.b16 %v9989, %v9987
        %v10050 = vpack.c.b16 %v9992, %v9990
        %v10051 = vpack.c.b16 %v9993, %v9991
        %v10052 = vpack.c.b16 %v9996, %v9994
        %v10053 = vpack.c.b16 %v9997, %v9995
        %v10054 = vpack.c.b16 %v10000, %v9998
        %v10055 = vpack.c.b16 %v10001, %v9999
        %v10056 = vpack.c.b16 %v10004, %v10002
        %v10057 = vpack.c.b16 %v10005, %v10003
        %v10058 = vpack.c.b16 %v10008, %v10006
        %v10059 = vpack.c.b16 %v10009, %v10007
        %v10060 = vpack.c.b16 %v10012, %v10010
        %v10061 = vpack.c.b16 %v10013, %v10011
        %v10062 = vpack.c.b16 %v10016, %v10014
        %v10063 = vpack.c.b16 %v10017, %v10015
        %v10064 = vpack.c.b16 %v10020, %v10018
        %v10065 = vpack.c.b16 %v10021, %v10019
        %v10066 = vpack.c.b16 %v10024, %v10022
        %v10067 = vpack.c.b16 %v10025, %v10023
        %v10068 = vpack.c.b16 %v10028, %v10026
        %v10069 = vpack.c.b16 %v10029, %v10027
        %v10070 = vpack.c.b16 %v10032, %v10030
        %v10071 = vpack.c.b16 %v10033, %v10031
        %v10072 = vpack.c.b16 %v10036, %v10034
        %v10073 = vpack.c.b16 %v10037, %v10035
        %v10074 = vpack.c.b16 %v10040, %v10038
        %v10075 = vpack.c.b16 %v10041, %v10039
        %v10076 = vpack.c.b16 %v10044, %v10042
        %v10077 = vpack.c.b16 %v10045, %v10043
        %10110 = vmatprep.subr.bf16.mxu0 %v10061
        %10111 = vmatpush1.bf16.msra.mxu0 %v10060
        %10112 = vmatprep.subr.bf16.mxu0 %v10059
        %10113 = vmatpush1.bf16.msra.mxu0 %v10058
        %10114 = vmatprep.subr.bf16.mxu0 %v10057
        %10115 = vmatpush1.bf16.msra.mxu0 %v10056
        %10116 = vmatprep.subr.bf16.mxu0 %v10055
        %10117 = vmatpush1.bf16.msra.mxu0 %v10054
        %10118 = vmatprep.subr.bf16.mxu0 %v10053
        %10119 = vmatpush1.bf16.msra.mxu0 %v10052
        %10120 = vmatprep.subr.bf16.mxu0 %v10051
        %10121 = vmatpush1.bf16.msra.mxu0 %v10050
        %10122 = vmatprep.subr.bf16.mxu0 %v10049
        %10123 = vmatpush1.bf16.msra.mxu0 %v10048
        %10124 = vmatprep.subr.bf16.mxu0 %v10047
        %10125 = vmatpush1.bf16.msra.mxu0 %v10046
        %10126 = vmatprep.subr.bf16.mxu0 %v10077
        %10127 = vmatpush2.bf16.msra.mxu0 %v10076
        %10128 = vmatprep.subr.bf16.mxu0 %v10075
        %10129 = vmatpush2.bf16.msra.mxu0 %v10074
        %10130 = vmatprep.subr.bf16.mxu0 %v10073
        %10131 = vmatpush2.bf16.msra.mxu0 %v10072
        %10132 = vmatprep.subr.bf16.mxu0 %v10071
        %10133 = vmatpush2.bf16.msra.mxu0 %v10070
        %10134 = vmatprep.subr.bf16.mxu0 %v10069
        %10135 = vmatpush2.bf16.msra.mxu0 %v10068
        %10136 = vmatprep.subr.bf16.mxu0 %v10067
        %10137 = vmatpush2.bf16.msra.mxu0 %v10066
        %10138 = vmatprep.subr.bf16.mxu0 %v10065
        %10139 = vmatpush2.bf16.msra.mxu0 %v10064
        %10140 = vmatprep.subr.bf16.mxu0 %v10063
        %10141 = vmatpush2.bf16.msra.mxu0 %v10062
        %10142 = vmatprep.mubr.bf16.mxu0 %v9943
        %10143 = vmatmul.mubr.bf16.gmra.mxu0 %v9942
        %v10144 = vpop.f32.mrf.mxu0
        %v10145 = vadd.f32 0.0, %v10144
        %v10146 = vpop.f32.mrf.mxu0
        %v10147 = vadd.f32 0.0, %v10146
        %v10148 = vpop.f32.mrf.mxu0
        %v10149 = vadd.f32 0.0, %v10148
        %v10150 = vpop.f32.mrf.mxu0
        %v10151 = vadd.f32 0.0, %v10150
        %10152 = vmatprep.mubr.bf16.mxu0 %v9945
        %10153 = vmatmul.mubr.bf16.gmra.mxu0 %v9944
        %v10154 = vpop.f32.mrf.mxu0
        %v10155 = vadd.f32 0.0, %v10154
        %v10156 = vpop.f32.mrf.mxu0
        %v10157 = vadd.f32 0.0, %v10156
        %v10158 = vpop.f32.mrf.mxu0
        %v10159 = vadd.f32 0.0, %v10158
        %v10160 = vpop.f32.mrf.mxu0
        %v10161 = vadd.f32 0.0, %v10160
        %10162 = vmatprep.mubr.bf16.mxu0 %v9947
        %10163 = vmatmul.mubr.bf16.gmra.mxu0 %v9946
        %v10164 = vpop.f32.mrf.mxu0
        %v10165 = vadd.f32 0.0, %v10164
        %v10166 = vpop.f32.mrf.mxu0
        %v10167 = vadd.f32 0.0, %v10166
        %v10168 = vpop.f32.mrf.mxu0
        %v10169 = vadd.f32 0.0, %v10168
        %v10170 = vpop.f32.mrf.mxu0
        %v10171 = vadd.f32 0.0, %v10170
        %10172 = vmatprep.mubr.bf16.mxu0 %v9949
        %10173 = vmatmul.mubr.bf16.gmra.mxu0 %v9948
        %v10174 = vpop.f32.mrf.mxu0
        %v10175 = vadd.f32 0.0, %v10174
        %v10176 = vpop.f32.mrf.mxu0
        %v10177 = vadd.f32 0.0, %v10176
        %v10178 = vpop.f32.mrf.mxu0
        %v10179 = vadd.f32 0.0, %v10178
        %v10180 = vpop.f32.mrf.mxu0
        %v10181 = vadd.f32 0.0, %v10180
        %10182 = vdwg.mxu0
        %v10183 = vadd.f32 %v10145, %v10147
        %10184 = vadd.xlane.f32.xlu0 %v10183
        %v10185 = vpop.xlane.xlu0 %10184
        %v10186 = vadd.f32 %v10149, %v10151
        %10187 = vadd.xlane.f32.xlu0 %v10186
        %v10188 = vpop.xlane.xlu0 %10187
        %v10189 = vadd.f32 %v10155, %v10157
        %10190 = vadd.xlane.f32.xlu0 %v10189
        %v10191 = vpop.xlane.xlu0 %10190
        %v10192 = vadd.f32 %v10159, %v10161
        %10193 = vadd.xlane.f32.xlu0 %v10192
        %v10194 = vpop.xlane.xlu0 %10193
        %v10195 = vadd.f32 %v10165, %v10167
        %10196 = vadd.xlane.f32.xlu0 %v10195
        %v10197 = vpop.xlane.xlu0 %10196
        %v10198 = vadd.f32 %v10169, %v10171
        %10199 = vadd.xlane.f32.xlu0 %v10198
        %v10200 = vpop.xlane.xlu0 %10199
        %v10201 = vadd.f32 %v10175, %v10177
        %10202 = vadd.xlane.f32.xlu0 %v10201
        %v10203 = vpop.xlane.xlu0 %10202
        %v10204 = vadd.f32 %v10179, %v10181
        %10205 = vadd.xlane.f32.xlu0 %v10204
        %v10206 = vpop.xlane.xlu0 %10205
        %v10207 = vmul.f32 %v10185, %v2998
        %v10208 = vmul.f32 %v10188, %v2998
        %v10209 = vmul.f32 %v10191, %v2998
        %v10210 = vmul.f32 %v10194, %v2998
        %v10211 = vmul.f32 %v10197, %v2998
        %v10212 = vmul.f32 %v10200, %v2998
        %v10213 = vmul.f32 %v10203, %v2998
        %v10214 = vmul.f32 %v10206, %v2998
        %v10215 = vmul.f32 %v10145, %v10145
        %v10216 = vmul.f32 %v10147, %v10147
        %v10217 = vmul.f32 %v10149, %v10149
        %v10218 = vmul.f32 %v10151, %v10151
        %v10219 = vmul.f32 %v10155, %v10155
        %v10220 = vmul.f32 %v10157, %v10157
        %v10221 = vmul.f32 %v10159, %v10159
        %v10222 = vmul.f32 %v10161, %v10161
        %v10223 = vmul.f32 %v10165, %v10165
        %v10224 = vmul.f32 %v10167, %v10167
        %v10225 = vmul.f32 %v10169, %v10169
        %v10226 = vmul.f32 %v10171, %v10171
        %v10227 = vmul.f32 %v10175, %v10175
        %v10228 = vmul.f32 %v10177, %v10177
        %v10229 = vmul.f32 %v10179, %v10179
        %v10230 = vmul.f32 %v10181, %v10181
        %v10231 = vadd.f32 %v10215, %v10216
        %10232 = vadd.xlane.f32.xlu0 %v10231
        %v10233 = vpop.xlane.xlu0 %10232
        %v10234 = vadd.f32 %v10217, %v10218
        %10235 = vadd.xlane.f32.xlu0 %v10234
        %v10236 = vpop.xlane.xlu0 %10235
        %v10237 = vadd.f32 %v10219, %v10220
        %10238 = vadd.xlane.f32.xlu0 %v10237
        %v10239 = vpop.xlane.xlu0 %10238
        %v10240 = vadd.f32 %v10221, %v10222
        %10241 = vadd.xlane.f32.xlu0 %v10240
        %v10242 = vpop.xlane.xlu0 %10241
        %v10243 = vadd.f32 %v10223, %v10224
        %10244 = vadd.xlane.f32.xlu0 %v10243
        %v10245 = vpop.xlane.xlu0 %10244
        %v10246 = vadd.f32 %v10225, %v10226
        %10247 = vadd.xlane.f32.xlu0 %v10246
        %v10248 = vpop.xlane.xlu0 %10247
        %v10249 = vadd.f32 %v10227, %v10228
        %10250 = vadd.xlane.f32.xlu0 %v10249
        %v10251 = vpop.xlane.xlu0 %10250
        %v10252 = vadd.f32 %v10229, %v10230
        %10253 = vadd.xlane.f32.xlu0 %v10252
        %v10254 = vpop.xlane.xlu0 %10253
        %v10255 = vmul.f32 %v10233, %v2998
        %v10256 = vmul.f32 %v10236, %v2998
        %v10257 = vmul.f32 %v10239, %v2998
        %v10258 = vmul.f32 %v10242, %v2998
        %v10259 = vmul.f32 %v10245, %v2998
        %v10260 = vmul.f32 %v10248, %v2998
        %v10261 = vmul.f32 %v10251, %v2998
        %v10262 = vmul.f32 %v10254, %v2998
        %v10263 = vmul.f32 %v10207, %v10207
        %v10264 = vmul.f32 %v10208, %v10208
        %v10265 = vmul.f32 %v10209, %v10209
        %v10266 = vmul.f32 %v10210, %v10210
        %v10267 = vmul.f32 %v10211, %v10211
        %v10268 = vmul.f32 %v10212, %v10212
        %v10269 = vmul.f32 %v10213, %v10213
        %v10270 = vmul.f32 %v10214, %v10214
        %v10271 = vsub.f32 %v10255, %v10263
        %v10272 = vsub.f32 %v10256, %v10264
        %v10273 = vsub.f32 %v10257, %v10265
        %v10274 = vsub.f32 %v10258, %v10266
        %v10275 = vsub.f32 %v10259, %v10267
        %v10276 = vsub.f32 %v10260, %v10268
        %v10277 = vsub.f32 %v10261, %v10269
        %v10278 = vsub.f32 %v10262, %v10270
        %v10279 = vmax.f32 %v10271, 0.0
        %v10280 = vmax.f32 %v10272, 0.0
        %v10281 = vmax.f32 %v10273, 0.0
        %v10282 = vmax.f32 %v10274, 0.0
        %v10283 = vmax.f32 %v10275, 0.0
        %v10284 = vmax.f32 %v10276, 0.0
        %v10285 = vmax.f32 %v10277, 0.0
        %v10286 = vmax.f32 %v10278, 0.0
        %v10287 = vsub.f32 %v10145, %v10207
        %v10288 = vsub.f32 %v10147, %v10207
        %v10289 = vsub.f32 %v10149, %v10208
        %v10290 = vsub.f32 %v10151, %v10208
        %v10291 = vsub.f32 %v10155, %v10209
        %v10292 = vsub.f32 %v10157, %v10209
        %v10293 = vsub.f32 %v10159, %v10210
        %v10294 = vsub.f32 %v10161, %v10210
        %v10295 = vsub.f32 %v10165, %v10211
        %v10296 = vsub.f32 %v10167, %v10211
        %v10297 = vsub.f32 %v10169, %v10212
        %v10298 = vsub.f32 %v10171, %v10212
        %v10299 = vsub.f32 %v10175, %v10213
        %v10300 = vsub.f32 %v10177, %v10213
        %v10301 = vsub.f32 %v10179, %v10214
        %v10302 = vsub.f32 %v10181, %v10214
        %v10303 = vadd.f32 %v10279, 1e-05
        %v10304 = vadd.f32 %v10280, 1e-05
        %v10305 = vadd.f32 %v10281, 1e-05
        %v10306 = vadd.f32 %v10282, 1e-05
        %v10307 = vadd.f32 %v10283, 1e-05
        %v10308 = vadd.f32 %v10284, 1e-05
        %v10309 = vadd.f32 %v10285, 1e-05
        %v10310 = vadd.f32 %v10286, 1e-05
        %v10311 = vrsqrt.pop %v10303
        %v10312 = vrsqrt.pop %v10304
        %v10313 = vrsqrt.pop %v10305
        %v10314 = vrsqrt.pop %v10306
        %v10315 = vrsqrt.pop %v10307
        %v10316 = vrsqrt.pop %v10308
        %v10317 = vrsqrt.pop %v10309
        %v10318 = vrsqrt.pop %v10310
        %v10319 = vmul.f32 %v10287, %v10311
        %v10320 = vmul.f32 %v10288, %v10311
        %v10321 = vmul.f32 %v10289, %v10312
        %v10322 = vmul.f32 %v10290, %v10312
        %v10323 = vmul.f32 %v10291, %v10313
        %v10324 = vmul.f32 %v10292, %v10313
        %v10325 = vmul.f32 %v10293, %v10314
        %v10326 = vmul.f32 %v10294, %v10314
        %v10327 = vmul.f32 %v10295, %v10315
        %v10328 = vmul.f32 %v10296, %v10315
        %v10329 = vmul.f32 %v10297, %v10316
        %v10330 = vmul.f32 %v10298, %v10316
        %v10331 = vmul.f32 %v10299, %v10317
        %v10332 = vmul.f32 %v10300, %v10317
        %v10333 = vmul.f32 %v10301, %v10318
        %v10334 = vmul.f32 %v10302, %v10318
        %s10335 = scalar_lea.vmem %s17, 37
        %v10336 = vld [vmem:[%s10335] ss:$8 sm:$0x3]
        %v10338 = vlaneseq
        %v10339 = vshrl.u32 %v10338, 7
        %v10340 = vsub.s32 0, %v10339
        %v10341 = vrot.slane %v10336, %v10340
        %v10342 = vlaneseq
        %v10343 = vshrl.u32 %v10342, 7
        %v10344 = vsub.s32 1, %v10343
        %v10345 = vrot.slane %v10336, %v10344
        %v10348 = vmul.f32 %v10319, %v10341
        %v10349 = vmul.f32 %v10320, %v10345
        %v10350 = vmul.f32 %v10321, %v10341
        %v10351 = vmul.f32 %v10322, %v10345
        %v10352 = vmul.f32 %v10323, %v10341
        %v10353 = vmul.f32 %v10324, %v10345
        %v10354 = vmul.f32 %v10325, %v10341
        %v10355 = vmul.f32 %v10326, %v10345
        %v10356 = vmul.f32 %v10327, %v10341
        %v10357 = vmul.f32 %v10328, %v10345
        %v10358 = vmul.f32 %v10329, %v10341
        %v10359 = vmul.f32 %v10330, %v10345
        %v10360 = vmul.f32 %v10331, %v10341
        %v10361 = vmul.f32 %v10332, %v10345
        %v10362 = vmul.f32 %v10333, %v10341
        %v10363 = vmul.f32 %v10334, %v10345
        %s10364 = scalar_lea.vmem %s17, 38
        %v10365 = vld [vmem:[%s10364] ss:$8 sm:$0x3]
        %v10367 = vlaneseq
        %v10368 = vshrl.u32 %v10367, 7
        %v10369 = vsub.s32 0, %v10368
        %v10370 = vrot.slane %v10365, %v10369
        %v10371 = vlaneseq
        %v10372 = vshrl.u32 %v10371, 7
        %v10373 = vsub.s32 1, %v10372
        %v10374 = vrot.slane %v10365, %v10373
        %v10377 = vadd.f32 %v10348, %v10370
        %v10378 = vadd.f32 %v10349, %v10374
        %v10379 = vadd.f32 %v10350, %v10370
        %v10380 = vadd.f32 %v10351, %v10374
        %v10381 = vadd.f32 %v10352, %v10370
        %v10382 = vadd.f32 %v10353, %v10374
        %v10383 = vadd.f32 %v10354, %v10370
        %v10384 = vadd.f32 %v10355, %v10374
        %v10385 = vadd.f32 %v10356, %v10370
        %v10386 = vadd.f32 %v10357, %v10374
        %v10387 = vadd.f32 %v10358, %v10370
        %v10388 = vadd.f32 %v10359, %v10374
        %v10389 = vadd.f32 %v10360, %v10370
        %v10390 = vadd.f32 %v10361, %v10374
        %v10391 = vadd.f32 %v10362, %v10370
        %v10392 = vadd.f32 %v10363, %v10374
        %v10393 = vmax.f32 %v10377, 0.0
        %v10394 = vmax.f32 %v10378, 0.0
        %v10395 = vmax.f32 %v10379, 0.0
        %v10396 = vmax.f32 %v10380, 0.0
        %v10397 = vmax.f32 %v10381, 0.0
        %v10398 = vmax.f32 %v10382, 0.0
        %v10399 = vmax.f32 %v10383, 0.0
        %v10400 = vmax.f32 %v10384, 0.0
        %v10401 = vmax.f32 %v10385, 0.0
        %v10402 = vmax.f32 %v10386, 0.0
        %v10403 = vmax.f32 %v10387, 0.0
        %v10404 = vmax.f32 %v10388, 0.0
        %v10405 = vmax.f32 %v10389, 0.0
        %v10406 = vmax.f32 %v10390, 0.0
        %v10407 = vmax.f32 %v10391, 0.0
        %v10408 = vmax.f32 %v10392, 0.0
        %v10409 = vld [vmem:[%s16] sm:$0xff]
        %v10410 = vld [vmem:[%s16 + $0x8] sm:$0xff]
        %v10411 = vld [vmem:[%s16 + $0x10] sm:$0xff]
        %v10412 = vld [vmem:[%s16 + $0x18] sm:$0xff]
        %v10413 = vld [vmem:[%s16 + $0x20] sm:$0xff]
        %v10414 = vld [vmem:[%s16 + $0x28] sm:$0xff]
        %v10415 = vld [vmem:[%s16 + $0x30] sm:$0xff]
        %v10416 = vld [vmem:[%s16 + $0x38] sm:$0xff]
        %v10417 = vld [vmem:[%s16 + $0x40] sm:$0xff]
        %v10418 = vld [vmem:[%s16 + $0x48] sm:$0xff]
        %v10419 = vld [vmem:[%s16 + $0x50] sm:$0xff]
        %v10420 = vld [vmem:[%s16 + $0x58] sm:$0xff]
        %v10421 = vld [vmem:[%s16 + $0x60] sm:$0xff]
        %v10422 = vld [vmem:[%s16 + $0x68] sm:$0xff]
        %v10423 = vld [vmem:[%s16 + $0x70] sm:$0xff]
        %v10424 = vld [vmem:[%s16 + $0x78] sm:$0xff]
        %v10425 = vld [vmem:[%s16 + $0x80] sm:$0xff]
        %v10426 = vld [vmem:[%s16 + $0x88] sm:$0xff]
        %v10427 = vld [vmem:[%s16 + $0x90] sm:$0xff]
        %v10428 = vld [vmem:[%s16 + $0x98] sm:$0xff]
        %v10429 = vld [vmem:[%s16 + $0xa0] sm:$0xff]
        %v10430 = vld [vmem:[%s16 + $0xa8] sm:$0xff]
        %v10431 = vld [vmem:[%s16 + $0xb0] sm:$0xff]
        %v10432 = vld [vmem:[%s16 + $0xb8] sm:$0xff]
        %v10433 = vld [vmem:[%s16 + $0xc0] sm:$0xff]
        %v10434 = vld [vmem:[%s16 + $0xc8] sm:$0xff]
        %v10435 = vld [vmem:[%s16 + $0xd0] sm:$0xff]
        %v10436 = vld [vmem:[%s16 + $0xd8] sm:$0xff]
        %v10437 = vld [vmem:[%s16 + $0xe0] sm:$0xff]
        %v10438 = vld [vmem:[%s16 + $0xe8] sm:$0xff]
        %v10439 = vld [vmem:[%s16 + $0xf0] sm:$0xff]
        %v10440 = vld [vmem:[%s16 + $0xf8] sm:$0xff]
        %v10441 = vpack.c.bf16 %v10395, %v10393
        %v10442 = vpack.c.bf16 %v10396, %v10394
        %v10443 = vpack.c.bf16 %v10399, %v10397
        %v10444 = vpack.c.bf16 %v10400, %v10398
        %v10445 = vpack.c.bf16 %v10403, %v10401
        %v10446 = vpack.c.bf16 %v10404, %v10402
        %v10447 = vpack.c.bf16 %v10407, %v10405
        %v10448 = vpack.c.bf16 %v10408, %v10406
        %s10449 = scalar_lea.vmem %s17, 23
        %v10450 = vld [vmem:[%s10449] ss:$8 sm:$0x3]
        %v10452 = vlaneseq
        %v10453 = vshrl.u32 %v10452, 7
        %v10454 = vsub.s32 0, %v10453
        %v10455 = vrot.slane %v10450, %v10454
        %v10456 = vlaneseq
        %v10457 = vshrl.u32 %v10456, 7
        %v10458 = vsub.s32 1, %v10457
        %v10459 = vrot.slane %v10450, %v10458
        %v10494 = vunpack.c.l.b16 %v10409
        %v10495 = vunpack.c.h.b16 %v10409
        %v10496 = vunpack.c.l.b16 %v10410
        %v10497 = vunpack.c.h.b16 %v10410
        %v10498 = vunpack.c.l.b16 %v10411
        %v10499 = vunpack.c.h.b16 %v10411
        %v10500 = vunpack.c.l.b16 %v10412
        %v10501 = vunpack.c.h.b16 %v10412
        %v10502 = vunpack.c.l.b16 %v10413
        %v10503 = vunpack.c.h.b16 %v10413
        %v10504 = vunpack.c.l.b16 %v10414
        %v10505 = vunpack.c.h.b16 %v10414
        %v10506 = vunpack.c.l.b16 %v10415
        %v10507 = vunpack.c.h.b16 %v10415
        %v10508 = vunpack.c.l.b16 %v10416
        %v10509 = vunpack.c.h.b16 %v10416
        %v10510 = vunpack.c.l.b16 %v10417
        %v10511 = vunpack.c.h.b16 %v10417
        %v10512 = vunpack.c.l.b16 %v10418
        %v10513 = vunpack.c.h.b16 %v10418
        %v10514 = vunpack.c.l.b16 %v10419
        %v10515 = vunpack.c.h.b16 %v10419
        %v10516 = vunpack.c.l.b16 %v10420
        %v10517 = vunpack.c.h.b16 %v10420
        %v10518 = vunpack.c.l.b16 %v10421
        %v10519 = vunpack.c.h.b16 %v10421
        %v10520 = vunpack.c.l.b16 %v10422
        %v10521 = vunpack.c.h.b16 %v10422
        %v10522 = vunpack.c.l.b16 %v10423
        %v10523 = vunpack.c.h.b16 %v10423
        %v10524 = vunpack.c.l.b16 %v10424
        %v10525 = vunpack.c.h.b16 %v10424
        %v10526 = vunpack.c.l.b16 %v10425
        %v10527 = vunpack.c.h.b16 %v10425
        %v10528 = vunpack.c.l.b16 %v10426
        %v10529 = vunpack.c.h.b16 %v10426
        %v10530 = vunpack.c.l.b16 %v10427
        %v10531 = vunpack.c.h.b16 %v10427
        %v10532 = vunpack.c.l.b16 %v10428
        %v10533 = vunpack.c.h.b16 %v10428
        %v10534 = vunpack.c.l.b16 %v10429
        %v10535 = vunpack.c.h.b16 %v10429
        %v10536 = vunpack.c.l.b16 %v10430
        %v10537 = vunpack.c.h.b16 %v10430
        %v10538 = vunpack.c.l.b16 %v10431
        %v10539 = vunpack.c.h.b16 %v10431
        %v10540 = vunpack.c.l.b16 %v10432
        %v10541 = vunpack.c.h.b16 %v10432
        %v10542 = vunpack.c.l.b16 %v10433
        %v10543 = vunpack.c.h.b16 %v10433
        %v10544 = vunpack.c.l.b16 %v10434
        %v10545 = vunpack.c.h.b16 %v10434
        %v10546 = vunpack.c.l.b16 %v10435
        %v10547 = vunpack.c.h.b16 %v10435
        %v10548 = vunpack.c.l.b16 %v10436
        %v10549 = vunpack.c.h.b16 %v10436
        %v10550 = vunpack.c.l.b16 %v10437
        %v10551 = vunpack.c.h.b16 %v10437
        %v10552 = vunpack.c.l.b16 %v10438
        %v10553 = vunpack.c.h.b16 %v10438
        %v10554 = vunpack.c.l.b16 %v10439
        %v10555 = vunpack.c.h.b16 %v10439
        %v10556 = vunpack.c.l.b16 %v10440
        %v10557 = vunpack.c.h.b16 %v10440
        %v10558 = vpack.c.b16 %v10496, %v10494
        %v10559 = vpack.c.b16 %v10497, %v10495
        %v10560 = vpack.c.b16 %v10500, %v10498
        %v10561 = vpack.c.b16 %v10501, %v10499
        %v10562 = vpack.c.b16 %v10504, %v10502
        %v10563 = vpack.c.b16 %v10505, %v10503
        %v10564 = vpack.c.b16 %v10508, %v10506
        %v10565 = vpack.c.b16 %v10509, %v10507
        %v10566 = vpack.c.b16 %v10512, %v10510
        %v10567 = vpack.c.b16 %v10513, %v10511
        %v10568 = vpack.c.b16 %v10516, %v10514
        %v10569 = vpack.c.b16 %v10517, %v10515
        %v10570 = vpack.c.b16 %v10520, %v10518
        %v10571 = vpack.c.b16 %v10521, %v10519
        %v10572 = vpack.c.b16 %v10524, %v10522
        %v10573 = vpack.c.b16 %v10525, %v10523
        %v10574 = vpack.c.b16 %v10528, %v10526
        %v10575 = vpack.c.b16 %v10529, %v10527
        %v10576 = vpack.c.b16 %v10532, %v10530
        %v10577 = vpack.c.b16 %v10533, %v10531
        %v10578 = vpack.c.b16 %v10536, %v10534
        %v10579 = vpack.c.b16 %v10537, %v10535
        %v10580 = vpack.c.b16 %v10540, %v10538
        %v10581 = vpack.c.b16 %v10541, %v10539
        %v10582 = vpack.c.b16 %v10544, %v10542
        %v10583 = vpack.c.b16 %v10545, %v10543
        %v10584 = vpack.c.b16 %v10548, %v10546
        %v10585 = vpack.c.b16 %v10549, %v10547
        %v10586 = vpack.c.b16 %v10552, %v10550
        %v10587 = vpack.c.b16 %v10553, %v10551
        %v10588 = vpack.c.b16 %v10556, %v10554
        %v10589 = vpack.c.b16 %v10557, %v10555
        %10622 = vmatprep.subr.bf16.mxu0 %v10573
        %10623 = vmatpush1.bf16.msra.mxu0 %v10572
        %10624 = vmatprep.subr.bf16.mxu0 %v10571
        %10625 = vmatpush1.bf16.msra.mxu0 %v10570
        %10626 = vmatprep.subr.bf16.mxu0 %v10569
        %10627 = vmatpush1.bf16.msra.mxu0 %v10568
        %10628 = vmatprep.subr.bf16.mxu0 %v10567
        %10629 = vmatpush1.bf16.msra.mxu0 %v10566
        %10630 = vmatprep.subr.bf16.mxu0 %v10565
        %10631 = vmatpush1.bf16.msra.mxu0 %v10564
        %10632 = vmatprep.subr.bf16.mxu0 %v10563
        %10633 = vmatpush1.bf16.msra.mxu0 %v10562
        %10634 = vmatprep.subr.bf16.mxu0 %v10561
        %10635 = vmatpush1.bf16.msra.mxu0 %v10560
        %10636 = vmatprep.subr.bf16.mxu0 %v10559
        %10637 = vmatpush1.bf16.msra.mxu0 %v10558
        %10638 = vmatprep.subr.bf16.mxu0 %v10589
        %10639 = vmatpush2.bf16.msra.mxu0 %v10588
        %10640 = vmatprep.subr.bf16.mxu0 %v10587
        %10641 = vmatpush2.bf16.msra.mxu0 %v10586
        %10642 = vmatprep.subr.bf16.mxu0 %v10585
        %10643 = vmatpush2.bf16.msra.mxu0 %v10584
        %10644 = vmatprep.subr.bf16.mxu0 %v10583
        %10645 = vmatpush2.bf16.msra.mxu0 %v10582
        %10646 = vmatprep.subr.bf16.mxu0 %v10581
        %10647 = vmatpush2.bf16.msra.mxu0 %v10580
        %10648 = vmatprep.subr.bf16.mxu0 %v10579
        %10649 = vmatpush2.bf16.msra.mxu0 %v10578
        %10650 = vmatprep.subr.bf16.mxu0 %v10577
        %10651 = vmatpush2.bf16.msra.mxu0 %v10576
        %10652 = vmatprep.subr.bf16.mxu0 %v10575
        %10653 = vmatpush2.bf16.msra.mxu0 %v10574
        %10654 = vmatprep.mubr.bf16.mxu0 %v10442
        %10655 = vmatmul.mubr.bf16.gmra.mxu0 %v10441
        %v10656 = vpop.f32.mrf.mxu0
        %v10657 = vadd.f32 %v10455, %v10656
        %v10658 = vpop.f32.mrf.mxu0
        %v10659 = vadd.f32 %v10459, %v10658
        %v10660 = vpop.f32.mrf.mxu0
        %v10661 = vadd.f32 %v10455, %v10660
        %v10662 = vpop.f32.mrf.mxu0
        %v10663 = vadd.f32 %v10459, %v10662
        %10664 = vmatprep.mubr.bf16.mxu0 %v10444
        %10665 = vmatmul.mubr.bf16.gmra.mxu0 %v10443
        %v10666 = vpop.f32.mrf.mxu0
        %v10667 = vadd.f32 %v10455, %v10666
        %v10668 = vpop.f32.mrf.mxu0
        %v10669 = vadd.f32 %v10459, %v10668
        %v10670 = vpop.f32.mrf.mxu0
        %v10671 = vadd.f32 %v10455, %v10670
        %v10672 = vpop.f32.mrf.mxu0
        %v10673 = vadd.f32 %v10459, %v10672
        %10674 = vmatprep.mubr.bf16.mxu0 %v10446
        %10675 = vmatmul.mubr.bf16.gmra.mxu0 %v10445
        %v10676 = vpop.f32.mrf.mxu0
        %v10677 = vadd.f32 %v10455, %v10676
        %v10678 = vpop.f32.mrf.mxu0
        %v10679 = vadd.f32 %v10459, %v10678
        %v10680 = vpop.f32.mrf.mxu0
        %v10681 = vadd.f32 %v10455, %v10680
        %v10682 = vpop.f32.mrf.mxu0
        %v10683 = vadd.f32 %v10459, %v10682
        %10684 = vmatprep.mubr.bf16.mxu0 %v10448
        %10685 = vmatmul.mubr.bf16.gmra.mxu0 %v10447
        %v10686 = vpop.f32.mrf.mxu0
        %v10687 = vadd.f32 %v10455, %v10686
        %v10688 = vpop.f32.mrf.mxu0
        %v10689 = vadd.f32 %v10459, %v10688
        %v10690 = vpop.f32.mrf.mxu0
        %v10691 = vadd.f32 %v10455, %v10690
        %v10692 = vpop.f32.mrf.mxu0
        %v10693 = vadd.f32 %v10459, %v10692
        %10694 = vdwg.mxu0
        %10695 = vst [vmem:[%s648] sm:$0xff] %v10657
        %10696 = vst [vmem:[%s648 + $0x8] sm:$0xff] %v10659
        %10697 = vst [vmem:[%s648 + $0x10] sm:$0xff] %v10661
        %10698 = vst [vmem:[%s648 + $0x18] sm:$0xff] %v10663
        %10699 = vst [vmem:[%s648 + $0x20] sm:$0xff] %v10667
        %10700 = vst [vmem:[%s648 + $0x28] sm:$0xff] %v10669
        %10701 = vst [vmem:[%s648 + $0x30] sm:$0xff] %v10671
        %10702 = vst [vmem:[%s648 + $0x38] sm:$0xff] %v10673
        %10703 = vst [vmem:[%s648 + $0x40] sm:$0xff] %v10677
        %10704 = vst [vmem:[%s648 + $0x48] sm:$0xff] %v10679
        %10705 = vst [vmem:[%s648 + $0x50] sm:$0xff] %v10681
        %10706 = vst [vmem:[%s648 + $0x58] sm:$0xff] %v10683
        %10707 = vst [vmem:[%s648 + $0x60] sm:$0xff] %v10687
        %10708 = vst [vmem:[%s648 + $0x68] sm:$0xff] %v10689
        %10709 = vst [vmem:[%s648 + $0x70] sm:$0xff] %v10691
        %10710 = vst [vmem:[%s648 + $0x78] sm:$0xff] %v10693
        %v10711 = vpack.c.bf16 %v10661, %v10657
        %v10712 = vpack.c.bf16 %v10663, %v10659
        %v10713 = vpack.c.bf16 %v10671, %v10667
        %v10714 = vpack.c.bf16 %v10673, %v10669
        %v10715 = vpack.c.bf16 %v10681, %v10677
        %v10716 = vpack.c.bf16 %v10683, %v10679
        %v10717 = vpack.c.bf16 %v10691, %v10687
        %v10718 = vpack.c.bf16 %v10693, %v10689
        %10719 = vmatprep.subr.bf16.mxu0 %v2132
        %10720 = vmatpush1.bf16.xpose.msra.mxu0 %v2131
        %10721 = vmatprep.subr.bf16.mxu0 %v2130
        %10722 = vmatpush1.bf16.xpose.msra.mxu0 %v2129
        %10723 = vmatprep.subr.bf16.mxu0 %v2128
        %10724 = vmatpush1.bf16.xpose.msra.mxu0 %v2127
        %10725 = vmatprep.subr.bf16.mxu0 %v2126
        %10726 = vmatpush1.bf16.xpose.msra.mxu0 %v2125
        %10727 = vmatprep.subr.bf16.mxu0 %v2124
        %10728 = vmatpush1.bf16.xpose.msra.mxu0 %v2123
        %10729 = vmatprep.subr.bf16.mxu0 %v2122
        %10730 = vmatpush1.bf16.xpose.msra.mxu0 %v2121
        %10731 = vmatprep.subr.bf16.mxu0 %v2120
        %10732 = vmatpush1.bf16.xpose.msra.mxu0 %v2119
        %10733 = vmatprep.subr.bf16.mxu0 %v2118
        %10734 = vmatpush1.bf16.xpose.msra.mxu0 %v2117
        %10735 = vmatprep.subr.bf16.mxu0 %v2148
        %10736 = vmatpush2.bf16.xpose.msra.mxu0 %v2147
        %10737 = vmatprep.subr.bf16.mxu0 %v2146
        %10738 = vmatpush2.bf16.xpose.msra.mxu0 %v2145
        %10739 = vmatprep.subr.bf16.mxu0 %v2144
        %10740 = vmatpush2.bf16.xpose.msra.mxu0 %v2143
        %10741 = vmatprep.subr.bf16.mxu0 %v2142
        %10742 = vmatpush2.bf16.xpose.msra.mxu0 %v2141
        %10743 = vmatprep.subr.bf16.mxu0 %v2140
        %10744 = vmatpush2.bf16.xpose.msra.mxu0 %v2139
        %10745 = vmatprep.subr.bf16.mxu0 %v2138
        %10746 = vmatpush2.bf16.xpose.msra.mxu0 %v2137
        %10747 = vmatprep.subr.bf16.mxu0 %v2136
        %10748 = vmatpush2.bf16.xpose.msra.mxu0 %v2135
        %10749 = vmatprep.subr.bf16.mxu0 %v2134
        %10750 = vmatpush2.bf16.xpose.msra.mxu0 %v2133
        %10751 = vmatprep.mubr.bf16.mxu0 %v10712
        %10752 = vmatmul.mubr.bf16.gmra.mxu0 %v10711
        %v10753 = vpop.f32.mrf.mxu0
        %v10754 = vadd.f32 0.0, %v10753
        %v10755 = vpop.f32.mrf.mxu0
        %v10756 = vadd.f32 0.0, %v10755
        %v10757 = vpop.f32.mrf.mxu0
        %v10758 = vadd.f32 0.0, %v10757
        %v10759 = vpop.f32.mrf.mxu0
        %v10760 = vadd.f32 0.0, %v10759
        %10761 = vmatprep.mubr.bf16.mxu0 %v10714
        %10762 = vmatmul.mubr.bf16.gmra.mxu0 %v10713
        %v10763 = vpop.f32.mrf.mxu0
        %v10764 = vadd.f32 0.0, %v10763
        %v10765 = vpop.f32.mrf.mxu0
        %v10766 = vadd.f32 0.0, %v10765
        %v10767 = vpop.f32.mrf.mxu0
        %v10768 = vadd.f32 0.0, %v10767
        %v10769 = vpop.f32.mrf.mxu0
        %v10770 = vadd.f32 0.0, %v10769
        %10771 = vmatprep.mubr.bf16.mxu0 %v10716
        %10772 = vmatmul.mubr.bf16.gmra.mxu0 %v10715
        %v10773 = vpop.f32.mrf.mxu0
        %v10774 = vadd.f32 0.0, %v10773
        %v10775 = vpop.f32.mrf.mxu0
        %v10776 = vadd.f32 0.0, %v10775
        %v10777 = vpop.f32.mrf.mxu0
        %v10778 = vadd.f32 0.0, %v10777
        %v10779 = vpop.f32.mrf.mxu0
        %v10780 = vadd.f32 0.0, %v10779
        %10781 = vmatprep.mubr.bf16.mxu0 %v10718
        %10782 = vmatmul.mubr.bf16.gmra.mxu0 %v10717
        %v10783 = vpop.f32.mrf.mxu0
        %v10784 = vadd.f32 0.0, %v10783
        %v10785 = vpop.f32.mrf.mxu0
        %v10786 = vadd.f32 0.0, %v10785
        %v10787 = vpop.f32.mrf.mxu0
        %v10788 = vadd.f32 0.0, %v10787
        %v10789 = vpop.f32.mrf.mxu0
        %v10790 = vadd.f32 0.0, %v10789
        %10791 = vdwg.mxu0
        %10792 = vst [vmem:[%s673] sm:$0xff] %v10754
        %10793 = vst [vmem:[%s673 + $0x8] sm:$0xff] %v10756
        %10794 = vst [vmem:[%s673 + $0x10] sm:$0xff] %v10758
        %10795 = vst [vmem:[%s673 + $0x18] sm:$0xff] %v10760
        %10796 = vst [vmem:[%s673 + $0x20] sm:$0xff] %v10764
        %10797 = vst [vmem:[%s673 + $0x28] sm:$0xff] %v10766
        %10798 = vst [vmem:[%s673 + $0x30] sm:$0xff] %v10768
        %10799 = vst [vmem:[%s673 + $0x38] sm:$0xff] %v10770
        %10800 = vst [vmem:[%s673 + $0x40] sm:$0xff] %v10774
        %10801 = vst [vmem:[%s673 + $0x48] sm:$0xff] %v10776
        %10802 = vst [vmem:[%s673 + $0x50] sm:$0xff] %v10778
        %10803 = vst [vmem:[%s673 + $0x58] sm:$0xff] %v10780
        %10804 = vst [vmem:[%s673 + $0x60] sm:$0xff] %v10784
        %10805 = vst [vmem:[%s673 + $0x68] sm:$0xff] %v10786
        %10806 = vst [vmem:[%s673 + $0x70] sm:$0xff] %v10788
        %10807 = vst [vmem:[%s673 + $0x78] sm:$0xff] %v10790
        %p10808 = scmp.lt.s32.totalorder %s34, 1
        %s10809 = scalar_select %p10808, %s34, 1
        %s10810 = smul.addr %s10809, 16
        %s10811 = smul.addr %s10810, 8
        %s10812 = scalar_lea.vmem %s18, %s10811
        %s10813 = sand.u32 %s466, 1
        %s10814 = scalar_lea.sflag [#allocation3], %s10813
        %s10815 = sand.u32 %s466, 1
        %s10816 = smul.addr %s10815, 128
        %s10817 = scalar_lea.vmem [#allocation2], %s10816
        // Predicated region
        $region93: #{kernel_update_head_forward.1} parent=91 // pred_check
          %p10818 = pneg %p450
        $region94: #{kernel_update_head_forward.1} parent=91 // pred_check_branch
          %10820 = sbr.rel (%p10818) target = $region96
        $region95: #{kernel_update_head_forward.1} parent=91 // pred_region
          _
        $region96: #{kernel_update_head_forward.1} parent=91 // pred_fallthru
          _
        // Predicated region
        $region97: #{kernel_update_head_forward.1} parent=91 // pred_check
          %p10821 = pneg %p476
        $region98: #{kernel_update_head_forward.1} parent=91 // pred_check_branch
          %10823 = sbr.rel (%p10821) target = $region100
        $region99: #{kernel_update_head_forward.1} parent=91 // pred_region
          %s10825 = ssub.s32 2048, 2048
          %10826 = vsyncadd %s10814, %s10825
          %s10827 = smul.addr %s34, 16
          %s10828 = smul.addr %s10827, 128
          %s10829 = scalar_lea.hbm %s19, %s10828
          %s10830 = sshll.u32 %s10817, 4
          %s10831 = int_to_ptr.vmem [resolvable:$true] %s10830
          %10836 = dma.vmem_to_hbm [thread:$0]  %s10831, 2048, %s10829, %s10814, 256, 256, 16
        $region100: #{kernel_update_head_forward.1} parent=91 // pred_fallthru
          _
      $region92: #{kernel_update_head_forward.1} parent=5 // pred_fallthru
        _
      %p10837 = scmp.le.s32.totalorder 2, %s29
      // Predicated region
      $region101: #{kernel_update_head_forward.1} parent=5 // pred_check
        %p10838 = pneg %p10837
      $region102: #{kernel_update_head_forward.1} parent=5 // pred_check_branch
        %10840 = sbr.rel (%p10838) target = $region104
      $region103: #{kernel_update_head_forward.1} parent=5 // pred_region
        %s10841 = ssub.s32 %s29, 2
        // Predicated region
        $region105: #{kernel_update_head_forward.1} parent=103 // pred_check
          %p10842 = pneg %p456
        $region106: #{kernel_update_head_forward.1} parent=103 // pred_check_branch
          %10844 = sbr.rel (%p10842) target = $region108
        $region107: #{kernel_update_head_forward.1} parent=103 // pred_region
          %p10845 = scmp.lt.s32.totalorder %s35, 1
          %s10846 = scalar_select %p10845, %s35, 1
          %s10847 = smul.addr %s10846, 16
          %s10848 = smul.addr %s10847, 8
          %s10849 = scalar_lea.vmem %s18, %s10848
        $region108: #{kernel_update_head_forward.1} parent=103 // pred_fallthru
          _
        // Predicated region
        $region109: #{kernel_update_head_forward.1} parent=103 // pred_check
          %p10850 = pneg %p482
        $region110: #{kernel_update_head_forward.1} parent=103 // pred_check_branch
          %10852 = sbr.rel (%p10850) target = $region112
        $region111: #{kernel_update_head_forward.1} parent=103 // pred_region
          %s10853 = sand.u32 %s467, 1
          %s10854 = scalar_lea.sflag [#allocation3], %s10853
          %s10855 = sand.u32 %s467, 1
          %s10856 = smul.addr %s10855, 128
          %s10857 = scalar_lea.vmem [#allocation2], %s10856
          %10858 = dma.done %s10854, 2048
        $region112: #{kernel_update_head_forward.1} parent=103 // pred_fallthru
          _
      $region104: #{kernel_update_head_forward.1} parent=5 // pred_fallthru
        _
    $region6: #{kernel_update_head_forward.1} parent=1 // loop_footer
      %s33 = sadd.s32 1, %s29
    $region7: #{kernel_update_head_forward.1} parent=1 // loop_footer_branch
      %28 = sbr.rel target = $region3
    $region8: #{kernel_update_head_forward.1} parent=1 // loop_exit
      _
    %10859 = vsyncpa [#allocation3], 1
    %s10860 = scalar_lea.sflag [#allocation3], 1
    %10861 = vsyncpa %s10860, 1

</llo_original>
